<compile_context>
chip_gen: v5e
topology: v5e:2x2
jax: 0.10.0
libtpu: 0.0.40
codegen_flags: <defaults>
</compile_context>

<pallas_src>
import functools

import jax
import jax.numpy as jnp
from jax import lax
from jax.experimental import pallas as pl
from jax.experimental.pallas import tpu as pltpu


def _rup(v, m):
    return (v + m - 1) // m * m


_CONV1_CIN_PAD = 128  # lane-align conv1's 3 input channels


# ---------------------------------------------------------------------------
# Pallas kernels
# ---------------------------------------------------------------------------
def _conv3x3_kernel(x_ref, w_ref, b_ref, o_ref, *, act):
    """3x3 stride-1 'same' conv on one image, taps accumulated in-kernel.

    x_ref: (H+2, W+2, Cin) zero-padded image (bf16), resident in VMEM.
    w_ref: (9, Cin, Cout) taps (bf16).  b_ref: (1, Cout) f32.
    o_ref: (H, W, Cout).  Loops over output rows; each row accumulates the 9
    tap matmuls on the MXU in f32, then applies bias + activation.
    """
    H, W, cout = o_ref.shape
    bias = b_ref[...]  # (1, Cout) f32

    def row_body(h, carry):
        acc = jnp.zeros((W, cout), jnp.float32)
        for t in range(9):
            dy, dx = t // 3, t % 3
            xs = x_ref[h + dy, dx:dx + W, :]                     # (W, Cin) bf16
            acc = acc + jnp.dot(xs, w_ref[t],
                                preferred_element_type=jnp.float32)
        r = acc + bias
        if act == "relu":
            r = jnp.maximum(r, 0.0)
        o_ref[h] = r.astype(o_ref.dtype)
        return carry

    lax.fori_loop(0, H, row_body, 0)


def _maxpool2x2_kernel(x_ref, o_ref):
    """x_ref: (R, 2, Wo, 2*C), o_ref: (R, Wo, C) with R = B*Ho.

    Row-pair max via static index on axis 1, column-pair max via lane-aligned
    slices of the 2*C minor dim.  Single block, no strided views.
    """
    c = o_ref.shape[-1]
    x = x_ref[...]
    m = jnp.maximum(x[:, 0], x[:, 1])                    # max over the 2 rows
    o_ref[...] = jnp.maximum(m[..., :c], m[..., c:])     # max over the 2 cols


def _linear_kernel(x_ref, w_ref, b_ref, o_ref, *, act):
    """Single-K-tile matmul with fused bias + activation (no acc scratch)."""
    r = jnp.dot(x_ref[...], w_ref[...], preferred_element_type=jnp.float32)
    r = r + b_ref[...]
    if act == "relu":
        r = jnp.maximum(r, 0.0)
    o_ref[...] = r.astype(o_ref.dtype)


def _linear_acc_kernel(x_ref, w_ref, b_ref, o_ref, acc_ref, *, act):
    """K-tiled matmul: f32 accumulator in VMEM scratch, epilogue on last K step."""
    k = pl.program_id(1)

    @pl.when(k == 0)
    def _():
        acc_ref[...] = jnp.zeros_like(acc_ref)

    acc_ref[...] += jnp.dot(x_ref[...], w_ref[...],
                            preferred_element_type=jnp.float32)

    @pl.when(k == pl.num_programs(1) - 1)
    def _():
        r = acc_ref[...] + b_ref[...]
        if act == "relu":
            r = jnp.maximum(r, 0.0)
        o_ref[...] = r.astype(o_ref.dtype)


# ---------------------------------------------------------------------------
# Layer wrappers
# ---------------------------------------------------------------------------
def conv3x3(x_nhwc, w, b, act="relu"):
    """Conv2d(k=3, stride=1, padding=1) + activation.  NHWC in, NHWC out."""
    B, H, W, Cin = x_nhwc.shape
    Cout = w.shape[-1]
    xp = jnp.pad(x_nhwc, ((0, 0), (1, 1), (1, 1), (0, 0)))
    Hp, Wp = H + 2, W + 2
    return pl.pallas_call(
        functools.partial(_conv3x3_kernel, act=act),
        out_shape=jax.ShapeDtypeStruct((B, H, W, Cout), x_nhwc.dtype),
        grid=(B,),
        in_specs=[
            pl.BlockSpec((None, Hp, Wp, Cin), lambda bb: (bb, 0, 0, 0)),
            pl.BlockSpec((9, Cin, Cout), lambda bb: (0, 0, 0)),
            pl.BlockSpec((1, Cout), lambda bb: (0, 0)),
        ],
        out_specs=pl.BlockSpec((None, H, W, Cout), lambda bb: (bb, 0, 0, 0)),
        compiler_params=pltpu.CompilerParams(dimension_semantics=("parallel",)),
    )(xp, w, b)


def maxpool2x2(x_nhwc):
    """MaxPool2d(kernel=2, stride=2).  NHWC in, NHWC out."""
    B, H, W, C = x_nhwc.shape
    Ho, Wo = H // 2, W // 2
    # Contiguous regrouping (free reshape): (B,H,W,C) -> (B*Ho, 2, Wo, 2*C)
    xr = x_nhwc.reshape(B * Ho, 2, Wo, 2 * C)
    out = pl.pallas_call(
        _maxpool2x2_kernel,
        out_shape=jax.ShapeDtypeStruct((B * Ho, Wo, C), x_nhwc.dtype),
        grid=(1,),
        in_specs=[pl.BlockSpec((B * Ho, 2, Wo, 2 * C), lambda i: (0, 0, 0, 0))],
        out_specs=pl.BlockSpec((B * Ho, Wo, C), lambda i: (0, 0, 0)),
    )(xr)
    return out.reshape(B, Ho, Wo, C)


def linear(x, w, b, act="none", *, out_dtype=None, tk=2048, tn=512):
    """(M,K) @ (K,N) + b with fused activation; bf16 operands, f32 accumulation."""
    M, K = x.shape
    _, N = w.shape
    out_dtype = x.dtype if out_dtype is None else out_dtype

    Mp = _rup(max(M, 8), 8)
    Np = _rup(N, 128)
    Kp = _rup(K, 128)
    tn = min(tn, Np)
    if Np % tn:
        tn = Np
    tk = min(tk, Kp)
    if Kp % tk:
        Kp = _rup(Kp, tk)

    xp = x.astype(jnp.bfloat16)
    wp = w.astype(jnp.bfloat16)
    if (M, K) != (Mp, Kp):
        xp = jnp.pad(xp, ((0, Mp - M), (0, Kp - K)))
    if (K, N) != (Kp, Np):
        wp = jnp.pad(wp, ((0, Kp - K), (0, Np - N)))
    bp = b.astype(jnp.float32)
    if N != Np:
        bp = jnp.pad(bp, ((0, 0), (0, Np - N)))

    nj, nk = Np // tn, Kp // tk
    if nk == 1:
        # K fits in a single tile: no K grid axis, no acc scratch.
        out = pl.pallas_call(
            functools.partial(_linear_kernel, act=act),
            out_shape=jax.ShapeDtypeStruct((Mp, Np), out_dtype),
            grid=(nj,),
            in_specs=[
                pl.BlockSpec((Mp, Kp), lambda j: (0, 0)),
                pl.BlockSpec((Kp, tn), lambda j: (0, j)),
                pl.BlockSpec((1, tn), lambda j: (0, j)),
            ],
            out_specs=pl.BlockSpec((Mp, tn), lambda j: (0, j)),
            compiler_params=pltpu.CompilerParams(
                dimension_semantics=("parallel",)),
        )(xp, wp, bp)
    else:
        out = pl.pallas_call(
            functools.partial(_linear_acc_kernel, act=act),
            out_shape=jax.ShapeDtypeStruct((Mp, Np), out_dtype),
            grid=(nj, nk),
            in_specs=[
                pl.BlockSpec((Mp, tk), lambda j, k: (0, k)),
                pl.BlockSpec((tk, tn), lambda j, k: (k, j)),
                pl.BlockSpec((1, tn), lambda j, k: (0, j)),
            ],
            out_specs=pl.BlockSpec((Mp, tn), lambda j, k: (0, j)),
            scratch_shapes=[pltpu.VMEM((Mp, tn), jnp.float32)],
            compiler_params=pltpu.CompilerParams(
                dimension_semantics=("parallel", "arbitrary")),
        )(xp, wp, bp)
    return out[:M, :N]


# ---------------------------------------------------------------------------
# Model: parameters + forward
# ---------------------------------------------------------------------------
def init_params(key, num_classes=10):
    """Deterministic synthetic init (stand-in for trained PyTorch weights).

    Conv weights are stored tap-major (9, Cin, Cout) in bf16; a real PyTorch
    checkpoint (Cout, Cin, kh, kw) would be converted with
    w.transpose(2, 3, 1, 0).reshape(9, Cin, Cout).  Linear weights are stored
    (in, out), i.e. the transpose of PyTorch's (out, in).  Biases stay f32.
    """
    def conv_init(k, cin, cout, cin_pad=None):
        kw, kb = jax.random.split(k)
        w = jax.random.normal(kw, (3, 3, cin, cout), jnp.float32) * (9 * cin) ** -0.5
        b = jax.random.normal(kb, (1, cout), jnp.float32) * 0.01
        if cin_pad is not None and cin_pad > cin:
            w = jnp.pad(w, ((0, 0), (0, 0), (0, cin_pad - cin), (0, 0)))
        return w.reshape(9, w.shape[2], cout).astype(jnp.bfloat16), b

    def fc_init(k, fin, fout):
        kw, kb = jax.random.split(k)
        w = jax.random.normal(kw, (fin, fout), jnp.float32) * fin ** -0.5
        b = jax.random.normal(kb, (1, fout), jnp.float32) * 0.01
        return w.astype(jnp.bfloat16), b

    k1, k2, k3, k4, k5 = jax.random.split(key, 5)
    return {
        "conv1": conv_init(k1, 3, 64, cin_pad=_CONV1_CIN_PAD),
        "conv2": conv_init(k2, 64, 128),
        "conv3": conv_init(k3, 128, 256),
        "fc1": fc_init(k4, 256 * 8 * 8, 512),
        "fc2": fc_init(k5, 512, num_classes),
    }


def forward(params, x_nchw):
    B = x_nchw.shape[0]
    x = jnp.transpose(x_nchw, (0, 2, 3, 1)).astype(jnp.bfloat16)   # NCHW -> NHWC
    # Zero-pad conv1's 3 input channels to a lane-dense width (weights are
    # zero-padded to match at init, so the result is identical).
    x = jnp.pad(x, ((0, 0), (0, 0), (0, 0), (0, _CONV1_CIN_PAD - x.shape[-1])))

    x = conv3x3(x, *params["conv1"], act="relu")        # (B, 32, 32, 64)
    x = conv3x3(x, *params["conv2"], act="relu")        # (B, 32, 32, 128)
    x = maxpool2x2(x)                                   # (B, 16, 16, 128)
    x = conv3x3(x, *params["conv3"], act="relu")        # (B, 16, 16, 256)
    x = maxpool2x2(x)                                   # (B, 8, 8, 256)

    # Flatten with PyTorch NCHW ordering: feature index = c*64 + h*8 + w.
    feats = jnp.transpose(x, (0, 3, 1, 2)).reshape(B, -1)           # (B, 16384)

    h = linear(feats, *params["fc1"], act="relu", tk=2048, tn=512)  # (B, 512)
    logits = linear(h, *params["fc2"], act="none", out_dtype=jnp.float32)
    return logits                                                   # (B, num_classes)


if __name__ == "__main__":
    NUM_CLASSES = 10
    key = jax.random.PRNGKey(0)
    k_x, k_p = jax.random.split(key)

    # fc1 expects 16384 = 256*8*8 features, so the input must be (B, 3, 32, 32).
    x = jax.random.normal(k_x, (2, 3, 32, 32), jnp.float32)
    params = init_params(k_p, NUM_CLASSES)

    logits = jax.jit(forward)(params, x)
    jax.block_until_ready(logits)

    assert logits.shape == (2, NUM_CLASSES) and logits.dtype == jnp.float32
    assert bool(jnp.all(jnp.isfinite(logits)))
    print("KERNEL_OK")
</pallas_src>

<mosaic_0001>
module attributes {stable_mosaic.version = 11 : i64} {
  func.func @_conv3x3_kernel(%arg0: i32, %arg1: memref<1x34x34x128xbf16, #tpu.memory_space<vmem>>, %arg2: memref<9x128x64xbf16, #tpu.memory_space<vmem>>, %arg3: memref<1x64xf32, #tpu.memory_space<vmem>>, %arg4: memref<1x32x32x64xbf16, #tpu.memory_space<vmem>>) attributes {dimension_semantics = [#tpu.dimension_semantics<parallel>], iteration_bounds = array<i64: 2>, scalar_prefetch = 0 : i64, scratch_operands = 0 : i64, tpu.core_type = #tpu.core_type<tc>, window_params = [{transform_indices = @transform_0, window_bounds = array<i64: 1, 34, 34, 128>}, {pipeline_mode = #tpu.pipeline_mode<synchronous>, transform_indices = @transform_1, window_bounds = array<i64: 9, 128, 64>}, {pipeline_mode = #tpu.pipeline_mode<synchronous>, transform_indices = @transform_2, window_bounds = array<i64: 1, 64>}, {transform_indices = @transform_3, window_bounds = array<i64: 1, 32, 32, 64>}]} {
    %c0 = arith.constant 0 : index
    %c0_0 = arith.constant 0 : index
    %0 = vector.load %arg3[%c0, %c0_0] : memref<1x64xf32, #tpu.memory_space<vmem>>, vector<1x64xf32>
    %c0_i32 = arith.constant 0 : i32
    %c32_i32 = arith.constant 32 : i32
    %1 = arith.addi %c0_i32, %c32_i32 : i32
    %c1_i32 = arith.constant 1 : i32
    scf.for %arg5 = %c0_i32 to %1 step %c1_i32  : i32 {
      %cst = arith.constant 0.000000e+00 : f32
      %2 = vector.broadcast %cst : f32 to vector<32x64xf32>
      %c0_i32_2 = arith.constant 0 : i32
      %3 = arith.addi %arg5, %c0_i32_2 : i32
      %c0_3 = arith.constant 0 : index
      %4 = arith.index_cast %3 : i32 to index
      %c0_4 = arith.constant 0 : index
      %c0_5 = arith.constant 0 : index
      %5 = vector.load %arg1[%c0_3, %4, %c0_4, %c0_5] : memref<1x34x34x128xbf16, #tpu.memory_space<vmem>>, vector<1x1x32x128xbf16>
      %6 = vector.shape_cast %5 : vector<1x1x32x128xbf16> to vector<32x128xbf16>
      %c0_6 = arith.constant 0 : index
      %c0_7 = arith.constant 0 : index
      %c0_8 = arith.constant 0 : index
      %7 = vector.load %arg2[%c0_6, %c0_7, %c0_8] : memref<9x128x64xbf16, #tpu.memory_space<vmem>>, vector<1x128x64xbf16>
      %8 = vector.shape_cast %7 : vector<1x128x64xbf16> to vector<128x64xbf16>
      %cst_9 = arith.constant dense<0.000000e+00> : vector<32x64xf32>
      %9 = tpu.matmul %6, %8, %cst_9 {dimension_numbers = #tpu.dot_dimension_numbers<[1], [0], [0], [1], [0, 0, 1, 1], [], []>} : vector<32x128xbf16>, vector<128x64xbf16>, vector<32x64xf32> -> vector<32x64xf32>
      %10 = arith.addf %2, %9 : vector<32x64xf32>
      %c0_i32_10 = arith.constant 0 : i32
      %11 = arith.addi %arg5, %c0_i32_10 : i32
      %c0_11 = arith.constant 0 : index
      %12 = arith.index_cast %11 : i32 to index
      %c1 = arith.constant 1 : index
      %c0_12 = arith.constant 0 : index
      %13 = vector.load %arg1[%c0_11, %12, %c1, %c0_12] : memref<1x34x34x128xbf16, #tpu.memory_space<vmem>>, vector<1x1x32x128xbf16>
      %14 = vector.shape_cast %13 : vector<1x1x32x128xbf16> to vector<32x128xbf16>
      %c1_13 = arith.constant 1 : index
      %c0_14 = arith.constant 0 : index
      %c0_15 = arith.constant 0 : index
      %15 = vector.load %arg2[%c1_13, %c0_14, %c0_15] : memref<9x128x64xbf16, #tpu.memory_space<vmem>>, vector<1x128x64xbf16>
      %16 = vector.shape_cast %15 : vector<1x128x64xbf16> to vector<128x64xbf16>
      %cst_16 = arith.constant dense<0.000000e+00> : vector<32x64xf32>
      %17 = tpu.matmul %14, %16, %cst_16 {dimension_numbers = #tpu.dot_dimension_numbers<[1], [0], [0], [1], [0, 0, 1, 1], [], []>} : vector<32x128xbf16>, vector<128x64xbf16>, vector<32x64xf32> -> vector<32x64xf32>
      %18 = arith.addf %10, %17 : vector<32x64xf32>
      %c0_i32_17 = arith.constant 0 : i32
      %19 = arith.addi %arg5, %c0_i32_17 : i32
      %c0_18 = arith.constant 0 : index
      %20 = arith.index_cast %19 : i32 to index
      %c2 = arith.constant 2 : index
      %c0_19 = arith.constant 0 : index
      %21 = vector.load %arg1[%c0_18, %20, %c2, %c0_19] : memref<1x34x34x128xbf16, #tpu.memory_space<vmem>>, vector<1x1x32x128xbf16>
      %22 = vector.shape_cast %21 : vector<1x1x32x128xbf16> to vector<32x128xbf16>
      %c2_20 = arith.constant 2 : index
      %c0_21 = arith.constant 0 : index
      %c0_22 = arith.constant 0 : index
      %23 = vector.load %arg2[%c2_20, %c0_21, %c0_22] : memref<9x128x64xbf16, #tpu.memory_space<vmem>>, vector<1x128x64xbf16>
      %24 = vector.shape_cast %23 : vector<1x128x64xbf16> to vector<128x64xbf16>
      %cst_23 = arith.constant dense<0.000000e+00> : vector<32x64xf32>
      %25 = tpu.matmul %22, %24, %cst_23 {dimension_numbers = #tpu.dot_dimension_numbers<[1], [0], [0], [1], [0, 0, 1, 1], [], []>} : vector<32x128xbf16>, vector<128x64xbf16>, vector<32x64xf32> -> vector<32x64xf32>
      %26 = arith.addf %18, %25 : vector<32x64xf32>
      %c1_i32_24 = arith.constant 1 : i32
      %27 = arith.addi %arg5, %c1_i32_24 : i32
      %c0_25 = arith.constant 0 : index
      %28 = arith.index_cast %27 : i32 to index
      %c0_26 = arith.constant 0 : index
      %c0_27 = arith.constant 0 : index
      %29 = vector.load %arg1[%c0_25, %28, %c0_26, %c0_27] : memref<1x34x34x128xbf16, #tpu.memory_space<vmem>>, vector<1x1x32x128xbf16>
      %30 = vector.shape_cast %29 : vector<1x1x32x128xbf16> to vector<32x128xbf16>
      %c3 = arith.constant 3 : index
      %c0_28 = arith.constant 0 : index
      %c0_29 = arith.constant 0 : index
      %31 = vector.load %arg2[%c3, %c0_28, %c0_29] : memref<9x128x64xbf16, #tpu.memory_space<vmem>>, vector<1x128x64xbf16>
      %32 = vector.shape_cast %31 : vector<1x128x64xbf16> to vector<128x64xbf16>
      %cst_30 = arith.constant dense<0.000000e+00> : vector<32x64xf32>
      %33 = tpu.matmul %30, %32, %cst_30 {dimension_numbers = #tpu.dot_dimension_numbers<[1], [0], [0], [1], [0, 0, 1, 1], [], []>} : vector<32x128xbf16>, vector<128x64xbf16>, vector<32x64xf32> -> vector<32x64xf32>
      %34 = arith.addf %26, %33 : vector<32x64xf32>
      %c1_i32_31 = arith.constant 1 : i32
      %35 = arith.addi %arg5, %c1_i32_31 : i32
      %c0_32 = arith.constant 0 : index
      %36 = arith.index_cast %35 : i32 to index
      %c1_33 = arith.constant 1 : index
      %c0_34 = arith.constant 0 : index
      %37 = vector.load %arg1[%c0_32, %36, %c1_33, %c0_34] : memref<1x34x34x128xbf16, #tpu.memory_space<vmem>>, vector<1x1x32x128xbf16>
      %38 = vector.shape_cast %37 : vector<1x1x32x128xbf16> to vector<32x128xbf16>
      %c4 = arith.constant 4 : index
      %c0_35 = arith.constant 0 : index
      %c0_36 = arith.constant 0 : index
      %39 = vector.load %arg2[%c4, %c0_35, %c0_36] : memref<9x128x64xbf16, #tpu.memory_space<vmem>>, vector<1x128x64xbf16>
      %40 = vector.shape_cast %39 : vector<1x128x64xbf16> to vector<128x64xbf16>
      %cst_37 = arith.constant dense<0.000000e+00> : vector<32x64xf32>
      %41 = tpu.matmul %38, %40, %cst_37 {dimension_numbers = #tpu.dot_dimension_numbers<[1], [0], [0], [1], [0, 0, 1, 1], [], []>} : vector<32x128xbf16>, vector<128x64xbf16>, vector<32x64xf32> -> vector<32x64xf32>
      %42 = arith.addf %34, %41 : vector<32x64xf32>
      %c1_i32_38 = arith.constant 1 : i32
      %43 = arith.addi %arg5, %c1_i32_38 : i32
      %c0_39 = arith.constant 0 : index
      %44 = arith.index_cast %43 : i32 to index
      %c2_40 = arith.constant 2 : index
      %c0_41 = arith.constant 0 : index
      %45 = vector.load %arg1[%c0_39, %44, %c2_40, %c0_41] : memref<1x34x34x128xbf16, #tpu.memory_space<vmem>>, vector<1x1x32x128xbf16>
      %46 = vector.shape_cast %45 : vector<1x1x32x128xbf16> to vector<32x128xbf16>
      %c5 = arith.constant 5 : index
      %c0_42 = arith.constant 0 : index
      %c0_43 = arith.constant 0 : index
      %47 = vector.load %arg2[%c5, %c0_42, %c0_43] : memref<9x128x64xbf16, #tpu.memory_space<vmem>>, vector<1x128x64xbf16>
      %48 = vector.shape_cast %47 : vector<1x128x64xbf16> to vector<128x64xbf16>
      %cst_44 = arith.constant dense<0.000000e+00> : vector<32x64xf32>
      %49 = tpu.matmul %46, %48, %cst_44 {dimension_numbers = #tpu.dot_dimension_numbers<[1], [0], [0], [1], [0, 0, 1, 1], [], []>} : vector<32x128xbf16>, vector<128x64xbf16>, vector<32x64xf32> -> vector<32x64xf32>
      %50 = arith.addf %42, %49 : vector<32x64xf32>
      %c2_i32 = arith.constant 2 : i32
      %51 = arith.addi %arg5, %c2_i32 : i32
      %c0_45 = arith.constant 0 : index
      %52 = arith.index_cast %51 : i32 to index
      %c0_46 = arith.constant 0 : index
      %c0_47 = arith.constant 0 : index
      %53 = vector.load %arg1[%c0_45, %52, %c0_46, %c0_47] : memref<1x34x34x128xbf16, #tpu.memory_space<vmem>>, vector<1x1x32x128xbf16>
      %54 = vector.shape_cast %53 : vector<1x1x32x128xbf16> to vector<32x128xbf16>
      %c6 = arith.constant 6 : index
      %c0_48 = arith.constant 0 : index
      %c0_49 = arith.constant 0 : index
      %55 = vector.load %arg2[%c6, %c0_48, %c0_49] : memref<9x128x64xbf16, #tpu.memory_space<vmem>>, vector<1x128x64xbf16>
      %56 = vector.shape_cast %55 : vector<1x128x64xbf16> to vector<128x64xbf16>
      %cst_50 = arith.constant dense<0.000000e+00> : vector<32x64xf32>
      %57 = tpu.matmul %54, %56, %cst_50 {dimension_numbers = #tpu.dot_dimension_numbers<[1], [0], [0], [1], [0, 0, 1, 1], [], []>} : vector<32x128xbf16>, vector<128x64xbf16>, vector<32x64xf32> -> vector<32x64xf32>
      %58 = arith.addf %50, %57 : vector<32x64xf32>
      %c2_i32_51 = arith.constant 2 : i32
      %59 = arith.addi %arg5, %c2_i32_51 : i32
      %c0_52 = arith.constant 0 : index
      %60 = arith.index_cast %59 : i32 to index
      %c1_53 = arith.constant 1 : index
      %c0_54 = arith.constant 0 : index
      %61 = vector.load %arg1[%c0_52, %60, %c1_53, %c0_54] : memref<1x34x34x128xbf16, #tpu.memory_space<vmem>>, vector<1x1x32x128xbf16>
      %62 = vector.shape_cast %61 : vector<1x1x32x128xbf16> to vector<32x128xbf16>
      %c7 = arith.constant 7 : index
      %c0_55 = arith.constant 0 : index
      %c0_56 = arith.constant 0 : index
      %63 = vector.load %arg2[%c7, %c0_55, %c0_56] : memref<9x128x64xbf16, #tpu.memory_space<vmem>>, vector<1x128x64xbf16>
      %64 = vector.shape_cast %63 : vector<1x128x64xbf16> to vector<128x64xbf16>
      %cst_57 = arith.constant dense<0.000000e+00> : vector<32x64xf32>
      %65 = tpu.matmul %62, %64, %cst_57 {dimension_numbers = #tpu.dot_dimension_numbers<[1], [0], [0], [1], [0, 0, 1, 1], [], []>} : vector<32x128xbf16>, vector<128x64xbf16>, vector<32x64xf32> -> vector<32x64xf32>
      %66 = arith.addf %58, %65 : vector<32x64xf32>
      %c2_i32_58 = arith.constant 2 : i32
      %67 = arith.addi %arg5, %c2_i32_58 : i32
      %c0_59 = arith.constant 0 : index
      %68 = arith.index_cast %67 : i32 to index
      %c2_60 = arith.constant 2 : index
      %c0_61 = arith.constant 0 : index
      %69 = vector.load %arg1[%c0_59, %68, %c2_60, %c0_61] : memref<1x34x34x128xbf16, #tpu.memory_space<vmem>>, vector<1x1x32x128xbf16>
      %70 = vector.shape_cast %69 : vector<1x1x32x128xbf16> to vector<32x128xbf16>
      %c8 = arith.constant 8 : index
      %c0_62 = arith.constant 0 : index
      %c0_63 = arith.constant 0 : index
      %71 = vector.load %arg2[%c8, %c0_62, %c0_63] : memref<9x128x64xbf16, #tpu.memory_space<vmem>>, vector<1x128x64xbf16>
      %72 = vector.shape_cast %71 : vector<1x128x64xbf16> to vector<128x64xbf16>
      %cst_64 = arith.constant dense<0.000000e+00> : vector<32x64xf32>
      %73 = tpu.matmul %70, %72, %cst_64 {dimension_numbers = #tpu.dot_dimension_numbers<[1], [0], [0], [1], [0, 0, 1, 1], [], []>} : vector<32x128xbf16>, vector<128x64xbf16>, vector<32x64xf32> -> vector<32x64xf32>
      %74 = arith.addf %66, %73 : vector<32x64xf32>
      %75 = vector.broadcast %0 : vector<1x64xf32> to vector<32x64xf32>
      %76 = arith.addf %74, %75 : vector<32x64xf32>
      %cst_65 = arith.constant 0.000000e+00 : f32
      %77 = vector.broadcast %cst_65 : f32 to vector<32x64xf32>
      %78 = arith.maximumf %76, %77 : vector<32x64xf32>
      %79 = arith.truncf %78 : vector<32x64xf32> to vector<32x64xbf16>
      %c0_66 = arith.constant 0 : index
      %80 = arith.index_cast %arg5 : i32 to index
      %c0_67 = arith.constant 0 : index
      %c0_68 = arith.constant 0 : index
      %81 = vector.load %arg4[%c0_66, %80, %c0_67, %c0_68] : memref<1x32x32x64xbf16, #tpu.memory_space<vmem>>, vector<1x1x32x64xbf16>
      %82 = vector.shape_cast %81 : vector<1x1x32x64xbf16> to vector<32x64xbf16>
      %83 = vector.shape_cast %79 : vector<32x64xbf16> to vector<1x1x32x64xbf16>
      tpu.vector_store %arg4[%c0_66, %80, %c0_67, %c0_68], %83 {strides = array<i32>} : memref<1x32x32x64xbf16, #tpu.memory_space<vmem>>, vector<1x1x32x64xbf16>,
    }
    %c32_i32_1 = arith.constant 32 : i32
    return
  }
  func.func @transform_0(%arg0: i32) -> (i32, i32, i32, i32) {
    %c0_i32 = arith.constant 0 : i32
    %c0_i32_0 = arith.constant 0 : i32
    %c0_i32_1 = arith.constant 0 : i32
    %c0_i32_2 = arith.constant 0 : i32
    return %arg0, %c0_i32, %c0_i32_0, %c0_i32_1 : i32, i32, i32, i32
  }
  func.func @transform_1(%arg0: i32) -> (i32, i32, i32) {
    %c0_i32 = arith.constant 0 : i32
    %c0_i32_0 = arith.constant 0 : i32
    %c0_i32_1 = arith.constant 0 : i32
    %c0_i32_2 = arith.constant 0 : i32
    return %c0_i32, %c0_i32_0, %c0_i32_1 : i32, i32, i32
  }
  func.func @transform_2(%arg0: i32) -> (i32, i32) {
    %c0_i32 = arith.constant 0 : i32
    %c0_i32_0 = arith.constant 0 : i32
    %c0_i32_1 = arith.constant 0 : i32
    return %c0_i32, %c0_i32_0 : i32, i32
  }
  func.func @transform_3(%arg0: i32) -> (i32, i32, i32, i32) {
    %c0_i32 = arith.constant 0 : i32
    %c0_i32_0 = arith.constant 0 : i32
    %c0_i32_1 = arith.constant 0 : i32
    %c0_i32_2 = arith.constant 0 : i32
    return %arg0, %c0_i32, %c0_i32_0, %c0_i32_1 : i32, i32, i32, i32
  }
}

module attributes {stable_mosaic.version = 11 : i64} {
  func.func @_conv3x3_kernel(%arg0: i32, %arg1: memref<1x34x34x64xbf16, #tpu.memory_space<vmem>>, %arg2: memref<9x64x128xbf16, #tpu.memory_space<vmem>>, %arg3: memref<1x128xf32, #tpu.memory_space<vmem>>, %arg4: memref<1x32x32x128xbf16, #tpu.memory_space<vmem>>) attributes {dimension_semantics = [#tpu.dimension_semantics<parallel>], iteration_bounds = array<i64: 2>, scalar_prefetch = 0 : i64, scratch_operands = 0 : i64, tpu.core_type = #tpu.core_type<tc>, window_params = [{transform_indices = @transform_0, window_bounds = array<i64: 1, 34, 34, 64>}, {pipeline_mode = #tpu.pipeline_mode<synchronous>, transform_indices = @transform_1, window_bounds = array<i64: 9, 64, 128>}, {pipeline_mode = #tpu.pipeline_mode<synchronous>, transform_indices = @transform_2, window_bounds = array<i64: 1, 128>}, {transform_indices = @transform_3, window_bounds = array<i64: 1, 32, 32, 128>}]} {
    %c0 = arith.constant 0 : index
    %c0_0 = arith.constant 0 : index
    %0 = vector.load %arg3[%c0, %c0_0] : memref<1x128xf32, #tpu.memory_space<vmem>>, vector<1x128xf32>
    %c0_i32 = arith.constant 0 : i32
    %c32_i32 = arith.constant 32 : i32
    %1 = arith.addi %c0_i32, %c32_i32 : i32
    %c1_i32 = arith.constant 1 : i32
    scf.for %arg5 = %c0_i32 to %1 step %c1_i32  : i32 {
      %cst = arith.constant 0.000000e+00 : f32
      %2 = vector.broadcast %cst : f32 to vector<32x128xf32>
      %c0_i32_2 = arith.constant 0 : i32
      %3 = arith.addi %arg5, %c0_i32_2 : i32
      %c0_3 = arith.constant 0 : index
      %4 = arith.index_cast %3 : i32 to index
      %c0_4 = arith.constant 0 : index
      %c0_5 = arith.constant 0 : index
      %5 = vector.load %arg1[%c0_3, %4, %c0_4, %c0_5] : memref<1x34x34x64xbf16, #tpu.memory_space<vmem>>, vector<1x1x32x64xbf16>
      %6 = vector.shape_cast %5 : vector<1x1x32x64xbf16> to vector<32x64xbf16>
      %c0_6 = arith.constant 0 : index
      %c0_7 = arith.constant 0 : index
      %c0_8 = arith.constant 0 : index
      %7 = vector.load %arg2[%c0_6, %c0_7, %c0_8] : memref<9x64x128xbf16, #tpu.memory_space<vmem>>, vector<1x64x128xbf16>
      %8 = vector.shape_cast %7 : vector<1x64x128xbf16> to vector<64x128xbf16>
      %cst_9 = arith.constant dense<0.000000e+00> : vector<32x128xf32>
      %9 = tpu.matmul %6, %8, %cst_9 {dimension_numbers = #tpu.dot_dimension_numbers<[1], [0], [0], [1], [0, 0, 1, 1], [], []>} : vector<32x64xbf16>, vector<64x128xbf16>, vector<32x128xf32> -> vector<32x128xf32>
      %10 = arith.addf %2, %9 : vector<32x128xf32>
      %c0_i32_10 = arith.constant 0 : i32
      %11 = arith.addi %arg5, %c0_i32_10 : i32
      %c0_11 = arith.constant 0 : index
      %12 = arith.index_cast %11 : i32 to index
      %c1 = arith.constant 1 : index
      %c0_12 = arith.constant 0 : index
      %13 = vector.load %arg1[%c0_11, %12, %c1, %c0_12] : memref<1x34x34x64xbf16, #tpu.memory_space<vmem>>, vector<1x1x32x64xbf16>
      %14 = vector.shape_cast %13 : vector<1x1x32x64xbf16> to vector<32x64xbf16>
      %c1_13 = arith.constant 1 : index
      %c0_14 = arith.constant 0 : index
      %c0_15 = arith.constant 0 : index
      %15 = vector.load %arg2[%c1_13, %c0_14, %c0_15] : memref<9x64x128xbf16, #tpu.memory_space<vmem>>, vector<1x64x128xbf16>
      %16 = vector.shape_cast %15 : vector<1x64x128xbf16> to vector<64x128xbf16>
      %cst_16 = arith.constant dense<0.000000e+00> : vector<32x128xf32>
      %17 = tpu.matmul %14, %16, %cst_16 {dimension_numbers = #tpu.dot_dimension_numbers<[1], [0], [0], [1], [0, 0, 1, 1], [], []>} : vector<32x64xbf16>, vector<64x128xbf16>, vector<32x128xf32> -> vector<32x128xf32>
      %18 = arith.addf %10, %17 : vector<32x128xf32>
      %c0_i32_17 = arith.constant 0 : i32
      %19 = arith.addi %arg5, %c0_i32_17 : i32
      %c0_18 = arith.constant 0 : index
      %20 = arith.index_cast %19 : i32 to index
      %c2 = arith.constant 2 : index
      %c0_19 = arith.constant 0 : index
      %21 = vector.load %arg1[%c0_18, %20, %c2, %c0_19] : memref<1x34x34x64xbf16, #tpu.memory_space<vmem>>, vector<1x1x32x64xbf16>
      %22 = vector.shape_cast %21 : vector<1x1x32x64xbf16> to vector<32x64xbf16>
      %c2_20 = arith.constant 2 : index
      %c0_21 = arith.constant 0 : index
      %c0_22 = arith.constant 0 : index
      %23 = vector.load %arg2[%c2_20, %c0_21, %c0_22] : memref<9x64x128xbf16, #tpu.memory_space<vmem>>, vector<1x64x128xbf16>
      %24 = vector.shape_cast %23 : vector<1x64x128xbf16> to vector<64x128xbf16>
      %cst_23 = arith.constant dense<0.000000e+00> : vector<32x128xf32>
      %25 = tpu.matmul %22, %24, %cst_23 {dimension_numbers = #tpu.dot_dimension_numbers<[1], [0], [0], [1], [0, 0, 1, 1], [], []>} : vector<32x64xbf16>, vector<64x128xbf16>, vector<32x128xf32> -> vector<32x128xf32>
      %26 = arith.addf %18, %25 : vector<32x128xf32>
      %c1_i32_24 = arith.constant 1 : i32
      %27 = arith.addi %arg5, %c1_i32_24 : i32
      %c0_25 = arith.constant 0 : index
      %28 = arith.index_cast %27 : i32 to index
      %c0_26 = arith.constant 0 : index
      %c0_27 = arith.constant 0 : index
      %29 = vector.load %arg1[%c0_25, %28, %c0_26, %c0_27] : memref<1x34x34x64xbf16, #tpu.memory_space<vmem>>, vector<1x1x32x64xbf16>
      %30 = vector.shape_cast %29 : vector<1x1x32x64xbf16> to vector<32x64xbf16>
      %c3 = arith.constant 3 : index
      %c0_28 = arith.constant 0 : index
      %c0_29 = arith.constant 0 : index
      %31 = vector.load %arg2[%c3, %c0_28, %c0_29] : memref<9x64x128xbf16, #tpu.memory_space<vmem>>, vector<1x64x128xbf16>
      %32 = vector.shape_cast %31 : vector<1x64x128xbf16> to vector<64x128xbf16>
      %cst_30 = arith.constant dense<0.000000e+00> : vector<32x128xf32>
      %33 = tpu.matmul %30, %32, %cst_30 {dimension_numbers = #tpu.dot_dimension_numbers<[1], [0], [0], [1], [0, 0, 1, 1], [], []>} : vector<32x64xbf16>, vector<64x128xbf16>, vector<32x128xf32> -> vector<32x128xf32>
      %34 = arith.addf %26, %33 : vector<32x128xf32>
      %c1_i32_31 = arith.constant 1 : i32
      %35 = arith.addi %arg5, %c1_i32_31 : i32
      %c0_32 = arith.constant 0 : index
      %36 = arith.index_cast %35 : i32 to index
      %c1_33 = arith.constant 1 : index
      %c0_34 = arith.constant 0 : index
      %37 = vector.load %arg1[%c0_32, %36, %c1_33, %c0_34] : memref<1x34x34x64xbf16, #tpu.memory_space<vmem>>, vector<1x1x32x64xbf16>
      %38 = vector.shape_cast %37 : vector<1x1x32x64xbf16> to vector<32x64xbf16>
      %c4 = arith.constant 4 : index
      %c0_35 = arith.constant 0 : index
      %c0_36 = arith.constant 0 : index
      %39 = vector.load %arg2[%c4, %c0_35, %c0_36] : memref<9x64x128xbf16, #tpu.memory_space<vmem>>, vector<1x64x128xbf16>
      %40 = vector.shape_cast %39 : vector<1x64x128xbf16> to vector<64x128xbf16>
      %cst_37 = arith.constant dense<0.000000e+00> : vector<32x128xf32>
      %41 = tpu.matmul %38, %40, %cst_37 {dimension_numbers = #tpu.dot_dimension_numbers<[1], [0], [0], [1], [0, 0, 1, 1], [], []>} : vector<32x64xbf16>, vector<64x128xbf16>, vector<32x128xf32> -> vector<32x128xf32>
      %42 = arith.addf %34, %41 : vector<32x128xf32>
      %c1_i32_38 = arith.constant 1 : i32
      %43 = arith.addi %arg5, %c1_i32_38 : i32
      %c0_39 = arith.constant 0 : index
      %44 = arith.index_cast %43 : i32 to index
      %c2_40 = arith.constant 2 : index
      %c0_41 = arith.constant 0 : index
      %45 = vector.load %arg1[%c0_39, %44, %c2_40, %c0_41] : memref<1x34x34x64xbf16, #tpu.memory_space<vmem>>, vector<1x1x32x64xbf16>
      %46 = vector.shape_cast %45 : vector<1x1x32x64xbf16> to vector<32x64xbf16>
      %c5 = arith.constant 5 : index
      %c0_42 = arith.constant 0 : index
      %c0_43 = arith.constant 0 : index
      %47 = vector.load %arg2[%c5, %c0_42, %c0_43] : memref<9x64x128xbf16, #tpu.memory_space<vmem>>, vector<1x64x128xbf16>
      %48 = vector.shape_cast %47 : vector<1x64x128xbf16> to vector<64x128xbf16>
      %cst_44 = arith.constant dense<0.000000e+00> : vector<32x128xf32>
      %49 = tpu.matmul %46, %48, %cst_44 {dimension_numbers = #tpu.dot_dimension_numbers<[1], [0], [0], [1], [0, 0, 1, 1], [], []>} : vector<32x64xbf16>, vector<64x128xbf16>, vector<32x128xf32> -> vector<32x128xf32>
      %50 = arith.addf %42, %49 : vector<32x128xf32>
      %c2_i32 = arith.constant 2 : i32
      %51 = arith.addi %arg5, %c2_i32 : i32
      %c0_45 = arith.constant 0 : index
      %52 = arith.index_cast %51 : i32 to index
      %c0_46 = arith.constant 0 : index
      %c0_47 = arith.constant 0 : index
      %53 = vector.load %arg1[%c0_45, %52, %c0_46, %c0_47] : memref<1x34x34x64xbf16, #tpu.memory_space<vmem>>, vector<1x1x32x64xbf16>
      %54 = vector.shape_cast %53 : vector<1x1x32x64xbf16> to vector<32x64xbf16>
      %c6 = arith.constant 6 : index
      %c0_48 = arith.constant 0 : index
      %c0_49 = arith.constant 0 : index
      %55 = vector.load %arg2[%c6, %c0_48, %c0_49] : memref<9x64x128xbf16, #tpu.memory_space<vmem>>, vector<1x64x128xbf16>
      %56 = vector.shape_cast %55 : vector<1x64x128xbf16> to vector<64x128xbf16>
      %cst_50 = arith.constant dense<0.000000e+00> : vector<32x128xf32>
      %57 = tpu.matmul %54, %56, %cst_50 {dimension_numbers = #tpu.dot_dimension_numbers<[1], [0], [0], [1], [0, 0, 1, 1], [], []>} : vector<32x64xbf16>, vector<64x128xbf16>, vector<32x128xf32> -> vector<32x128xf32>
      %58 = arith.addf %50, %57 : vector<32x128xf32>
      %c2_i32_51 = arith.constant 2 : i32
      %59 = arith.addi %arg5, %c2_i32_51 : i32
      %c0_52 = arith.constant 0 : index
      %60 = arith.index_cast %59 : i32 to index
      %c1_53 = arith.constant 1 : index
      %c0_54 = arith.constant 0 : index
      %61 = vector.load %arg1[%c0_52, %60, %c1_53, %c0_54] : memref<1x34x34x64xbf16, #tpu.memory_space<vmem>>, vector<1x1x32x64xbf16>
      %62 = vector.shape_cast %61 : vector<1x1x32x64xbf16> to vector<32x64xbf16>
      %c7 = arith.constant 7 : index
      %c0_55 = arith.constant 0 : index
      %c0_56 = arith.constant 0 : index
      %63 = vector.load %arg2[%c7, %c0_55, %c0_56] : memref<9x64x128xbf16, #tpu.memory_space<vmem>>, vector<1x64x128xbf16>
      %64 = vector.shape_cast %63 : vector<1x64x128xbf16> to vector<64x128xbf16>
      %cst_57 = arith.constant dense<0.000000e+00> : vector<32x128xf32>
      %65 = tpu.matmul %62, %64, %cst_57 {dimension_numbers = #tpu.dot_dimension_numbers<[1], [0], [0], [1], [0, 0, 1, 1], [], []>} : vector<32x64xbf16>, vector<64x128xbf16>, vector<32x128xf32> -> vector<32x128xf32>
      %66 = arith.addf %58, %65 : vector<32x128xf32>
      %c2_i32_58 = arith.constant 2 : i32
      %67 = arith.addi %arg5, %c2_i32_58 : i32
      %c0_59 = arith.constant 0 : index
      %68 = arith.index_cast %67 : i32 to index
      %c2_60 = arith.constant 2 : index
      %c0_61 = arith.constant 0 : index
      %69 = vector.load %arg1[%c0_59, %68, %c2_60, %c0_61] : memref<1x34x34x64xbf16, #tpu.memory_space<vmem>>, vector<1x1x32x64xbf16>
      %70 = vector.shape_cast %69 : vector<1x1x32x64xbf16> to vector<32x64xbf16>
      %c8 = arith.constant 8 : index
      %c0_62 = arith.constant 0 : index
      %c0_63 = arith.constant 0 : index
      %71 = vector.load %arg2[%c8, %c0_62, %c0_63] : memref<9x64x128xbf16, #tpu.memory_space<vmem>>, vector<1x64x128xbf16>
      %72 = vector.shape_cast %71 : vector<1x64x128xbf16> to vector<64x128xbf16>
      %cst_64 = arith.constant dense<0.000000e+00> : vector<32x128xf32>
      %73 = tpu.matmul %70, %72, %cst_64 {dimension_numbers = #tpu.dot_dimension_numbers<[1], [0], [0], [1], [0, 0, 1, 1], [], []>} : vector<32x64xbf16>, vector<64x128xbf16>, vector<32x128xf32> -> vector<32x128xf32>
      %74 = arith.addf %66, %73 : vector<32x128xf32>
      %75 = vector.broadcast %0 : vector<1x128xf32> to vector<32x128xf32>
      %76 = arith.addf %74, %75 : vector<32x128xf32>
      %cst_65 = arith.constant 0.000000e+00 : f32
      %77 = vector.broadcast %cst_65 : f32 to vector<32x128xf32>
      %78 = arith.maximumf %76, %77 : vector<32x128xf32>
      %79 = arith.truncf %78 : vector<32x128xf32> to vector<32x128xbf16>
      %c0_66 = arith.constant 0 : index
      %80 = arith.index_cast %arg5 : i32 to index
      %c0_67 = arith.constant 0 : index
      %c0_68 = arith.constant 0 : index
      %81 = vector.load %arg4[%c0_66, %80, %c0_67, %c0_68] : memref<1x32x32x128xbf16, #tpu.memory_space<vmem>>, vector<1x1x32x128xbf16>
      %82 = vector.shape_cast %81 : vector<1x1x32x128xbf16> to vector<32x128xbf16>
      %83 = vector.shape_cast %79 : vector<32x128xbf16> to vector<1x1x32x128xbf16>
      tpu.vector_store %arg4[%c0_66, %80, %c0_67, %c0_68], %83 {strides = array<i32>} : memref<1x32x32x128xbf16, #tpu.memory_space<vmem>>, vector<1x1x32x128xbf16>,
    }
    %c32_i32_1 = arith.constant 32 : i32
    return
  }
  func.func @transform_0(%arg0: i32) -> (i32, i32, i32, i32) {
    %c0_i32 = arith.constant 0 : i32
    %c0_i32_0 = arith.constant 0 : i32
    %c0_i32_1 = arith.constant 0 : i32
    %c0_i32_2 = arith.constant 0 : i32
    return %arg0, %c0_i32, %c0_i32_0, %c0_i32_1 : i32, i32, i32, i32
  }
  func.func @transform_1(%arg0: i32) -> (i32, i32, i32) {
    %c0_i32 = arith.constant 0 : i32
    %c0_i32_0 = arith.constant 0 : i32
    %c0_i32_1 = arith.constant 0 : i32
    %c0_i32_2 = arith.constant 0 : i32
    return %c0_i32, %c0_i32_0, %c0_i32_1 : i32, i32, i32
  }
  func.func @transform_2(%arg0: i32) -> (i32, i32) {
    %c0_i32 = arith.constant 0 : i32
    %c0_i32_0 = arith.constant 0 : i32
    %c0_i32_1 = arith.constant 0 : i32
    return %c0_i32, %c0_i32_0 : i32, i32
  }
  func.func @transform_3(%arg0: i32) -> (i32, i32, i32, i32) {
    %c0_i32 = arith.constant 0 : i32
    %c0_i32_0 = arith.constant 0 : i32
    %c0_i32_1 = arith.constant 0 : i32
    %c0_i32_2 = arith.constant 0 : i32
    return %arg0, %c0_i32, %c0_i32_0, %c0_i32_1 : i32, i32, i32, i32
  }
}

module attributes {stable_mosaic.version = 11 : i64} {
  func.func @_maxpool2x2_kernel(%arg0: i32, %arg1: memref<32x2x16x256xbf16, #tpu.memory_space<vmem>>, %arg2: memref<32x16x128xbf16, #tpu.memory_space<vmem>>) attributes {dimension_semantics = [#tpu.dimension_semantics<arbitrary>], iteration_bounds = array<i64: 1>, scalar_prefetch = 0 : i64, scratch_operands = 0 : i64, tpu.core_type = #tpu.core_type<tc>, window_params = [{pipeline_mode = #tpu.pipeline_mode<synchronous>, transform_indices = @transform_0, window_bounds = array<i64: 32, 2, 16, 256>}, {pipeline_mode = #tpu.pipeline_mode<synchronous>, transform_indices = @transform_1, window_bounds = array<i64: 32, 16, 128>}]} {
    %c0 = arith.constant 0 : index
    %c0_0 = arith.constant 0 : index
    %c0_1 = arith.constant 0 : index
    %c0_2 = arith.constant 0 : index
    %0 = vector.load %arg1[%c0, %c0_0, %c0_1, %c0_2] : memref<32x2x16x256xbf16, #tpu.memory_space<vmem>>, vector<32x2x16x256xbf16>
    %1 = vector.extract_strided_slice %0 {offsets = [0, 0, 0, 0], sizes = [32, 1, 16, 256], strides = [1, 1, 1, 1]} : vector<32x2x16x256xbf16> to vector<32x1x16x256xbf16>
    %2 = vector.shape_cast %1 : vector<32x1x16x256xbf16> to vector<32x16x256xbf16>
    %3 = vector.extract_strided_slice %0 {offsets = [0, 1, 0, 0], sizes = [32, 1, 16, 256], strides = [1, 1, 1, 1]} : vector<32x2x16x256xbf16> to vector<32x1x16x256xbf16>
    %4 = vector.shape_cast %3 : vector<32x1x16x256xbf16> to vector<32x16x256xbf16>
    %5 = arith.maximumf %2, %4 : vector<32x16x256xbf16>
    %6 = vector.extract_strided_slice %5 {offsets = [0, 0, 0], sizes = [32, 16, 128], strides = [1, 1, 1]} : vector<32x16x256xbf16> to vector<32x16x128xbf16>
    %7 = vector.extract_strided_slice %5 {offsets = [0, 0, 128], sizes = [32, 16, 128], strides = [1, 1, 1]} : vector<32x16x256xbf16> to vector<32x16x128xbf16>
    %8 = arith.maximumf %6, %7 : vector<32x16x128xbf16>
    %c0_3 = arith.constant 0 : index
    %c0_4 = arith.constant 0 : index
    %c0_5 = arith.constant 0 : index
    %9 = vector.load %arg2[%c0_3, %c0_4, %c0_5] : memref<32x16x128xbf16, #tpu.memory_space<vmem>>, vector<32x16x128xbf16>
    tpu.vector_store %arg2[%c0_3, %c0_4, %c0_5], %8 {strides = array<i32>} : memref<32x16x128xbf16, #tpu.memory_space<vmem>>, vector<32x16x128xbf16>,
    return
  }
  func.func @transform_0(%arg0: i32) -> (i32, i32, i32, i32) {
    %c0_i32 = arith.constant 0 : i32
    %c0_i32_0 = arith.constant 0 : i32
    %c0_i32_1 = arith.constant 0 : i32
    %c0_i32_2 = arith.constant 0 : i32
    %c0_i32_3 = arith.constant 0 : i32
    return %c0_i32, %c0_i32_0, %c0_i32_1, %c0_i32_2 : i32, i32, i32, i32
  }
  func.func @transform_1(%arg0: i32) -> (i32, i32, i32) {
    %c0_i32 = arith.constant 0 : i32
    %c0_i32_0 = arith.constant 0 : i32
    %c0_i32_1 = arith.constant 0 : i32
    %c0_i32_2 = arith.constant 0 : i32
    return %c0_i32, %c0_i32_0, %c0_i32_1 : i32, i32, i32
  }
}

module attributes {stable_mosaic.version = 11 : i64} {
  func.func @_conv3x3_kernel(%arg0: i32, %arg1: memref<1x18x18x128xbf16, #tpu.memory_space<vmem>>, %arg2: memref<9x128x256xbf16, #tpu.memory_space<vmem>>, %arg3: memref<1x256xf32, #tpu.memory_space<vmem>>, %arg4: memref<1x16x16x256xbf16, #tpu.memory_space<vmem>>) attributes {dimension_semantics = [#tpu.dimension_semantics<parallel>], iteration_bounds = array<i64: 2>, scalar_prefetch = 0 : i64, scratch_operands = 0 : i64, tpu.core_type = #tpu.core_type<tc>, window_params = [{transform_indices = @transform_0, window_bounds = array<i64: 1, 18, 18, 128>}, {pipeline_mode = #tpu.pipeline_mode<synchronous>, transform_indices = @transform_1, window_bounds = array<i64: 9, 128, 256>}, {pipeline_mode = #tpu.pipeline_mode<synchronous>, transform_indices = @transform_2, window_bounds = array<i64: 1, 256>}, {transform_indices = @transform_3, window_bounds = array<i64: 1, 16, 16, 256>}]} {
    %c0 = arith.constant 0 : index
    %c0_0 = arith.constant 0 : index
    %0 = vector.load %arg3[%c0, %c0_0] : memref<1x256xf32, #tpu.memory_space<vmem>>, vector<1x256xf32>
    %c0_i32 = arith.constant 0 : i32
    %c16_i32 = arith.constant 16 : i32
    %1 = arith.addi %c0_i32, %c16_i32 : i32
    %c1_i32 = arith.constant 1 : i32
    scf.for %arg5 = %c0_i32 to %1 step %c1_i32  : i32 {
      %cst = arith.constant 0.000000e+00 : f32
      %2 = vector.broadcast %cst : f32 to vector<16x256xf32>
      %c0_i32_2 = arith.constant 0 : i32
      %3 = arith.addi %arg5, %c0_i32_2 : i32
      %c0_3 = arith.constant 0 : index
      %4 = arith.index_cast %3 : i32 to index
      %c0_4 = arith.constant 0 : index
      %c0_5 = arith.constant 0 : index
      %5 = vector.load %arg1[%c0_3, %4, %c0_4, %c0_5] : memref<1x18x18x128xbf16, #tpu.memory_space<vmem>>, vector<1x1x16x128xbf16>
      %6 = vector.shape_cast %5 : vector<1x1x16x128xbf16> to vector<16x128xbf16>
      %c0_6 = arith.constant 0 : index
      %c0_7 = arith.constant 0 : index
      %c0_8 = arith.constant 0 : index
      %7 = vector.load %arg2[%c0_6, %c0_7, %c0_8] : memref<9x128x256xbf16, #tpu.memory_space<vmem>>, vector<1x128x256xbf16>
      %8 = vector.shape_cast %7 : vector<1x128x256xbf16> to vector<128x256xbf16>
      %cst_9 = arith.constant dense<0.000000e+00> : vector<16x256xf32>
      %9 = tpu.matmul %6, %8, %cst_9 {dimension_numbers = #tpu.dot_dimension_numbers<[1], [0], [0], [1], [0, 0, 1, 1], [], []>} : vector<16x128xbf16>, vector<128x256xbf16>, vector<16x256xf32> -> vector<16x256xf32>
      %10 = arith.addf %2, %9 : vector<16x256xf32>
      %c0_i32_10 = arith.constant 0 : i32
      %11 = arith.addi %arg5, %c0_i32_10 : i32
      %c0_11 = arith.constant 0 : index
      %12 = arith.index_cast %11 : i32 to index
      %c1 = arith.constant 1 : index
      %c0_12 = arith.constant 0 : index
      %13 = vector.load %arg1[%c0_11, %12, %c1, %c0_12] : memref<1x18x18x128xbf16, #tpu.memory_space<vmem>>, vector<1x1x16x128xbf16>
      %14 = vector.shape_cast %13 : vector<1x1x16x128xbf16> to vector<16x128xbf16>
      %c1_13 = arith.constant 1 : index
      %c0_14 = arith.constant 0 : index
      %c0_15 = arith.constant 0 : index
      %15 = vector.load %arg2[%c1_13, %c0_14, %c0_15] : memref<9x128x256xbf16, #tpu.memory_space<vmem>>, vector<1x128x256xbf16>
      %16 = vector.shape_cast %15 : vector<1x128x256xbf16> to vector<128x256xbf16>
      %cst_16 = arith.constant dense<0.000000e+00> : vector<16x256xf32>
      %17 = tpu.matmul %14, %16, %cst_16 {dimension_numbers = #tpu.dot_dimension_numbers<[1], [0], [0], [1], [0, 0, 1, 1], [], []>} : vector<16x128xbf16>, vector<128x256xbf16>, vector<16x256xf32> -> vector<16x256xf32>
      %18 = arith.addf %10, %17 : vector<16x256xf32>
      %c0_i32_17 = arith.constant 0 : i32
      %19 = arith.addi %arg5, %c0_i32_17 : i32
      %c0_18 = arith.constant 0 : index
      %20 = arith.index_cast %19 : i32 to index
      %c2 = arith.constant 2 : index
      %c0_19 = arith.constant 0 : index
      %21 = vector.load %arg1[%c0_18, %20, %c2, %c0_19] : memref<1x18x18x128xbf16, #tpu.memory_space<vmem>>, vector<1x1x16x128xbf16>
      %22 = vector.shape_cast %21 : vector<1x1x16x128xbf16> to vector<16x128xbf16>
      %c2_20 = arith.constant 2 : index
      %c0_21 = arith.constant 0 : index
      %c0_22 = arith.constant 0 : index
      %23 = vector.load %arg2[%c2_20, %c0_21, %c0_22] : memref<9x128x256xbf16, #tpu.memory_space<vmem>>, vector<1x128x256xbf16>
      %24 = vector.shape_cast %23 : vector<1x128x256xbf16> to vector<128x256xbf16>
      %cst_23 = arith.constant dense<0.000000e+00> : vector<16x256xf32>
      %25 = tpu.matmul %22, %24, %cst_23 {dimension_numbers = #tpu.dot_dimension_numbers<[1], [0], [0], [1], [0, 0, 1, 1], [], []>} : vector<16x128xbf16>, vector<128x256xbf16>, vector<16x256xf32> -> vector<16x256xf32>
      %26 = arith.addf %18, %25 : vector<16x256xf32>
      %c1_i32_24 = arith.constant 1 : i32
      %27 = arith.addi %arg5, %c1_i32_24 : i32
      %c0_25 = arith.constant 0 : index
      %28 = arith.index_cast %27 : i32 to index
      %c0_26 = arith.constant 0 : index
      %c0_27 = arith.constant 0 : index
      %29 = vector.load %arg1[%c0_25, %28, %c0_26, %c0_27] : memref<1x18x18x128xbf16, #tpu.memory_space<vmem>>, vector<1x1x16x128xbf16>
      %30 = vector.shape_cast %29 : vector<1x1x16x128xbf16> to vector<16x128xbf16>
      %c3 = arith.constant 3 : index
      %c0_28 = arith.constant 0 : index
      %c0_29 = arith.constant 0 : index
      %31 = vector.load %arg2[%c3, %c0_28, %c0_29] : memref<9x128x256xbf16, #tpu.memory_space<vmem>>, vector<1x128x256xbf16>
      %32 = vector.shape_cast %31 : vector<1x128x256xbf16> to vector<128x256xbf16>
      %cst_30 = arith.constant dense<0.000000e+00> : vector<16x256xf32>
      %33 = tpu.matmul %30, %32, %cst_30 {dimension_numbers = #tpu.dot_dimension_numbers<[1], [0], [0], [1], [0, 0, 1, 1], [], []>} : vector<16x128xbf16>, vector<128x256xbf16>, vector<16x256xf32> -> vector<16x256xf32>
      %34 = arith.addf %26, %33 : vector<16x256xf32>
      %c1_i32_31 = arith.constant 1 : i32
      %35 = arith.addi %arg5, %c1_i32_31 : i32
      %c0_32 = arith.constant 0 : index
      %36 = arith.index_cast %35 : i32 to index
      %c1_33 = arith.constant 1 : index
      %c0_34 = arith.constant 0 : index
      %37 = vector.load %arg1[%c0_32, %36, %c1_33, %c0_34] : memref<1x18x18x128xbf16, #tpu.memory_space<vmem>>, vector<1x1x16x128xbf16>
      %38 = vector.shape_cast %37 : vector<1x1x16x128xbf16> to vector<16x128xbf16>
      %c4 = arith.constant 4 : index
      %c0_35 = arith.constant 0 : index
      %c0_36 = arith.constant 0 : index
      %39 = vector.load %arg2[%c4, %c0_35, %c0_36] : memref<9x128x256xbf16, #tpu.memory_space<vmem>>, vector<1x128x256xbf16>
      %40 = vector.shape_cast %39 : vector<1x128x256xbf16> to vector<128x256xbf16>
      %cst_37 = arith.constant dense<0.000000e+00> : vector<16x256xf32>
      %41 = tpu.matmul %38, %40, %cst_37 {dimension_numbers = #tpu.dot_dimension_numbers<[1], [0], [0], [1], [0, 0, 1, 1], [], []>} : vector<16x128xbf16>, vector<128x256xbf16>, vector<16x256xf32> -> vector<16x256xf32>
      %42 = arith.addf %34, %41 : vector<16x256xf32>
      %c1_i32_38 = arith.constant 1 : i32
      %43 = arith.addi %arg5, %c1_i32_38 : i32
      %c0_39 = arith.constant 0 : index
      %44 = arith.index_cast %43 : i32 to index
      %c2_40 = arith.constant 2 : index
      %c0_41 = arith.constant 0 : index
      %45 = vector.load %arg1[%c0_39, %44, %c2_40, %c0_41] : memref<1x18x18x128xbf16, #tpu.memory_space<vmem>>, vector<1x1x16x128xbf16>
      %46 = vector.shape_cast %45 : vector<1x1x16x128xbf16> to vector<16x128xbf16>
      %c5 = arith.constant 5 : index
      %c0_42 = arith.constant 0 : index
      %c0_43 = arith.constant 0 : index
      %47 = vector.load %arg2[%c5, %c0_42, %c0_43] : memref<9x128x256xbf16, #tpu.memory_space<vmem>>, vector<1x128x256xbf16>
      %48 = vector.shape_cast %47 : vector<1x128x256xbf16> to vector<128x256xbf16>
      %cst_44 = arith.constant dense<0.000000e+00> : vector<16x256xf32>
      %49 = tpu.matmul %46, %48, %cst_44 {dimension_numbers = #tpu.dot_dimension_numbers<[1], [0], [0], [1], [0, 0, 1, 1], [], []>} : vector<16x128xbf16>, vector<128x256xbf16>, vector<16x256xf32> -> vector<16x256xf32>
      %50 = arith.addf %42, %49 : vector<16x256xf32>
      %c2_i32 = arith.constant 2 : i32
      %51 = arith.addi %arg5, %c2_i32 : i32
      %c0_45 = arith.constant 0 : index
      %52 = arith.index_cast %51 : i32 to index
      %c0_46 = arith.constant 0 : index
      %c0_47 = arith.constant 0 : index
      %53 = vector.load %arg1[%c0_45, %52, %c0_46, %c0_47] : memref<1x18x18x128xbf16, #tpu.memory_space<vmem>>, vector<1x1x16x128xbf16>
      %54 = vector.shape_cast %53 : vector<1x1x16x128xbf16> to vector<16x128xbf16>
      %c6 = arith.constant 6 : index
      %c0_48 = arith.constant 0 : index
      %c0_49 = arith.constant 0 : index
      %55 = vector.load %arg2[%c6, %c0_48, %c0_49] : memref<9x128x256xbf16, #tpu.memory_space<vmem>>, vector<1x128x256xbf16>
      %56 = vector.shape_cast %55 : vector<1x128x256xbf16> to vector<128x256xbf16>
      %cst_50 = arith.constant dense<0.000000e+00> : vector<16x256xf32>
      %57 = tpu.matmul %54, %56, %cst_50 {dimension_numbers = #tpu.dot_dimension_numbers<[1], [0], [0], [1], [0, 0, 1, 1], [], []>} : vector<16x128xbf16>, vector<128x256xbf16>, vector<16x256xf32> -> vector<16x256xf32>
      %58 = arith.addf %50, %57 : vector<16x256xf32>
      %c2_i32_51 = arith.constant 2 : i32
      %59 = arith.addi %arg5, %c2_i32_51 : i32
      %c0_52 = arith.constant 0 : index
      %60 = arith.index_cast %59 : i32 to index
      %c1_53 = arith.constant 1 : index
      %c0_54 = arith.constant 0 : index
      %61 = vector.load %arg1[%c0_52, %60, %c1_53, %c0_54] : memref<1x18x18x128xbf16, #tpu.memory_space<vmem>>, vector<1x1x16x128xbf16>
      %62 = vector.shape_cast %61 : vector<1x1x16x128xbf16> to vector<16x128xbf16>
      %c7 = arith.constant 7 : index
      %c0_55 = arith.constant 0 : index
      %c0_56 = arith.constant 0 : index
      %63 = vector.load %arg2[%c7, %c0_55, %c0_56] : memref<9x128x256xbf16, #tpu.memory_space<vmem>>, vector<1x128x256xbf16>
      %64 = vector.shape_cast %63 : vector<1x128x256xbf16> to vector<128x256xbf16>
      %cst_57 = arith.constant dense<0.000000e+00> : vector<16x256xf32>
      %65 = tpu.matmul %62, %64, %cst_57 {dimension_numbers = #tpu.dot_dimension_numbers<[1], [0], [0], [1], [0, 0, 1, 1], [], []>} : vector<16x128xbf16>, vector<128x256xbf16>, vector<16x256xf32> -> vector<16x256xf32>
      %66 = arith.addf %58, %65 : vector<16x256xf32>
      %c2_i32_58 = arith.constant 2 : i32
      %67 = arith.addi %arg5, %c2_i32_58 : i32
      %c0_59 = arith.constant 0 : index
      %68 = arith.index_cast %67 : i32 to index
      %c2_60 = arith.constant 2 : index
      %c0_61 = arith.constant 0 : index
      %69 = vector.load %arg1[%c0_59, %68, %c2_60, %c0_61] : memref<1x18x18x128xbf16, #tpu.memory_space<vmem>>, vector<1x1x16x128xbf16>
      %70 = vector.shape_cast %69 : vector<1x1x16x128xbf16> to vector<16x128xbf16>
      %c8 = arith.constant 8 : index
      %c0_62 = arith.constant 0 : index
      %c0_63 = arith.constant 0 : index
      %71 = vector.load %arg2[%c8, %c0_62, %c0_63] : memref<9x128x256xbf16, #tpu.memory_space<vmem>>, vector<1x128x256xbf16>
      %72 = vector.shape_cast %71 : vector<1x128x256xbf16> to vector<128x256xbf16>
      %cst_64 = arith.constant dense<0.000000e+00> : vector<16x256xf32>
      %73 = tpu.matmul %70, %72, %cst_64 {dimension_numbers = #tpu.dot_dimension_numbers<[1], [0], [0], [1], [0, 0, 1, 1], [], []>} : vector<16x128xbf16>, vector<128x256xbf16>, vector<16x256xf32> -> vector<16x256xf32>
      %74 = arith.addf %66, %73 : vector<16x256xf32>
      %75 = vector.broadcast %0 : vector<1x256xf32> to vector<16x256xf32>
      %76 = arith.addf %74, %75 : vector<16x256xf32>
      %cst_65 = arith.constant 0.000000e+00 : f32
      %77 = vector.broadcast %cst_65 : f32 to vector<16x256xf32>
      %78 = arith.maximumf %76, %77 : vector<16x256xf32>
      %79 = arith.truncf %78 : vector<16x256xf32> to vector<16x256xbf16>
      %c0_66 = arith.constant 0 : index
      %80 = arith.index_cast %arg5 : i32 to index
      %c0_67 = arith.constant 0 : index
      %c0_68 = arith.constant 0 : index
      %81 = vector.load %arg4[%c0_66, %80, %c0_67, %c0_68] : memref<1x16x16x256xbf16, #tpu.memory_space<vmem>>, vector<1x1x16x256xbf16>
      %82 = vector.shape_cast %81 : vector<1x1x16x256xbf16> to vector<16x256xbf16>
      %83 = vector.shape_cast %79 : vector<16x256xbf16> to vector<1x1x16x256xbf16>
      tpu.vector_store %arg4[%c0_66, %80, %c0_67, %c0_68], %83 {strides = array<i32>} : memref<1x16x16x256xbf16, #tpu.memory_space<vmem>>, vector<1x1x16x256xbf16>,
    }
    %c16_i32_1 = arith.constant 16 : i32
    return
  }
  func.func @transform_0(%arg0: i32) -> (i32, i32, i32, i32) {
    %c0_i32 = arith.constant 0 : i32
    %c0_i32_0 = arith.constant 0 : i32
    %c0_i32_1 = arith.constant 0 : i32
    %c0_i32_2 = arith.constant 0 : i32
    return %arg0, %c0_i32, %c0_i32_0, %c0_i32_1 : i32, i32, i32, i32
  }
  func.func @transform_1(%arg0: i32) -> (i32, i32, i32) {
    %c0_i32 = arith.constant 0 : i32
    %c0_i32_0 = arith.constant 0 : i32
    %c0_i32_1 = arith.constant 0 : i32
    %c0_i32_2 = arith.constant 0 : i32
    return %c0_i32, %c0_i32_0, %c0_i32_1 : i32, i32, i32
  }
  func.func @transform_2(%arg0: i32) -> (i32, i32) {
    %c0_i32 = arith.constant 0 : i32
    %c0_i32_0 = arith.constant 0 : i32
    %c0_i32_1 = arith.constant 0 : i32
    return %c0_i32, %c0_i32_0 : i32, i32
  }
  func.func @transform_3(%arg0: i32) -> (i32, i32, i32, i32) {
    %c0_i32 = arith.constant 0 : i32
    %c0_i32_0 = arith.constant 0 : i32
    %c0_i32_1 = arith.constant 0 : i32
    %c0_i32_2 = arith.constant 0 : i32
    return %arg0, %c0_i32, %c0_i32_0, %c0_i32_1 : i32, i32, i32, i32
  }
}

module attributes {stable_mosaic.version = 11 : i64} {
  func.func @_maxpool2x2_kernel(%arg0: i32, %arg1: memref<16x2x8x512xbf16, #tpu.memory_space<vmem>>, %arg2: memref<16x8x256xbf16, #tpu.memory_space<vmem>>) attributes {dimension_semantics = [#tpu.dimension_semantics<arbitrary>], iteration_bounds = array<i64: 1>, scalar_prefetch = 0 : i64, scratch_operands = 0 : i64, tpu.core_type = #tpu.core_type<tc>, window_params = [{pipeline_mode = #tpu.pipeline_mode<synchronous>, transform_indices = @transform_0, window_bounds = array<i64: 16, 2, 8, 512>}, {pipeline_mode = #tpu.pipeline_mode<synchronous>, transform_indices = @transform_1, window_bounds = array<i64: 16, 8, 256>}]} {
    %c0 = arith.constant 0 : index
    %c0_0 = arith.constant 0 : index
    %c0_1 = arith.constant 0 : index
    %c0_2 = arith.constant 0 : index
    %0 = vector.load %arg1[%c0, %c0_0, %c0_1, %c0_2] : memref<16x2x8x512xbf16, #tpu.memory_space<vmem>>, vector<16x2x8x512xbf16>
    %1 = vector.extract_strided_slice %0 {offsets = [0, 0, 0, 0], sizes = [16, 1, 8, 512], strides = [1, 1, 1, 1]} : vector<16x2x8x512xbf16> to vector<16x1x8x512xbf16>
    %2 = vector.shape_cast %1 : vector<16x1x8x512xbf16> to vector<16x8x512xbf16>
    %3 = vector.extract_strided_slice %0 {offsets = [0, 1, 0, 0], sizes = [16, 1, 8, 512], strides = [1, 1, 1, 1]} : vector<16x2x8x512xbf16> to vector<16x1x8x512xbf16>
    %4 = vector.shape_cast %3 : vector<16x1x8x512xbf16> to vector<16x8x512xbf16>
    %5 = arith.maximumf %2, %4 : vector<16x8x512xbf16>
    %6 = vector.extract_strided_slice %5 {offsets = [0, 0, 0], sizes = [16, 8, 256], strides = [1, 1, 1]} : vector<16x8x512xbf16> to vector<16x8x256xbf16>
    %7 = vector.extract_strided_slice %5 {offsets = [0, 0, 256], sizes = [16, 8, 256], strides = [1, 1, 1]} : vector<16x8x512xbf16> to vector<16x8x256xbf16>
    %8 = arith.maximumf %6, %7 : vector<16x8x256xbf16>
    %c0_3 = arith.constant 0 : index
    %c0_4 = arith.constant 0 : index
    %c0_5 = arith.constant 0 : index
    %9 = vector.load %arg2[%c0_3, %c0_4, %c0_5] : memref<16x8x256xbf16, #tpu.memory_space<vmem>>, vector<16x8x256xbf16>
    tpu.vector_store %arg2[%c0_3, %c0_4, %c0_5], %8 {strides = array<i32>} : memref<16x8x256xbf16, #tpu.memory_space<vmem>>, vector<16x8x256xbf16>,
    return
  }
  func.func @transform_0(%arg0: i32) -> (i32, i32, i32, i32) {
    %c0_i32 = arith.constant 0 : i32
    %c0_i32_0 = arith.constant 0 : i32
    %c0_i32_1 = arith.constant 0 : i32
    %c0_i32_2 = arith.constant 0 : i32
    %c0_i32_3 = arith.constant 0 : i32
    return %c0_i32, %c0_i32_0, %c0_i32_1, %c0_i32_2 : i32, i32, i32, i32
  }
  func.func @transform_1(%arg0: i32) -> (i32, i32, i32) {
    %c0_i32 = arith.constant 0 : i32
    %c0_i32_0 = arith.constant 0 : i32
    %c0_i32_1 = arith.constant 0 : i32
    %c0_i32_2 = arith.constant 0 : i32
    return %c0_i32, %c0_i32_0, %c0_i32_1 : i32, i32, i32
  }
}

module attributes {stable_mosaic.version = 11 : i64} {
  func.func @_linear_acc_kernel(%arg0: i32, %arg1: i32, %arg2: memref<8x2048xbf16, #tpu.memory_space<vmem>>, %arg3: memref<2048x512xbf16, #tpu.memory_space<vmem>>, %arg4: memref<1x512xf32, #tpu.memory_space<vmem>>, %arg5: memref<8x512xbf16, #tpu.memory_space<vmem>>, %arg6: memref<8x512xf32, #tpu.memory_space<vmem>>) attributes {dimension_semantics = [#tpu.dimension_semantics<parallel>, #tpu.dimension_semantics<arbitrary>], iteration_bounds = array<i64: 1, 8>, scalar_prefetch = 0 : i64, scratch_operands = 1 : i64, tpu.core_type = #tpu.core_type<tc>, window_params = [{transform_indices = @transform_0, window_bounds = array<i64: 8, 2048>}, {transform_indices = @transform_1, window_bounds = array<i64: 2048, 512>}, {transform_indices = @transform_2, window_bounds = array<i64: 1, 512>}, {transform_indices = @transform_3, window_bounds = array<i64: 8, 512>}]} {
    %c0_i32 = arith.constant 0 : i32
    %0 = arith.cmpi eq, %arg1, %c0_i32 : i32
    %1 = arith.extui %0 : i1 to i32
    %c0_i32_0 = arith.constant 0 : i32
    %2 = arith.cmpi ne, %1, %c0_i32_0 : i32
    scf.if %2 {
      %cst_9 = arith.constant 0.000000e+00 : f32
      %12 = vector.broadcast %cst_9 : f32 to vector<8x512xf32>
      %c0_10 = arith.constant 0 : index
      %c0_11 = arith.constant 0 : index
      %13 = vector.load %arg6[%c0_10, %c0_11] : memref<8x512xf32, #tpu.memory_space<vmem>>, vector<8x512xf32>
      tpu.vector_store %arg6[%c0_10, %c0_11], %12 {strides = array<i32>} : memref<8x512xf32, #tpu.memory_space<vmem>>, vector<8x512xf32>,
    } else {
    }
    %c0 = arith.constant 0 : index
    %c0_1 = arith.constant 0 : index
    %3 = vector.load %arg6[%c0, %c0_1] : memref<8x512xf32, #tpu.memory_space<vmem>>, vector<8x512xf32>
    %c0_2 = arith.constant 0 : index
    %c0_3 = arith.constant 0 : index
    %4 = vector.load %arg2[%c0_2, %c0_3] : memref<8x2048xbf16, #tpu.memory_space<vmem>>, vector<8x2048xbf16>
    %c0_4 = arith.constant 0 : index
    %c0_5 = arith.constant 0 : index
    %5 = vector.load %arg3[%c0_4, %c0_5] : memref<2048x512xbf16, #tpu.memory_space<vmem>>, vector<2048x512xbf16>
    %cst = arith.constant dense<0.000000e+00> : vector<8x512xf32>
    %6 = tpu.matmul %4, %5, %cst {dimension_numbers = #tpu.dot_dimension_numbers<[1], [0], [0], [1], [0, 0, 1, 1], [], []>} : vector<8x2048xbf16>, vector<2048x512xbf16>, vector<8x512xf32> -> vector<8x512xf32>
    %7 = arith.addf %3, %6 : vector<8x512xf32>
    %c0_6 = arith.constant 0 : index
    %c0_7 = arith.constant 0 : index
    %8 = vector.load %arg6[%c0_6, %c0_7] : memref<8x512xf32, #tpu.memory_space<vmem>>, vector<8x512xf32>
    tpu.vector_store %arg6[%c0_6, %c0_7], %7 {strides = array<i32>} : memref<8x512xf32, #tpu.memory_space<vmem>>, vector<8x512xf32>,
    %c7_i32 = arith.constant 7 : i32
    %9 = arith.cmpi eq, %arg1, %c7_i32 : i32
    %10 = arith.extui %9 : i1 to i32
    %c0_i32_8 = arith.constant 0 : i32
    %11 = arith.cmpi ne, %10, %c0_i32_8 : i32
    scf.if %11 {
      %c0_9 = arith.constant 0 : index
      %c0_10 = arith.constant 0 : index
      %12 = vector.load %arg6[%c0_9, %c0_10] : memref<8x512xf32, #tpu.memory_space<vmem>>, vector<8x512xf32>
      %c0_11 = arith.constant 0 : index
      %c0_12 = arith.constant 0 : index
      %13 = vector.load %arg4[%c0_11, %c0_12] : memref<1x512xf32, #tpu.memory_space<vmem>>, vector<1x512xf32>
      %14 = vector.broadcast %13 : vector<1x512xf32> to vector<8x512xf32>
      %15 = arith.addf %12, %14 : vector<8x512xf32>
      %cst_13 = arith.constant 0.000000e+00 : f32
      %16 = vector.broadcast %cst_13 : f32 to vector<8x512xf32>
      %17 = arith.maximumf %15, %16 : vector<8x512xf32>
      %18 = arith.truncf %17 : vector<8x512xf32> to vector<8x512xbf16>
      %c0_14 = arith.constant 0 : index
      %c0_15 = arith.constant 0 : index
      %19 = vector.load %arg5[%c0_14, %c0_15] : memref<8x512xbf16, #tpu.memory_space<vmem>>, vector<8x512xbf16>
      tpu.vector_store %arg5[%c0_14, %c0_15], %18 {strides = array<i32>} : memref<8x512xbf16, #tpu.memory_space<vmem>>, vector<8x512xbf16>,
    } else {
    }
    return
  }
  func.func @transform_0(%arg0: i32, %arg1: i32) -> (i32, i32) {
    %c0_i32 = arith.constant 0 : i32
    %c0_i32_0 = arith.constant 0 : i32
    return %c0_i32, %arg1 : i32, i32
  }
  func.func @transform_1(%arg0: i32, %arg1: i32) -> (i32, i32) {
    %c0_i32 = arith.constant 0 : i32
    return %arg1, %arg0 : i32, i32
  }
  func.func @transform_2(%arg0: i32, %arg1: i32) -> (i32, i32) {
    %c0_i32 = arith.constant 0 : i32
    %c0_i32_0 = arith.constant 0 : i32
    return %c0_i32, %arg0 : i32, i32
  }
  func.func @transform_3(%arg0: i32, %arg1: i32) -> (i32, i32) {
    %c0_i32 = arith.constant 0 : i32
    %c0_i32_0 = arith.constant 0 : i32
    return %c0_i32, %arg0 : i32, i32
  }
}

module attributes {stable_mosaic.version = 11 : i64} {
  func.func @_linear_kernel(%arg0: i32, %arg1: memref<8x512xbf16, #tpu.memory_space<vmem>>, %arg2: memref<512x128xbf16, #tpu.memory_space<vmem>>, %arg3: memref<1x128xf32, #tpu.memory_space<vmem>>, %arg4: memref<8x128xf32, #tpu.memory_space<vmem>>) attributes {dimension_semantics = [#tpu.dimension_semantics<parallel>], iteration_bounds = array<i64: 1>, scalar_prefetch = 0 : i64, scratch_operands = 0 : i64, tpu.core_type = #tpu.core_type<tc>, window_params = [{pipeline_mode = #tpu.pipeline_mode<synchronous>, transform_indices = @transform_0, window_bounds = array<i64: 8, 512>}, {transform_indices = @transform_1, window_bounds = array<i64: 512, 128>}, {transform_indices = @transform_2, window_bounds = array<i64: 1, 128>}, {transform_indices = @transform_3, window_bounds = array<i64: 8, 128>}]} {
    %c0 = arith.constant 0 : index
    %c0_0 = arith.constant 0 : index
    %0 = vector.load %arg1[%c0, %c0_0] : memref<8x512xbf16, #tpu.memory_space<vmem>>, vector<8x512xbf16>
    %c0_1 = arith.constant 0 : index
    %c0_2 = arith.constant 0 : index
    %1 = vector.load %arg2[%c0_1, %c0_2] : memref<512x128xbf16, #tpu.memory_space<vmem>>, vector<512x128xbf16>
    %cst = arith.constant dense<0.000000e+00> : vector<8x128xf32>
    %2 = tpu.matmul %0, %1, %cst {dimension_numbers = #tpu.dot_dimension_numbers<[1], [0], [0], [1], [0, 0, 1, 1], [], []>} : vector<8x512xbf16>, vector<512x128xbf16>, vector<8x128xf32> -> vector<8x128xf32>
    %c0_3 = arith.constant 0 : index
    %c0_4 = arith.constant 0 : index
    %3 = vector.load %arg3[%c0_3, %c0_4] : memref<1x128xf32, #tpu.memory_space<vmem>>, vector<1x128xf32>
    %4 = vector.broadcast %3 : vector<1x128xf32> to vector<8x128xf32>
    %5 = arith.addf %2, %4 : vector<8x128xf32>
    %c0_5 = arith.constant 0 : index
    %c0_6 = arith.constant 0 : index
    %6 = vector.load %arg4[%c0_5, %c0_6] : memref<8x128xf32, #tpu.memory_space<vmem>>, vector<8x128xf32>
    tpu.vector_store %arg4[%c0_5, %c0_6], %5 {strides = array<i32>} : memref<8x128xf32, #tpu.memory_space<vmem>>, vector<8x128xf32>,
    return
  }
  func.func @transform_0(%arg0: i32) -> (i32, i32) {
    %c0_i32 = arith.constant 0 : i32
    %c0_i32_0 = arith.constant 0 : i32
    %c0_i32_1 = arith.constant 0 : i32
    return %c0_i32, %c0_i32_0 : i32, i32
  }
  func.func @transform_1(%arg0: i32) -> (i32, i32) {
    %c0_i32 = arith.constant 0 : i32
    %c0_i32_0 = arith.constant 0 : i32
    return %c0_i32, %arg0 : i32, i32
  }
  func.func @transform_2(%arg0: i32) -> (i32, i32) {
    %c0_i32 = arith.constant 0 : i32
    %c0_i32_0 = arith.constant 0 : i32
    return %c0_i32, %arg0 : i32, i32
  }
  func.func @transform_3(%arg0: i32) -> (i32, i32) {
    %c0_i32 = arith.constant 0 : i32
    %c0_i32_0 = arith.constant 0 : i32
    return %c0_i32, %arg0 : i32, i32
  }
}

</mosaic_0001>

<llo_original>
// kernel: forward.7
$region0: #{forward.7}
  #allocation0 [shape = 'u32[]', space=smem, size = 0x4, offset = 0x4, fixed_abs, tag = 'smem constant byte address 0x4 - core index']
  #allocation1 [shape = 'u32[72,128]{1,0:T(1,128)}', space=vmem, size = 0x9000, scoped, tag = 'internal scratch']
  %s0 = inlined_call_operand.vmem [shape: bf16[2,34,34,128], index: 0, kind: input, shape index: {}]
  %s1 = inlined_call_operand.vmem [shape: bf16[9,128,64], index: 1, kind: input, shape index: {}]
  %s2 = inlined_call_operand.hbm [shape: f32[1,64], index: 2, kind: input, shape index: {}]
  %s3 = inlined_call_operand.vmem [shape: bf16[2,32,32,64], index: 3, kind: output, shape index: {}]
  %s4 = sld [smem:[#allocation0]]
  $region56: #{forward.7} parent=0
    _
  %s6 = ssub.s32 1, %s4
  %s7 = scalar_select 0, %s6, %s4
  $region1: #{forward.7} parent=0
    #allocation2 [shape = 'u8[512]{0}', space=vmem, size = 0x400, scoped, tag = 'input window, operand 2, single buffered']
    #allocation3 [shape = 's32[2]{0}', space=sflag, size = 0x8, scoped, tag = 'scoped memory for forward.7']
    %8 = vsyncpa [#allocation3], 0
    loop: start=0, step=1, limit=4
    $region2: #{forward.7} parent=1 // loop_pre_header
      _
    $region3: #{forward.7} parent=1 // loop_header
      %s10 = sphi 0, %s14
      %p11 = scmp.ge.s32.totalorder %s10, 4
      %s20 = sphi 0, %s22
      %s23 = sphi 0, %s20
      %s24 = sphi 0, %s23
      %s40 = sphi 0, %s24
      %s44 = sphi 0, %s44
      %s46 = sphi 0, %s44
      %s47 = sphi 0, %s46
      %s61 = sphi 0, %s47
      %s65 = sphi 0, %s65
      %s67 = sphi 0, %s65
      %s68 = sphi 0, %s67
      %s82 = sphi 0, %s68
      %s88 = sphi 0, %s90
      %s91 = sphi 0, %s88
      %s92 = sphi 0, %s91
      %s108 = sphi 0, %s92
    $region4: #{forward.7} parent=1 // loop_header_branch
      %13 = sbr.rel (%p11) target = $region8
    $region5: #{forward.7} parent=1 // loop_body
      %s15 = ssub.s32 %s10, 1
      %s16 = ssub.s32 %s10, 2
      %s17 = sadd.s32 %s10, 1
      %s18 = ssub.s32 %s10, %s17
      %p19 = scmp.eq.s32.totalorder %s18, 0
      %s21 = sadd.s32 %s20, 1
      %s22 = scalar_select %p19, %s20, %s21
      %p25 = pneg %p19
      %p26 = scmp.eq.s32.totalorder %s10, 1
      %p27 = por %p25, %p26
      %p28 = scmp.ne.s32.totalorder %s20, %s23
      %p29 = scmp.eq.s32.totalorder %s10, 0
      %p30 = por %p28, %p29
      %p31 = scmp.ne.s32.totalorder %s20, %s23
      %p32 = scmp.eq.s32.totalorder %s15, 1
      %p33 = por %p31, %p32
      %p34 = scmp.ne.s32.totalorder %s23, %s24
      %p35 = scmp.eq.s32.totalorder %s15, 0
      %p36 = por %p34, %p35
      %p37 = scmp.ne.s32.totalorder %s23, %s24
      %p38 = scmp.eq.s32.totalorder %s16, 1
      %p39 = por %p37, %p38
      %p41 = scmp.ne.s32.totalorder %s24, %s40
      %p42 = scmp.eq.s32.totalorder %s16, 0
      %p43 = por %p41, %p42
      %s45 = sadd.s32 %s44, 1
      %p48 = scmp.eq.s32.totalorder %s10, 1
      %p49 = scmp.ne.s32.totalorder %s44, %s46
      %p50 = scmp.eq.s32.totalorder %s10, 0
      %p51 = por %p49, %p50
      %p52 = scmp.ne.s32.totalorder %s44, %s46
      %p53 = scmp.eq.s32.totalorder %s15, 1
      %p54 = por %p52, %p53
      %p55 = scmp.ne.s32.totalorder %s46, %s47
      %p56 = scmp.eq.s32.totalorder %s15, 0
      %p57 = por %p55, %p56
      %p58 = scmp.ne.s32.totalorder %s46, %s47
      %p59 = scmp.eq.s32.totalorder %s16, 1
      %p60 = por %p58, %p59
      %p62 = scmp.ne.s32.totalorder %s47, %s61
      %p63 = scmp.eq.s32.totalorder %s16, 0
      %p64 = por %p62, %p63
      %s66 = sadd.s32 %s65, 1
      %p69 = scmp.eq.s32.totalorder %s10, 1
      %p70 = scmp.ne.s32.totalorder %s65, %s67
      %p71 = scmp.eq.s32.totalorder %s10, 0
      %p72 = por %p70, %p71
      %p73 = scmp.ne.s32.totalorder %s65, %s67
      %p74 = scmp.eq.s32.totalorder %s15, 1
      %p75 = por %p73, %p74
      %p76 = scmp.ne.s32.totalorder %s67, %s68
      %p77 = scmp.eq.s32.totalorder %s15, 0
      %p78 = por %p76, %p77
      %p79 = scmp.ne.s32.totalorder %s67, %s68
      %p80 = scmp.eq.s32.totalorder %s16, 1
      %p81 = por %p79, %p80
      %p83 = scmp.ne.s32.totalorder %s68, %s82
      %p84 = scmp.eq.s32.totalorder %s16, 0
      %p85 = por %p83, %p84
      %s86 = ssub.s32 %s10, %s17
      %p87 = scmp.eq.s32.totalorder %s86, 0
      %s89 = sadd.s32 %s88, 1
      %s90 = scalar_select %p87, %s88, %s89
      %p93 = pneg %p87
      %p94 = scmp.eq.s32.totalorder %s10, 1
      %p95 = por %p93, %p94
      %p96 = scmp.ne.s32.totalorder %s88, %s91
      %p97 = scmp.eq.s32.totalorder %s10, 0
      %p98 = por %p96, %p97
      %p99 = scmp.ne.s32.totalorder %s88, %s91
      %p100 = scmp.eq.s32.totalorder %s15, 1
      %p101 = por %p99, %p100
      %p102 = scmp.ne.s32.totalorder %s91, %s92
      %p103 = scmp.eq.s32.totalorder %s15, 0
      %p104 = por %p102, %p103
      %p105 = scmp.ne.s32.totalorder %s91, %s92
      %p106 = scmp.eq.s32.totalorder %s16, 1
      %p107 = por %p105, %p106
      %p109 = scmp.ne.s32.totalorder %s92, %s108
      %p110 = scmp.eq.s32.totalorder %s16, 0
      %p111 = por %p109, %p110
      %p112 = scmp.le.s32.totalorder 1, %s10
      %p113 = scmp.lt.s32.totalorder %s10, 3
      %p114 = pnand %p112, %p113
      %p115 = pneg %p114
      // Predicated region
      $region9: #{forward.7} parent=5 // pred_check
        _
      $region10: #{forward.7} parent=5 // pred_check_branch
        %117 = sbr.rel (%p114) target = $region12
      $region11: #{forward.7} parent=5 // pred_region
        %s118 = ssub.s32 %s10, 1
        // Predicated region
        $region13: #{forward.7} parent=11 // pred_check
          %p119 = pneg %p57
        $region14: #{forward.7} parent=11 // pred_check_branch
          %121 = sbr.rel (%p119) target = $region16
        $region15: #{forward.7} parent=11 // pred_region
          _
        $region16: #{forward.7} parent=11 // pred_fallthru
          _
        // Predicated region
        $region17: #{forward.7} parent=11 // pred_check
          %p122 = pneg %p78
        $region18: #{forward.7} parent=11 // pred_check_branch
          %124 = sbr.rel (%p122) target = $region20
        $region19: #{forward.7} parent=11 // pred_region
          %126 = vsyncadd [#allocation3], 0
          %s128 = sshll.u32 %s2, 4
          %s129 = int_to_ptr.hbm [resolvable:$true] %s128
          %s130 = sshll.u32 [#allocation2], 4
          %s131 = int_to_ptr.vmem [resolvable:$true] %s130
          %133 = dma.hbm_to_vmem [thread:$0]  %s129, 16, %s131, [#allocation3]
        $region20: #{forward.7} parent=11 // pred_fallthru
          _
      $region12: #{forward.7} parent=5 // pred_fallthru
        _
      %p134 = scmp.lt.s32.totalorder %s10, 2
      // Predicated region
      $region21: #{forward.7} parent=5 // pred_check
        %p135 = pneg %p134
      $region22: #{forward.7} parent=5 // pred_check_branch
        %137 = sbr.rel (%p135) target = $region24
      $region23: #{forward.7} parent=5 // pred_region
        // Predicated region
        $region25: #{forward.7} parent=23 // pred_check
          %p138 = pneg %p30
        $region26: #{forward.7} parent=23 // pred_check_branch
          %140 = sbr.rel (%p138) target = $region28
        $region27: #{forward.7} parent=23 // pred_region
          %p141 = scmp.lt.s32.totalorder %s10, 1
          %s142 = scalar_select %p141, %s10, 1
          %s143 = smul.addr %s142, 170
          %s144 = smul.addr %s143, 4
          %s145 = scalar_lea.vmem %s0, %s144
        $region28: #{forward.7} parent=23 // pred_fallthru
          _
      $region24: #{forward.7} parent=5 // pred_fallthru
        _
      %p146 = scmp.le.s32.totalorder 1, %s10
      %p147 = scmp.lt.s32.totalorder %s10, 3
      %p148 = pnand %p146, %p147
      %p149 = pneg %p148
      // Predicated region
      $region29: #{forward.7} parent=5 // pred_check
        _
      $region30: #{forward.7} parent=5 // pred_check_branch
        %151 = sbr.rel (%p148) target = $region32
      $region31: #{forward.7} parent=5 // pred_region
        %s152 = ssub.s32 %s10, 1
        // Predicated region
        $region33: #{forward.7} parent=31 // pred_check
          %p153 = pneg %p78
        $region34: #{forward.7} parent=31 // pred_check_branch
          %155 = sbr.rel (%p153) target = $region36
        $region35: #{forward.7} parent=31 // pred_region
          %157 = dma.done [#allocation3], 16
        $region36: #{forward.7} parent=31 // pred_fallthru
          _
        %p158 = scmp.lt.s32.totalorder %s15, 1
        %s159 = scalar_select %p158, %s15, 1
        %s160 = smul.addr %s159, 170
        %s161 = smul.addr %s160, 4
        %s162 = scalar_lea.vmem %s0, %s161
        %p163 = pneg %p36
        %p164 = pneg %p33
        %p165 = pneg %p57
        %p166 = pneg %p54
        %p167 = pneg %p78
        %p168 = pneg %p75
        %p169 = pneg %p104
        %p170 = pneg %p101
        %p171 = scmp.lt.s32.totalorder %s15, 1
        %s172 = scalar_select %p171, %s15, 1
        %s173 = smul.addr %s172, 128
        %s174 = smul.addr %s173, 4
        %s175 = scalar_lea.vmem %s3, %s174
        %p176 = scmp.lt.s32.totalorder %s15, 1
        %s177 = scalar_select %p176, %s15, 1
        %s178 = smul.addr %s177, 170
        %s179 = smul.addr %s178, 4
        %s180 = scalar_lea.vmem %s0, %s179
        %p181 = scmp.lt.s32.totalorder %s15, 1
        %s182 = scalar_select %p181, %s15, 1
        %s183 = smul.addr %s182, 128
        %s184 = smul.addr %s183, 4
        %s185 = scalar_lea.vmem %s3, %s184
        %v186 = vld [vmem:[#allocation2] sm:$0x1]
        loop: start=0, step=1, limit=32
        $region37: #{forward.7} parent=31 // loop_pre_header
          _
        $region38: #{forward.7} parent=31 // loop_header
          %s188 = sphi 0, %s192
          %p189 = scmp.ge.s32.totalorder %s188, 32
        $region39: #{forward.7} parent=31 // loop_header_branch
          %191 = sbr.rel (%p189) target = $region43
        $region40: #{forward.7} parent=31 // loop_body
          %s193 = smul.u32 %s188, 5
          %s194 = smul.addr %s193, 4
          %s195 = scalar_lea.vmem %s180, %s194
          %v196 = vld [vmem:[%s195] sm:$0xf]
          %v197 = vld [vmem:[%s195 + $0x4] sm:$0xf]
          %v198 = vld [vmem:[%s195 + $0x8] sm:$0xf]
          %v199 = vld [vmem:[%s195 + $0xc] sm:$0xf]
          %v200 = vld [vmem:[%s1] sm:$0xf]
          %v201 = vld [vmem:[%s1 + $0x4] sm:$0xf]
          %v202 = vld [vmem:[%s1 + $0x8] sm:$0xf]
          %v203 = vld [vmem:[%s1 + $0xc] sm:$0xf]
          %v204 = vld [vmem:[%s1 + $0x10] sm:$0xf]
          %v205 = vld [vmem:[%s1 + $0x14] sm:$0xf]
          %v206 = vld [vmem:[%s1 + $0x18] sm:$0xf]
          %v207 = vld [vmem:[%s1 + $0x1c] sm:$0xf]
          %v208 = vld [vmem:[%s1 + $0x20] sm:$0xf]
          %v209 = vld [vmem:[%s1 + $0x24] sm:$0xf]
          %v210 = vld [vmem:[%s1 + $0x28] sm:$0xf]
          %v211 = vld [vmem:[%s1 + $0x2c] sm:$0xf]
          %v212 = vld [vmem:[%s1 + $0x30] sm:$0xf]
          %v213 = vld [vmem:[%s1 + $0x34] sm:$0xf]
          %v214 = vld [vmem:[%s1 + $0x38] sm:$0xf]
          %v215 = vld [vmem:[%s1 + $0x3c] sm:$0xf]
          %v216 = vld [vmem:[%s195 + $0x10] sm:$0x1]
          %s217 = scalar_lea.vmem %s1, 64
          %v218 = vld [vmem:[%s217] sm:$0xf]
          %v219 = vld [vmem:[%s217 + $0x4] sm:$0xf]
          %v220 = vld [vmem:[%s217 + $0x8] sm:$0xf]
          %v221 = vld [vmem:[%s217 + $0xc] sm:$0xf]
          %v222 = vld [vmem:[%s217 + $0x10] sm:$0xf]
          %v223 = vld [vmem:[%s217 + $0x14] sm:$0xf]
          %v224 = vld [vmem:[%s217 + $0x18] sm:$0xf]
          %v225 = vld [vmem:[%s217 + $0x1c] sm:$0xf]
          %v226 = vld [vmem:[%s217 + $0x20] sm:$0xf]
          %v227 = vld [vmem:[%s217 + $0x24] sm:$0xf]
          %v228 = vld [vmem:[%s217 + $0x28] sm:$0xf]
          %v229 = vld [vmem:[%s217 + $0x2c] sm:$0xf]
          %v230 = vld [vmem:[%s217 + $0x30] sm:$0xf]
          %v231 = vld [vmem:[%s217 + $0x34] sm:$0xf]
          %v232 = vld [vmem:[%s217 + $0x38] sm:$0xf]
          %v233 = vld [vmem:[%s217 + $0x3c] sm:$0xf]
          %v239 = vunpack.c.l.b16 %v196
          %v240 = vunpack.c.l.b16 %v197
          %v241 = vunpack.c.l.b16 %v198
          %v242 = vunpack.c.l.b16 %v199
          %v243 = vunpack.c.l.b16 %v216
          %v244 = vpack.c.b16 %v240, %v239
          %v245 = vpack.c.b16 %v242, %v241
          %v246 = vpack.c.b16 %v243, %v243
          %vm247 = vsmask.f32 7424
          %v249 = vshrl.u32 %v244, 16
          %v251 = vshll.u32 %v244, 16
          %v253 = vrot.slane %v251, 1
          %v254 = vor.u32 %v249, %v253
          %v256 = vshll.u32 %v245, 16
          %v258 = vrot.slane %v256, 1
          %v259 = vsel %vm247, %v254, %v258
          %v260 = vshrl.u32 %v245, 16
          %v262 = vor.u32 %v260, %v258
          %v264 = vshll.u32 %v246, 16
          %v266 = vrot.slane %v264, 1
          %v267 = vsel %vm247, %v262, %v266
          %v286 = vunpack.c.l.b16 %v218
          %v287 = vunpack.c.l.b16 %v219
          %v288 = vunpack.c.l.b16 %v220
          %v289 = vunpack.c.l.b16 %v221
          %v290 = vunpack.c.l.b16 %v222
          %v291 = vunpack.c.l.b16 %v223
          %v292 = vunpack.c.l.b16 %v224
          %v293 = vunpack.c.l.b16 %v225
          %v294 = vunpack.c.l.b16 %v226
          %v295 = vunpack.c.l.b16 %v227
          %v296 = vunpack.c.l.b16 %v228
          %v297 = vunpack.c.l.b16 %v229
          %v298 = vunpack.c.l.b16 %v230
          %v299 = vunpack.c.l.b16 %v231
          %v300 = vunpack.c.l.b16 %v232
          %v301 = vunpack.c.l.b16 %v233
          %v302 = vpack.c.b16 %v287, %v286
          %v303 = vpack.c.b16 %v289, %v288
          %v304 = vpack.c.b16 %v291, %v290
          %v305 = vpack.c.b16 %v293, %v292
          %v306 = vpack.c.b16 %v295, %v294
          %v307 = vpack.c.b16 %v297, %v296
          %v308 = vpack.c.b16 %v299, %v298
          %v309 = vpack.c.b16 %v301, %v300
          %318 = vmatpush.bf16.msra.mxu0 %v309
          %319 = vmatpush.bf16.msra.mxu0 %v308
          %320 = vmatpush.bf16.msra.mxu0 %v307
          %321 = vmatpush.bf16.msra.mxu0 %v306
          %322 = vmatpush.bf16.msra.mxu0 %v305
          %323 = vmatpush.bf16.msra.mxu0 %v304
          %324 = vmatpush.bf16.msra.mxu0 %v303
          %325 = vmatpush.bf16.msra.mxu0 %v302
          %326 = vmatmul.bf16.gmra.mxu0 %v259
          %v327 = vpop.f32.mrf.mxu0
          %v328 = vadd.f32 0.0, %v327
          %v329 = vpop.f32.mrf.mxu0
          %v330 = vadd.f32 0.0, %v329
          %331 = vmatmul.bf16.gmra.mxu0 %v267
          %v332 = vpop.f32.mrf.mxu0
          %v333 = vadd.f32 0.0, %v332
          %v334 = vpop.f32.mrf.mxu0
          %v335 = vadd.f32 0.0, %v334
          %336 = vdwg.mxu0
          %v355 = vunpack.c.l.b16 %v200
          %v356 = vunpack.c.l.b16 %v201
          %v357 = vunpack.c.l.b16 %v202
          %v358 = vunpack.c.l.b16 %v203
          %v359 = vunpack.c.l.b16 %v204
          %v360 = vunpack.c.l.b16 %v205
          %v361 = vunpack.c.l.b16 %v206
          %v362 = vunpack.c.l.b16 %v207
          %v363 = vunpack.c.l.b16 %v208
          %v364 = vunpack.c.l.b16 %v209
          %v365 = vunpack.c.l.b16 %v210
          %v366 = vunpack.c.l.b16 %v211
          %v367 = vunpack.c.l.b16 %v212
          %v368 = vunpack.c.l.b16 %v213
          %v369 = vunpack.c.l.b16 %v214
          %v370 = vunpack.c.l.b16 %v215
          %v371 = vpack.c.b16 %v356, %v355
          %v372 = vpack.c.b16 %v358, %v357
          %v373 = vpack.c.b16 %v360, %v359
          %v374 = vpack.c.b16 %v362, %v361
          %v375 = vpack.c.b16 %v364, %v363
          %v376 = vpack.c.b16 %v366, %v365
          %v377 = vpack.c.b16 %v368, %v367
          %v378 = vpack.c.b16 %v370, %v369
          %387 = vmatpush.bf16.msra.mxu0 %v378
          %388 = vmatpush.bf16.msra.mxu0 %v377
          %389 = vmatpush.bf16.msra.mxu0 %v376
          %390 = vmatpush.bf16.msra.mxu0 %v375
          %391 = vmatpush.bf16.msra.mxu0 %v374
          %392 = vmatpush.bf16.msra.mxu0 %v373
          %393 = vmatpush.bf16.msra.mxu0 %v372
          %394 = vmatpush.bf16.msra.mxu0 %v371
          %395 = vmatmul.bf16.gmra.mxu0 %v244
          %v396 = vpop.f32.mrf.mxu0
          %v397 = vadd.f32 %v328, %v396
          %v398 = vpop.f32.mrf.mxu0
          %v399 = vadd.f32 %v330, %v398
          %400 = vmatmul.bf16.gmra.mxu0 %v245
          %v401 = vpop.f32.mrf.mxu0
          %v402 = vadd.f32 %v333, %v401
          %v403 = vpop.f32.mrf.mxu0
          %v404 = vadd.f32 %v335, %v403
          %405 = vdwg.mxu0
          %v406 = vld [vmem:[%s195] sm:$0xe]
          %s407 = scalar_lea.vmem %s1, 128
          %v408 = vld [vmem:[%s407] sm:$0xf]
          %v409 = vld [vmem:[%s407 + $0x4] sm:$0xf]
          %v410 = vld [vmem:[%s407 + $0x8] sm:$0xf]
          %v411 = vld [vmem:[%s407 + $0xc] sm:$0xf]
          %v412 = vld [vmem:[%s407 + $0x10] sm:$0xf]
          %v413 = vld [vmem:[%s407 + $0x14] sm:$0xf]
          %v414 = vld [vmem:[%s407 + $0x18] sm:$0xf]
          %v415 = vld [vmem:[%s407 + $0x1c] sm:$0xf]
          %v416 = vld [vmem:[%s407 + $0x20] sm:$0xf]
          %v417 = vld [vmem:[%s407 + $0x24] sm:$0xf]
          %v418 = vld [vmem:[%s407 + $0x28] sm:$0xf]
          %v419 = vld [vmem:[%s407 + $0x2c] sm:$0xf]
          %v420 = vld [vmem:[%s407 + $0x30] sm:$0xf]
          %v421 = vld [vmem:[%s407 + $0x34] sm:$0xf]
          %v422 = vld [vmem:[%s407 + $0x38] sm:$0xf]
          %v423 = vld [vmem:[%s407 + $0x3c] sm:$0xf]
          %v425 = vunpack.c.l.b16 %v406
          %v426 = vpack.c.b16 %v240, %v425
          %vm427 = vcmask 1046528
          %v428 = vrot.slane %v426, 1
          %v429 = vrot.slane %v245, 1
          %v430 = vsel %vm427, %v428, %v429
          %v431 = vrot.slane %v246, 1
          %v432 = vsel %vm427, %v429, %v431
          %v451 = vunpack.c.l.b16 %v408
          %v452 = vunpack.c.l.b16 %v409
          %v453 = vunpack.c.l.b16 %v410
          %v454 = vunpack.c.l.b16 %v411
          %v455 = vunpack.c.l.b16 %v412
          %v456 = vunpack.c.l.b16 %v413
          %v457 = vunpack.c.l.b16 %v414
          %v458 = vunpack.c.l.b16 %v415
          %v459 = vunpack.c.l.b16 %v416
          %v460 = vunpack.c.l.b16 %v417
          %v461 = vunpack.c.l.b16 %v418
          %v462 = vunpack.c.l.b16 %v419
          %v463 = vunpack.c.l.b16 %v420
          %v464 = vunpack.c.l.b16 %v421
          %v465 = vunpack.c.l.b16 %v422
          %v466 = vunpack.c.l.b16 %v423
          %v467 = vpack.c.b16 %v452, %v451
          %v468 = vpack.c.b16 %v454, %v453
          %v469 = vpack.c.b16 %v456, %v455
          %v470 = vpack.c.b16 %v458, %v457
          %v471 = vpack.c.b16 %v460, %v459
          %v472 = vpack.c.b16 %v462, %v461
          %v473 = vpack.c.b16 %v464, %v463
          %v474 = vpack.c.b16 %v466, %v465
          %483 = vmatpush.bf16.msra.mxu0 %v474
          %484 = vmatpush.bf16.msra.mxu0 %v473
          %485 = vmatpush.bf16.msra.mxu0 %v472
          %486 = vmatpush.bf16.msra.mxu0 %v471
          %487 = vmatpush.bf16.msra.mxu0 %v470
          %488 = vmatpush.bf16.msra.mxu0 %v469
          %489 = vmatpush.bf16.msra.mxu0 %v468
          %490 = vmatpush.bf16.msra.mxu0 %v467
          %491 = vmatmul.bf16.gmra.mxu0 %v430
          %v492 = vpop.f32.mrf.mxu0
          %v493 = vadd.f32 0.0, %v492
          %v494 = vpop.f32.mrf.mxu0
          %v495 = vadd.f32 0.0, %v494
          %496 = vmatmul.bf16.gmra.mxu0 %v432
          %v497 = vpop.f32.mrf.mxu0
          %v498 = vadd.f32 0.0, %v497
          %v499 = vpop.f32.mrf.mxu0
          %v500 = vadd.f32 0.0, %v499
          %501 = vdwg.mxu0
          %v502 = vadd.f32 %v397, %v493
          %v503 = vadd.f32 %v399, %v495
          %v504 = vadd.f32 %v402, %v498
          %v505 = vadd.f32 %v404, %v500
          %s506 = sadd.s32 %s188, 1
          %s507 = smul.u32 %s506, 5
          %s508 = smul.addr %s507, 4
          %s509 = scalar_lea.vmem %s180, %s508
          %v510 = vld [vmem:[%s509] sm:$0xf]
          %v511 = vld [vmem:[%s509 + $0x4] sm:$0xf]
          %v512 = vld [vmem:[%s509 + $0x8] sm:$0xf]
          %v513 = vld [vmem:[%s509 + $0xc] sm:$0xf]
          %s514 = scalar_lea.vmem %s1, 192
          %v515 = vld [vmem:[%s514] sm:$0xf]
          %v516 = vld [vmem:[%s514 + $0x4] sm:$0xf]
          %v517 = vld [vmem:[%s514 + $0x8] sm:$0xf]
          %v518 = vld [vmem:[%s514 + $0xc] sm:$0xf]
          %v519 = vld [vmem:[%s514 + $0x10] sm:$0xf]
          %v520 = vld [vmem:[%s514 + $0x14] sm:$0xf]
          %v521 = vld [vmem:[%s514 + $0x18] sm:$0xf]
          %v522 = vld [vmem:[%s514 + $0x1c] sm:$0xf]
          %v523 = vld [vmem:[%s514 + $0x20] sm:$0xf]
          %v524 = vld [vmem:[%s514 + $0x24] sm:$0xf]
          %v525 = vld [vmem:[%s514 + $0x28] sm:$0xf]
          %v526 = vld [vmem:[%s514 + $0x2c] sm:$0xf]
          %v527 = vld [vmem:[%s514 + $0x30] sm:$0xf]
          %v528 = vld [vmem:[%s514 + $0x34] sm:$0xf]
          %v529 = vld [vmem:[%s514 + $0x38] sm:$0xf]
          %v530 = vld [vmem:[%s514 + $0x3c] sm:$0xf]
          %v535 = vunpack.c.l.b16 %v510
          %v536 = vunpack.c.l.b16 %v511
          %v537 = vunpack.c.l.b16 %v512
          %v538 = vunpack.c.l.b16 %v513
          %v539 = vpack.c.b16 %v536, %v535
          %v540 = vpack.c.b16 %v538, %v537
          %v559 = vunpack.c.l.b16 %v515
          %v560 = vunpack.c.l.b16 %v516
          %v561 = vunpack.c.l.b16 %v517
          %v562 = vunpack.c.l.b16 %v518
          %v563 = vunpack.c.l.b16 %v519
          %v564 = vunpack.c.l.b16 %v520
          %v565 = vunpack.c.l.b16 %v521
          %v566 = vunpack.c.l.b16 %v522
          %v567 = vunpack.c.l.b16 %v523
          %v568 = vunpack.c.l.b16 %v524
          %v569 = vunpack.c.l.b16 %v525
          %v570 = vunpack.c.l.b16 %v526
          %v571 = vunpack.c.l.b16 %v527
          %v572 = vunpack.c.l.b16 %v528
          %v573 = vunpack.c.l.b16 %v529
          %v574 = vunpack.c.l.b16 %v530
          %v575 = vpack.c.b16 %v560, %v559
          %v576 = vpack.c.b16 %v562, %v561
          %v577 = vpack.c.b16 %v564, %v563
          %v578 = vpack.c.b16 %v566, %v565
          %v579 = vpack.c.b16 %v568, %v567
          %v580 = vpack.c.b16 %v570, %v569
          %v581 = vpack.c.b16 %v572, %v571
          %v582 = vpack.c.b16 %v574, %v573
          %591 = vmatpush.bf16.msra.mxu0 %v582
          %592 = vmatpush.bf16.msra.mxu0 %v581
          %593 = vmatpush.bf16.msra.mxu0 %v580
          %594 = vmatpush.bf16.msra.mxu0 %v579
          %595 = vmatpush.bf16.msra.mxu0 %v578
          %596 = vmatpush.bf16.msra.mxu0 %v577
          %597 = vmatpush.bf16.msra.mxu0 %v576
          %598 = vmatpush.bf16.msra.mxu0 %v575
          %599 = vmatmul.bf16.gmra.mxu0 %v539
          %v600 = vpop.f32.mrf.mxu0
          %v601 = vadd.f32 0.0, %v600
          %v602 = vpop.f32.mrf.mxu0
          %v603 = vadd.f32 0.0, %v602
          %604 = vmatmul.bf16.gmra.mxu0 %v540
          %v605 = vpop.f32.mrf.mxu0
          %v606 = vadd.f32 0.0, %v605
          %v607 = vpop.f32.mrf.mxu0
          %v608 = vadd.f32 0.0, %v607
          %609 = vdwg.mxu0
          %v610 = vadd.f32 %v502, %v601
          %v611 = vadd.f32 %v503, %v603
          %v612 = vadd.f32 %v504, %v606
          %v613 = vadd.f32 %v505, %v608
          %v614 = vld [vmem:[%s509] sm:$0xf]
          %v615 = vld [vmem:[%s509 + $0x4] sm:$0xf]
          %v616 = vld [vmem:[%s509 + $0x8] sm:$0xf]
          %v617 = vld [vmem:[%s509 + $0xc] sm:$0xf]
          %v618 = vld [vmem:[%s509 + $0x10] sm:$0x1]
          %s619 = scalar_lea.vmem %s1, 256
          %v620 = vld [vmem:[%s619] sm:$0xf]
          %v621 = vld [vmem:[%s619 + $0x4] sm:$0xf]
          %v622 = vld [vmem:[%s619 + $0x8] sm:$0xf]
          %v623 = vld [vmem:[%s619 + $0xc] sm:$0xf]
          %v624 = vld [vmem:[%s619 + $0x10] sm:$0xf]
          %v625 = vld [vmem:[%s619 + $0x14] sm:$0xf]
          %v626 = vld [vmem:[%s619 + $0x18] sm:$0xf]
          %v627 = vld [vmem:[%s619 + $0x1c] sm:$0xf]
          %v628 = vld [vmem:[%s619 + $0x20] sm:$0xf]
          %v629 = vld [vmem:[%s619 + $0x24] sm:$0xf]
          %v630 = vld [vmem:[%s619 + $0x28] sm:$0xf]
          %v631 = vld [vmem:[%s619 + $0x2c] sm:$0xf]
          %v632 = vld [vmem:[%s619 + $0x30] sm:$0xf]
          %v633 = vld [vmem:[%s619 + $0x34] sm:$0xf]
          %v634 = vld [vmem:[%s619 + $0x38] sm:$0xf]
          %v635 = vld [vmem:[%s619 + $0x3c] sm:$0xf]
          %v641 = vunpack.c.l.b16 %v614
          %v642 = vunpack.c.l.b16 %v615
          %v643 = vunpack.c.l.b16 %v616
          %v644 = vunpack.c.l.b16 %v617
          %v645 = vunpack.c.l.b16 %v618
          %v646 = vpack.c.b16 %v642, %v641
          %v647 = vpack.c.b16 %v644, %v643
          %v648 = vpack.c.b16 %v645, %v645
          %v650 = vshrl.u32 %v646, 16
          %v652 = vshll.u32 %v646, 16
          %v654 = vrot.slane %v652, 1
          %v655 = vor.u32 %v650, %v654
          %v657 = vshll.u32 %v647, 16
          %v659 = vrot.slane %v657, 1
          %v660 = vsel %vm247, %v655, %v659
          %v661 = vshrl.u32 %v647, 16
          %v663 = vor.u32 %v661, %v659
          %v665 = vshll.u32 %v648, 16
          %v667 = vrot.slane %v665, 1
          %v668 = vsel %vm247, %v663, %v667
          %v687 = vunpack.c.l.b16 %v620
          %v688 = vunpack.c.l.b16 %v621
          %v689 = vunpack.c.l.b16 %v622
          %v690 = vunpack.c.l.b16 %v623
          %v691 = vunpack.c.l.b16 %v624
          %v692 = vunpack.c.l.b16 %v625
          %v693 = vunpack.c.l.b16 %v626
          %v694 = vunpack.c.l.b16 %v627
          %v695 = vunpack.c.l.b16 %v628
          %v696 = vunpack.c.l.b16 %v629
          %v697 = vunpack.c.l.b16 %v630
          %v698 = vunpack.c.l.b16 %v631
          %v699 = vunpack.c.l.b16 %v632
          %v700 = vunpack.c.l.b16 %v633
          %v701 = vunpack.c.l.b16 %v634
          %v702 = vunpack.c.l.b16 %v635
          %v703 = vpack.c.b16 %v688, %v687
          %v704 = vpack.c.b16 %v690, %v689
          %v705 = vpack.c.b16 %v692, %v691
          %v706 = vpack.c.b16 %v694, %v693
          %v707 = vpack.c.b16 %v696, %v695
          %v708 = vpack.c.b16 %v698, %v697
          %v709 = vpack.c.b16 %v700, %v699
          %v710 = vpack.c.b16 %v702, %v701
          %719 = vmatpush.bf16.msra.mxu0 %v710
          %720 = vmatpush.bf16.msra.mxu0 %v709
          %721 = vmatpush.bf16.msra.mxu0 %v708
          %722 = vmatpush.bf16.msra.mxu0 %v707
          %723 = vmatpush.bf16.msra.mxu0 %v706
          %724 = vmatpush.bf16.msra.mxu0 %v705
          %725 = vmatpush.bf16.msra.mxu0 %v704
          %726 = vmatpush.bf16.msra.mxu0 %v703
          %727 = vmatmul.bf16.gmra.mxu0 %v660
          %v728 = vpop.f32.mrf.mxu0
          %v729 = vadd.f32 0.0, %v728
          %v730 = vpop.f32.mrf.mxu0
          %v731 = vadd.f32 0.0, %v730
          %732 = vmatmul.bf16.gmra.mxu0 %v668
          %v733 = vpop.f32.mrf.mxu0
          %v734 = vadd.f32 0.0, %v733
          %v735 = vpop.f32.mrf.mxu0
          %v736 = vadd.f32 0.0, %v735
          %737 = vdwg.mxu0
          %v738 = vadd.f32 %v610, %v729
          %v739 = vadd.f32 %v611, %v731
          %v740 = vadd.f32 %v612, %v734
          %v741 = vadd.f32 %v613, %v736
          %v742 = vld [vmem:[%s509] sm:$0xe]
          %s743 = scalar_lea.vmem %s1, 320
          %v744 = vld [vmem:[%s743] sm:$0xf]
          %v745 = vld [vmem:[%s743 + $0x4] sm:$0xf]
          %v746 = vld [vmem:[%s743 + $0x8] sm:$0xf]
          %v747 = vld [vmem:[%s743 + $0xc] sm:$0xf]
          %v748 = vld [vmem:[%s743 + $0x10] sm:$0xf]
          %v749 = vld [vmem:[%s743 + $0x14] sm:$0xf]
          %v750 = vld [vmem:[%s743 + $0x18] sm:$0xf]
          %v751 = vld [vmem:[%s743 + $0x1c] sm:$0xf]
          %v752 = vld [vmem:[%s743 + $0x20] sm:$0xf]
          %v753 = vld [vmem:[%s743 + $0x24] sm:$0xf]
          %v754 = vld [vmem:[%s743 + $0x28] sm:$0xf]
          %v755 = vld [vmem:[%s743 + $0x2c] sm:$0xf]
          %v756 = vld [vmem:[%s743 + $0x30] sm:$0xf]
          %v757 = vld [vmem:[%s743 + $0x34] sm:$0xf]
          %v758 = vld [vmem:[%s743 + $0x38] sm:$0xf]
          %v759 = vld [vmem:[%s743 + $0x3c] sm:$0xf]
          %v761 = vunpack.c.l.b16 %v742
          %v762 = vpack.c.b16 %v642, %v761
          %v763 = vrot.slane %v762, 1
          %v764 = vrot.slane %v647, 1
          %v765 = vsel %vm427, %v763, %v764
          %v766 = vrot.slane %v648, 1
          %v767 = vsel %vm427, %v764, %v766
          %v786 = vunpack.c.l.b16 %v744
          %v787 = vunpack.c.l.b16 %v745
          %v788 = vunpack.c.l.b16 %v746
          %v789 = vunpack.c.l.b16 %v747
          %v790 = vunpack.c.l.b16 %v748
          %v791 = vunpack.c.l.b16 %v749
          %v792 = vunpack.c.l.b16 %v750
          %v793 = vunpack.c.l.b16 %v751
          %v794 = vunpack.c.l.b16 %v752
          %v795 = vunpack.c.l.b16 %v753
          %v796 = vunpack.c.l.b16 %v754
          %v797 = vunpack.c.l.b16 %v755
          %v798 = vunpack.c.l.b16 %v756
          %v799 = vunpack.c.l.b16 %v757
          %v800 = vunpack.c.l.b16 %v758
          %v801 = vunpack.c.l.b16 %v759
          %v802 = vpack.c.b16 %v787, %v786
          %v803 = vpack.c.b16 %v789, %v788
          %v804 = vpack.c.b16 %v791, %v790
          %v805 = vpack.c.b16 %v793, %v792
          %v806 = vpack.c.b16 %v795, %v794
          %v807 = vpack.c.b16 %v797, %v796
          %v808 = vpack.c.b16 %v799, %v798
          %v809 = vpack.c.b16 %v801, %v800
          %818 = vmatpush.bf16.msra.mxu0 %v809
          %819 = vmatpush.bf16.msra.mxu0 %v808
          %820 = vmatpush.bf16.msra.mxu0 %v807
          %821 = vmatpush.bf16.msra.mxu0 %v806
          %822 = vmatpush.bf16.msra.mxu0 %v805
          %823 = vmatpush.bf16.msra.mxu0 %v804
          %824 = vmatpush.bf16.msra.mxu0 %v803
          %825 = vmatpush.bf16.msra.mxu0 %v802
          %826 = vmatmul.bf16.gmra.mxu0 %v765
          %v827 = vpop.f32.mrf.mxu0
          %v828 = vadd.f32 0.0, %v827
          %v829 = vpop.f32.mrf.mxu0
          %v830 = vadd.f32 0.0, %v829
          %831 = vmatmul.bf16.gmra.mxu0 %v767
          %v832 = vpop.f32.mrf.mxu0
          %v833 = vadd.f32 0.0, %v832
          %v834 = vpop.f32.mrf.mxu0
          %v835 = vadd.f32 0.0, %v834
          %836 = vdwg.mxu0
          %v837 = vadd.f32 %v738, %v828
          %v838 = vadd.f32 %v739, %v830
          %v839 = vadd.f32 %v740, %v833
          %v840 = vadd.f32 %v741, %v835
          %s841 = sadd.s32 %s188, 2
          %s842 = smul.u32 %s841, 5
          %s843 = smul.addr %s842, 4
          %s844 = scalar_lea.vmem %s180, %s843
          %v845 = vld [vmem:[%s844] sm:$0xf]
          %v846 = vld [vmem:[%s844 + $0x4] sm:$0xf]
          %v847 = vld [vmem:[%s844 + $0x8] sm:$0xf]
          %v848 = vld [vmem:[%s844 + $0xc] sm:$0xf]
          %s849 = scalar_lea.vmem %s1, 384
          %v850 = vld [vmem:[%s849] sm:$0xf]
          %v851 = vld [vmem:[%s849 + $0x4] sm:$0xf]
          %v852 = vld [vmem:[%s849 + $0x8] sm:$0xf]
          %v853 = vld [vmem:[%s849 + $0xc] sm:$0xf]
          %v854 = vld [vmem:[%s849 + $0x10] sm:$0xf]
          %v855 = vld [vmem:[%s849 + $0x14] sm:$0xf]
          %v856 = vld [vmem:[%s849 + $0x18] sm:$0xf]
          %v857 = vld [vmem:[%s849 + $0x1c] sm:$0xf]
          %v858 = vld [vmem:[%s849 + $0x20] sm:$0xf]
          %v859 = vld [vmem:[%s849 + $0x24] sm:$0xf]
          %v860 = vld [vmem:[%s849 + $0x28] sm:$0xf]
          %v861 = vld [vmem:[%s849 + $0x2c] sm:$0xf]
          %v862 = vld [vmem:[%s849 + $0x30] sm:$0xf]
          %v863 = vld [vmem:[%s849 + $0x34] sm:$0xf]
          %v864 = vld [vmem:[%s849 + $0x38] sm:$0xf]
          %v865 = vld [vmem:[%s849 + $0x3c] sm:$0xf]
          %v870 = vunpack.c.l.b16 %v845
          %v871 = vunpack.c.l.b16 %v846
          %v872 = vunpack.c.l.b16 %v847
          %v873 = vunpack.c.l.b16 %v848
          %v874 = vpack.c.b16 %v871, %v870
          %v875 = vpack.c.b16 %v873, %v872
          %v894 = vunpack.c.l.b16 %v850
          %v895 = vunpack.c.l.b16 %v851
          %v896 = vunpack.c.l.b16 %v852
          %v897 = vunpack.c.l.b16 %v853
          %v898 = vunpack.c.l.b16 %v854
          %v899 = vunpack.c.l.b16 %v855
          %v900 = vunpack.c.l.b16 %v856
          %v901 = vunpack.c.l.b16 %v857
          %v902 = vunpack.c.l.b16 %v858
          %v903 = vunpack.c.l.b16 %v859
          %v904 = vunpack.c.l.b16 %v860
          %v905 = vunpack.c.l.b16 %v861
          %v906 = vunpack.c.l.b16 %v862
          %v907 = vunpack.c.l.b16 %v863
          %v908 = vunpack.c.l.b16 %v864
          %v909 = vunpack.c.l.b16 %v865
          %v910 = vpack.c.b16 %v895, %v894
          %v911 = vpack.c.b16 %v897, %v896
          %v912 = vpack.c.b16 %v899, %v898
          %v913 = vpack.c.b16 %v901, %v900
          %v914 = vpack.c.b16 %v903, %v902
          %v915 = vpack.c.b16 %v905, %v904
          %v916 = vpack.c.b16 %v907, %v906
          %v917 = vpack.c.b16 %v909, %v908
          %926 = vmatpush.bf16.msra.mxu0 %v917
          %927 = vmatpush.bf16.msra.mxu0 %v916
          %928 = vmatpush.bf16.msra.mxu0 %v915
          %929 = vmatpush.bf16.msra.mxu0 %v914
          %930 = vmatpush.bf16.msra.mxu0 %v913
          %931 = vmatpush.bf16.msra.mxu0 %v912
          %932 = vmatpush.bf16.msra.mxu0 %v911
          %933 = vmatpush.bf16.msra.mxu0 %v910
          %934 = vmatmul.bf16.gmra.mxu0 %v874
          %v935 = vpop.f32.mrf.mxu0
          %v936 = vadd.f32 0.0, %v935
          %v937 = vpop.f32.mrf.mxu0
          %v938 = vadd.f32 0.0, %v937
          %939 = vmatmul.bf16.gmra.mxu0 %v875
          %v940 = vpop.f32.mrf.mxu0
          %v941 = vadd.f32 0.0, %v940
          %v942 = vpop.f32.mrf.mxu0
          %v943 = vadd.f32 0.0, %v942
          %944 = vdwg.mxu0
          %v945 = vadd.f32 %v837, %v936
          %v946 = vadd.f32 %v838, %v938
          %v947 = vadd.f32 %v839, %v941
          %v948 = vadd.f32 %v840, %v943
          %v949 = vld [vmem:[%s844] sm:$0xf]
          %v950 = vld [vmem:[%s844 + $0x4] sm:$0xf]
          %v951 = vld [vmem:[%s844 + $0x8] sm:$0xf]
          %v952 = vld [vmem:[%s844 + $0xc] sm:$0xf]
          %v953 = vld [vmem:[%s844 + $0x10] sm:$0x1]
          %s954 = scalar_lea.vmem %s1, 448
          %v955 = vld [vmem:[%s954] sm:$0xf]
          %v956 = vld [vmem:[%s954 + $0x4] sm:$0xf]
          %v957 = vld [vmem:[%s954 + $0x8] sm:$0xf]
          %v958 = vld [vmem:[%s954 + $0xc] sm:$0xf]
          %v959 = vld [vmem:[%s954 + $0x10] sm:$0xf]
          %v960 = vld [vmem:[%s954 + $0x14] sm:$0xf]
          %v961 = vld [vmem:[%s954 + $0x18] sm:$0xf]
          %v962 = vld [vmem:[%s954 + $0x1c] sm:$0xf]
          %v963 = vld [vmem:[%s954 + $0x20] sm:$0xf]
          %v964 = vld [vmem:[%s954 + $0x24] sm:$0xf]
          %v965 = vld [vmem:[%s954 + $0x28] sm:$0xf]
          %v966 = vld [vmem:[%s954 + $0x2c] sm:$0xf]
          %v967 = vld [vmem:[%s954 + $0x30] sm:$0xf]
          %v968 = vld [vmem:[%s954 + $0x34] sm:$0xf]
          %v969 = vld [vmem:[%s954 + $0x38] sm:$0xf]
          %v970 = vld [vmem:[%s954 + $0x3c] sm:$0xf]
          %v976 = vunpack.c.l.b16 %v949
          %v977 = vunpack.c.l.b16 %v950
          %v978 = vunpack.c.l.b16 %v951
          %v979 = vunpack.c.l.b16 %v952
          %v980 = vunpack.c.l.b16 %v953
          %v981 = vpack.c.b16 %v977, %v976
          %v982 = vpack.c.b16 %v979, %v978
          %v983 = vpack.c.b16 %v980, %v980
          %v985 = vshrl.u32 %v981, 16
          %v987 = vshll.u32 %v981, 16
          %v989 = vrot.slane %v987, 1
          %v990 = vor.u32 %v985, %v989
          %v992 = vshll.u32 %v982, 16
          %v994 = vrot.slane %v992, 1
          %v995 = vsel %vm247, %v990, %v994
          %v996 = vshrl.u32 %v982, 16
          %v998 = vor.u32 %v996, %v994
          %v1000 = vshll.u32 %v983, 16
          %v1002 = vrot.slane %v1000, 1
          %v1003 = vsel %vm247, %v998, %v1002
          %v1022 = vunpack.c.l.b16 %v955
          %v1023 = vunpack.c.l.b16 %v956
          %v1024 = vunpack.c.l.b16 %v957
          %v1025 = vunpack.c.l.b16 %v958
          %v1026 = vunpack.c.l.b16 %v959
          %v1027 = vunpack.c.l.b16 %v960
          %v1028 = vunpack.c.l.b16 %v961
          %v1029 = vunpack.c.l.b16 %v962
          %v1030 = vunpack.c.l.b16 %v963
          %v1031 = vunpack.c.l.b16 %v964
          %v1032 = vunpack.c.l.b16 %v965
          %v1033 = vunpack.c.l.b16 %v966
          %v1034 = vunpack.c.l.b16 %v967
          %v1035 = vunpack.c.l.b16 %v968
          %v1036 = vunpack.c.l.b16 %v969
          %v1037 = vunpack.c.l.b16 %v970
          %v1038 = vpack.c.b16 %v1023, %v1022
          %v1039 = vpack.c.b16 %v1025, %v1024
          %v1040 = vpack.c.b16 %v1027, %v1026
          %v1041 = vpack.c.b16 %v1029, %v1028
          %v1042 = vpack.c.b16 %v1031, %v1030
          %v1043 = vpack.c.b16 %v1033, %v1032
          %v1044 = vpack.c.b16 %v1035, %v1034
          %v1045 = vpack.c.b16 %v1037, %v1036
          %1054 = vmatpush.bf16.msra.mxu0 %v1045
          %1055 = vmatpush.bf16.msra.mxu0 %v1044
          %1056 = vmatpush.bf16.msra.mxu0 %v1043
          %1057 = vmatpush.bf16.msra.mxu0 %v1042
          %1058 = vmatpush.bf16.msra.mxu0 %v1041
          %1059 = vmatpush.bf16.msra.mxu0 %v1040
          %1060 = vmatpush.bf16.msra.mxu0 %v1039
          %1061 = vmatpush.bf16.msra.mxu0 %v1038
          %1062 = vmatmul.bf16.gmra.mxu0 %v995
          %v1063 = vpop.f32.mrf.mxu0
          %v1064 = vadd.f32 0.0, %v1063
          %v1065 = vpop.f32.mrf.mxu0
          %v1066 = vadd.f32 0.0, %v1065
          %1067 = vmatmul.bf16.gmra.mxu0 %v1003
          %v1068 = vpop.f32.mrf.mxu0
          %v1069 = vadd.f32 0.0, %v1068
          %v1070 = vpop.f32.mrf.mxu0
          %v1071 = vadd.f32 0.0, %v1070
          %1072 = vdwg.mxu0
          %v1073 = vadd.f32 %v945, %v1064
          %v1074 = vadd.f32 %v946, %v1066
          %v1075 = vadd.f32 %v947, %v1069
          %v1076 = vadd.f32 %v948, %v1071
          %v1077 = vld [vmem:[%s844] sm:$0xe]
          %s1078 = scalar_lea.vmem %s1, 512
          %v1079 = vld [vmem:[%s1078] sm:$0xf]
          %v1080 = vld [vmem:[%s1078 + $0x4] sm:$0xf]
          %v1081 = vld [vmem:[%s1078 + $0x8] sm:$0xf]
          %v1082 = vld [vmem:[%s1078 + $0xc] sm:$0xf]
          %v1083 = vld [vmem:[%s1078 + $0x10] sm:$0xf]
          %v1084 = vld [vmem:[%s1078 + $0x14] sm:$0xf]
          %v1085 = vld [vmem:[%s1078 + $0x18] sm:$0xf]
          %v1086 = vld [vmem:[%s1078 + $0x1c] sm:$0xf]
          %v1087 = vld [vmem:[%s1078 + $0x20] sm:$0xf]
          %v1088 = vld [vmem:[%s1078 + $0x24] sm:$0xf]
          %v1089 = vld [vmem:[%s1078 + $0x28] sm:$0xf]
          %v1090 = vld [vmem:[%s1078 + $0x2c] sm:$0xf]
          %v1091 = vld [vmem:[%s1078 + $0x30] sm:$0xf]
          %v1092 = vld [vmem:[%s1078 + $0x34] sm:$0xf]
          %v1093 = vld [vmem:[%s1078 + $0x38] sm:$0xf]
          %v1094 = vld [vmem:[%s1078 + $0x3c] sm:$0xf]
          %v1096 = vunpack.c.l.b16 %v1077
          %v1097 = vpack.c.b16 %v977, %v1096
          %v1098 = vrot.slane %v1097, 1
          %v1099 = vrot.slane %v982, 1
          %v1100 = vsel %vm427, %v1098, %v1099
          %v1101 = vrot.slane %v983, 1
          %v1102 = vsel %vm427, %v1099, %v1101
          %v1121 = vunpack.c.l.b16 %v1079
          %v1122 = vunpack.c.l.b16 %v1080
          %v1123 = vunpack.c.l.b16 %v1081
          %v1124 = vunpack.c.l.b16 %v1082
          %v1125 = vunpack.c.l.b16 %v1083
          %v1126 = vunpack.c.l.b16 %v1084
          %v1127 = vunpack.c.l.b16 %v1085
          %v1128 = vunpack.c.l.b16 %v1086
          %v1129 = vunpack.c.l.b16 %v1087
          %v1130 = vunpack.c.l.b16 %v1088
          %v1131 = vunpack.c.l.b16 %v1089
          %v1132 = vunpack.c.l.b16 %v1090
          %v1133 = vunpack.c.l.b16 %v1091
          %v1134 = vunpack.c.l.b16 %v1092
          %v1135 = vunpack.c.l.b16 %v1093
          %v1136 = vunpack.c.l.b16 %v1094
          %v1137 = vpack.c.b16 %v1122, %v1121
          %v1138 = vpack.c.b16 %v1124, %v1123
          %v1139 = vpack.c.b16 %v1126, %v1125
          %v1140 = vpack.c.b16 %v1128, %v1127
          %v1141 = vpack.c.b16 %v1130, %v1129
          %v1142 = vpack.c.b16 %v1132, %v1131
          %v1143 = vpack.c.b16 %v1134, %v1133
          %v1144 = vpack.c.b16 %v1136, %v1135
          %1153 = vmatpush.bf16.msra.mxu0 %v1144
          %1154 = vmatpush.bf16.msra.mxu0 %v1143
          %1155 = vmatpush.bf16.msra.mxu0 %v1142
          %1156 = vmatpush.bf16.msra.mxu0 %v1141
          %1157 = vmatpush.bf16.msra.mxu0 %v1140
          %1158 = vmatpush.bf16.msra.mxu0 %v1139
          %1159 = vmatpush.bf16.msra.mxu0 %v1138
          %1160 = vmatpush.bf16.msra.mxu0 %v1137
          %1161 = vmatmul.bf16.gmra.mxu0 %v1100
          %v1162 = vpop.f32.mrf.mxu0
          %v1163 = vadd.f32 0.0, %v1162
          %v1164 = vpop.f32.mrf.mxu0
          %v1165 = vadd.f32 0.0, %v1164
          %1166 = vmatmul.bf16.gmra.mxu0 %v1102
          %v1167 = vpop.f32.mrf.mxu0
          %v1168 = vadd.f32 0.0, %v1167
          %v1169 = vpop.f32.mrf.mxu0
          %v1170 = vadd.f32 0.0, %v1169
          %1171 = vdwg.mxu0
          %v1172 = vadd.f32 %v1073, %v1163
          %v1173 = vadd.f32 %v1074, %v1165
          %v1174 = vadd.f32 %v1075, %v1168
          %v1175 = vadd.f32 %v1076, %v1170
          %v1177 = vperm.slane %v186, 0
          %v1179 = vadd.f32 %v1172, %v1177
          %v1180 = vadd.f32 %v1173, %v1177
          %v1181 = vadd.f32 %v1174, %v1177
          %v1182 = vadd.f32 %v1175, %v1177
          %v1183 = vmax.f32 %v1179, 0.0
          %v1184 = vmax.f32 %v1180, 0.0
          %v1185 = vmax.f32 %v1181, 0.0
          %v1186 = vmax.f32 %v1182, 0.0
          %v1187 = vpack.c.bf16 %v1183, %v1183
          %v1188 = vpack.c.bf16 %v1184, %v1184
          %v1189 = vpack.c.bf16 %v1185, %v1185
          %v1190 = vpack.c.bf16 %v1186, %v1186
          %s1191 = smul.u32 %s188, 4
          %s1192 = smul.addr %s1191, 4
          %s1193 = scalar_lea.vmem %s185, %s1192
          %vm1194 = vcmask 519168
          %1195 = vst.msk [vmem:[%s1193] sm:$0xf] %vm1194, %v1187
          %1196 = vst.msk [vmem:[%s1193 + $0x4] sm:$0xf] %vm1194, %v1188
          %1197 = vst.msk [vmem:[%s1193 + $0x8] sm:$0xf] %vm1194, %v1189
          %1198 = vst.msk [vmem:[%s1193 + $0xc] sm:$0xf] %vm1194, %v1190
        $region41: #{forward.7} parent=31 // loop_footer
          %s192 = sadd.s32 1, %s188
        $region42: #{forward.7} parent=31 // loop_footer_branch
          %187 = sbr.rel target = $region38
        $region43: #{forward.7} parent=31 // loop_exit
          _
        %p1199 = scmp.lt.s32.totalorder %s15, 1
        %s1200 = scalar_select %p1199, %s15, 1
        %s1201 = smul.addr %s1200, 128
        %s1202 = smul.addr %s1201, 4
        %s1203 = scalar_lea.vmem %s3, %s1202
        // Predicated region
        $region44: #{forward.7} parent=31 // pred_check
          %p1204 = pneg %p101
        $region45: #{forward.7} parent=31 // pred_check_branch
          %1206 = sbr.rel (%p1204) target = $region47
        $region46: #{forward.7} parent=31 // pred_region
          _
        $region47: #{forward.7} parent=31 // pred_fallthru
          _
      $region32: #{forward.7} parent=5 // pred_fallthru
        _
      %p1207 = scmp.le.s32.totalorder 2, %s10
      // Predicated region
      $region48: #{forward.7} parent=5 // pred_check
        %p1208 = pneg %p1207
      $region49: #{forward.7} parent=5 // pred_check_branch
        %1210 = sbr.rel (%p1208) target = $region51
      $region50: #{forward.7} parent=5 // pred_region
        %s1211 = ssub.s32 %s10, 2
        // Predicated region
        $region52: #{forward.7} parent=50 // pred_check
          %p1212 = pneg %p107
        $region53: #{forward.7} parent=50 // pred_check_branch
          %1214 = sbr.rel (%p1212) target = $region55
        $region54: #{forward.7} parent=50 // pred_region
          %p1215 = scmp.lt.s32.totalorder %s16, 1
          %s1216 = scalar_select %p1215, %s16, 1
          %s1217 = smul.addr %s1216, 128
          %s1218 = smul.addr %s1217, 4
          %s1219 = scalar_lea.vmem %s3, %s1218
        $region55: #{forward.7} parent=50 // pred_fallthru
          _
      $region51: #{forward.7} parent=5 // pred_fallthru
        _
    $region6: #{forward.7} parent=1 // loop_footer
      %s14 = sadd.s32 1, %s10
    $region7: #{forward.7} parent=1 // loop_footer_branch
      %9 = sbr.rel target = $region3
    $region8: #{forward.7} parent=1 // loop_exit
      _
    %1220 = vsyncpa [#allocation3], 1
    %s1221 = scalar_lea.sflag [#allocation3], 1
    %1222 = vsyncpa %s1221, 1

// kernel: forward.8
$region0: #{forward.8}
  #allocation0 [shape = 'u32[]', space=smem, size = 0x4, offset = 0x4, fixed_abs, tag = 'smem constant byte address 0x4 - core index']
  #allocation1 [shape = 'u32[72,128]{1,0:T(1,128)}', space=vmem, size = 0x9000, scoped, tag = 'internal scratch']
  %s0 = inlined_call_operand.vmem [shape: bf16[2,34,34,64], index: 0, kind: input, shape index: {}]
  %s1 = inlined_call_operand.hbm [shape: bf16[9,64,128], index: 1, kind: input, shape index: {}]
  %s2 = inlined_call_operand.hbm [shape: f32[1,128], index: 2, kind: input, shape index: {}]
  %s3 = inlined_call_operand.vmem [shape: bf16[2,32,32,128], index: 3, kind: output, shape index: {}]
  %s4 = sld [smem:[#allocation0]]
  $region60: #{forward.8} parent=0
    _
  %s6 = ssub.s32 1, %s4
  %s7 = scalar_select 0, %s6, %s4
  $region1: #{forward.8} parent=0
    #allocation2 [shape = 'u8[147456]{0}', space=vmem, size = 0x24000, scoped, tag = 'input window, operand 1, single buffered']
    #allocation3 [shape = 's32[2]{0}', space=sflag, size = 0x8, scoped, tag = 'scoped memory for forward.8']
    #allocation4 [shape = 'u8[512]{0}', space=vmem, size = 0x400, scoped, tag = 'input window, operand 2, single buffered']
    #allocation5 [shape = 's32[1]{0}', space=sflag, size = 0x4, scoped, tag = 'scoped memory for forward.8']
    %8 = vsyncpa [#allocation3], 0
    %9 = vsyncpa [#allocation5], 0
    loop: start=0, step=1, limit=4
    $region2: #{forward.8} parent=1 // loop_pre_header
      _
    $region3: #{forward.8} parent=1 // loop_header
      %s11 = sphi 0, %s15
      %p12 = scmp.ge.s32.totalorder %s11, 4
      %s21 = sphi 0, %s23
      %s24 = sphi 0, %s21
      %s25 = sphi 0, %s24
      %s41 = sphi 0, %s25
      %s45 = sphi 0, %s45
      %s47 = sphi 0, %s45
      %s48 = sphi 0, %s47
      %s62 = sphi 0, %s48
      %s66 = sphi 0, %s66
      %s68 = sphi 0, %s66
      %s69 = sphi 0, %s68
      %s83 = sphi 0, %s69
      %s89 = sphi 0, %s91
      %s92 = sphi 0, %s89
      %s93 = sphi 0, %s92
      %s109 = sphi 0, %s93
    $region4: #{forward.8} parent=1 // loop_header_branch
      %14 = sbr.rel (%p12) target = $region8
    $region5: #{forward.8} parent=1 // loop_body
      %s16 = ssub.s32 %s11, 1
      %s17 = ssub.s32 %s11, 2
      %s18 = sadd.s32 %s11, 1
      %s19 = ssub.s32 %s11, %s18
      %p20 = scmp.eq.s32.totalorder %s19, 0
      %s22 = sadd.s32 %s21, 1
      %s23 = scalar_select %p20, %s21, %s22
      %p26 = pneg %p20
      %p27 = scmp.eq.s32.totalorder %s11, 1
      %p28 = por %p26, %p27
      %p29 = scmp.ne.s32.totalorder %s21, %s24
      %p30 = scmp.eq.s32.totalorder %s11, 0
      %p31 = por %p29, %p30
      %p32 = scmp.ne.s32.totalorder %s21, %s24
      %p33 = scmp.eq.s32.totalorder %s16, 1
      %p34 = por %p32, %p33
      %p35 = scmp.ne.s32.totalorder %s24, %s25
      %p36 = scmp.eq.s32.totalorder %s16, 0
      %p37 = por %p35, %p36
      %p38 = scmp.ne.s32.totalorder %s24, %s25
      %p39 = scmp.eq.s32.totalorder %s17, 1
      %p40 = por %p38, %p39
      %p42 = scmp.ne.s32.totalorder %s25, %s41
      %p43 = scmp.eq.s32.totalorder %s17, 0
      %p44 = por %p42, %p43
      %s46 = sadd.s32 %s45, 1
      %p49 = scmp.eq.s32.totalorder %s11, 1
      %p50 = scmp.ne.s32.totalorder %s45, %s47
      %p51 = scmp.eq.s32.totalorder %s11, 0
      %p52 = por %p50, %p51
      %p53 = scmp.ne.s32.totalorder %s45, %s47
      %p54 = scmp.eq.s32.totalorder %s16, 1
      %p55 = por %p53, %p54
      %p56 = scmp.ne.s32.totalorder %s47, %s48
      %p57 = scmp.eq.s32.totalorder %s16, 0
      %p58 = por %p56, %p57
      %p59 = scmp.ne.s32.totalorder %s47, %s48
      %p60 = scmp.eq.s32.totalorder %s17, 1
      %p61 = por %p59, %p60
      %p63 = scmp.ne.s32.totalorder %s48, %s62
      %p64 = scmp.eq.s32.totalorder %s17, 0
      %p65 = por %p63, %p64
      %s67 = sadd.s32 %s66, 1
      %p70 = scmp.eq.s32.totalorder %s11, 1
      %p71 = scmp.ne.s32.totalorder %s66, %s68
      %p72 = scmp.eq.s32.totalorder %s11, 0
      %p73 = por %p71, %p72
      %p74 = scmp.ne.s32.totalorder %s66, %s68
      %p75 = scmp.eq.s32.totalorder %s16, 1
      %p76 = por %p74, %p75
      %p77 = scmp.ne.s32.totalorder %s68, %s69
      %p78 = scmp.eq.s32.totalorder %s16, 0
      %p79 = por %p77, %p78
      %p80 = scmp.ne.s32.totalorder %s68, %s69
      %p81 = scmp.eq.s32.totalorder %s17, 1
      %p82 = por %p80, %p81
      %p84 = scmp.ne.s32.totalorder %s69, %s83
      %p85 = scmp.eq.s32.totalorder %s17, 0
      %p86 = por %p84, %p85
      %s87 = ssub.s32 %s11, %s18
      %p88 = scmp.eq.s32.totalorder %s87, 0
      %s90 = sadd.s32 %s89, 1
      %s91 = scalar_select %p88, %s89, %s90
      %p94 = pneg %p88
      %p95 = scmp.eq.s32.totalorder %s11, 1
      %p96 = por %p94, %p95
      %p97 = scmp.ne.s32.totalorder %s89, %s92
      %p98 = scmp.eq.s32.totalorder %s11, 0
      %p99 = por %p97, %p98
      %p100 = scmp.ne.s32.totalorder %s89, %s92
      %p101 = scmp.eq.s32.totalorder %s16, 1
      %p102 = por %p100, %p101
      %p103 = scmp.ne.s32.totalorder %s92, %s93
      %p104 = scmp.eq.s32.totalorder %s16, 0
      %p105 = por %p103, %p104
      %p106 = scmp.ne.s32.totalorder %s92, %s93
      %p107 = scmp.eq.s32.totalorder %s17, 1
      %p108 = por %p106, %p107
      %p110 = scmp.ne.s32.totalorder %s93, %s109
      %p111 = scmp.eq.s32.totalorder %s17, 0
      %p112 = por %p110, %p111
      %p113 = scmp.le.s32.totalorder 1, %s11
      %p114 = scmp.lt.s32.totalorder %s11, 3
      %p115 = pnand %p113, %p114
      %p116 = pneg %p115
      // Predicated region
      $region9: #{forward.8} parent=5 // pred_check
        _
      $region10: #{forward.8} parent=5 // pred_check_branch
        %118 = sbr.rel (%p115) target = $region12
      $region11: #{forward.8} parent=5 // pred_region
        %s119 = ssub.s32 %s11, 1
        // Predicated region
        $region13: #{forward.8} parent=11 // pred_check
          %p120 = pneg %p58
        $region14: #{forward.8} parent=11 // pred_check_branch
          %122 = sbr.rel (%p120) target = $region16
        $region15: #{forward.8} parent=11 // pred_region
          %124 = vsyncadd [#allocation3], 0
          %s125 = sshll.u32 %s1, 4
          %s126 = int_to_ptr.hbm [resolvable:$true] %s125
          %s127 = sshll.u32 [#allocation2], 4
          %s128 = int_to_ptr.vmem [resolvable:$true] %s127
          %133 = dma.hbm_to_vmem [thread:$0]  %s126, 4608, %s128, [#allocation3], 64, 64, 4
        $region16: #{forward.8} parent=11 // pred_fallthru
          _
        // Predicated region
        $region17: #{forward.8} parent=11 // pred_check
          %p134 = pneg %p79
        $region18: #{forward.8} parent=11 // pred_check_branch
          %136 = sbr.rel (%p134) target = $region20
        $region19: #{forward.8} parent=11 // pred_region
          %138 = vsyncadd [#allocation5], 0
          %s140 = sshll.u32 %s2, 4
          %s141 = int_to_ptr.hbm [resolvable:$true] %s140
          %s142 = sshll.u32 [#allocation4], 4
          %s143 = int_to_ptr.vmem [resolvable:$true] %s142
          %145 = dma.hbm_to_vmem [thread:$0]  %s141, 16, %s143, [#allocation5]
        $region20: #{forward.8} parent=11 // pred_fallthru
          _
      $region12: #{forward.8} parent=5 // pred_fallthru
        _
      %p146 = scmp.lt.s32.totalorder %s11, 2
      // Predicated region
      $region21: #{forward.8} parent=5 // pred_check
        %p147 = pneg %p146
      $region22: #{forward.8} parent=5 // pred_check_branch
        %149 = sbr.rel (%p147) target = $region24
      $region23: #{forward.8} parent=5 // pred_region
        // Predicated region
        $region25: #{forward.8} parent=23 // pred_check
          %p150 = pneg %p31
        $region26: #{forward.8} parent=23 // pred_check_branch
          %152 = sbr.rel (%p150) target = $region28
        $region27: #{forward.8} parent=23 // pred_region
          %p153 = scmp.lt.s32.totalorder %s11, 1
          %s154 = scalar_select %p153, %s11, 1
          %s155 = smul.addr %s154, 170
          %s156 = smul.addr %s155, 4
          %s157 = scalar_lea.vmem %s0, %s156
        $region28: #{forward.8} parent=23 // pred_fallthru
          _
      $region24: #{forward.8} parent=5 // pred_fallthru
        _
      %p158 = scmp.le.s32.totalorder 1, %s11
      %p159 = scmp.lt.s32.totalorder %s11, 3
      %p160 = pnand %p158, %p159
      %p161 = pneg %p160
      // Predicated region
      $region29: #{forward.8} parent=5 // pred_check
        _
      $region30: #{forward.8} parent=5 // pred_check_branch
        %163 = sbr.rel (%p160) target = $region32
      $region31: #{forward.8} parent=5 // pred_region
        %s164 = ssub.s32 %s11, 1
        // Predicated region
        $region33: #{forward.8} parent=31 // pred_check
          %p165 = pneg %p58
        $region34: #{forward.8} parent=31 // pred_check_branch
          %167 = sbr.rel (%p165) target = $region36
        $region35: #{forward.8} parent=31 // pred_region
          %169 = dma.done [#allocation3], 4608
        $region36: #{forward.8} parent=31 // pred_fallthru
          _
        // Predicated region
        $region37: #{forward.8} parent=31 // pred_check
          %p170 = pneg %p79
        $region38: #{forward.8} parent=31 // pred_check_branch
          %172 = sbr.rel (%p170) target = $region40
        $region39: #{forward.8} parent=31 // pred_region
          %174 = dma.done [#allocation5], 16
        $region40: #{forward.8} parent=31 // pred_fallthru
          _
        %p175 = scmp.lt.s32.totalorder %s16, 1
        %s176 = scalar_select %p175, %s16, 1
        %s177 = smul.addr %s176, 170
        %s178 = smul.addr %s177, 4
        %s179 = scalar_lea.vmem %s0, %s178
        %p180 = pneg %p37
        %p181 = pneg %p34
        %p182 = pneg %p58
        %p183 = pneg %p55
        %p184 = pneg %p79
        %p185 = pneg %p76
        %p186 = pneg %p105
        %p187 = pneg %p102
        %p188 = scmp.lt.s32.totalorder %s16, 1
        %s189 = scalar_select %p188, %s16, 1
        %s190 = smul.addr %s189, 128
        %s191 = smul.addr %s190, 4
        %s192 = scalar_lea.vmem %s3, %s191
        %p193 = scmp.lt.s32.totalorder %s16, 1
        %s194 = scalar_select %p193, %s16, 1
        %s195 = smul.addr %s194, 170
        %s196 = smul.addr %s195, 4
        %s197 = scalar_lea.vmem %s0, %s196
        %p198 = scmp.lt.s32.totalorder %s16, 1
        %s199 = scalar_select %p198, %s16, 1
        %s200 = smul.addr %s199, 128
        %s201 = smul.addr %s200, 4
        %s202 = scalar_lea.vmem %s3, %s201
        %v204 = vld [vmem:[#allocation4] sm:$0x1]
        loop: start=0, step=1, limit=32
        $region41: #{forward.8} parent=31 // loop_pre_header
          _
        $region42: #{forward.8} parent=31 // loop_header
          %s206 = sphi 0, %s210
          %p207 = scmp.ge.s32.totalorder %s206, 32
        $region43: #{forward.8} parent=31 // loop_header_branch
          %209 = sbr.rel (%p207) target = $region47
        $region44: #{forward.8} parent=31 // loop_body
          %s211 = smul.u32 %s206, 5
          %s212 = smul.addr %s211, 4
          %s213 = scalar_lea.vmem %s197, %s212
          %v214 = vld [vmem:[%s213] sm:$0xf]
          %v215 = vld [vmem:[%s213 + $0x4] sm:$0xf]
          %v216 = vld [vmem:[%s213 + $0x8] sm:$0xf]
          %v217 = vld [vmem:[%s213 + $0xc] sm:$0xf]
          %v218 = vld [vmem:[#allocation2] sm:$0xf]
          %v219 = vld [vmem:[#allocation2 + $0x4] sm:$0xf]
          %v220 = vld [vmem:[#allocation2 + $0x8] sm:$0xf]
          %v221 = vld [vmem:[#allocation2 + $0xc] sm:$0xf]
          %v222 = vld [vmem:[#allocation2 + $0x10] sm:$0xf]
          %v223 = vld [vmem:[#allocation2 + $0x14] sm:$0xf]
          %v224 = vld [vmem:[#allocation2 + $0x18] sm:$0xf]
          %v225 = vld [vmem:[#allocation2 + $0x1c] sm:$0xf]
          %v226 = vld [vmem:[%s213 + $0x10] sm:$0x1]
          %s227 = scalar_lea.vmem [#allocation2], 32
          %v228 = vld [vmem:[%s227] sm:$0xf]
          %v229 = vld [vmem:[%s227 + $0x4] sm:$0xf]
          %v230 = vld [vmem:[%s227 + $0x8] sm:$0xf]
          %v231 = vld [vmem:[%s227 + $0xc] sm:$0xf]
          %v232 = vld [vmem:[%s227 + $0x10] sm:$0xf]
          %v233 = vld [vmem:[%s227 + $0x14] sm:$0xf]
          %v234 = vld [vmem:[%s227 + $0x18] sm:$0xf]
          %v235 = vld [vmem:[%s227 + $0x1c] sm:$0xf]
          %v241 = vunpack.c.l.b16 %v214
          %v242 = vunpack.c.l.b16 %v215
          %v243 = vunpack.c.l.b16 %v216
          %v244 = vunpack.c.l.b16 %v217
          %v245 = vunpack.c.l.b16 %v226
          %v246 = vpack.c.b16 %v242, %v241
          %v247 = vpack.c.b16 %v244, %v243
          %v248 = vpack.c.b16 %v245, %v245
          %vm249 = vsmask.f32 7424
          %v251 = vshrl.u32 %v246, 16
          %v253 = vshll.u32 %v246, 16
          %v255 = vrot.slane %v253, 1
          %v256 = vor.u32 %v251, %v255
          %v258 = vshll.u32 %v247, 16
          %v260 = vrot.slane %v258, 1
          %v261 = vsel %vm249, %v256, %v260
          %v262 = vshrl.u32 %v247, 16
          %v264 = vor.u32 %v262, %v260
          %v266 = vshll.u32 %v248, 16
          %v268 = vrot.slane %v266, 1
          %v269 = vsel %vm249, %v264, %v268
          %v278 = vunpack.c.l.b16 %v228
          %v279 = vunpack.c.l.b16 %v229
          %v280 = vunpack.c.l.b16 %v230
          %v281 = vunpack.c.l.b16 %v231
          %v282 = vunpack.c.l.b16 %v232
          %v283 = vunpack.c.l.b16 %v233
          %v284 = vunpack.c.l.b16 %v234
          %v285 = vunpack.c.l.b16 %v235
          %v286 = vpack.c.b16 %v279, %v278
          %v287 = vpack.c.b16 %v281, %v280
          %v288 = vpack.c.b16 %v283, %v282
          %v289 = vpack.c.b16 %v285, %v284
          %vm294 = vcmask 523264
          %v296 = vsel %vm294, %v261, 0
          %v299 = vsel %vm294, %v269, 0
          %301 = vmatpush.bf16.msra.mxu0 0
          %302 = vmatpush.bf16.msra.mxu0 0
          %303 = vmatpush.bf16.msra.mxu0 0
          %304 = vmatpush.bf16.msra.mxu0 0
          %305 = vmatpush.bf16.msra.mxu0 %v289
          %306 = vmatpush.bf16.msra.mxu0 %v288
          %307 = vmatpush.bf16.msra.mxu0 %v287
          %308 = vmatpush.bf16.msra.mxu0 %v286
          %309 = vmatmul.bf16.gmra.mxu0 %v296
          %v310 = vpop.f32.mrf.mxu0
          %v311 = vadd.f32 0.0, %v310
          %v312 = vpop.f32.mrf.mxu0
          %v313 = vadd.f32 0.0, %v312
          %314 = vmatmul.bf16.gmra.mxu0 %v299
          %v315 = vpop.f32.mrf.mxu0
          %v316 = vadd.f32 0.0, %v315
          %v317 = vpop.f32.mrf.mxu0
          %v318 = vadd.f32 0.0, %v317
          %319 = vdwg.mxu0
          %v328 = vunpack.c.l.b16 %v218
          %v329 = vunpack.c.l.b16 %v219
          %v330 = vunpack.c.l.b16 %v220
          %v331 = vunpack.c.l.b16 %v221
          %v332 = vunpack.c.l.b16 %v222
          %v333 = vunpack.c.l.b16 %v223
          %v334 = vunpack.c.l.b16 %v224
          %v335 = vunpack.c.l.b16 %v225
          %v336 = vpack.c.b16 %v329, %v328
          %v337 = vpack.c.b16 %v331, %v330
          %v338 = vpack.c.b16 %v333, %v332
          %v339 = vpack.c.b16 %v335, %v334
          %v344 = vsel %vm294, %v246, 0
          %v346 = vsel %vm294, %v247, 0
          %348 = vmatpush.bf16.msra.mxu0 0
          %349 = vmatpush.bf16.msra.mxu0 0
          %350 = vmatpush.bf16.msra.mxu0 0
          %351 = vmatpush.bf16.msra.mxu0 0
          %352 = vmatpush.bf16.msra.mxu0 %v339
          %353 = vmatpush.bf16.msra.mxu0 %v338
          %354 = vmatpush.bf16.msra.mxu0 %v337
          %355 = vmatpush.bf16.msra.mxu0 %v336
          %356 = vmatmul.bf16.gmra.mxu0 %v344
          %v357 = vpop.f32.mrf.mxu0
          %v358 = vadd.f32 %v311, %v357
          %v359 = vpop.f32.mrf.mxu0
          %v360 = vadd.f32 %v313, %v359
          %361 = vmatmul.bf16.gmra.mxu0 %v346
          %v362 = vpop.f32.mrf.mxu0
          %v363 = vadd.f32 %v316, %v362
          %v364 = vpop.f32.mrf.mxu0
          %v365 = vadd.f32 %v318, %v364
          %366 = vdwg.mxu0
          %v367 = vld [vmem:[%s213] sm:$0xe]
          %s368 = scalar_lea.vmem [#allocation2], 64
          %v369 = vld [vmem:[%s368] sm:$0xf]
          %v370 = vld [vmem:[%s368 + $0x4] sm:$0xf]
          %v371 = vld [vmem:[%s368 + $0x8] sm:$0xf]
          %v372 = vld [vmem:[%s368 + $0xc] sm:$0xf]
          %v373 = vld [vmem:[%s368 + $0x10] sm:$0xf]
          %v374 = vld [vmem:[%s368 + $0x14] sm:$0xf]
          %v375 = vld [vmem:[%s368 + $0x18] sm:$0xf]
          %v376 = vld [vmem:[%s368 + $0x1c] sm:$0xf]
          %v378 = vunpack.c.l.b16 %v367
          %v379 = vpack.c.b16 %v242, %v378
          %vm380 = vcmask 1046528
          %v381 = vrot.slane %v379, 1
          %v382 = vrot.slane %v247, 1
          %v383 = vsel %vm380, %v381, %v382
          %v384 = vrot.slane %v248, 1
          %v385 = vsel %vm380, %v382, %v384
          %v394 = vunpack.c.l.b16 %v369
          %v395 = vunpack.c.l.b16 %v370
          %v396 = vunpack.c.l.b16 %v371
          %v397 = vunpack.c.l.b16 %v372
          %v398 = vunpack.c.l.b16 %v373
          %v399 = vunpack.c.l.b16 %v374
          %v400 = vunpack.c.l.b16 %v375
          %v401 = vunpack.c.l.b16 %v376
          %v402 = vpack.c.b16 %v395, %v394
          %v403 = vpack.c.b16 %v397, %v396
          %v404 = vpack.c.b16 %v399, %v398
          %v405 = vpack.c.b16 %v401, %v400
          %v411 = vsel %vm294, %v383, 0
          %v414 = vsel %vm294, %v385, 0
          %416 = vmatpush.bf16.msra.mxu0 0
          %417 = vmatpush.bf16.msra.mxu0 0
          %418 = vmatpush.bf16.msra.mxu0 0
          %419 = vmatpush.bf16.msra.mxu0 0
          %420 = vmatpush.bf16.msra.mxu0 %v405
          %421 = vmatpush.bf16.msra.mxu0 %v404
          %422 = vmatpush.bf16.msra.mxu0 %v403
          %423 = vmatpush.bf16.msra.mxu0 %v402
          %424 = vmatmul.bf16.gmra.mxu0 %v411
          %v425 = vpop.f32.mrf.mxu0
          %v426 = vadd.f32 0.0, %v425
          %v427 = vpop.f32.mrf.mxu0
          %v428 = vadd.f32 0.0, %v427
          %429 = vmatmul.bf16.gmra.mxu0 %v414
          %v430 = vpop.f32.mrf.mxu0
          %v431 = vadd.f32 0.0, %v430
          %v432 = vpop.f32.mrf.mxu0
          %v433 = vadd.f32 0.0, %v432
          %434 = vdwg.mxu0
          %v435 = vadd.f32 %v358, %v426
          %v436 = vadd.f32 %v360, %v428
          %v437 = vadd.f32 %v363, %v431
          %v438 = vadd.f32 %v365, %v433
          %s439 = sadd.s32 %s206, 1
          %s440 = smul.u32 %s439, 5
          %s441 = smul.addr %s440, 4
          %s442 = scalar_lea.vmem %s197, %s441
          %v443 = vld [vmem:[%s442] sm:$0xf]
          %v444 = vld [vmem:[%s442 + $0x4] sm:$0xf]
          %v445 = vld [vmem:[%s442 + $0x8] sm:$0xf]
          %v446 = vld [vmem:[%s442 + $0xc] sm:$0xf]
          %s447 = scalar_lea.vmem [#allocation2], 96
          %v448 = vld [vmem:[%s447] sm:$0xf]
          %v449 = vld [vmem:[%s447 + $0x4] sm:$0xf]
          %v450 = vld [vmem:[%s447 + $0x8] sm:$0xf]
          %v451 = vld [vmem:[%s447 + $0xc] sm:$0xf]
          %v452 = vld [vmem:[%s447 + $0x10] sm:$0xf]
          %v453 = vld [vmem:[%s447 + $0x14] sm:$0xf]
          %v454 = vld [vmem:[%s447 + $0x18] sm:$0xf]
          %v455 = vld [vmem:[%s447 + $0x1c] sm:$0xf]
          %v460 = vunpack.c.l.b16 %v443
          %v461 = vunpack.c.l.b16 %v444
          %v462 = vunpack.c.l.b16 %v445
          %v463 = vunpack.c.l.b16 %v446
          %v464 = vpack.c.b16 %v461, %v460
          %v465 = vpack.c.b16 %v463, %v462
          %v474 = vunpack.c.l.b16 %v448
          %v475 = vunpack.c.l.b16 %v449
          %v476 = vunpack.c.l.b16 %v450
          %v477 = vunpack.c.l.b16 %v451
          %v478 = vunpack.c.l.b16 %v452
          %v479 = vunpack.c.l.b16 %v453
          %v480 = vunpack.c.l.b16 %v454
          %v481 = vunpack.c.l.b16 %v455
          %v482 = vpack.c.b16 %v475, %v474
          %v483 = vpack.c.b16 %v477, %v476
          %v484 = vpack.c.b16 %v479, %v478
          %v485 = vpack.c.b16 %v481, %v480
          %v491 = vsel %vm294, %v464, 0
          %v494 = vsel %vm294, %v465, 0
          %496 = vmatpush.bf16.msra.mxu0 0
          %497 = vmatpush.bf16.msra.mxu0 0
          %498 = vmatpush.bf16.msra.mxu0 0
          %499 = vmatpush.bf16.msra.mxu0 0
          %500 = vmatpush.bf16.msra.mxu0 %v485
          %501 = vmatpush.bf16.msra.mxu0 %v484
          %502 = vmatpush.bf16.msra.mxu0 %v483
          %503 = vmatpush.bf16.msra.mxu0 %v482
          %504 = vmatmul.bf16.gmra.mxu0 %v491
          %v505 = vpop.f32.mrf.mxu0
          %v506 = vadd.f32 0.0, %v505
          %v507 = vpop.f32.mrf.mxu0
          %v508 = vadd.f32 0.0, %v507
          %509 = vmatmul.bf16.gmra.mxu0 %v494
          %v510 = vpop.f32.mrf.mxu0
          %v511 = vadd.f32 0.0, %v510
          %v512 = vpop.f32.mrf.mxu0
          %v513 = vadd.f32 0.0, %v512
          %514 = vdwg.mxu0
          %v515 = vadd.f32 %v435, %v506
          %v516 = vadd.f32 %v436, %v508
          %v517 = vadd.f32 %v437, %v511
          %v518 = vadd.f32 %v438, %v513
          %v519 = vld [vmem:[%s442] sm:$0xf]
          %v520 = vld [vmem:[%s442 + $0x4] sm:$0xf]
          %v521 = vld [vmem:[%s442 + $0x8] sm:$0xf]
          %v522 = vld [vmem:[%s442 + $0xc] sm:$0xf]
          %v523 = vld [vmem:[%s442 + $0x10] sm:$0x1]
          %s524 = scalar_lea.vmem [#allocation2], 128
          %v525 = vld [vmem:[%s524] sm:$0xf]
          %v526 = vld [vmem:[%s524 + $0x4] sm:$0xf]
          %v527 = vld [vmem:[%s524 + $0x8] sm:$0xf]
          %v528 = vld [vmem:[%s524 + $0xc] sm:$0xf]
          %v529 = vld [vmem:[%s524 + $0x10] sm:$0xf]
          %v530 = vld [vmem:[%s524 + $0x14] sm:$0xf]
          %v531 = vld [vmem:[%s524 + $0x18] sm:$0xf]
          %v532 = vld [vmem:[%s524 + $0x1c] sm:$0xf]
          %v538 = vunpack.c.l.b16 %v519
          %v539 = vunpack.c.l.b16 %v520
          %v540 = vunpack.c.l.b16 %v521
          %v541 = vunpack.c.l.b16 %v522
          %v542 = vunpack.c.l.b16 %v523
          %v543 = vpack.c.b16 %v539, %v538
          %v544 = vpack.c.b16 %v541, %v540
          %v545 = vpack.c.b16 %v542, %v542
          %v547 = vshrl.u32 %v543, 16
          %v549 = vshll.u32 %v543, 16
          %v551 = vrot.slane %v549, 1
          %v552 = vor.u32 %v547, %v551
          %v554 = vshll.u32 %v544, 16
          %v556 = vrot.slane %v554, 1
          %v557 = vsel %vm249, %v552, %v556
          %v558 = vshrl.u32 %v544, 16
          %v560 = vor.u32 %v558, %v556
          %v562 = vshll.u32 %v545, 16
          %v564 = vrot.slane %v562, 1
          %v565 = vsel %vm249, %v560, %v564
          %v574 = vunpack.c.l.b16 %v525
          %v575 = vunpack.c.l.b16 %v526
          %v576 = vunpack.c.l.b16 %v527
          %v577 = vunpack.c.l.b16 %v528
          %v578 = vunpack.c.l.b16 %v529
          %v579 = vunpack.c.l.b16 %v530
          %v580 = vunpack.c.l.b16 %v531
          %v581 = vunpack.c.l.b16 %v532
          %v582 = vpack.c.b16 %v575, %v574
          %v583 = vpack.c.b16 %v577, %v576
          %v584 = vpack.c.b16 %v579, %v578
          %v585 = vpack.c.b16 %v581, %v580
          %v591 = vsel %vm294, %v557, 0
          %v594 = vsel %vm294, %v565, 0
          %596 = vmatpush.bf16.msra.mxu0 0
          %597 = vmatpush.bf16.msra.mxu0 0
          %598 = vmatpush.bf16.msra.mxu0 0
          %599 = vmatpush.bf16.msra.mxu0 0
          %600 = vmatpush.bf16.msra.mxu0 %v585
          %601 = vmatpush.bf16.msra.mxu0 %v584
          %602 = vmatpush.bf16.msra.mxu0 %v583
          %603 = vmatpush.bf16.msra.mxu0 %v582
          %604 = vmatmul.bf16.gmra.mxu0 %v591
          %v605 = vpop.f32.mrf.mxu0
          %v606 = vadd.f32 0.0, %v605
          %v607 = vpop.f32.mrf.mxu0
          %v608 = vadd.f32 0.0, %v607
          %609 = vmatmul.bf16.gmra.mxu0 %v594
          %v610 = vpop.f32.mrf.mxu0
          %v611 = vadd.f32 0.0, %v610
          %v612 = vpop.f32.mrf.mxu0
          %v613 = vadd.f32 0.0, %v612
          %614 = vdwg.mxu0
          %v615 = vadd.f32 %v515, %v606
          %v616 = vadd.f32 %v516, %v608
          %v617 = vadd.f32 %v517, %v611
          %v618 = vadd.f32 %v518, %v613
          %v619 = vld [vmem:[%s442] sm:$0xe]
          %s620 = scalar_lea.vmem [#allocation2], 160
          %v621 = vld [vmem:[%s620] sm:$0xf]
          %v622 = vld [vmem:[%s620 + $0x4] sm:$0xf]
          %v623 = vld [vmem:[%s620 + $0x8] sm:$0xf]
          %v624 = vld [vmem:[%s620 + $0xc] sm:$0xf]
          %v625 = vld [vmem:[%s620 + $0x10] sm:$0xf]
          %v626 = vld [vmem:[%s620 + $0x14] sm:$0xf]
          %v627 = vld [vmem:[%s620 + $0x18] sm:$0xf]
          %v628 = vld [vmem:[%s620 + $0x1c] sm:$0xf]
          %v630 = vunpack.c.l.b16 %v619
          %v631 = vpack.c.b16 %v539, %v630
          %v632 = vrot.slane %v631, 1
          %v633 = vrot.slane %v544, 1
          %v634 = vsel %vm380, %v632, %v633
          %v635 = vrot.slane %v545, 1
          %v636 = vsel %vm380, %v633, %v635
          %v645 = vunpack.c.l.b16 %v621
          %v646 = vunpack.c.l.b16 %v622
          %v647 = vunpack.c.l.b16 %v623
          %v648 = vunpack.c.l.b16 %v624
          %v649 = vunpack.c.l.b16 %v625
          %v650 = vunpack.c.l.b16 %v626
          %v651 = vunpack.c.l.b16 %v627
          %v652 = vunpack.c.l.b16 %v628
          %v653 = vpack.c.b16 %v646, %v645
          %v654 = vpack.c.b16 %v648, %v647
          %v655 = vpack.c.b16 %v650, %v649
          %v656 = vpack.c.b16 %v652, %v651
          %v662 = vsel %vm294, %v634, 0
          %v665 = vsel %vm294, %v636, 0
          %667 = vmatpush.bf16.msra.mxu0 0
          %668 = vmatpush.bf16.msra.mxu0 0
          %669 = vmatpush.bf16.msra.mxu0 0
          %670 = vmatpush.bf16.msra.mxu0 0
          %671 = vmatpush.bf16.msra.mxu0 %v656
          %672 = vmatpush.bf16.msra.mxu0 %v655
          %673 = vmatpush.bf16.msra.mxu0 %v654
          %674 = vmatpush.bf16.msra.mxu0 %v653
          %675 = vmatmul.bf16.gmra.mxu0 %v662
          %v676 = vpop.f32.mrf.mxu0
          %v677 = vadd.f32 0.0, %v676
          %v678 = vpop.f32.mrf.mxu0
          %v679 = vadd.f32 0.0, %v678
          %680 = vmatmul.bf16.gmra.mxu0 %v665
          %v681 = vpop.f32.mrf.mxu0
          %v682 = vadd.f32 0.0, %v681
          %v683 = vpop.f32.mrf.mxu0
          %v684 = vadd.f32 0.0, %v683
          %685 = vdwg.mxu0
          %v686 = vadd.f32 %v615, %v677
          %v687 = vadd.f32 %v616, %v679
          %v688 = vadd.f32 %v617, %v682
          %v689 = vadd.f32 %v618, %v684
          %s690 = sadd.s32 %s206, 2
          %s691 = smul.u32 %s690, 5
          %s692 = smul.addr %s691, 4
          %s693 = scalar_lea.vmem %s197, %s692
          %v694 = vld [vmem:[%s693] sm:$0xf]
          %v695 = vld [vmem:[%s693 + $0x4] sm:$0xf]
          %v696 = vld [vmem:[%s693 + $0x8] sm:$0xf]
          %v697 = vld [vmem:[%s693 + $0xc] sm:$0xf]
          %s698 = scalar_lea.vmem [#allocation2], 192
          %v699 = vld [vmem:[%s698] sm:$0xf]
          %v700 = vld [vmem:[%s698 + $0x4] sm:$0xf]
          %v701 = vld [vmem:[%s698 + $0x8] sm:$0xf]
          %v702 = vld [vmem:[%s698 + $0xc] sm:$0xf]
          %v703 = vld [vmem:[%s698 + $0x10] sm:$0xf]
          %v704 = vld [vmem:[%s698 + $0x14] sm:$0xf]
          %v705 = vld [vmem:[%s698 + $0x18] sm:$0xf]
          %v706 = vld [vmem:[%s698 + $0x1c] sm:$0xf]
          %v711 = vunpack.c.l.b16 %v694
          %v712 = vunpack.c.l.b16 %v695
          %v713 = vunpack.c.l.b16 %v696
          %v714 = vunpack.c.l.b16 %v697
          %v715 = vpack.c.b16 %v712, %v711
          %v716 = vpack.c.b16 %v714, %v713
          %v725 = vunpack.c.l.b16 %v699
          %v726 = vunpack.c.l.b16 %v700
          %v727 = vunpack.c.l.b16 %v701
          %v728 = vunpack.c.l.b16 %v702
          %v729 = vunpack.c.l.b16 %v703
          %v730 = vunpack.c.l.b16 %v704
          %v731 = vunpack.c.l.b16 %v705
          %v732 = vunpack.c.l.b16 %v706
          %v733 = vpack.c.b16 %v726, %v725
          %v734 = vpack.c.b16 %v728, %v727
          %v735 = vpack.c.b16 %v730, %v729
          %v736 = vpack.c.b16 %v732, %v731
          %v742 = vsel %vm294, %v715, 0
          %v745 = vsel %vm294, %v716, 0
          %747 = vmatpush.bf16.msra.mxu0 0
          %748 = vmatpush.bf16.msra.mxu0 0
          %749 = vmatpush.bf16.msra.mxu0 0
          %750 = vmatpush.bf16.msra.mxu0 0
          %751 = vmatpush.bf16.msra.mxu0 %v736
          %752 = vmatpush.bf16.msra.mxu0 %v735
          %753 = vmatpush.bf16.msra.mxu0 %v734
          %754 = vmatpush.bf16.msra.mxu0 %v733
          %755 = vmatmul.bf16.gmra.mxu0 %v742
          %v756 = vpop.f32.mrf.mxu0
          %v757 = vadd.f32 0.0, %v756
          %v758 = vpop.f32.mrf.mxu0
          %v759 = vadd.f32 0.0, %v758
          %760 = vmatmul.bf16.gmra.mxu0 %v745
          %v761 = vpop.f32.mrf.mxu0
          %v762 = vadd.f32 0.0, %v761
          %v763 = vpop.f32.mrf.mxu0
          %v764 = vadd.f32 0.0, %v763
          %765 = vdwg.mxu0
          %v766 = vadd.f32 %v686, %v757
          %v767 = vadd.f32 %v687, %v759
          %v768 = vadd.f32 %v688, %v762
          %v769 = vadd.f32 %v689, %v764
          %v770 = vld [vmem:[%s693] sm:$0xf]
          %v771 = vld [vmem:[%s693 + $0x4] sm:$0xf]
          %v772 = vld [vmem:[%s693 + $0x8] sm:$0xf]
          %v773 = vld [vmem:[%s693 + $0xc] sm:$0xf]
          %v774 = vld [vmem:[%s693 + $0x10] sm:$0x1]
          %s775 = scalar_lea.vmem [#allocation2], 224
          %v776 = vld [vmem:[%s775] sm:$0xf]
          %v777 = vld [vmem:[%s775 + $0x4] sm:$0xf]
          %v778 = vld [vmem:[%s775 + $0x8] sm:$0xf]
          %v779 = vld [vmem:[%s775 + $0xc] sm:$0xf]
          %v780 = vld [vmem:[%s775 + $0x10] sm:$0xf]
          %v781 = vld [vmem:[%s775 + $0x14] sm:$0xf]
          %v782 = vld [vmem:[%s775 + $0x18] sm:$0xf]
          %v783 = vld [vmem:[%s775 + $0x1c] sm:$0xf]
          %v789 = vunpack.c.l.b16 %v770
          %v790 = vunpack.c.l.b16 %v771
          %v791 = vunpack.c.l.b16 %v772
          %v792 = vunpack.c.l.b16 %v773
          %v793 = vunpack.c.l.b16 %v774
          %v794 = vpack.c.b16 %v790, %v789
          %v795 = vpack.c.b16 %v792, %v791
          %v796 = vpack.c.b16 %v793, %v793
          %v798 = vshrl.u32 %v794, 16
          %v800 = vshll.u32 %v794, 16
          %v802 = vrot.slane %v800, 1
          %v803 = vor.u32 %v798, %v802
          %v805 = vshll.u32 %v795, 16
          %v807 = vrot.slane %v805, 1
          %v808 = vsel %vm249, %v803, %v807
          %v809 = vshrl.u32 %v795, 16
          %v811 = vor.u32 %v809, %v807
          %v813 = vshll.u32 %v796, 16
          %v815 = vrot.slane %v813, 1
          %v816 = vsel %vm249, %v811, %v815
          %v825 = vunpack.c.l.b16 %v776
          %v826 = vunpack.c.l.b16 %v777
          %v827 = vunpack.c.l.b16 %v778
          %v828 = vunpack.c.l.b16 %v779
          %v829 = vunpack.c.l.b16 %v780
          %v830 = vunpack.c.l.b16 %v781
          %v831 = vunpack.c.l.b16 %v782
          %v832 = vunpack.c.l.b16 %v783
          %v833 = vpack.c.b16 %v826, %v825
          %v834 = vpack.c.b16 %v828, %v827
          %v835 = vpack.c.b16 %v830, %v829
          %v836 = vpack.c.b16 %v832, %v831
          %v842 = vsel %vm294, %v808, 0
          %v845 = vsel %vm294, %v816, 0
          %847 = vmatpush.bf16.msra.mxu0 0
          %848 = vmatpush.bf16.msra.mxu0 0
          %849 = vmatpush.bf16.msra.mxu0 0
          %850 = vmatpush.bf16.msra.mxu0 0
          %851 = vmatpush.bf16.msra.mxu0 %v836
          %852 = vmatpush.bf16.msra.mxu0 %v835
          %853 = vmatpush.bf16.msra.mxu0 %v834
          %854 = vmatpush.bf16.msra.mxu0 %v833
          %855 = vmatmul.bf16.gmra.mxu0 %v842
          %v856 = vpop.f32.mrf.mxu0
          %v857 = vadd.f32 0.0, %v856
          %v858 = vpop.f32.mrf.mxu0
          %v859 = vadd.f32 0.0, %v858
          %860 = vmatmul.bf16.gmra.mxu0 %v845
          %v861 = vpop.f32.mrf.mxu0
          %v862 = vadd.f32 0.0, %v861
          %v863 = vpop.f32.mrf.mxu0
          %v864 = vadd.f32 0.0, %v863
          %865 = vdwg.mxu0
          %v866 = vadd.f32 %v766, %v857
          %v867 = vadd.f32 %v767, %v859
          %v868 = vadd.f32 %v768, %v862
          %v869 = vadd.f32 %v769, %v864
          %v870 = vld [vmem:[%s693] sm:$0xe]
          %s871 = scalar_lea.vmem [#allocation2], 256
          %v872 = vld [vmem:[%s871] sm:$0xf]
          %v873 = vld [vmem:[%s871 + $0x4] sm:$0xf]
          %v874 = vld [vmem:[%s871 + $0x8] sm:$0xf]
          %v875 = vld [vmem:[%s871 + $0xc] sm:$0xf]
          %v876 = vld [vmem:[%s871 + $0x10] sm:$0xf]
          %v877 = vld [vmem:[%s871 + $0x14] sm:$0xf]
          %v878 = vld [vmem:[%s871 + $0x18] sm:$0xf]
          %v879 = vld [vmem:[%s871 + $0x1c] sm:$0xf]
          %v881 = vunpack.c.l.b16 %v870
          %v882 = vpack.c.b16 %v790, %v881
          %v883 = vrot.slane %v882, 1
          %v884 = vrot.slane %v795, 1
          %v885 = vsel %vm380, %v883, %v884
          %v886 = vrot.slane %v796, 1
          %v887 = vsel %vm380, %v884, %v886
          %v896 = vunpack.c.l.b16 %v872
          %v897 = vunpack.c.l.b16 %v873
          %v898 = vunpack.c.l.b16 %v874
          %v899 = vunpack.c.l.b16 %v875
          %v900 = vunpack.c.l.b16 %v876
          %v901 = vunpack.c.l.b16 %v877
          %v902 = vunpack.c.l.b16 %v878
          %v903 = vunpack.c.l.b16 %v879
          %v904 = vpack.c.b16 %v897, %v896
          %v905 = vpack.c.b16 %v899, %v898
          %v906 = vpack.c.b16 %v901, %v900
          %v907 = vpack.c.b16 %v903, %v902
          %v913 = vsel %vm294, %v885, 0
          %v916 = vsel %vm294, %v887, 0
          %918 = vmatpush.bf16.msra.mxu0 0
          %919 = vmatpush.bf16.msra.mxu0 0
          %920 = vmatpush.bf16.msra.mxu0 0
          %921 = vmatpush.bf16.msra.mxu0 0
          %922 = vmatpush.bf16.msra.mxu0 %v907
          %923 = vmatpush.bf16.msra.mxu0 %v906
          %924 = vmatpush.bf16.msra.mxu0 %v905
          %925 = vmatpush.bf16.msra.mxu0 %v904
          %926 = vmatmul.bf16.gmra.mxu0 %v913
          %v927 = vpop.f32.mrf.mxu0
          %v928 = vadd.f32 0.0, %v927
          %v929 = vpop.f32.mrf.mxu0
          %v930 = vadd.f32 0.0, %v929
          %931 = vmatmul.bf16.gmra.mxu0 %v916
          %v932 = vpop.f32.mrf.mxu0
          %v933 = vadd.f32 0.0, %v932
          %v934 = vpop.f32.mrf.mxu0
          %v935 = vadd.f32 0.0, %v934
          %936 = vdwg.mxu0
          %v937 = vadd.f32 %v866, %v928
          %v938 = vadd.f32 %v867, %v930
          %v939 = vadd.f32 %v868, %v933
          %v940 = vadd.f32 %v869, %v935
          %v942 = vperm.slane %v204, 0
          %v944 = vadd.f32 %v937, %v942
          %v945 = vadd.f32 %v938, %v942
          %v946 = vadd.f32 %v939, %v942
          %v947 = vadd.f32 %v940, %v942
          %v948 = vmax.f32 %v944, 0.0
          %v949 = vmax.f32 %v945, 0.0
          %v950 = vmax.f32 %v946, 0.0
          %v951 = vmax.f32 %v947, 0.0
          %v952 = vpack.c.bf16 %v948, %v948
          %v953 = vpack.c.bf16 %v949, %v949
          %v954 = vpack.c.bf16 %v950, %v950
          %v955 = vpack.c.bf16 %v951, %v951
          %s956 = smul.u32 %s206, 4
          %s957 = smul.addr %s956, 4
          %s958 = scalar_lea.vmem %s202, %s957
          %959 = vst [vmem:[%s958] sm:$0xf] %v952
          %960 = vst [vmem:[%s958 + $0x4] sm:$0xf] %v953
          %961 = vst [vmem:[%s958 + $0x8] sm:$0xf] %v954
          %962 = vst [vmem:[%s958 + $0xc] sm:$0xf] %v955
        $region45: #{forward.8} parent=31 // loop_footer
          %s210 = sadd.s32 1, %s206
        $region46: #{forward.8} parent=31 // loop_footer_branch
          %205 = sbr.rel target = $region42
        $region47: #{forward.8} parent=31 // loop_exit
          _
        %p963 = scmp.lt.s32.totalorder %s16, 1
        %s964 = scalar_select %p963, %s16, 1
        %s965 = smul.addr %s964, 128
        %s966 = smul.addr %s965, 4
        %s967 = scalar_lea.vmem %s3, %s966
        // Predicated region
        $region48: #{forward.8} parent=31 // pred_check
          %p968 = pneg %p102
        $region49: #{forward.8} parent=31 // pred_check_branch
          %970 = sbr.rel (%p968) target = $region51
        $region50: #{forward.8} parent=31 // pred_region
          _
        $region51: #{forward.8} parent=31 // pred_fallthru
          _
      $region32: #{forward.8} parent=5 // pred_fallthru
        _
      %p971 = scmp.le.s32.totalorder 2, %s11
      // Predicated region
      $region52: #{forward.8} parent=5 // pred_check
        %p972 = pneg %p971
      $region53: #{forward.8} parent=5 // pred_check_branch
        %974 = sbr.rel (%p972) target = $region55
      $region54: #{forward.8} parent=5 // pred_region
        %s975 = ssub.s32 %s11, 2
        // Predicated region
        $region56: #{forward.8} parent=54 // pred_check
          %p976 = pneg %p108
        $region57: #{forward.8} parent=54 // pred_check_branch
          %978 = sbr.rel (%p976) target = $region59
        $region58: #{forward.8} parent=54 // pred_region
          %p979 = scmp.lt.s32.totalorder %s17, 1
          %s980 = scalar_select %p979, %s17, 1
          %s981 = smul.addr %s980, 128
          %s982 = smul.addr %s981, 4
          %s983 = scalar_lea.vmem %s3, %s982
        $region59: #{forward.8} parent=54 // pred_fallthru
          _
      $region55: #{forward.8} parent=5 // pred_fallthru
        _
    $region6: #{forward.8} parent=1 // loop_footer
      %s15 = sadd.s32 1, %s11
    $region7: #{forward.8} parent=1 // loop_footer_branch
      %10 = sbr.rel target = $region3
    $region8: #{forward.8} parent=1 // loop_exit
      _
    %984 = vsyncpa [#allocation3], 1
    %s985 = scalar_lea.sflag [#allocation3], 1
    %986 = vsyncpa %s985, 1
    %987 = vsyncpa [#allocation5], 1

// kernel: forward.9
$region0: #{forward.9}
  #allocation0 [shape = 'u32[]', space=smem, size = 0x4, offset = 0x4, fixed_abs, tag = 'smem constant byte address 0x4 - core index']
  #allocation1 [shape = 'u32[72,128]{1,0:T(1,128)}', space=vmem, size = 0x9000, scoped, tag = 'internal scratch']
  %s0 = inlined_call_operand.vmem [shape: bf16[32,2,16,256], index: 0, kind: input, shape index: {}]
  %s1 = inlined_call_operand.vmem [shape: bf16[32,16,128], index: 1, kind: output, shape index: {}]
  %s2 = sld [smem:[#allocation0]]
  $region14: #{forward.9} parent=0
    _
  %s4 = ssub.s32 1, %s2
  %s5 = scalar_select 0, %s4, %s2
  // Predicated region
  $region2: #{forward.9} parent=0 // pred_check
    _
  $region3: #{forward.9} parent=0 // pred_check_branch
    %7 = sbr.rel (0) target = $region5
  $region4: #{forward.9} parent=0 // pred_region
    _
  $region5: #{forward.9} parent=0 // pred_fallthru
    _
  %v8 = vld [vmem:[%s0] sm:$0xff]
  %v9 = vld [vmem:[%s0 + $0x8] sm:$0xff]
  %v10 = vld [vmem:[%s0 + $0x10] sm:$0xff]
  %v11 = vld [vmem:[%s0 + $0x18] sm:$0xff]
  %v12 = vld [vmem:[%s0 + $0x20] sm:$0xff]
  %v13 = vld [vmem:[%s0 + $0x28] sm:$0xff]
  %v14 = vld [vmem:[%s0 + $0x30] sm:$0xff]
  %v15 = vld [vmem:[%s0 + $0x38] sm:$0xff]
  %v16 = vld [vmem:[%s0 + $0x40] sm:$0xff]
  %v17 = vld [vmem:[%s0 + $0x48] sm:$0xff]
  %v18 = vld [vmem:[%s0 + $0x50] sm:$0xff]
  %v19 = vld [vmem:[%s0 + $0x58] sm:$0xff]
  %v20 = vld [vmem:[%s0 + $0x60] sm:$0xff]
  %v21 = vld [vmem:[%s0 + $0x68] sm:$0xff]
  %v22 = vld [vmem:[%s0 + $0x70] sm:$0xff]
  %v23 = vld [vmem:[%s0 + $0x78] sm:$0xff]
  %v24 = vld [vmem:[%s0 + $0x80] sm:$0xff]
  %v25 = vld [vmem:[%s0 + $0x88] sm:$0xff]
  %v26 = vld [vmem:[%s0 + $0x90] sm:$0xff]
  %v27 = vld [vmem:[%s0 + $0x98] sm:$0xff]
  %v28 = vld [vmem:[%s0 + $0xa0] sm:$0xff]
  %v29 = vld [vmem:[%s0 + $0xa8] sm:$0xff]
  %v30 = vld [vmem:[%s0 + $0xb0] sm:$0xff]
  %v31 = vld [vmem:[%s0 + $0xb8] sm:$0xff]
  %v32 = vld [vmem:[%s0 + $0xc0] sm:$0xff]
  %v33 = vld [vmem:[%s0 + $0xc8] sm:$0xff]
  %v34 = vld [vmem:[%s0 + $0xd0] sm:$0xff]
  %v35 = vld [vmem:[%s0 + $0xd8] sm:$0xff]
  %v36 = vld [vmem:[%s0 + $0xe0] sm:$0xff]
  %v37 = vld [vmem:[%s0 + $0xe8] sm:$0xff]
  %v38 = vld [vmem:[%s0 + $0xf0] sm:$0xff]
  %v39 = vld [vmem:[%s0 + $0xf8] sm:$0xff]
  %v40 = vld [vmem:[%s0 + $0x100] sm:$0xff]
  %v41 = vld [vmem:[%s0 + $0x108] sm:$0xff]
  %v42 = vld [vmem:[%s0 + $0x110] sm:$0xff]
  %v43 = vld [vmem:[%s0 + $0x118] sm:$0xff]
  %v44 = vld [vmem:[%s0 + $0x120] sm:$0xff]
  %v45 = vld [vmem:[%s0 + $0x128] sm:$0xff]
  %v46 = vld [vmem:[%s0 + $0x130] sm:$0xff]
  %v47 = vld [vmem:[%s0 + $0x138] sm:$0xff]
  %v48 = vld [vmem:[%s0 + $0x140] sm:$0xff]
  %v49 = vld [vmem:[%s0 + $0x148] sm:$0xff]
  %v50 = vld [vmem:[%s0 + $0x150] sm:$0xff]
  %v51 = vld [vmem:[%s0 + $0x158] sm:$0xff]
  %v52 = vld [vmem:[%s0 + $0x160] sm:$0xff]
  %v53 = vld [vmem:[%s0 + $0x168] sm:$0xff]
  %v54 = vld [vmem:[%s0 + $0x170] sm:$0xff]
  %v55 = vld [vmem:[%s0 + $0x178] sm:$0xff]
  %v56 = vld [vmem:[%s0 + $0x180] sm:$0xff]
  %v57 = vld [vmem:[%s0 + $0x188] sm:$0xff]
  %v58 = vld [vmem:[%s0 + $0x190] sm:$0xff]
  %v59 = vld [vmem:[%s0 + $0x198] sm:$0xff]
  %v60 = vld [vmem:[%s0 + $0x1a0] sm:$0xff]
  %v61 = vld [vmem:[%s0 + $0x1a8] sm:$0xff]
  %v62 = vld [vmem:[%s0 + $0x1b0] sm:$0xff]
  %v63 = vld [vmem:[%s0 + $0x1b8] sm:$0xff]
  %v64 = vld [vmem:[%s0 + $0x1c0] sm:$0xff]
  %v65 = vld [vmem:[%s0 + $0x1c8] sm:$0xff]
  %v66 = vld [vmem:[%s0 + $0x1d0] sm:$0xff]
  %v67 = vld [vmem:[%s0 + $0x1d8] sm:$0xff]
  %v68 = vld [vmem:[%s0 + $0x1e0] sm:$0xff]
  %v69 = vld [vmem:[%s0 + $0x1e8] sm:$0xff]
  %v70 = vld [vmem:[%s0 + $0x1f0] sm:$0xff]
  %v71 = vld [vmem:[%s0 + $0x1f8] sm:$0xff]
  %v72 = vld [vmem:[%s0 + $0x200] sm:$0xff]
  %v73 = vld [vmem:[%s0 + $0x208] sm:$0xff]
  %v74 = vld [vmem:[%s0 + $0x210] sm:$0xff]
  %v75 = vld [vmem:[%s0 + $0x218] sm:$0xff]
  %v76 = vld [vmem:[%s0 + $0x220] sm:$0xff]
  %v77 = vld [vmem:[%s0 + $0x228] sm:$0xff]
  %v78 = vld [vmem:[%s0 + $0x230] sm:$0xff]
  %v79 = vld [vmem:[%s0 + $0x238] sm:$0xff]
  %v80 = vld [vmem:[%s0 + $0x240] sm:$0xff]
  %v81 = vld [vmem:[%s0 + $0x248] sm:$0xff]
  %v82 = vld [vmem:[%s0 + $0x250] sm:$0xff]
  %v83 = vld [vmem:[%s0 + $0x258] sm:$0xff]
  %v84 = vld [vmem:[%s0 + $0x260] sm:$0xff]
  %v85 = vld [vmem:[%s0 + $0x268] sm:$0xff]
  %v86 = vld [vmem:[%s0 + $0x270] sm:$0xff]
  %v87 = vld [vmem:[%s0 + $0x278] sm:$0xff]
  %v88 = vld [vmem:[%s0 + $0x280] sm:$0xff]
  %v89 = vld [vmem:[%s0 + $0x288] sm:$0xff]
  %v90 = vld [vmem:[%s0 + $0x290] sm:$0xff]
  %v91 = vld [vmem:[%s0 + $0x298] sm:$0xff]
  %v92 = vld [vmem:[%s0 + $0x2a0] sm:$0xff]
  %v93 = vld [vmem:[%s0 + $0x2a8] sm:$0xff]
  %v94 = vld [vmem:[%s0 + $0x2b0] sm:$0xff]
  %v95 = vld [vmem:[%s0 + $0x2b8] sm:$0xff]
  %v96 = vld [vmem:[%s0 + $0x2c0] sm:$0xff]
  %v97 = vld [vmem:[%s0 + $0x2c8] sm:$0xff]
  %v98 = vld [vmem:[%s0 + $0x2d0] sm:$0xff]
  %v99 = vld [vmem:[%s0 + $0x2d8] sm:$0xff]
  %v100 = vld [vmem:[%s0 + $0x2e0] sm:$0xff]
  %v101 = vld [vmem:[%s0 + $0x2e8] sm:$0xff]
  %v102 = vld [vmem:[%s0 + $0x2f0] sm:$0xff]
  %v103 = vld [vmem:[%s0 + $0x2f8] sm:$0xff]
  %v104 = vld [vmem:[%s0 + $0x300] sm:$0xff]
  %v105 = vld [vmem:[%s0 + $0x308] sm:$0xff]
  %v106 = vld [vmem:[%s0 + $0x310] sm:$0xff]
  %v107 = vld [vmem:[%s0 + $0x318] sm:$0xff]
  %v108 = vld [vmem:[%s0 + $0x320] sm:$0xff]
  %v109 = vld [vmem:[%s0 + $0x328] sm:$0xff]
  %v110 = vld [vmem:[%s0 + $0x330] sm:$0xff]
  %v111 = vld [vmem:[%s0 + $0x338] sm:$0xff]
  %v112 = vld [vmem:[%s0 + $0x340] sm:$0xff]
  %v113 = vld [vmem:[%s0 + $0x348] sm:$0xff]
  %v114 = vld [vmem:[%s0 + $0x350] sm:$0xff]
  %v115 = vld [vmem:[%s0 + $0x358] sm:$0xff]
  %v116 = vld [vmem:[%s0 + $0x360] sm:$0xff]
  %v117 = vld [vmem:[%s0 + $0x368] sm:$0xff]
  %v118 = vld [vmem:[%s0 + $0x370] sm:$0xff]
  %v119 = vld [vmem:[%s0 + $0x378] sm:$0xff]
  %v120 = vld [vmem:[%s0 + $0x380] sm:$0xff]
  %v121 = vld [vmem:[%s0 + $0x388] sm:$0xff]
  %v122 = vld [vmem:[%s0 + $0x390] sm:$0xff]
  %v123 = vld [vmem:[%s0 + $0x398] sm:$0xff]
  %v124 = vld [vmem:[%s0 + $0x3a0] sm:$0xff]
  %v125 = vld [vmem:[%s0 + $0x3a8] sm:$0xff]
  %v126 = vld [vmem:[%s0 + $0x3b0] sm:$0xff]
  %v127 = vld [vmem:[%s0 + $0x3b8] sm:$0xff]
  %v128 = vld [vmem:[%s0 + $0x3c0] sm:$0xff]
  %v129 = vld [vmem:[%s0 + $0x3c8] sm:$0xff]
  %v130 = vld [vmem:[%s0 + $0x3d0] sm:$0xff]
  %v131 = vld [vmem:[%s0 + $0x3d8] sm:$0xff]
  %v132 = vld [vmem:[%s0 + $0x3e0] sm:$0xff]
  %v133 = vld [vmem:[%s0 + $0x3e8] sm:$0xff]
  %v134 = vld [vmem:[%s0 + $0x3f0] sm:$0xff]
  %v135 = vld [vmem:[%s0 + $0x3f8] sm:$0xff]
  %v136 = vunpack.c.l.bf16 %v8
  %v137 = vunpack.c.h.bf16 %v8
  %v138 = vunpack.c.l.bf16 %v9
  %v139 = vunpack.c.h.bf16 %v9
  %v140 = vunpack.c.l.bf16 %v12
  %v141 = vunpack.c.h.bf16 %v12
  %v142 = vunpack.c.l.bf16 %v13
  %v143 = vunpack.c.h.bf16 %v13
  %v144 = vunpack.c.l.bf16 %v16
  %v145 = vunpack.c.h.bf16 %v16
  %v146 = vunpack.c.l.bf16 %v17
  %v147 = vunpack.c.h.bf16 %v17
  %v148 = vunpack.c.l.bf16 %v20
  %v149 = vunpack.c.h.bf16 %v20
  %v150 = vunpack.c.l.bf16 %v21
  %v151 = vunpack.c.h.bf16 %v21
  %v152 = vunpack.c.l.bf16 %v24
  %v153 = vunpack.c.h.bf16 %v24
  %v154 = vunpack.c.l.bf16 %v25
  %v155 = vunpack.c.h.bf16 %v25
  %v156 = vunpack.c.l.bf16 %v28
  %v157 = vunpack.c.h.bf16 %v28
  %v158 = vunpack.c.l.bf16 %v29
  %v159 = vunpack.c.h.bf16 %v29
  %v160 = vunpack.c.l.bf16 %v32
  %v161 = vunpack.c.h.bf16 %v32
  %v162 = vunpack.c.l.bf16 %v33
  %v163 = vunpack.c.h.bf16 %v33
  %v164 = vunpack.c.l.bf16 %v36
  %v165 = vunpack.c.h.bf16 %v36
  %v166 = vunpack.c.l.bf16 %v37
  %v167 = vunpack.c.h.bf16 %v37
  %v168 = vunpack.c.l.bf16 %v40
  %v169 = vunpack.c.h.bf16 %v40
  %v170 = vunpack.c.l.bf16 %v41
  %v171 = vunpack.c.h.bf16 %v41
  %v172 = vunpack.c.l.bf16 %v44
  %v173 = vunpack.c.h.bf16 %v44
  %v174 = vunpack.c.l.bf16 %v45
  %v175 = vunpack.c.h.bf16 %v45
  %v176 = vunpack.c.l.bf16 %v48
  %v177 = vunpack.c.h.bf16 %v48
  %v178 = vunpack.c.l.bf16 %v49
  %v179 = vunpack.c.h.bf16 %v49
  %v180 = vunpack.c.l.bf16 %v52
  %v181 = vunpack.c.h.bf16 %v52
  %v182 = vunpack.c.l.bf16 %v53
  %v183 = vunpack.c.h.bf16 %v53
  %v184 = vunpack.c.l.bf16 %v56
  %v185 = vunpack.c.h.bf16 %v56
  %v186 = vunpack.c.l.bf16 %v57
  %v187 = vunpack.c.h.bf16 %v57
  %v188 = vunpack.c.l.bf16 %v60
  %v189 = vunpack.c.h.bf16 %v60
  %v190 = vunpack.c.l.bf16 %v61
  %v191 = vunpack.c.h.bf16 %v61
  %v192 = vunpack.c.l.bf16 %v64
  %v193 = vunpack.c.h.bf16 %v64
  %v194 = vunpack.c.l.bf16 %v65
  %v195 = vunpack.c.h.bf16 %v65
  %v196 = vunpack.c.l.bf16 %v68
  %v197 = vunpack.c.h.bf16 %v68
  %v198 = vunpack.c.l.bf16 %v69
  %v199 = vunpack.c.h.bf16 %v69
  %v200 = vunpack.c.l.bf16 %v72
  %v201 = vunpack.c.h.bf16 %v72
  %v202 = vunpack.c.l.bf16 %v73
  %v203 = vunpack.c.h.bf16 %v73
  %v204 = vunpack.c.l.bf16 %v76
  %v205 = vunpack.c.h.bf16 %v76
  %v206 = vunpack.c.l.bf16 %v77
  %v207 = vunpack.c.h.bf16 %v77
  %v208 = vunpack.c.l.bf16 %v80
  %v209 = vunpack.c.h.bf16 %v80
  %v210 = vunpack.c.l.bf16 %v81
  %v211 = vunpack.c.h.bf16 %v81
  %v212 = vunpack.c.l.bf16 %v84
  %v213 = vunpack.c.h.bf16 %v84
  %v214 = vunpack.c.l.bf16 %v85
  %v215 = vunpack.c.h.bf16 %v85
  %v216 = vunpack.c.l.bf16 %v88
  %v217 = vunpack.c.h.bf16 %v88
  %v218 = vunpack.c.l.bf16 %v89
  %v219 = vunpack.c.h.bf16 %v89
  %v220 = vunpack.c.l.bf16 %v92
  %v221 = vunpack.c.h.bf16 %v92
  %v222 = vunpack.c.l.bf16 %v93
  %v223 = vunpack.c.h.bf16 %v93
  %v224 = vunpack.c.l.bf16 %v96
  %v225 = vunpack.c.h.bf16 %v96
  %v226 = vunpack.c.l.bf16 %v97
  %v227 = vunpack.c.h.bf16 %v97
  %v228 = vunpack.c.l.bf16 %v100
  %v229 = vunpack.c.h.bf16 %v100
  %v230 = vunpack.c.l.bf16 %v101
  %v231 = vunpack.c.h.bf16 %v101
  %v232 = vunpack.c.l.bf16 %v104
  %v233 = vunpack.c.h.bf16 %v104
  %v234 = vunpack.c.l.bf16 %v105
  %v235 = vunpack.c.h.bf16 %v105
  %v236 = vunpack.c.l.bf16 %v108
  %v237 = vunpack.c.h.bf16 %v108
  %v238 = vunpack.c.l.bf16 %v109
  %v239 = vunpack.c.h.bf16 %v109
  %v240 = vunpack.c.l.bf16 %v112
  %v241 = vunpack.c.h.bf16 %v112
  %v242 = vunpack.c.l.bf16 %v113
  %v243 = vunpack.c.h.bf16 %v113
  %v244 = vunpack.c.l.bf16 %v116
  %v245 = vunpack.c.h.bf16 %v116
  %v246 = vunpack.c.l.bf16 %v117
  %v247 = vunpack.c.h.bf16 %v117
  %v248 = vunpack.c.l.bf16 %v120
  %v249 = vunpack.c.h.bf16 %v120
  %v250 = vunpack.c.l.bf16 %v121
  %v251 = vunpack.c.h.bf16 %v121
  %v252 = vunpack.c.l.bf16 %v124
  %v253 = vunpack.c.h.bf16 %v124
  %v254 = vunpack.c.l.bf16 %v125
  %v255 = vunpack.c.h.bf16 %v125
  %v256 = vunpack.c.l.bf16 %v128
  %v257 = vunpack.c.h.bf16 %v128
  %v258 = vunpack.c.l.bf16 %v129
  %v259 = vunpack.c.h.bf16 %v129
  %v260 = vunpack.c.l.bf16 %v132
  %v261 = vunpack.c.h.bf16 %v132
  %v262 = vunpack.c.l.bf16 %v133
  %v263 = vunpack.c.h.bf16 %v133
  %v264 = vunpack.c.l.bf16 %v10
  %v265 = vunpack.c.h.bf16 %v10
  %v266 = vunpack.c.l.bf16 %v11
  %v267 = vunpack.c.h.bf16 %v11
  %v268 = vunpack.c.l.bf16 %v14
  %v269 = vunpack.c.h.bf16 %v14
  %v270 = vunpack.c.l.bf16 %v15
  %v271 = vunpack.c.h.bf16 %v15
  %v272 = vunpack.c.l.bf16 %v18
  %v273 = vunpack.c.h.bf16 %v18
  %v274 = vunpack.c.l.bf16 %v19
  %v275 = vunpack.c.h.bf16 %v19
  %v276 = vunpack.c.l.bf16 %v22
  %v277 = vunpack.c.h.bf16 %v22
  %v278 = vunpack.c.l.bf16 %v23
  %v279 = vunpack.c.h.bf16 %v23
  %v280 = vunpack.c.l.bf16 %v26
  %v281 = vunpack.c.h.bf16 %v26
  %v282 = vunpack.c.l.bf16 %v27
  %v283 = vunpack.c.h.bf16 %v27
  %v284 = vunpack.c.l.bf16 %v30
  %v285 = vunpack.c.h.bf16 %v30
  %v286 = vunpack.c.l.bf16 %v31
  %v287 = vunpack.c.h.bf16 %v31
  %v288 = vunpack.c.l.bf16 %v34
  %v289 = vunpack.c.h.bf16 %v34
  %v290 = vunpack.c.l.bf16 %v35
  %v291 = vunpack.c.h.bf16 %v35
  %v292 = vunpack.c.l.bf16 %v38
  %v293 = vunpack.c.h.bf16 %v38
  %v294 = vunpack.c.l.bf16 %v39
  %v295 = vunpack.c.h.bf16 %v39
  %v296 = vunpack.c.l.bf16 %v42
  %v297 = vunpack.c.h.bf16 %v42
  %v298 = vunpack.c.l.bf16 %v43
  %v299 = vunpack.c.h.bf16 %v43
  %v300 = vunpack.c.l.bf16 %v46
  %v301 = vunpack.c.h.bf16 %v46
  %v302 = vunpack.c.l.bf16 %v47
  %v303 = vunpack.c.h.bf16 %v47
  %v304 = vunpack.c.l.bf16 %v50
  %v305 = vunpack.c.h.bf16 %v50
  %v306 = vunpack.c.l.bf16 %v51
  %v307 = vunpack.c.h.bf16 %v51
  %v308 = vunpack.c.l.bf16 %v54
  %v309 = vunpack.c.h.bf16 %v54
  %v310 = vunpack.c.l.bf16 %v55
  %v311 = vunpack.c.h.bf16 %v55
  %v312 = vunpack.c.l.bf16 %v58
  %v313 = vunpack.c.h.bf16 %v58
  %v314 = vunpack.c.l.bf16 %v59
  %v315 = vunpack.c.h.bf16 %v59
  %v316 = vunpack.c.l.bf16 %v62
  %v317 = vunpack.c.h.bf16 %v62
  %v318 = vunpack.c.l.bf16 %v63
  %v319 = vunpack.c.h.bf16 %v63
  %v320 = vunpack.c.l.bf16 %v66
  %v321 = vunpack.c.h.bf16 %v66
  %v322 = vunpack.c.l.bf16 %v67
  %v323 = vunpack.c.h.bf16 %v67
  %v324 = vunpack.c.l.bf16 %v70
  %v325 = vunpack.c.h.bf16 %v70
  %v326 = vunpack.c.l.bf16 %v71
  %v327 = vunpack.c.h.bf16 %v71
  %v328 = vunpack.c.l.bf16 %v74
  %v329 = vunpack.c.h.bf16 %v74
  %v330 = vunpack.c.l.bf16 %v75
  %v331 = vunpack.c.h.bf16 %v75
  %v332 = vunpack.c.l.bf16 %v78
  %v333 = vunpack.c.h.bf16 %v78
  %v334 = vunpack.c.l.bf16 %v79
  %v335 = vunpack.c.h.bf16 %v79
  %v336 = vunpack.c.l.bf16 %v82
  %v337 = vunpack.c.h.bf16 %v82
  %v338 = vunpack.c.l.bf16 %v83
  %v339 = vunpack.c.h.bf16 %v83
  %v340 = vunpack.c.l.bf16 %v86
  %v341 = vunpack.c.h.bf16 %v86
  %v342 = vunpack.c.l.bf16 %v87
  %v343 = vunpack.c.h.bf16 %v87
  %v344 = vunpack.c.l.bf16 %v90
  %v345 = vunpack.c.h.bf16 %v90
  %v346 = vunpack.c.l.bf16 %v91
  %v347 = vunpack.c.h.bf16 %v91
  %v348 = vunpack.c.l.bf16 %v94
  %v349 = vunpack.c.h.bf16 %v94
  %v350 = vunpack.c.l.bf16 %v95
  %v351 = vunpack.c.h.bf16 %v95
  %v352 = vunpack.c.l.bf16 %v98
  %v353 = vunpack.c.h.bf16 %v98
  %v354 = vunpack.c.l.bf16 %v99
  %v355 = vunpack.c.h.bf16 %v99
  %v356 = vunpack.c.l.bf16 %v102
  %v357 = vunpack.c.h.bf16 %v102
  %v358 = vunpack.c.l.bf16 %v103
  %v359 = vunpack.c.h.bf16 %v103
  %v360 = vunpack.c.l.bf16 %v106
  %v361 = vunpack.c.h.bf16 %v106
  %v362 = vunpack.c.l.bf16 %v107
  %v363 = vunpack.c.h.bf16 %v107
  %v364 = vunpack.c.l.bf16 %v110
  %v365 = vunpack.c.h.bf16 %v110
  %v366 = vunpack.c.l.bf16 %v111
  %v367 = vunpack.c.h.bf16 %v111
  %v368 = vunpack.c.l.bf16 %v114
  %v369 = vunpack.c.h.bf16 %v114
  %v370 = vunpack.c.l.bf16 %v115
  %v371 = vunpack.c.h.bf16 %v115
  %v372 = vunpack.c.l.bf16 %v118
  %v373 = vunpack.c.h.bf16 %v118
  %v374 = vunpack.c.l.bf16 %v119
  %v375 = vunpack.c.h.bf16 %v119
  %v376 = vunpack.c.l.bf16 %v122
  %v377 = vunpack.c.h.bf16 %v122
  %v378 = vunpack.c.l.bf16 %v123
  %v379 = vunpack.c.h.bf16 %v123
  %v380 = vunpack.c.l.bf16 %v126
  %v381 = vunpack.c.h.bf16 %v126
  %v382 = vunpack.c.l.bf16 %v127
  %v383 = vunpack.c.h.bf16 %v127
  %v384 = vunpack.c.l.bf16 %v130
  %v385 = vunpack.c.h.bf16 %v130
  %v386 = vunpack.c.l.bf16 %v131
  %v387 = vunpack.c.h.bf16 %v131
  %v388 = vunpack.c.l.bf16 %v134
  %v389 = vunpack.c.h.bf16 %v134
  %v390 = vunpack.c.l.bf16 %v135
  %v391 = vunpack.c.h.bf16 %v135
  %v392 = vmax.f32 %v136, %v264
  %v393 = vmax.f32 %v137, %v265
  %v394 = vmax.f32 %v138, %v266
  %v395 = vmax.f32 %v139, %v267
  %v396 = vmax.f32 %v140, %v268
  %v397 = vmax.f32 %v141, %v269
  %v398 = vmax.f32 %v142, %v270
  %v399 = vmax.f32 %v143, %v271
  %v400 = vmax.f32 %v144, %v272
  %v401 = vmax.f32 %v145, %v273
  %v402 = vmax.f32 %v146, %v274
  %v403 = vmax.f32 %v147, %v275
  %v404 = vmax.f32 %v148, %v276
  %v405 = vmax.f32 %v149, %v277
  %v406 = vmax.f32 %v150, %v278
  %v407 = vmax.f32 %v151, %v279
  %v408 = vmax.f32 %v152, %v280
  %v409 = vmax.f32 %v153, %v281
  %v410 = vmax.f32 %v154, %v282
  %v411 = vmax.f32 %v155, %v283
  %v412 = vmax.f32 %v156, %v284
  %v413 = vmax.f32 %v157, %v285
  %v414 = vmax.f32 %v158, %v286
  %v415 = vmax.f32 %v159, %v287
  %v416 = vmax.f32 %v160, %v288
  %v417 = vmax.f32 %v161, %v289
  %v418 = vmax.f32 %v162, %v290
  %v419 = vmax.f32 %v163, %v291
  %v420 = vmax.f32 %v164, %v292
  %v421 = vmax.f32 %v165, %v293
  %v422 = vmax.f32 %v166, %v294
  %v423 = vmax.f32 %v167, %v295
  %v424 = vmax.f32 %v168, %v296
  %v425 = vmax.f32 %v169, %v297
  %v426 = vmax.f32 %v170, %v298
  %v427 = vmax.f32 %v171, %v299
  %v428 = vmax.f32 %v172, %v300
  %v429 = vmax.f32 %v173, %v301
  %v430 = vmax.f32 %v174, %v302
  %v431 = vmax.f32 %v175, %v303
  %v432 = vmax.f32 %v176, %v304
  %v433 = vmax.f32 %v177, %v305
  %v434 = vmax.f32 %v178, %v306
  %v435 = vmax.f32 %v179, %v307
  %v436 = vmax.f32 %v180, %v308
  %v437 = vmax.f32 %v181, %v309
  %v438 = vmax.f32 %v182, %v310
  %v439 = vmax.f32 %v183, %v311
  %v440 = vmax.f32 %v184, %v312
  %v441 = vmax.f32 %v185, %v313
  %v442 = vmax.f32 %v186, %v314
  %v443 = vmax.f32 %v187, %v315
  %v444 = vmax.f32 %v188, %v316
  %v445 = vmax.f32 %v189, %v317
  %v446 = vmax.f32 %v190, %v318
  %v447 = vmax.f32 %v191, %v319
  %v448 = vmax.f32 %v192, %v320
  %v449 = vmax.f32 %v193, %v321
  %v450 = vmax.f32 %v194, %v322
  %v451 = vmax.f32 %v195, %v323
  %v452 = vmax.f32 %v196, %v324
  %v453 = vmax.f32 %v197, %v325
  %v454 = vmax.f32 %v198, %v326
  %v455 = vmax.f32 %v199, %v327
  %v456 = vmax.f32 %v200, %v328
  %v457 = vmax.f32 %v201, %v329
  %v458 = vmax.f32 %v202, %v330
  %v459 = vmax.f32 %v203, %v331
  %v460 = vmax.f32 %v204, %v332
  %v461 = vmax.f32 %v205, %v333
  %v462 = vmax.f32 %v206, %v334
  %v463 = vmax.f32 %v207, %v335
  %v464 = vmax.f32 %v208, %v336
  %v465 = vmax.f32 %v209, %v337
  %v466 = vmax.f32 %v210, %v338
  %v467 = vmax.f32 %v211, %v339
  %v468 = vmax.f32 %v212, %v340
  %v469 = vmax.f32 %v213, %v341
  %v470 = vmax.f32 %v214, %v342
  %v471 = vmax.f32 %v215, %v343
  %v472 = vmax.f32 %v216, %v344
  %v473 = vmax.f32 %v217, %v345
  %v474 = vmax.f32 %v218, %v346
  %v475 = vmax.f32 %v219, %v347
  %v476 = vmax.f32 %v220, %v348
  %v477 = vmax.f32 %v221, %v349
  %v478 = vmax.f32 %v222, %v350
  %v479 = vmax.f32 %v223, %v351
  %v480 = vmax.f32 %v224, %v352
  %v481 = vmax.f32 %v225, %v353
  %v482 = vmax.f32 %v226, %v354
  %v483 = vmax.f32 %v227, %v355
  %v484 = vmax.f32 %v228, %v356
  %v485 = vmax.f32 %v229, %v357
  %v486 = vmax.f32 %v230, %v358
  %v487 = vmax.f32 %v231, %v359
  %v488 = vmax.f32 %v232, %v360
  %v489 = vmax.f32 %v233, %v361
  %v490 = vmax.f32 %v234, %v362
  %v491 = vmax.f32 %v235, %v363
  %v492 = vmax.f32 %v236, %v364
  %v493 = vmax.f32 %v237, %v365
  %v494 = vmax.f32 %v238, %v366
  %v495 = vmax.f32 %v239, %v367
  %v496 = vmax.f32 %v240, %v368
  %v497 = vmax.f32 %v241, %v369
  %v498 = vmax.f32 %v242, %v370
  %v499 = vmax.f32 %v243, %v371
  %v500 = vmax.f32 %v244, %v372
  %v501 = vmax.f32 %v245, %v373
  %v502 = vmax.f32 %v246, %v374
  %v503 = vmax.f32 %v247, %v375
  %v504 = vmax.f32 %v248, %v376
  %v505 = vmax.f32 %v249, %v377
  %v506 = vmax.f32 %v250, %v378
  %v507 = vmax.f32 %v251, %v379
  %v508 = vmax.f32 %v252, %v380
  %v509 = vmax.f32 %v253, %v381
  %v510 = vmax.f32 %v254, %v382
  %v511 = vmax.f32 %v255, %v383
  %v512 = vmax.f32 %v256, %v384
  %v513 = vmax.f32 %v257, %v385
  %v514 = vmax.f32 %v258, %v386
  %v515 = vmax.f32 %v259, %v387
  %v516 = vmax.f32 %v260, %v388
  %v517 = vmax.f32 %v261, %v389
  %v518 = vmax.f32 %v262, %v390
  %v519 = vmax.f32 %v263, %v391
  %v520 = vpack.c.bf16 %v393, %v392
  %v521 = vpack.c.bf16 %v395, %v394
  %v522 = vpack.c.bf16 %v397, %v396
  %v523 = vpack.c.bf16 %v399, %v398
  %v524 = vpack.c.bf16 %v401, %v400
  %v525 = vpack.c.bf16 %v403, %v402
  %v526 = vpack.c.bf16 %v405, %v404
  %v527 = vpack.c.bf16 %v407, %v406
  %v528 = vpack.c.bf16 %v409, %v408
  %v529 = vpack.c.bf16 %v411, %v410
  %v530 = vpack.c.bf16 %v413, %v412
  %v531 = vpack.c.bf16 %v415, %v414
  %v532 = vpack.c.bf16 %v417, %v416
  %v533 = vpack.c.bf16 %v419, %v418
  %v534 = vpack.c.bf16 %v421, %v420
  %v535 = vpack.c.bf16 %v423, %v422
  %v536 = vpack.c.bf16 %v425, %v424
  %v537 = vpack.c.bf16 %v427, %v426
  %v538 = vpack.c.bf16 %v429, %v428
  %v539 = vpack.c.bf16 %v431, %v430
  %v540 = vpack.c.bf16 %v433, %v432
  %v541 = vpack.c.bf16 %v435, %v434
  %v542 = vpack.c.bf16 %v437, %v436
  %v543 = vpack.c.bf16 %v439, %v438
  %v544 = vpack.c.bf16 %v441, %v440
  %v545 = vpack.c.bf16 %v443, %v442
  %v546 = vpack.c.bf16 %v445, %v444
  %v547 = vpack.c.bf16 %v447, %v446
  %v548 = vpack.c.bf16 %v449, %v448
  %v549 = vpack.c.bf16 %v451, %v450
  %v550 = vpack.c.bf16 %v453, %v452
  %v551 = vpack.c.bf16 %v455, %v454
  %v552 = vpack.c.bf16 %v457, %v456
  %v553 = vpack.c.bf16 %v459, %v458
  %v554 = vpack.c.bf16 %v461, %v460
  %v555 = vpack.c.bf16 %v463, %v462
  %v556 = vpack.c.bf16 %v465, %v464
  %v557 = vpack.c.bf16 %v467, %v466
  %v558 = vpack.c.bf16 %v469, %v468
  %v559 = vpack.c.bf16 %v471, %v470
  %v560 = vpack.c.bf16 %v473, %v472
  %v561 = vpack.c.bf16 %v475, %v474
  %v562 = vpack.c.bf16 %v477, %v476
  %v563 = vpack.c.bf16 %v479, %v478
  %v564 = vpack.c.bf16 %v481, %v480
  %v565 = vpack.c.bf16 %v483, %v482
  %v566 = vpack.c.bf16 %v485, %v484
  %v567 = vpack.c.bf16 %v487, %v486
  %v568 = vpack.c.bf16 %v489, %v488
  %v569 = vpack.c.bf16 %v491, %v490
  %v570 = vpack.c.bf16 %v493, %v492
  %v571 = vpack.c.bf16 %v495, %v494
  %v572 = vpack.c.bf16 %v497, %v496
  %v573 = vpack.c.bf16 %v499, %v498
  %v574 = vpack.c.bf16 %v501, %v500
  %v575 = vpack.c.bf16 %v503, %v502
  %v576 = vpack.c.bf16 %v505, %v504
  %v577 = vpack.c.bf16 %v507, %v506
  %v578 = vpack.c.bf16 %v509, %v508
  %v579 = vpack.c.bf16 %v511, %v510
  %v580 = vpack.c.bf16 %v513, %v512
  %v581 = vpack.c.bf16 %v515, %v514
  %v582 = vpack.c.bf16 %v517, %v516
  %v583 = vpack.c.bf16 %v519, %v518
  %v584 = vunpack.c.l.bf16 %v520
  %v585 = vunpack.c.l.bf16 %v521
  %v586 = vunpack.c.l.bf16 %v522
  %v587 = vunpack.c.l.bf16 %v523
  %v588 = vunpack.c.l.bf16 %v524
  %v589 = vunpack.c.l.bf16 %v525
  %v590 = vunpack.c.l.bf16 %v526
  %v591 = vunpack.c.l.bf16 %v527
  %v592 = vunpack.c.l.bf16 %v528
  %v593 = vunpack.c.l.bf16 %v529
  %v594 = vunpack.c.l.bf16 %v530
  %v595 = vunpack.c.l.bf16 %v531
  %v596 = vunpack.c.l.bf16 %v532
  %v597 = vunpack.c.l.bf16 %v533
  %v598 = vunpack.c.l.bf16 %v534
  %v599 = vunpack.c.l.bf16 %v535
  %v600 = vunpack.c.l.bf16 %v536
  %v601 = vunpack.c.l.bf16 %v537
  %v602 = vunpack.c.l.bf16 %v538
  %v603 = vunpack.c.l.bf16 %v539
  %v604 = vunpack.c.l.bf16 %v540
  %v605 = vunpack.c.l.bf16 %v541
  %v606 = vunpack.c.l.bf16 %v542
  %v607 = vunpack.c.l.bf16 %v543
  %v608 = vunpack.c.l.bf16 %v544
  %v609 = vunpack.c.l.bf16 %v545
  %v610 = vunpack.c.l.bf16 %v546
  %v611 = vunpack.c.l.bf16 %v547
  %v612 = vunpack.c.l.bf16 %v548
  %v613 = vunpack.c.l.bf16 %v549
  %v614 = vunpack.c.l.bf16 %v550
  %v615 = vunpack.c.l.bf16 %v551
  %v616 = vunpack.c.l.bf16 %v552
  %v617 = vunpack.c.l.bf16 %v553
  %v618 = vunpack.c.l.bf16 %v554
  %v619 = vunpack.c.l.bf16 %v555
  %v620 = vunpack.c.l.bf16 %v556
  %v621 = vunpack.c.l.bf16 %v557
  %v622 = vunpack.c.l.bf16 %v558
  %v623 = vunpack.c.l.bf16 %v559
  %v624 = vunpack.c.l.bf16 %v560
  %v625 = vunpack.c.l.bf16 %v561
  %v626 = vunpack.c.l.bf16 %v562
  %v627 = vunpack.c.l.bf16 %v563
  %v628 = vunpack.c.l.bf16 %v564
  %v629 = vunpack.c.l.bf16 %v565
  %v630 = vunpack.c.l.bf16 %v566
  %v631 = vunpack.c.l.bf16 %v567
  %v632 = vunpack.c.l.bf16 %v568
  %v633 = vunpack.c.l.bf16 %v569
  %v634 = vunpack.c.l.bf16 %v570
  %v635 = vunpack.c.l.bf16 %v571
  %v636 = vunpack.c.l.bf16 %v572
  %v637 = vunpack.c.l.bf16 %v573
  %v638 = vunpack.c.l.bf16 %v574
  %v639 = vunpack.c.l.bf16 %v575
  %v640 = vunpack.c.l.bf16 %v576
  %v641 = vunpack.c.l.bf16 %v577
  %v642 = vunpack.c.l.bf16 %v578
  %v643 = vunpack.c.l.bf16 %v579
  %v644 = vunpack.c.l.bf16 %v580
  %v645 = vunpack.c.l.bf16 %v581
  %v646 = vunpack.c.l.bf16 %v582
  %v647 = vunpack.c.l.bf16 %v583
  %v712 = vrot.slane %v520, 4
  %v713 = vrot.slane %v521, 4
  %v714 = vrot.slane %v522, 4
  %v715 = vrot.slane %v523, 4
  %v716 = vrot.slane %v524, 4
  %v717 = vrot.slane %v525, 4
  %v718 = vrot.slane %v526, 4
  %v719 = vrot.slane %v527, 4
  %v720 = vrot.slane %v528, 4
  %v721 = vrot.slane %v529, 4
  %v722 = vrot.slane %v530, 4
  %v723 = vrot.slane %v531, 4
  %v724 = vrot.slane %v532, 4
  %v725 = vrot.slane %v533, 4
  %v726 = vrot.slane %v534, 4
  %v727 = vrot.slane %v535, 4
  %v728 = vrot.slane %v536, 4
  %v729 = vrot.slane %v537, 4
  %v730 = vrot.slane %v538, 4
  %v731 = vrot.slane %v539, 4
  %v732 = vrot.slane %v540, 4
  %v733 = vrot.slane %v541, 4
  %v734 = vrot.slane %v542, 4
  %v735 = vrot.slane %v543, 4
  %v736 = vrot.slane %v544, 4
  %v737 = vrot.slane %v545, 4
  %v738 = vrot.slane %v546, 4
  %v739 = vrot.slane %v547, 4
  %v740 = vrot.slane %v548, 4
  %v741 = vrot.slane %v549, 4
  %v742 = vrot.slane %v550, 4
  %v743 = vrot.slane %v551, 4
  %v744 = vrot.slane %v552, 4
  %v745 = vrot.slane %v553, 4
  %v746 = vrot.slane %v554, 4
  %v747 = vrot.slane %v555, 4
  %v748 = vrot.slane %v556, 4
  %v749 = vrot.slane %v557, 4
  %v750 = vrot.slane %v558, 4
  %v751 = vrot.slane %v559, 4
  %v752 = vrot.slane %v560, 4
  %v753 = vrot.slane %v561, 4
  %v754 = vrot.slane %v562, 4
  %v755 = vrot.slane %v563, 4
  %v756 = vrot.slane %v564, 4
  %v757 = vrot.slane %v565, 4
  %v758 = vrot.slane %v566, 4
  %v759 = vrot.slane %v567, 4
  %v760 = vrot.slane %v568, 4
  %v761 = vrot.slane %v569, 4
  %v762 = vrot.slane %v570, 4
  %v763 = vrot.slane %v571, 4
  %v764 = vrot.slane %v572, 4
  %v765 = vrot.slane %v573, 4
  %v766 = vrot.slane %v574, 4
  %v767 = vrot.slane %v575, 4
  %v768 = vrot.slane %v576, 4
  %v769 = vrot.slane %v577, 4
  %v770 = vrot.slane %v578, 4
  %v771 = vrot.slane %v579, 4
  %v772 = vrot.slane %v580, 4
  %v773 = vrot.slane %v581, 4
  %v774 = vrot.slane %v582, 4
  %v775 = vrot.slane %v583, 4
  %v840 = vunpack.c.l.bf16 %v712
  %v841 = vunpack.c.l.bf16 %v713
  %v842 = vunpack.c.l.bf16 %v714
  %v843 = vunpack.c.l.bf16 %v715
  %v844 = vunpack.c.l.bf16 %v716
  %v845 = vunpack.c.l.bf16 %v717
  %v846 = vunpack.c.l.bf16 %v718
  %v847 = vunpack.c.l.bf16 %v719
  %v848 = vunpack.c.l.bf16 %v720
  %v849 = vunpack.c.l.bf16 %v721
  %v850 = vunpack.c.l.bf16 %v722
  %v851 = vunpack.c.l.bf16 %v723
  %v852 = vunpack.c.l.bf16 %v724
  %v853 = vunpack.c.l.bf16 %v725
  %v854 = vunpack.c.l.bf16 %v726
  %v855 = vunpack.c.l.bf16 %v727
  %v856 = vunpack.c.l.bf16 %v728
  %v857 = vunpack.c.l.bf16 %v729
  %v858 = vunpack.c.l.bf16 %v730
  %v859 = vunpack.c.l.bf16 %v731
  %v860 = vunpack.c.l.bf16 %v732
  %v861 = vunpack.c.l.bf16 %v733
  %v862 = vunpack.c.l.bf16 %v734
  %v863 = vunpack.c.l.bf16 %v735
  %v864 = vunpack.c.l.bf16 %v736
  %v865 = vunpack.c.l.bf16 %v737
  %v866 = vunpack.c.l.bf16 %v738
  %v867 = vunpack.c.l.bf16 %v739
  %v868 = vunpack.c.l.bf16 %v740
  %v869 = vunpack.c.l.bf16 %v741
  %v870 = vunpack.c.l.bf16 %v742
  %v871 = vunpack.c.l.bf16 %v743
  %v872 = vunpack.c.l.bf16 %v744
  %v873 = vunpack.c.l.bf16 %v745
  %v874 = vunpack.c.l.bf16 %v746
  %v875 = vunpack.c.l.bf16 %v747
  %v876 = vunpack.c.l.bf16 %v748
  %v877 = vunpack.c.l.bf16 %v749
  %v878 = vunpack.c.l.bf16 %v750
  %v879 = vunpack.c.l.bf16 %v751
  %v880 = vunpack.c.l.bf16 %v752
  %v881 = vunpack.c.l.bf16 %v753
  %v882 = vunpack.c.l.bf16 %v754
  %v883 = vunpack.c.l.bf16 %v755
  %v884 = vunpack.c.l.bf16 %v756
  %v885 = vunpack.c.l.bf16 %v757
  %v886 = vunpack.c.l.bf16 %v758
  %v887 = vunpack.c.l.bf16 %v759
  %v888 = vunpack.c.l.bf16 %v760
  %v889 = vunpack.c.l.bf16 %v761
  %v890 = vunpack.c.l.bf16 %v762
  %v891 = vunpack.c.l.bf16 %v763
  %v892 = vunpack.c.l.bf16 %v764
  %v893 = vunpack.c.l.bf16 %v765
  %v894 = vunpack.c.l.bf16 %v766
  %v895 = vunpack.c.l.bf16 %v767
  %v896 = vunpack.c.l.bf16 %v768
  %v897 = vunpack.c.l.bf16 %v769
  %v898 = vunpack.c.l.bf16 %v770
  %v899 = vunpack.c.l.bf16 %v771
  %v900 = vunpack.c.l.bf16 %v772
  %v901 = vunpack.c.l.bf16 %v773
  %v902 = vunpack.c.l.bf16 %v774
  %v903 = vunpack.c.l.bf16 %v775
  %v904 = vmax.f32 %v584, %v840
  %v905 = vmax.f32 %v585, %v841
  %v906 = vmax.f32 %v586, %v842
  %v907 = vmax.f32 %v587, %v843
  %v908 = vmax.f32 %v588, %v844
  %v909 = vmax.f32 %v589, %v845
  %v910 = vmax.f32 %v590, %v846
  %v911 = vmax.f32 %v591, %v847
  %v912 = vmax.f32 %v592, %v848
  %v913 = vmax.f32 %v593, %v849
  %v914 = vmax.f32 %v594, %v850
  %v915 = vmax.f32 %v595, %v851
  %v916 = vmax.f32 %v596, %v852
  %v917 = vmax.f32 %v597, %v853
  %v918 = vmax.f32 %v598, %v854
  %v919 = vmax.f32 %v599, %v855
  %v920 = vmax.f32 %v600, %v856
  %v921 = vmax.f32 %v601, %v857
  %v922 = vmax.f32 %v602, %v858
  %v923 = vmax.f32 %v603, %v859
  %v924 = vmax.f32 %v604, %v860
  %v925 = vmax.f32 %v605, %v861
  %v926 = vmax.f32 %v606, %v862
  %v927 = vmax.f32 %v607, %v863
  %v928 = vmax.f32 %v608, %v864
  %v929 = vmax.f32 %v609, %v865
  %v930 = vmax.f32 %v610, %v866
  %v931 = vmax.f32 %v611, %v867
  %v932 = vmax.f32 %v612, %v868
  %v933 = vmax.f32 %v613, %v869
  %v934 = vmax.f32 %v614, %v870
  %v935 = vmax.f32 %v615, %v871
  %v936 = vmax.f32 %v616, %v872
  %v937 = vmax.f32 %v617, %v873
  %v938 = vmax.f32 %v618, %v874
  %v939 = vmax.f32 %v619, %v875
  %v940 = vmax.f32 %v620, %v876
  %v941 = vmax.f32 %v621, %v877
  %v942 = vmax.f32 %v622, %v878
  %v943 = vmax.f32 %v623, %v879
  %v944 = vmax.f32 %v624, %v880
  %v945 = vmax.f32 %v625, %v881
  %v946 = vmax.f32 %v626, %v882
  %v947 = vmax.f32 %v627, %v883
  %v948 = vmax.f32 %v628, %v884
  %v949 = vmax.f32 %v629, %v885
  %v950 = vmax.f32 %v630, %v886
  %v951 = vmax.f32 %v631, %v887
  %v952 = vmax.f32 %v632, %v888
  %v953 = vmax.f32 %v633, %v889
  %v954 = vmax.f32 %v634, %v890
  %v955 = vmax.f32 %v635, %v891
  %v956 = vmax.f32 %v636, %v892
  %v957 = vmax.f32 %v637, %v893
  %v958 = vmax.f32 %v638, %v894
  %v959 = vmax.f32 %v639, %v895
  %v960 = vmax.f32 %v640, %v896
  %v961 = vmax.f32 %v641, %v897
  %v962 = vmax.f32 %v642, %v898
  %v963 = vmax.f32 %v643, %v899
  %v964 = vmax.f32 %v644, %v900
  %v965 = vmax.f32 %v645, %v901
  %v966 = vmax.f32 %v646, %v902
  %v967 = vmax.f32 %v647, %v903
  %v968 = vpack.c.bf16 %v904, %v904
  %v969 = vpack.c.bf16 %v905, %v905
  %v970 = vpack.c.bf16 %v906, %v906
  %v971 = vpack.c.bf16 %v907, %v907
  %v972 = vpack.c.bf16 %v908, %v908
  %v973 = vpack.c.bf16 %v909, %v909
  %v974 = vpack.c.bf16 %v910, %v910
  %v975 = vpack.c.bf16 %v911, %v911
  %v976 = vpack.c.bf16 %v912, %v912
  %v977 = vpack.c.bf16 %v913, %v913
  %v978 = vpack.c.bf16 %v914, %v914
  %v979 = vpack.c.bf16 %v915, %v915
  %v980 = vpack.c.bf16 %v916, %v916
  %v981 = vpack.c.bf16 %v917, %v917
  %v982 = vpack.c.bf16 %v918, %v918
  %v983 = vpack.c.bf16 %v919, %v919
  %v984 = vpack.c.bf16 %v920, %v920
  %v985 = vpack.c.bf16 %v921, %v921
  %v986 = vpack.c.bf16 %v922, %v922
  %v987 = vpack.c.bf16 %v923, %v923
  %v988 = vpack.c.bf16 %v924, %v924
  %v989 = vpack.c.bf16 %v925, %v925
  %v990 = vpack.c.bf16 %v926, %v926
  %v991 = vpack.c.bf16 %v927, %v927
  %v992 = vpack.c.bf16 %v928, %v928
  %v993 = vpack.c.bf16 %v929, %v929
  %v994 = vpack.c.bf16 %v930, %v930
  %v995 = vpack.c.bf16 %v931, %v931
  %v996 = vpack.c.bf16 %v932, %v932
  %v997 = vpack.c.bf16 %v933, %v933
  %v998 = vpack.c.bf16 %v934, %v934
  %v999 = vpack.c.bf16 %v935, %v935
  %v1000 = vpack.c.bf16 %v936, %v936
  %v1001 = vpack.c.bf16 %v937, %v937
  %v1002 = vpack.c.bf16 %v938, %v938
  %v1003 = vpack.c.bf16 %v939, %v939
  %v1004 = vpack.c.bf16 %v940, %v940
  %v1005 = vpack.c.bf16 %v941, %v941
  %v1006 = vpack.c.bf16 %v942, %v942
  %v1007 = vpack.c.bf16 %v943, %v943
  %v1008 = vpack.c.bf16 %v944, %v944
  %v1009 = vpack.c.bf16 %v945, %v945
  %v1010 = vpack.c.bf16 %v946, %v946
  %v1011 = vpack.c.bf16 %v947, %v947
  %v1012 = vpack.c.bf16 %v948, %v948
  %v1013 = vpack.c.bf16 %v949, %v949
  %v1014 = vpack.c.bf16 %v950, %v950
  %v1015 = vpack.c.bf16 %v951, %v951
  %v1016 = vpack.c.bf16 %v952, %v952
  %v1017 = vpack.c.bf16 %v953, %v953
  %v1018 = vpack.c.bf16 %v954, %v954
  %v1019 = vpack.c.bf16 %v955, %v955
  %v1020 = vpack.c.bf16 %v956, %v956
  %v1021 = vpack.c.bf16 %v957, %v957
  %v1022 = vpack.c.bf16 %v958, %v958
  %v1023 = vpack.c.bf16 %v959, %v959
  %v1024 = vpack.c.bf16 %v960, %v960
  %v1025 = vpack.c.bf16 %v961, %v961
  %v1026 = vpack.c.bf16 %v962, %v962
  %v1027 = vpack.c.bf16 %v963, %v963
  %v1028 = vpack.c.bf16 %v964, %v964
  %v1029 = vpack.c.bf16 %v965, %v965
  %v1030 = vpack.c.bf16 %v966, %v966
  %v1031 = vpack.c.bf16 %v967, %v967
  %1032 = vst [vmem:[%s1] sm:$0xf] %v968
  %1033 = vst [vmem:[%s1 + $0x4] sm:$0xf] %v969
  %1034 = vst [vmem:[%s1 + $0x8] sm:$0xf] %v970
  %1035 = vst [vmem:[%s1 + $0xc] sm:$0xf] %v971
  %1036 = vst [vmem:[%s1 + $0x10] sm:$0xf] %v972
  %1037 = vst [vmem:[%s1 + $0x14] sm:$0xf] %v973
  %1038 = vst [vmem:[%s1 + $0x18] sm:$0xf] %v974
  %1039 = vst [vmem:[%s1 + $0x1c] sm:$0xf] %v975
  %1040 = vst [vmem:[%s1 + $0x20] sm:$0xf] %v976
  %1041 = vst [vmem:[%s1 + $0x24] sm:$0xf] %v977
  %1042 = vst [vmem:[%s1 + $0x28] sm:$0xf] %v978
  %1043 = vst [vmem:[%s1 + $0x2c] sm:$0xf] %v979
  %1044 = vst [vmem:[%s1 + $0x30] sm:$0xf] %v980
  %1045 = vst [vmem:[%s1 + $0x34] sm:$0xf] %v981
  %1046 = vst [vmem:[%s1 + $0x38] sm:$0xf] %v982
  %1047 = vst [vmem:[%s1 + $0x3c] sm:$0xf] %v983
  %1048 = vst [vmem:[%s1 + $0x40] sm:$0xf] %v984
  %1049 = vst [vmem:[%s1 + $0x44] sm:$0xf] %v985
  %1050 = vst [vmem:[%s1 + $0x48] sm:$0xf] %v986
  %1051 = vst [vmem:[%s1 + $0x4c] sm:$0xf] %v987
  %1052 = vst [vmem:[%s1 + $0x50] sm:$0xf] %v988
  %1053 = vst [vmem:[%s1 + $0x54] sm:$0xf] %v989
  %1054 = vst [vmem:[%s1 + $0x58] sm:$0xf] %v990
  %1055 = vst [vmem:[%s1 + $0x5c] sm:$0xf] %v991
  %1056 = vst [vmem:[%s1 + $0x60] sm:$0xf] %v992
  %1057 = vst [vmem:[%s1 + $0x64] sm:$0xf] %v993
  %1058 = vst [vmem:[%s1 + $0x68] sm:$0xf] %v994
  %1059 = vst [vmem:[%s1 + $0x6c] sm:$0xf] %v995
  %1060 = vst [vmem:[%s1 + $0x70] sm:$0xf] %v996
  %1061 = vst [vmem:[%s1 + $0x74] sm:$0xf] %v997
  %1062 = vst [vmem:[%s1 + $0x78] sm:$0xf] %v998
  %1063 = vst [vmem:[%s1 + $0x7c] sm:$0xf] %v999
  %1064 = vst [vmem:[%s1 + $0x80] sm:$0xf] %v1000
  %1065 = vst [vmem:[%s1 + $0x84] sm:$0xf] %v1001
  %1066 = vst [vmem:[%s1 + $0x88] sm:$0xf] %v1002
  %1067 = vst [vmem:[%s1 + $0x8c] sm:$0xf] %v1003
  %1068 = vst [vmem:[%s1 + $0x90] sm:$0xf] %v1004
  %1069 = vst [vmem:[%s1 + $0x94] sm:$0xf] %v1005
  %1070 = vst [vmem:[%s1 + $0x98] sm:$0xf] %v1006
  %1071 = vst [vmem:[%s1 + $0x9c] sm:$0xf] %v1007
  %1072 = vst [vmem:[%s1 + $0xa0] sm:$0xf] %v1008
  %1073 = vst [vmem:[%s1 + $0xa4] sm:$0xf] %v1009
  %1074 = vst [vmem:[%s1 + $0xa8] sm:$0xf] %v1010
  %1075 = vst [vmem:[%s1 + $0xac] sm:$0xf] %v1011
  %1076 = vst [vmem:[%s1 + $0xb0] sm:$0xf] %v1012
  %1077 = vst [vmem:[%s1 + $0xb4] sm:$0xf] %v1013
  %1078 = vst [vmem:[%s1 + $0xb8] sm:$0xf] %v1014
  %1079 = vst [vmem:[%s1 + $0xbc] sm:$0xf] %v1015
  %1080 = vst [vmem:[%s1 + $0xc0] sm:$0xf] %v1016
  %1081 = vst [vmem:[%s1 + $0xc4] sm:$0xf] %v1017
  %1082 = vst [vmem:[%s1 + $0xc8] sm:$0xf] %v1018
  %1083 = vst [vmem:[%s1 + $0xcc] sm:$0xf] %v1019
  %1084 = vst [vmem:[%s1 + $0xd0] sm:$0xf] %v1020
  %1085 = vst [vmem:[%s1 + $0xd4] sm:$0xf] %v1021
  %1086 = vst [vmem:[%s1 + $0xd8] sm:$0xf] %v1022
  %1087 = vst [vmem:[%s1 + $0xdc] sm:$0xf] %v1023
  %1088 = vst [vmem:[%s1 + $0xe0] sm:$0xf] %v1024
  %1089 = vst [vmem:[%s1 + $0xe4] sm:$0xf] %v1025
  %1090 = vst [vmem:[%s1 + $0xe8] sm:$0xf] %v1026
  %1091 = vst [vmem:[%s1 + $0xec] sm:$0xf] %v1027
  %1092 = vst [vmem:[%s1 + $0xf0] sm:$0xf] %v1028
  %1093 = vst [vmem:[%s1 + $0xf4] sm:$0xf] %v1029
  %1094 = vst [vmem:[%s1 + $0xf8] sm:$0xf] %v1030
  %1095 = vst [vmem:[%s1 + $0xfc] sm:$0xf] %v1031
  // Predicated region
  $region6: #{forward.9} parent=0 // pred_check
    _
  $region7: #{forward.9} parent=0 // pred_check_branch
    %1097 = sbr.rel (0) target = $region9
  $region8: #{forward.9} parent=0 // pred_region
    _
  $region9: #{forward.9} parent=0 // pred_fallthru
    _
  // Predicated region
  $region10: #{forward.9} parent=0 // pred_check
    _
  $region11: #{forward.9} parent=0 // pred_check_branch
    %1099 = sbr.rel (0) target = $region13
  $region12: #{forward.9} parent=0 // pred_region
    _
  $region13: #{forward.9} parent=0 // pred_fallthru
    _

// kernel: forward.11
$region0: #{forward.11}
  #allocation0 [shape = 'u32[]', space=smem, size = 0x4, offset = 0x4, fixed_abs, tag = 'smem constant byte address 0x4 - core index']
  #allocation1 [shape = 'u32[72,128]{1,0:T(1,128)}', space=vmem, size = 0x9000, scoped, tag = 'internal scratch']
  %s0 = inlined_call_operand.vmem [shape: bf16[16,2,8,512], index: 0, kind: input, shape index: {}]
  %s1 = inlined_call_operand.vmem [shape: bf16[16,8,256], index: 1, kind: output, shape index: {}]
  %s2 = sld [smem:[#allocation0]]
  $region14: #{forward.11} parent=0
    _
  %s4 = ssub.s32 1, %s2
  %s5 = scalar_select 0, %s4, %s2
  // Predicated region
  $region2: #{forward.11} parent=0 // pred_check
    _
  $region3: #{forward.11} parent=0 // pred_check_branch
    %7 = sbr.rel (0) target = $region5
  $region4: #{forward.11} parent=0 // pred_region
    _
  $region5: #{forward.11} parent=0 // pred_fallthru
    _
  %v8 = vld [vmem:[%s0] sm:$0xff]
  %v9 = vld [vmem:[%s0 + $0x8] sm:$0xff]
  %v10 = vld [vmem:[%s0 + $0x10] sm:$0xff]
  %v11 = vld [vmem:[%s0 + $0x18] sm:$0xff]
  %v12 = vld [vmem:[%s0 + $0x20] sm:$0xff]
  %v13 = vld [vmem:[%s0 + $0x28] sm:$0xff]
  %v14 = vld [vmem:[%s0 + $0x30] sm:$0xff]
  %v15 = vld [vmem:[%s0 + $0x38] sm:$0xff]
  %v16 = vld [vmem:[%s0 + $0x40] sm:$0xff]
  %v17 = vld [vmem:[%s0 + $0x48] sm:$0xff]
  %v18 = vld [vmem:[%s0 + $0x50] sm:$0xff]
  %v19 = vld [vmem:[%s0 + $0x58] sm:$0xff]
  %v20 = vld [vmem:[%s0 + $0x60] sm:$0xff]
  %v21 = vld [vmem:[%s0 + $0x68] sm:$0xff]
  %v22 = vld [vmem:[%s0 + $0x70] sm:$0xff]
  %v23 = vld [vmem:[%s0 + $0x78] sm:$0xff]
  %v24 = vld [vmem:[%s0 + $0x80] sm:$0xff]
  %v25 = vld [vmem:[%s0 + $0x88] sm:$0xff]
  %v26 = vld [vmem:[%s0 + $0x90] sm:$0xff]
  %v27 = vld [vmem:[%s0 + $0x98] sm:$0xff]
  %v28 = vld [vmem:[%s0 + $0xa0] sm:$0xff]
  %v29 = vld [vmem:[%s0 + $0xa8] sm:$0xff]
  %v30 = vld [vmem:[%s0 + $0xb0] sm:$0xff]
  %v31 = vld [vmem:[%s0 + $0xb8] sm:$0xff]
  %v32 = vld [vmem:[%s0 + $0xc0] sm:$0xff]
  %v33 = vld [vmem:[%s0 + $0xc8] sm:$0xff]
  %v34 = vld [vmem:[%s0 + $0xd0] sm:$0xff]
  %v35 = vld [vmem:[%s0 + $0xd8] sm:$0xff]
  %v36 = vld [vmem:[%s0 + $0xe0] sm:$0xff]
  %v37 = vld [vmem:[%s0 + $0xe8] sm:$0xff]
  %v38 = vld [vmem:[%s0 + $0xf0] sm:$0xff]
  %v39 = vld [vmem:[%s0 + $0xf8] sm:$0xff]
  %v40 = vld [vmem:[%s0 + $0x100] sm:$0xff]
  %v41 = vld [vmem:[%s0 + $0x108] sm:$0xff]
  %v42 = vld [vmem:[%s0 + $0x110] sm:$0xff]
  %v43 = vld [vmem:[%s0 + $0x118] sm:$0xff]
  %v44 = vld [vmem:[%s0 + $0x120] sm:$0xff]
  %v45 = vld [vmem:[%s0 + $0x128] sm:$0xff]
  %v46 = vld [vmem:[%s0 + $0x130] sm:$0xff]
  %v47 = vld [vmem:[%s0 + $0x138] sm:$0xff]
  %v48 = vld [vmem:[%s0 + $0x140] sm:$0xff]
  %v49 = vld [vmem:[%s0 + $0x148] sm:$0xff]
  %v50 = vld [vmem:[%s0 + $0x150] sm:$0xff]
  %v51 = vld [vmem:[%s0 + $0x158] sm:$0xff]
  %v52 = vld [vmem:[%s0 + $0x160] sm:$0xff]
  %v53 = vld [vmem:[%s0 + $0x168] sm:$0xff]
  %v54 = vld [vmem:[%s0 + $0x170] sm:$0xff]
  %v55 = vld [vmem:[%s0 + $0x178] sm:$0xff]
  %v56 = vld [vmem:[%s0 + $0x180] sm:$0xff]
  %v57 = vld [vmem:[%s0 + $0x188] sm:$0xff]
  %v58 = vld [vmem:[%s0 + $0x190] sm:$0xff]
  %v59 = vld [vmem:[%s0 + $0x198] sm:$0xff]
  %v60 = vld [vmem:[%s0 + $0x1a0] sm:$0xff]
  %v61 = vld [vmem:[%s0 + $0x1a8] sm:$0xff]
  %v62 = vld [vmem:[%s0 + $0x1b0] sm:$0xff]
  %v63 = vld [vmem:[%s0 + $0x1b8] sm:$0xff]
  %v64 = vld [vmem:[%s0 + $0x1c0] sm:$0xff]
  %v65 = vld [vmem:[%s0 + $0x1c8] sm:$0xff]
  %v66 = vld [vmem:[%s0 + $0x1d0] sm:$0xff]
  %v67 = vld [vmem:[%s0 + $0x1d8] sm:$0xff]
  %v68 = vld [vmem:[%s0 + $0x1e0] sm:$0xff]
  %v69 = vld [vmem:[%s0 + $0x1e8] sm:$0xff]
  %v70 = vld [vmem:[%s0 + $0x1f0] sm:$0xff]
  %v71 = vld [vmem:[%s0 + $0x1f8] sm:$0xff]
  %v72 = vunpack.c.l.bf16 %v8
  %v73 = vunpack.c.h.bf16 %v8
  %v74 = vunpack.c.l.bf16 %v9
  %v75 = vunpack.c.h.bf16 %v9
  %v76 = vunpack.c.l.bf16 %v12
  %v77 = vunpack.c.h.bf16 %v12
  %v78 = vunpack.c.l.bf16 %v13
  %v79 = vunpack.c.h.bf16 %v13
  %v80 = vunpack.c.l.bf16 %v16
  %v81 = vunpack.c.h.bf16 %v16
  %v82 = vunpack.c.l.bf16 %v17
  %v83 = vunpack.c.h.bf16 %v17
  %v84 = vunpack.c.l.bf16 %v20
  %v85 = vunpack.c.h.bf16 %v20
  %v86 = vunpack.c.l.bf16 %v21
  %v87 = vunpack.c.h.bf16 %v21
  %v88 = vunpack.c.l.bf16 %v24
  %v89 = vunpack.c.h.bf16 %v24
  %v90 = vunpack.c.l.bf16 %v25
  %v91 = vunpack.c.h.bf16 %v25
  %v92 = vunpack.c.l.bf16 %v28
  %v93 = vunpack.c.h.bf16 %v28
  %v94 = vunpack.c.l.bf16 %v29
  %v95 = vunpack.c.h.bf16 %v29
  %v96 = vunpack.c.l.bf16 %v32
  %v97 = vunpack.c.h.bf16 %v32
  %v98 = vunpack.c.l.bf16 %v33
  %v99 = vunpack.c.h.bf16 %v33
  %v100 = vunpack.c.l.bf16 %v36
  %v101 = vunpack.c.h.bf16 %v36
  %v102 = vunpack.c.l.bf16 %v37
  %v103 = vunpack.c.h.bf16 %v37
  %v104 = vunpack.c.l.bf16 %v40
  %v105 = vunpack.c.h.bf16 %v40
  %v106 = vunpack.c.l.bf16 %v41
  %v107 = vunpack.c.h.bf16 %v41
  %v108 = vunpack.c.l.bf16 %v44
  %v109 = vunpack.c.h.bf16 %v44
  %v110 = vunpack.c.l.bf16 %v45
  %v111 = vunpack.c.h.bf16 %v45
  %v112 = vunpack.c.l.bf16 %v48
  %v113 = vunpack.c.h.bf16 %v48
  %v114 = vunpack.c.l.bf16 %v49
  %v115 = vunpack.c.h.bf16 %v49
  %v116 = vunpack.c.l.bf16 %v52
  %v117 = vunpack.c.h.bf16 %v52
  %v118 = vunpack.c.l.bf16 %v53
  %v119 = vunpack.c.h.bf16 %v53
  %v120 = vunpack.c.l.bf16 %v56
  %v121 = vunpack.c.h.bf16 %v56
  %v122 = vunpack.c.l.bf16 %v57
  %v123 = vunpack.c.h.bf16 %v57
  %v124 = vunpack.c.l.bf16 %v60
  %v125 = vunpack.c.h.bf16 %v60
  %v126 = vunpack.c.l.bf16 %v61
  %v127 = vunpack.c.h.bf16 %v61
  %v128 = vunpack.c.l.bf16 %v64
  %v129 = vunpack.c.h.bf16 %v64
  %v130 = vunpack.c.l.bf16 %v65
  %v131 = vunpack.c.h.bf16 %v65
  %v132 = vunpack.c.l.bf16 %v68
  %v133 = vunpack.c.h.bf16 %v68
  %v134 = vunpack.c.l.bf16 %v69
  %v135 = vunpack.c.h.bf16 %v69
  %v136 = vunpack.c.l.bf16 %v10
  %v137 = vunpack.c.h.bf16 %v10
  %v138 = vunpack.c.l.bf16 %v11
  %v139 = vunpack.c.h.bf16 %v11
  %v140 = vunpack.c.l.bf16 %v14
  %v141 = vunpack.c.h.bf16 %v14
  %v142 = vunpack.c.l.bf16 %v15
  %v143 = vunpack.c.h.bf16 %v15
  %v144 = vunpack.c.l.bf16 %v18
  %v145 = vunpack.c.h.bf16 %v18
  %v146 = vunpack.c.l.bf16 %v19
  %v147 = vunpack.c.h.bf16 %v19
  %v148 = vunpack.c.l.bf16 %v22
  %v149 = vunpack.c.h.bf16 %v22
  %v150 = vunpack.c.l.bf16 %v23
  %v151 = vunpack.c.h.bf16 %v23
  %v152 = vunpack.c.l.bf16 %v26
  %v153 = vunpack.c.h.bf16 %v26
  %v154 = vunpack.c.l.bf16 %v27
  %v155 = vunpack.c.h.bf16 %v27
  %v156 = vunpack.c.l.bf16 %v30
  %v157 = vunpack.c.h.bf16 %v30
  %v158 = vunpack.c.l.bf16 %v31
  %v159 = vunpack.c.h.bf16 %v31
  %v160 = vunpack.c.l.bf16 %v34
  %v161 = vunpack.c.h.bf16 %v34
  %v162 = vunpack.c.l.bf16 %v35
  %v163 = vunpack.c.h.bf16 %v35
  %v164 = vunpack.c.l.bf16 %v38
  %v165 = vunpack.c.h.bf16 %v38
  %v166 = vunpack.c.l.bf16 %v39
  %v167 = vunpack.c.h.bf16 %v39
  %v168 = vunpack.c.l.bf16 %v42
  %v169 = vunpack.c.h.bf16 %v42
  %v170 = vunpack.c.l.bf16 %v43
  %v171 = vunpack.c.h.bf16 %v43
  %v172 = vunpack.c.l.bf16 %v46
  %v173 = vunpack.c.h.bf16 %v46
  %v174 = vunpack.c.l.bf16 %v47
  %v175 = vunpack.c.h.bf16 %v47
  %v176 = vunpack.c.l.bf16 %v50
  %v177 = vunpack.c.h.bf16 %v50
  %v178 = vunpack.c.l.bf16 %v51
  %v179 = vunpack.c.h.bf16 %v51
  %v180 = vunpack.c.l.bf16 %v54
  %v181 = vunpack.c.h.bf16 %v54
  %v182 = vunpack.c.l.bf16 %v55
  %v183 = vunpack.c.h.bf16 %v55
  %v184 = vunpack.c.l.bf16 %v58
  %v185 = vunpack.c.h.bf16 %v58
  %v186 = vunpack.c.l.bf16 %v59
  %v187 = vunpack.c.h.bf16 %v59
  %v188 = vunpack.c.l.bf16 %v62
  %v189 = vunpack.c.h.bf16 %v62
  %v190 = vunpack.c.l.bf16 %v63
  %v191 = vunpack.c.h.bf16 %v63
  %v192 = vunpack.c.l.bf16 %v66
  %v193 = vunpack.c.h.bf16 %v66
  %v194 = vunpack.c.l.bf16 %v67
  %v195 = vunpack.c.h.bf16 %v67
  %v196 = vunpack.c.l.bf16 %v70
  %v197 = vunpack.c.h.bf16 %v70
  %v198 = vunpack.c.l.bf16 %v71
  %v199 = vunpack.c.h.bf16 %v71
  %v200 = vmax.f32 %v72, %v136
  %v201 = vmax.f32 %v73, %v137
  %v202 = vmax.f32 %v74, %v138
  %v203 = vmax.f32 %v75, %v139
  %v204 = vmax.f32 %v76, %v140
  %v205 = vmax.f32 %v77, %v141
  %v206 = vmax.f32 %v78, %v142
  %v207 = vmax.f32 %v79, %v143
  %v208 = vmax.f32 %v80, %v144
  %v209 = vmax.f32 %v81, %v145
  %v210 = vmax.f32 %v82, %v146
  %v211 = vmax.f32 %v83, %v147
  %v212 = vmax.f32 %v84, %v148
  %v213 = vmax.f32 %v85, %v149
  %v214 = vmax.f32 %v86, %v150
  %v215 = vmax.f32 %v87, %v151
  %v216 = vmax.f32 %v88, %v152
  %v217 = vmax.f32 %v89, %v153
  %v218 = vmax.f32 %v90, %v154
  %v219 = vmax.f32 %v91, %v155
  %v220 = vmax.f32 %v92, %v156
  %v221 = vmax.f32 %v93, %v157
  %v222 = vmax.f32 %v94, %v158
  %v223 = vmax.f32 %v95, %v159
  %v224 = vmax.f32 %v96, %v160
  %v225 = vmax.f32 %v97, %v161
  %v226 = vmax.f32 %v98, %v162
  %v227 = vmax.f32 %v99, %v163
  %v228 = vmax.f32 %v100, %v164
  %v229 = vmax.f32 %v101, %v165
  %v230 = vmax.f32 %v102, %v166
  %v231 = vmax.f32 %v103, %v167
  %v232 = vmax.f32 %v104, %v168
  %v233 = vmax.f32 %v105, %v169
  %v234 = vmax.f32 %v106, %v170
  %v235 = vmax.f32 %v107, %v171
  %v236 = vmax.f32 %v108, %v172
  %v237 = vmax.f32 %v109, %v173
  %v238 = vmax.f32 %v110, %v174
  %v239 = vmax.f32 %v111, %v175
  %v240 = vmax.f32 %v112, %v176
  %v241 = vmax.f32 %v113, %v177
  %v242 = vmax.f32 %v114, %v178
  %v243 = vmax.f32 %v115, %v179
  %v244 = vmax.f32 %v116, %v180
  %v245 = vmax.f32 %v117, %v181
  %v246 = vmax.f32 %v118, %v182
  %v247 = vmax.f32 %v119, %v183
  %v248 = vmax.f32 %v120, %v184
  %v249 = vmax.f32 %v121, %v185
  %v250 = vmax.f32 %v122, %v186
  %v251 = vmax.f32 %v123, %v187
  %v252 = vmax.f32 %v124, %v188
  %v253 = vmax.f32 %v125, %v189
  %v254 = vmax.f32 %v126, %v190
  %v255 = vmax.f32 %v127, %v191
  %v256 = vmax.f32 %v128, %v192
  %v257 = vmax.f32 %v129, %v193
  %v258 = vmax.f32 %v130, %v194
  %v259 = vmax.f32 %v131, %v195
  %v260 = vmax.f32 %v132, %v196
  %v261 = vmax.f32 %v133, %v197
  %v262 = vmax.f32 %v134, %v198
  %v263 = vmax.f32 %v135, %v199
  %v264 = vpack.c.bf16 %v201, %v200
  %v265 = vpack.c.bf16 %v203, %v202
  %v266 = vpack.c.bf16 %v205, %v204
  %v267 = vpack.c.bf16 %v207, %v206
  %v268 = vpack.c.bf16 %v209, %v208
  %v269 = vpack.c.bf16 %v211, %v210
  %v270 = vpack.c.bf16 %v213, %v212
  %v271 = vpack.c.bf16 %v215, %v214
  %v272 = vpack.c.bf16 %v217, %v216
  %v273 = vpack.c.bf16 %v219, %v218
  %v274 = vpack.c.bf16 %v221, %v220
  %v275 = vpack.c.bf16 %v223, %v222
  %v276 = vpack.c.bf16 %v225, %v224
  %v277 = vpack.c.bf16 %v227, %v226
  %v278 = vpack.c.bf16 %v229, %v228
  %v279 = vpack.c.bf16 %v231, %v230
  %v280 = vpack.c.bf16 %v233, %v232
  %v281 = vpack.c.bf16 %v235, %v234
  %v282 = vpack.c.bf16 %v237, %v236
  %v283 = vpack.c.bf16 %v239, %v238
  %v284 = vpack.c.bf16 %v241, %v240
  %v285 = vpack.c.bf16 %v243, %v242
  %v286 = vpack.c.bf16 %v245, %v244
  %v287 = vpack.c.bf16 %v247, %v246
  %v288 = vpack.c.bf16 %v249, %v248
  %v289 = vpack.c.bf16 %v251, %v250
  %v290 = vpack.c.bf16 %v253, %v252
  %v291 = vpack.c.bf16 %v255, %v254
  %v292 = vpack.c.bf16 %v257, %v256
  %v293 = vpack.c.bf16 %v259, %v258
  %v294 = vpack.c.bf16 %v261, %v260
  %v295 = vpack.c.bf16 %v263, %v262
  %v296 = vunpack.c.l.bf16 %v264
  %v297 = vunpack.c.h.bf16 %v264
  %v298 = vunpack.c.l.bf16 %v266
  %v299 = vunpack.c.h.bf16 %v266
  %v300 = vunpack.c.l.bf16 %v268
  %v301 = vunpack.c.h.bf16 %v268
  %v302 = vunpack.c.l.bf16 %v270
  %v303 = vunpack.c.h.bf16 %v270
  %v304 = vunpack.c.l.bf16 %v272
  %v305 = vunpack.c.h.bf16 %v272
  %v306 = vunpack.c.l.bf16 %v274
  %v307 = vunpack.c.h.bf16 %v274
  %v308 = vunpack.c.l.bf16 %v276
  %v309 = vunpack.c.h.bf16 %v276
  %v310 = vunpack.c.l.bf16 %v278
  %v311 = vunpack.c.h.bf16 %v278
  %v312 = vunpack.c.l.bf16 %v280
  %v313 = vunpack.c.h.bf16 %v280
  %v314 = vunpack.c.l.bf16 %v282
  %v315 = vunpack.c.h.bf16 %v282
  %v316 = vunpack.c.l.bf16 %v284
  %v317 = vunpack.c.h.bf16 %v284
  %v318 = vunpack.c.l.bf16 %v286
  %v319 = vunpack.c.h.bf16 %v286
  %v320 = vunpack.c.l.bf16 %v288
  %v321 = vunpack.c.h.bf16 %v288
  %v322 = vunpack.c.l.bf16 %v290
  %v323 = vunpack.c.h.bf16 %v290
  %v324 = vunpack.c.l.bf16 %v292
  %v325 = vunpack.c.h.bf16 %v292
  %v326 = vunpack.c.l.bf16 %v294
  %v327 = vunpack.c.h.bf16 %v294
  %v328 = vunpack.c.l.bf16 %v265
  %v329 = vunpack.c.h.bf16 %v265
  %v330 = vunpack.c.l.bf16 %v267
  %v331 = vunpack.c.h.bf16 %v267
  %v332 = vunpack.c.l.bf16 %v269
  %v333 = vunpack.c.h.bf16 %v269
  %v334 = vunpack.c.l.bf16 %v271
  %v335 = vunpack.c.h.bf16 %v271
  %v336 = vunpack.c.l.bf16 %v273
  %v337 = vunpack.c.h.bf16 %v273
  %v338 = vunpack.c.l.bf16 %v275
  %v339 = vunpack.c.h.bf16 %v275
  %v340 = vunpack.c.l.bf16 %v277
  %v341 = vunpack.c.h.bf16 %v277
  %v342 = vunpack.c.l.bf16 %v279
  %v343 = vunpack.c.h.bf16 %v279
  %v344 = vunpack.c.l.bf16 %v281
  %v345 = vunpack.c.h.bf16 %v281
  %v346 = vunpack.c.l.bf16 %v283
  %v347 = vunpack.c.h.bf16 %v283
  %v348 = vunpack.c.l.bf16 %v285
  %v349 = vunpack.c.h.bf16 %v285
  %v350 = vunpack.c.l.bf16 %v287
  %v351 = vunpack.c.h.bf16 %v287
  %v352 = vunpack.c.l.bf16 %v289
  %v353 = vunpack.c.h.bf16 %v289
  %v354 = vunpack.c.l.bf16 %v291
  %v355 = vunpack.c.h.bf16 %v291
  %v356 = vunpack.c.l.bf16 %v293
  %v357 = vunpack.c.h.bf16 %v293
  %v358 = vunpack.c.l.bf16 %v295
  %v359 = vunpack.c.h.bf16 %v295
  %v360 = vmax.f32 %v296, %v328
  %v361 = vmax.f32 %v297, %v329
  %v362 = vmax.f32 %v298, %v330
  %v363 = vmax.f32 %v299, %v331
  %v364 = vmax.f32 %v300, %v332
  %v365 = vmax.f32 %v301, %v333
  %v366 = vmax.f32 %v302, %v334
  %v367 = vmax.f32 %v303, %v335
  %v368 = vmax.f32 %v304, %v336
  %v369 = vmax.f32 %v305, %v337
  %v370 = vmax.f32 %v306, %v338
  %v371 = vmax.f32 %v307, %v339
  %v372 = vmax.f32 %v308, %v340
  %v373 = vmax.f32 %v309, %v341
  %v374 = vmax.f32 %v310, %v342
  %v375 = vmax.f32 %v311, %v343
  %v376 = vmax.f32 %v312, %v344
  %v377 = vmax.f32 %v313, %v345
  %v378 = vmax.f32 %v314, %v346
  %v379 = vmax.f32 %v315, %v347
  %v380 = vmax.f32 %v316, %v348
  %v381 = vmax.f32 %v317, %v349
  %v382 = vmax.f32 %v318, %v350
  %v383 = vmax.f32 %v319, %v351
  %v384 = vmax.f32 %v320, %v352
  %v385 = vmax.f32 %v321, %v353
  %v386 = vmax.f32 %v322, %v354
  %v387 = vmax.f32 %v323, %v355
  %v388 = vmax.f32 %v324, %v356
  %v389 = vmax.f32 %v325, %v357
  %v390 = vmax.f32 %v326, %v358
  %v391 = vmax.f32 %v327, %v359
  %v392 = vpack.c.bf16 %v361, %v360
  %v393 = vpack.c.bf16 %v363, %v362
  %v394 = vpack.c.bf16 %v365, %v364
  %v395 = vpack.c.bf16 %v367, %v366
  %v396 = vpack.c.bf16 %v369, %v368
  %v397 = vpack.c.bf16 %v371, %v370
  %v398 = vpack.c.bf16 %v373, %v372
  %v399 = vpack.c.bf16 %v375, %v374
  %v400 = vpack.c.bf16 %v377, %v376
  %v401 = vpack.c.bf16 %v379, %v378
  %v402 = vpack.c.bf16 %v381, %v380
  %v403 = vpack.c.bf16 %v383, %v382
  %v404 = vpack.c.bf16 %v385, %v384
  %v405 = vpack.c.bf16 %v387, %v386
  %v406 = vpack.c.bf16 %v389, %v388
  %v407 = vpack.c.bf16 %v391, %v390
  %408 = vst [vmem:[%s1] sm:$0xff] %v392
  %409 = vst [vmem:[%s1 + $0x8] sm:$0xff] %v393
  %410 = vst [vmem:[%s1 + $0x10] sm:$0xff] %v394
  %411 = vst [vmem:[%s1 + $0x18] sm:$0xff] %v395
  %412 = vst [vmem:[%s1 + $0x20] sm:$0xff] %v396
  %413 = vst [vmem:[%s1 + $0x28] sm:$0xff] %v397
  %414 = vst [vmem:[%s1 + $0x30] sm:$0xff] %v398
  %415 = vst [vmem:[%s1 + $0x38] sm:$0xff] %v399
  %416 = vst [vmem:[%s1 + $0x40] sm:$0xff] %v400
  %417 = vst [vmem:[%s1 + $0x48] sm:$0xff] %v401
  %418 = vst [vmem:[%s1 + $0x50] sm:$0xff] %v402
  %419 = vst [vmem:[%s1 + $0x58] sm:$0xff] %v403
  %420 = vst [vmem:[%s1 + $0x60] sm:$0xff] %v404
  %421 = vst [vmem:[%s1 + $0x68] sm:$0xff] %v405
  %422 = vst [vmem:[%s1 + $0x70] sm:$0xff] %v406
  %423 = vst [vmem:[%s1 + $0x78] sm:$0xff] %v407
  // Predicated region
  $region6: #{forward.11} parent=0 // pred_check
    _
  $region7: #{forward.11} parent=0 // pred_check_branch
    %425 = sbr.rel (0) target = $region9
  $region8: #{forward.11} parent=0 // pred_region
    _
  $region9: #{forward.11} parent=0 // pred_fallthru
    _
  // Predicated region
  $region10: #{forward.11} parent=0 // pred_check
    _
  $region11: #{forward.11} parent=0 // pred_check_branch
    %427 = sbr.rel (0) target = $region13
  $region12: #{forward.11} parent=0 // pred_region
    _
  $region13: #{forward.11} parent=0 // pred_fallthru
    _

// kernel: forward.10
$region0: #{forward.10}
  #allocation0 [shape = 'u32[]', space=smem, size = 0x4, offset = 0x4, fixed_abs, tag = 'smem constant byte address 0x4 - core index']
  #allocation1 [shape = 'u32[72,128]{1,0:T(1,128)}', space=vmem, size = 0x9000, scoped, tag = 'internal scratch']
  %s0 = inlined_call_operand.vmem [shape: bf16[2,18,18,128], index: 0, kind: input, shape index: {}]
  %s1 = inlined_call_operand.hbm [shape: bf16[9,128,256], index: 1, kind: input, shape index: {}]
  %s2 = inlined_call_operand.hbm [shape: f32[1,256], index: 2, kind: input, shape index: {}]
  %s3 = inlined_call_operand.vmem [shape: bf16[2,16,16,256], index: 3, kind: output, shape index: {}]
  %s4 = sld [smem:[#allocation0]]
  $region60: #{forward.10} parent=0
    _
  %s6 = ssub.s32 1, %s4
  %s7 = scalar_select 0, %s6, %s4
  $region1: #{forward.10} parent=0
    #allocation2 [shape = 'u8[589824]{0}', space=vmem, size = 0x90000, scoped, tag = 'input window, operand 1, single buffered']
    #allocation3 [shape = 's32[2]{0}', space=sflag, size = 0x8, scoped, tag = 'scoped memory for forward.10']
    #allocation4 [shape = 'u8[1024]{0}', space=vmem, size = 0x400, scoped, tag = 'input window, operand 2, single buffered']
    #allocation5 [shape = 's32[1]{0}', space=sflag, size = 0x4, scoped, tag = 'scoped memory for forward.10']
    %8 = vsyncpa [#allocation3], 0
    %9 = vsyncpa [#allocation5], 0
    loop: start=0, step=1, limit=4
    $region2: #{forward.10} parent=1 // loop_pre_header
      _
    $region3: #{forward.10} parent=1 // loop_header
      %s11 = sphi 0, %s15
      %p12 = scmp.ge.s32.totalorder %s11, 4
      %s21 = sphi 0, %s23
      %s24 = sphi 0, %s21
      %s25 = sphi 0, %s24
      %s41 = sphi 0, %s25
      %s45 = sphi 0, %s45
      %s47 = sphi 0, %s45
      %s48 = sphi 0, %s47
      %s62 = sphi 0, %s48
      %s66 = sphi 0, %s66
      %s68 = sphi 0, %s66
      %s69 = sphi 0, %s68
      %s83 = sphi 0, %s69
      %s89 = sphi 0, %s91
      %s92 = sphi 0, %s89
      %s93 = sphi 0, %s92
      %s109 = sphi 0, %s93
    $region4: #{forward.10} parent=1 // loop_header_branch
      %14 = sbr.rel (%p12) target = $region8
    $region5: #{forward.10} parent=1 // loop_body
      %s16 = ssub.s32 %s11, 1
      %s17 = ssub.s32 %s11, 2
      %s18 = sadd.s32 %s11, 1
      %s19 = ssub.s32 %s11, %s18
      %p20 = scmp.eq.s32.totalorder %s19, 0
      %s22 = sadd.s32 %s21, 1
      %s23 = scalar_select %p20, %s21, %s22
      %p26 = pneg %p20
      %p27 = scmp.eq.s32.totalorder %s11, 1
      %p28 = por %p26, %p27
      %p29 = scmp.ne.s32.totalorder %s21, %s24
      %p30 = scmp.eq.s32.totalorder %s11, 0
      %p31 = por %p29, %p30
      %p32 = scmp.ne.s32.totalorder %s21, %s24
      %p33 = scmp.eq.s32.totalorder %s16, 1
      %p34 = por %p32, %p33
      %p35 = scmp.ne.s32.totalorder %s24, %s25
      %p36 = scmp.eq.s32.totalorder %s16, 0
      %p37 = por %p35, %p36
      %p38 = scmp.ne.s32.totalorder %s24, %s25
      %p39 = scmp.eq.s32.totalorder %s17, 1
      %p40 = por %p38, %p39
      %p42 = scmp.ne.s32.totalorder %s25, %s41
      %p43 = scmp.eq.s32.totalorder %s17, 0
      %p44 = por %p42, %p43
      %s46 = sadd.s32 %s45, 1
      %p49 = scmp.eq.s32.totalorder %s11, 1
      %p50 = scmp.ne.s32.totalorder %s45, %s47
      %p51 = scmp.eq.s32.totalorder %s11, 0
      %p52 = por %p50, %p51
      %p53 = scmp.ne.s32.totalorder %s45, %s47
      %p54 = scmp.eq.s32.totalorder %s16, 1
      %p55 = por %p53, %p54
      %p56 = scmp.ne.s32.totalorder %s47, %s48
      %p57 = scmp.eq.s32.totalorder %s16, 0
      %p58 = por %p56, %p57
      %p59 = scmp.ne.s32.totalorder %s47, %s48
      %p60 = scmp.eq.s32.totalorder %s17, 1
      %p61 = por %p59, %p60
      %p63 = scmp.ne.s32.totalorder %s48, %s62
      %p64 = scmp.eq.s32.totalorder %s17, 0
      %p65 = por %p63, %p64
      %s67 = sadd.s32 %s66, 1
      %p70 = scmp.eq.s32.totalorder %s11, 1
      %p71 = scmp.ne.s32.totalorder %s66, %s68
      %p72 = scmp.eq.s32.totalorder %s11, 0
      %p73 = por %p71, %p72
      %p74 = scmp.ne.s32.totalorder %s66, %s68
      %p75 = scmp.eq.s32.totalorder %s16, 1
      %p76 = por %p74, %p75
      %p77 = scmp.ne.s32.totalorder %s68, %s69
      %p78 = scmp.eq.s32.totalorder %s16, 0
      %p79 = por %p77, %p78
      %p80 = scmp.ne.s32.totalorder %s68, %s69
      %p81 = scmp.eq.s32.totalorder %s17, 1
      %p82 = por %p80, %p81
      %p84 = scmp.ne.s32.totalorder %s69, %s83
      %p85 = scmp.eq.s32.totalorder %s17, 0
      %p86 = por %p84, %p85
      %s87 = ssub.s32 %s11, %s18
      %p88 = scmp.eq.s32.totalorder %s87, 0
      %s90 = sadd.s32 %s89, 1
      %s91 = scalar_select %p88, %s89, %s90
      %p94 = pneg %p88
      %p95 = scmp.eq.s32.totalorder %s11, 1
      %p96 = por %p94, %p95
      %p97 = scmp.ne.s32.totalorder %s89, %s92
      %p98 = scmp.eq.s32.totalorder %s11, 0
      %p99 = por %p97, %p98
      %p100 = scmp.ne.s32.totalorder %s89, %s92
      %p101 = scmp.eq.s32.totalorder %s16, 1
      %p102 = por %p100, %p101
      %p103 = scmp.ne.s32.totalorder %s92, %s93
      %p104 = scmp.eq.s32.totalorder %s16, 0
      %p105 = por %p103, %p104
      %p106 = scmp.ne.s32.totalorder %s92, %s93
      %p107 = scmp.eq.s32.totalorder %s17, 1
      %p108 = por %p106, %p107
      %p110 = scmp.ne.s32.totalorder %s93, %s109
      %p111 = scmp.eq.s32.totalorder %s17, 0
      %p112 = por %p110, %p111
      %p113 = scmp.le.s32.totalorder 1, %s11
      %p114 = scmp.lt.s32.totalorder %s11, 3
      %p115 = pnand %p113, %p114
      %p116 = pneg %p115
      // Predicated region
      $region9: #{forward.10} parent=5 // pred_check
        _
      $region10: #{forward.10} parent=5 // pred_check_branch
        %118 = sbr.rel (%p115) target = $region12
      $region11: #{forward.10} parent=5 // pred_region
        %s119 = ssub.s32 %s11, 1
        // Predicated region
        $region13: #{forward.10} parent=11 // pred_check
          %p120 = pneg %p58
        $region14: #{forward.10} parent=11 // pred_check_branch
          %122 = sbr.rel (%p120) target = $region16
        $region15: #{forward.10} parent=11 // pred_region
          %124 = vsyncadd [#allocation3], 0
          %s125 = sshll.u32 %s1, 4
          %s126 = int_to_ptr.hbm [resolvable:$true] %s125
          %s127 = sshll.u32 [#allocation2], 4
          %s128 = int_to_ptr.vmem [resolvable:$true] %s127
          %133 = dma.hbm_to_vmem [thread:$0]  %s126, 18432, %s128, [#allocation3], 128, 128, 8
        $region16: #{forward.10} parent=11 // pred_fallthru
          _
        // Predicated region
        $region17: #{forward.10} parent=11 // pred_check
          %p134 = pneg %p79
        $region18: #{forward.10} parent=11 // pred_check_branch
          %136 = sbr.rel (%p134) target = $region20
        $region19: #{forward.10} parent=11 // pred_region
          %138 = vsyncadd [#allocation5], 0
          %s140 = sshll.u32 %s2, 4
          %s141 = int_to_ptr.hbm [resolvable:$true] %s140
          %s142 = sshll.u32 [#allocation4], 4
          %s143 = int_to_ptr.vmem [resolvable:$true] %s142
          %145 = dma.hbm_to_vmem [thread:$0]  %s141, 32, %s143, [#allocation5]
        $region20: #{forward.10} parent=11 // pred_fallthru
          _
      $region12: #{forward.10} parent=5 // pred_fallthru
        _
      %p146 = scmp.lt.s32.totalorder %s11, 2
      // Predicated region
      $region21: #{forward.10} parent=5 // pred_check
        %p147 = pneg %p146
      $region22: #{forward.10} parent=5 // pred_check_branch
        %149 = sbr.rel (%p147) target = $region24
      $region23: #{forward.10} parent=5 // pred_region
        // Predicated region
        $region25: #{forward.10} parent=23 // pred_check
          %p150 = pneg %p31
        $region26: #{forward.10} parent=23 // pred_check_branch
          %152 = sbr.rel (%p150) target = $region28
        $region27: #{forward.10} parent=23 // pred_region
          %p153 = scmp.lt.s32.totalorder %s11, 1
          %s154 = scalar_select %p153, %s11, 1
          %s155 = smul.addr %s154, 54
          %s156 = smul.addr %s155, 4
          %s157 = scalar_lea.vmem %s0, %s156
        $region28: #{forward.10} parent=23 // pred_fallthru
          _
      $region24: #{forward.10} parent=5 // pred_fallthru
        _
      %p158 = scmp.le.s32.totalorder 1, %s11
      %p159 = scmp.lt.s32.totalorder %s11, 3
      %p160 = pnand %p158, %p159
      %p161 = pneg %p160
      // Predicated region
      $region29: #{forward.10} parent=5 // pred_check
        _
      $region30: #{forward.10} parent=5 // pred_check_branch
        %163 = sbr.rel (%p160) target = $region32
      $region31: #{forward.10} parent=5 // pred_region
        %s164 = ssub.s32 %s11, 1
        // Predicated region
        $region33: #{forward.10} parent=31 // pred_check
          %p165 = pneg %p58
        $region34: #{forward.10} parent=31 // pred_check_branch
          %167 = sbr.rel (%p165) target = $region36
        $region35: #{forward.10} parent=31 // pred_region
          %169 = dma.done [#allocation3], 18432
        $region36: #{forward.10} parent=31 // pred_fallthru
          _
        // Predicated region
        $region37: #{forward.10} parent=31 // pred_check
          %p170 = pneg %p79
        $region38: #{forward.10} parent=31 // pred_check_branch
          %172 = sbr.rel (%p170) target = $region40
        $region39: #{forward.10} parent=31 // pred_region
          %174 = dma.done [#allocation5], 32
        $region40: #{forward.10} parent=31 // pred_fallthru
          _
        %p175 = scmp.lt.s32.totalorder %s16, 1
        %s176 = scalar_select %p175, %s16, 1
        %s177 = smul.addr %s176, 54
        %s178 = smul.addr %s177, 4
        %s179 = scalar_lea.vmem %s0, %s178
        %p180 = pneg %p37
        %p181 = pneg %p34
        %p182 = pneg %p58
        %p183 = pneg %p55
        %p184 = pneg %p79
        %p185 = pneg %p76
        %p186 = pneg %p105
        %p187 = pneg %p102
        %p188 = scmp.lt.s32.totalorder %s16, 1
        %s189 = scalar_select %p188, %s16, 1
        %s190 = smul.addr %s189, 64
        %s191 = smul.addr %s190, 4
        %s192 = scalar_lea.vmem %s3, %s191
        %p193 = scmp.lt.s32.totalorder %s16, 1
        %s194 = scalar_select %p193, %s16, 1
        %s195 = smul.addr %s194, 54
        %s196 = smul.addr %s195, 4
        %s197 = scalar_lea.vmem %s0, %s196
        %p198 = scmp.lt.s32.totalorder %s16, 1
        %s199 = scalar_select %p198, %s16, 1
        %s200 = smul.addr %s199, 64
        %s201 = smul.addr %s200, 4
        %s202 = scalar_lea.vmem %s3, %s201
        %v203 = vld [vmem:[#allocation4] sm:$0x3]
        loop: start=0, step=1, limit=16
        $region41: #{forward.10} parent=31 // loop_pre_header
          _
        $region42: #{forward.10} parent=31 // loop_header
          %s205 = sphi 0, %s209
          %p206 = scmp.ge.s32.totalorder %s205, 16
        $region43: #{forward.10} parent=31 // loop_header_branch
          %208 = sbr.rel (%p206) target = $region47
        $region44: #{forward.10} parent=31 // loop_body
          %s210 = smul.u32 %s205, 3
          %s211 = smul.addr %s210, 4
          %s212 = scalar_lea.vmem %s197, %s211
          %v213 = vld [vmem:[%s212] sm:$0xf]
          %v214 = vld [vmem:[%s212 + $0x4] sm:$0xf]
          %v215 = vld [vmem:[#allocation2] sm:$0xff]
          %v216 = vld [vmem:[#allocation2 + $0x8] sm:$0xff]
          %v217 = vld [vmem:[#allocation2 + $0x10] sm:$0xff]
          %v218 = vld [vmem:[#allocation2 + $0x18] sm:$0xff]
          %v219 = vld [vmem:[#allocation2 + $0x20] sm:$0xff]
          %v220 = vld [vmem:[#allocation2 + $0x28] sm:$0xff]
          %v221 = vld [vmem:[#allocation2 + $0x30] sm:$0xff]
          %v222 = vld [vmem:[#allocation2 + $0x38] sm:$0xff]
          %v223 = vld [vmem:[#allocation2 + $0x40] sm:$0xff]
          %v224 = vld [vmem:[#allocation2 + $0x48] sm:$0xff]
          %v225 = vld [vmem:[#allocation2 + $0x50] sm:$0xff]
          %v226 = vld [vmem:[#allocation2 + $0x58] sm:$0xff]
          %v227 = vld [vmem:[#allocation2 + $0x60] sm:$0xff]
          %v228 = vld [vmem:[#allocation2 + $0x68] sm:$0xff]
          %v229 = vld [vmem:[#allocation2 + $0x70] sm:$0xff]
          %v230 = vld [vmem:[#allocation2 + $0x78] sm:$0xff]
          %v231 = vld [vmem:[%s212 + $0x8] sm:$0x1]
          %s232 = scalar_lea.vmem [#allocation2], 128
          %v233 = vld [vmem:[%s232] sm:$0xff]
          %v234 = vld [vmem:[%s232 + $0x8] sm:$0xff]
          %v235 = vld [vmem:[%s232 + $0x10] sm:$0xff]
          %v236 = vld [vmem:[%s232 + $0x18] sm:$0xff]
          %v237 = vld [vmem:[%s232 + $0x20] sm:$0xff]
          %v238 = vld [vmem:[%s232 + $0x28] sm:$0xff]
          %v239 = vld [vmem:[%s232 + $0x30] sm:$0xff]
          %v240 = vld [vmem:[%s232 + $0x38] sm:$0xff]
          %v241 = vld [vmem:[%s232 + $0x40] sm:$0xff]
          %v242 = vld [vmem:[%s232 + $0x48] sm:$0xff]
          %v243 = vld [vmem:[%s232 + $0x50] sm:$0xff]
          %v244 = vld [vmem:[%s232 + $0x58] sm:$0xff]
          %v245 = vld [vmem:[%s232 + $0x60] sm:$0xff]
          %v246 = vld [vmem:[%s232 + $0x68] sm:$0xff]
          %v247 = vld [vmem:[%s232 + $0x70] sm:$0xff]
          %v248 = vld [vmem:[%s232 + $0x78] sm:$0xff]
          %v252 = vunpack.c.l.b16 %v213
          %v253 = vunpack.c.l.b16 %v214
          %v254 = vunpack.c.l.b16 %v231
          %v255 = vpack.c.b16 %v253, %v252
          %v256 = vpack.c.b16 %v254, %v254
          %vm257 = vsmask.f32 7424
          %v259 = vshrl.u32 %v255, 16
          %v261 = vshll.u32 %v255, 16
          %v263 = vrot.slane %v261, 1
          %v264 = vor.u32 %v259, %v263
          %v266 = vshll.u32 %v256, 16
          %v268 = vrot.slane %v266, 1
          %v269 = vsel %vm257, %v264, %v268
          %v287 = vunpack.c.l.b16 %v233
          %v288 = vunpack.c.h.b16 %v233
          %v289 = vunpack.c.l.b16 %v234
          %v290 = vunpack.c.h.b16 %v234
          %v291 = vunpack.c.l.b16 %v235
          %v292 = vunpack.c.h.b16 %v235
          %v293 = vunpack.c.l.b16 %v236
          %v294 = vunpack.c.h.b16 %v236
          %v295 = vunpack.c.l.b16 %v237
          %v296 = vunpack.c.h.b16 %v237
          %v297 = vunpack.c.l.b16 %v238
          %v298 = vunpack.c.h.b16 %v238
          %v299 = vunpack.c.l.b16 %v239
          %v300 = vunpack.c.h.b16 %v239
          %v301 = vunpack.c.l.b16 %v240
          %v302 = vunpack.c.h.b16 %v240
          %v303 = vunpack.c.l.b16 %v241
          %v304 = vunpack.c.h.b16 %v241
          %v305 = vunpack.c.l.b16 %v242
          %v306 = vunpack.c.h.b16 %v242
          %v307 = vunpack.c.l.b16 %v243
          %v308 = vunpack.c.h.b16 %v243
          %v309 = vunpack.c.l.b16 %v244
          %v310 = vunpack.c.h.b16 %v244
          %v311 = vunpack.c.l.b16 %v245
          %v312 = vunpack.c.h.b16 %v245
          %v313 = vunpack.c.l.b16 %v246
          %v314 = vunpack.c.h.b16 %v246
          %v315 = vunpack.c.l.b16 %v247
          %v316 = vunpack.c.h.b16 %v247
          %v317 = vunpack.c.l.b16 %v248
          %v318 = vunpack.c.h.b16 %v248
          %v319 = vpack.c.b16 %v289, %v287
          %v320 = vpack.c.b16 %v290, %v288
          %v321 = vpack.c.b16 %v293, %v291
          %v322 = vpack.c.b16 %v294, %v292
          %v323 = vpack.c.b16 %v297, %v295
          %v324 = vpack.c.b16 %v298, %v296
          %v325 = vpack.c.b16 %v301, %v299
          %v326 = vpack.c.b16 %v302, %v300
          %v327 = vpack.c.b16 %v305, %v303
          %v328 = vpack.c.b16 %v306, %v304
          %v329 = vpack.c.b16 %v309, %v307
          %v330 = vpack.c.b16 %v310, %v308
          %v331 = vpack.c.b16 %v313, %v311
          %v332 = vpack.c.b16 %v314, %v312
          %v333 = vpack.c.b16 %v317, %v315
          %v334 = vpack.c.b16 %v318, %v316
          %351 = vmatpush.bf16.msra.mxu0 %v333
          %352 = vmatpush.bf16.msra.mxu0 %v331
          %353 = vmatpush.bf16.msra.mxu0 %v329
          %354 = vmatpush.bf16.msra.mxu0 %v327
          %355 = vmatpush.bf16.msra.mxu0 %v325
          %356 = vmatpush.bf16.msra.mxu0 %v323
          %357 = vmatpush.bf16.msra.mxu0 %v321
          %358 = vmatpush.bf16.msra.mxu0 %v319
          %359 = vmatmul.bf16.gmra.mxu0 %v269
          %v360 = vpop.f32.mrf.mxu0
          %v361 = vadd.f32 0.0, %v360
          %v362 = vpop.f32.mrf.mxu0
          %v363 = vadd.f32 0.0, %v362
          %364 = vdwg.mxu0
          %365 = vmatpush.bf16.msra.mxu0 %v334
          %366 = vmatpush.bf16.msra.mxu0 %v332
          %367 = vmatpush.bf16.msra.mxu0 %v330
          %368 = vmatpush.bf16.msra.mxu0 %v328
          %369 = vmatpush.bf16.msra.mxu0 %v326
          %370 = vmatpush.bf16.msra.mxu0 %v324
          %371 = vmatpush.bf16.msra.mxu0 %v322
          %372 = vmatpush.bf16.msra.mxu0 %v320
          %373 = vmatmul.bf16.gmra.mxu0 %v269
          %v374 = vpop.f32.mrf.mxu0
          %v375 = vadd.f32 0.0, %v374
          %v376 = vpop.f32.mrf.mxu0
          %v377 = vadd.f32 0.0, %v376
          %378 = vdwg.mxu0
          %v396 = vunpack.c.l.b16 %v215
          %v397 = vunpack.c.h.b16 %v215
          %v398 = vunpack.c.l.b16 %v216
          %v399 = vunpack.c.h.b16 %v216
          %v400 = vunpack.c.l.b16 %v217
          %v401 = vunpack.c.h.b16 %v217
          %v402 = vunpack.c.l.b16 %v218
          %v403 = vunpack.c.h.b16 %v218
          %v404 = vunpack.c.l.b16 %v219
          %v405 = vunpack.c.h.b16 %v219
          %v406 = vunpack.c.l.b16 %v220
          %v407 = vunpack.c.h.b16 %v220
          %v408 = vunpack.c.l.b16 %v221
          %v409 = vunpack.c.h.b16 %v221
          %v410 = vunpack.c.l.b16 %v222
          %v411 = vunpack.c.h.b16 %v222
          %v412 = vunpack.c.l.b16 %v223
          %v413 = vunpack.c.h.b16 %v223
          %v414 = vunpack.c.l.b16 %v224
          %v415 = vunpack.c.h.b16 %v224
          %v416 = vunpack.c.l.b16 %v225
          %v417 = vunpack.c.h.b16 %v225
          %v418 = vunpack.c.l.b16 %v226
          %v419 = vunpack.c.h.b16 %v226
          %v420 = vunpack.c.l.b16 %v227
          %v421 = vunpack.c.h.b16 %v227
          %v422 = vunpack.c.l.b16 %v228
          %v423 = vunpack.c.h.b16 %v228
          %v424 = vunpack.c.l.b16 %v229
          %v425 = vunpack.c.h.b16 %v229
          %v426 = vunpack.c.l.b16 %v230
          %v427 = vunpack.c.h.b16 %v230
          %v428 = vpack.c.b16 %v398, %v396
          %v429 = vpack.c.b16 %v399, %v397
          %v430 = vpack.c.b16 %v402, %v400
          %v431 = vpack.c.b16 %v403, %v401
          %v432 = vpack.c.b16 %v406, %v404
          %v433 = vpack.c.b16 %v407, %v405
          %v434 = vpack.c.b16 %v410, %v408
          %v435 = vpack.c.b16 %v411, %v409
          %v436 = vpack.c.b16 %v414, %v412
          %v437 = vpack.c.b16 %v415, %v413
          %v438 = vpack.c.b16 %v418, %v416
          %v439 = vpack.c.b16 %v419, %v417
          %v440 = vpack.c.b16 %v422, %v420
          %v441 = vpack.c.b16 %v423, %v421
          %v442 = vpack.c.b16 %v426, %v424
          %v443 = vpack.c.b16 %v427, %v425
          %460 = vmatpush.bf16.msra.mxu0 %v442
          %461 = vmatpush.bf16.msra.mxu0 %v440
          %462 = vmatpush.bf16.msra.mxu0 %v438
          %463 = vmatpush.bf16.msra.mxu0 %v436
          %464 = vmatpush.bf16.msra.mxu0 %v434
          %465 = vmatpush.bf16.msra.mxu0 %v432
          %466 = vmatpush.bf16.msra.mxu0 %v430
          %467 = vmatpush.bf16.msra.mxu0 %v428
          %468 = vmatmul.bf16.gmra.mxu0 %v255
          %v469 = vpop.f32.mrf.mxu0
          %v470 = vadd.f32 %v361, %v469
          %v471 = vpop.f32.mrf.mxu0
          %v472 = vadd.f32 %v363, %v471
          %473 = vdwg.mxu0
          %474 = vmatpush.bf16.msra.mxu0 %v443
          %475 = vmatpush.bf16.msra.mxu0 %v441
          %476 = vmatpush.bf16.msra.mxu0 %v439
          %477 = vmatpush.bf16.msra.mxu0 %v437
          %478 = vmatpush.bf16.msra.mxu0 %v435
          %479 = vmatpush.bf16.msra.mxu0 %v433
          %480 = vmatpush.bf16.msra.mxu0 %v431
          %481 = vmatpush.bf16.msra.mxu0 %v429
          %482 = vmatmul.bf16.gmra.mxu0 %v255
          %v483 = vpop.f32.mrf.mxu0
          %v484 = vadd.f32 %v375, %v483
          %v485 = vpop.f32.mrf.mxu0
          %v486 = vadd.f32 %v377, %v485
          %487 = vdwg.mxu0
          %v488 = vld [vmem:[%s212] sm:$0xe]
          %s489 = scalar_lea.vmem [#allocation2], 256
          %v490 = vld [vmem:[%s489] sm:$0xff]
          %v491 = vld [vmem:[%s489 + $0x8] sm:$0xff]
          %v492 = vld [vmem:[%s489 + $0x10] sm:$0xff]
          %v493 = vld [vmem:[%s489 + $0x18] sm:$0xff]
          %v494 = vld [vmem:[%s489 + $0x20] sm:$0xff]
          %v495 = vld [vmem:[%s489 + $0x28] sm:$0xff]
          %v496 = vld [vmem:[%s489 + $0x30] sm:$0xff]
          %v497 = vld [vmem:[%s489 + $0x38] sm:$0xff]
          %v498 = vld [vmem:[%s489 + $0x40] sm:$0xff]
          %v499 = vld [vmem:[%s489 + $0x48] sm:$0xff]
          %v500 = vld [vmem:[%s489 + $0x50] sm:$0xff]
          %v501 = vld [vmem:[%s489 + $0x58] sm:$0xff]
          %v502 = vld [vmem:[%s489 + $0x60] sm:$0xff]
          %v503 = vld [vmem:[%s489 + $0x68] sm:$0xff]
          %v504 = vld [vmem:[%s489 + $0x70] sm:$0xff]
          %v505 = vld [vmem:[%s489 + $0x78] sm:$0xff]
          %v507 = vunpack.c.l.b16 %v488
          %v508 = vpack.c.b16 %v253, %v507
          %vm509 = vcmask 1046528
          %v510 = vrot.slane %v508, 1
          %v511 = vrot.slane %v256, 1
          %v512 = vsel %vm509, %v510, %v511
          %v530 = vunpack.c.l.b16 %v490
          %v531 = vunpack.c.h.b16 %v490
          %v532 = vunpack.c.l.b16 %v491
          %v533 = vunpack.c.h.b16 %v491
          %v534 = vunpack.c.l.b16 %v492
          %v535 = vunpack.c.h.b16 %v492
          %v536 = vunpack.c.l.b16 %v493
          %v537 = vunpack.c.h.b16 %v493
          %v538 = vunpack.c.l.b16 %v494
          %v539 = vunpack.c.h.b16 %v494
          %v540 = vunpack.c.l.b16 %v495
          %v541 = vunpack.c.h.b16 %v495
          %v542 = vunpack.c.l.b16 %v496
          %v543 = vunpack.c.h.b16 %v496
          %v544 = vunpack.c.l.b16 %v497
          %v545 = vunpack.c.h.b16 %v497
          %v546 = vunpack.c.l.b16 %v498
          %v547 = vunpack.c.h.b16 %v498
          %v548 = vunpack.c.l.b16 %v499
          %v549 = vunpack.c.h.b16 %v499
          %v550 = vunpack.c.l.b16 %v500
          %v551 = vunpack.c.h.b16 %v500
          %v552 = vunpack.c.l.b16 %v501
          %v553 = vunpack.c.h.b16 %v501
          %v554 = vunpack.c.l.b16 %v502
          %v555 = vunpack.c.h.b16 %v502
          %v556 = vunpack.c.l.b16 %v503
          %v557 = vunpack.c.h.b16 %v503
          %v558 = vunpack.c.l.b16 %v504
          %v559 = vunpack.c.h.b16 %v504
          %v560 = vunpack.c.l.b16 %v505
          %v561 = vunpack.c.h.b16 %v505
          %v562 = vpack.c.b16 %v532, %v530
          %v563 = vpack.c.b16 %v533, %v531
          %v564 = vpack.c.b16 %v536, %v534
          %v565 = vpack.c.b16 %v537, %v535
          %v566 = vpack.c.b16 %v540, %v538
          %v567 = vpack.c.b16 %v541, %v539
          %v568 = vpack.c.b16 %v544, %v542
          %v569 = vpack.c.b16 %v545, %v543
          %v570 = vpack.c.b16 %v548, %v546
          %v571 = vpack.c.b16 %v549, %v547
          %v572 = vpack.c.b16 %v552, %v550
          %v573 = vpack.c.b16 %v553, %v551
          %v574 = vpack.c.b16 %v556, %v554
          %v575 = vpack.c.b16 %v557, %v555
          %v576 = vpack.c.b16 %v560, %v558
          %v577 = vpack.c.b16 %v561, %v559
          %594 = vmatpush.bf16.msra.mxu0 %v576
          %595 = vmatpush.bf16.msra.mxu0 %v574
          %596 = vmatpush.bf16.msra.mxu0 %v572
          %597 = vmatpush.bf16.msra.mxu0 %v570
          %598 = vmatpush.bf16.msra.mxu0 %v568
          %599 = vmatpush.bf16.msra.mxu0 %v566
          %600 = vmatpush.bf16.msra.mxu0 %v564
          %601 = vmatpush.bf16.msra.mxu0 %v562
          %602 = vmatmul.bf16.gmra.mxu0 %v512
          %v603 = vpop.f32.mrf.mxu0
          %v604 = vadd.f32 0.0, %v603
          %v605 = vpop.f32.mrf.mxu0
          %v606 = vadd.f32 0.0, %v605
          %607 = vdwg.mxu0
          %608 = vmatpush.bf16.msra.mxu0 %v577
          %609 = vmatpush.bf16.msra.mxu0 %v575
          %610 = vmatpush.bf16.msra.mxu0 %v573
          %611 = vmatpush.bf16.msra.mxu0 %v571
          %612 = vmatpush.bf16.msra.mxu0 %v569
          %613 = vmatpush.bf16.msra.mxu0 %v567
          %614 = vmatpush.bf16.msra.mxu0 %v565
          %615 = vmatpush.bf16.msra.mxu0 %v563
          %616 = vmatmul.bf16.gmra.mxu0 %v512
          %v617 = vpop.f32.mrf.mxu0
          %v618 = vadd.f32 0.0, %v617
          %v619 = vpop.f32.mrf.mxu0
          %v620 = vadd.f32 0.0, %v619
          %621 = vdwg.mxu0
          %v622 = vadd.f32 %v470, %v604
          %v623 = vadd.f32 %v484, %v618
          %v624 = vadd.f32 %v472, %v606
          %v625 = vadd.f32 %v486, %v620
          %s626 = sadd.s32 %s205, 1
          %s627 = smul.u32 %s626, 3
          %s628 = smul.addr %s627, 4
          %s629 = scalar_lea.vmem %s197, %s628
          %v630 = vld [vmem:[%s629] sm:$0xf]
          %v631 = vld [vmem:[%s629 + $0x4] sm:$0xf]
          %s632 = scalar_lea.vmem [#allocation2], 384
          %v633 = vld [vmem:[%s632] sm:$0xff]
          %v634 = vld [vmem:[%s632 + $0x8] sm:$0xff]
          %v635 = vld [vmem:[%s632 + $0x10] sm:$0xff]
          %v636 = vld [vmem:[%s632 + $0x18] sm:$0xff]
          %v637 = vld [vmem:[%s632 + $0x20] sm:$0xff]
          %v638 = vld [vmem:[%s632 + $0x28] sm:$0xff]
          %v639 = vld [vmem:[%s632 + $0x30] sm:$0xff]
          %v640 = vld [vmem:[%s632 + $0x38] sm:$0xff]
          %v641 = vld [vmem:[%s632 + $0x40] sm:$0xff]
          %v642 = vld [vmem:[%s632 + $0x48] sm:$0xff]
          %v643 = vld [vmem:[%s632 + $0x50] sm:$0xff]
          %v644 = vld [vmem:[%s632 + $0x58] sm:$0xff]
          %v645 = vld [vmem:[%s632 + $0x60] sm:$0xff]
          %v646 = vld [vmem:[%s632 + $0x68] sm:$0xff]
          %v647 = vld [vmem:[%s632 + $0x70] sm:$0xff]
          %v648 = vld [vmem:[%s632 + $0x78] sm:$0xff]
          %v651 = vunpack.c.l.b16 %v630
          %v652 = vunpack.c.l.b16 %v631
          %v653 = vpack.c.b16 %v652, %v651
          %v671 = vunpack.c.l.b16 %v633
          %v672 = vunpack.c.h.b16 %v633
          %v673 = vunpack.c.l.b16 %v634
          %v674 = vunpack.c.h.b16 %v634
          %v675 = vunpack.c.l.b16 %v635
          %v676 = vunpack.c.h.b16 %v635
          %v677 = vunpack.c.l.b16 %v636
          %v678 = vunpack.c.h.b16 %v636
          %v679 = vunpack.c.l.b16 %v637
          %v680 = vunpack.c.h.b16 %v637
          %v681 = vunpack.c.l.b16 %v638
          %v682 = vunpack.c.h.b16 %v638
          %v683 = vunpack.c.l.b16 %v639
          %v684 = vunpack.c.h.b16 %v639
          %v685 = vunpack.c.l.b16 %v640
          %v686 = vunpack.c.h.b16 %v640
          %v687 = vunpack.c.l.b16 %v641
          %v688 = vunpack.c.h.b16 %v641
          %v689 = vunpack.c.l.b16 %v642
          %v690 = vunpack.c.h.b16 %v642
          %v691 = vunpack.c.l.b16 %v643
          %v692 = vunpack.c.h.b16 %v643
          %v693 = vunpack.c.l.b16 %v644
          %v694 = vunpack.c.h.b16 %v644
          %v695 = vunpack.c.l.b16 %v645
          %v696 = vunpack.c.h.b16 %v645
          %v697 = vunpack.c.l.b16 %v646
          %v698 = vunpack.c.h.b16 %v646
          %v699 = vunpack.c.l.b16 %v647
          %v700 = vunpack.c.h.b16 %v647
          %v701 = vunpack.c.l.b16 %v648
          %v702 = vunpack.c.h.b16 %v648
          %v703 = vpack.c.b16 %v673, %v671
          %v704 = vpack.c.b16 %v674, %v672
          %v705 = vpack.c.b16 %v677, %v675
          %v706 = vpack.c.b16 %v678, %v676
          %v707 = vpack.c.b16 %v681, %v679
          %v708 = vpack.c.b16 %v682, %v680
          %v709 = vpack.c.b16 %v685, %v683
          %v710 = vpack.c.b16 %v686, %v684
          %v711 = vpack.c.b16 %v689, %v687
          %v712 = vpack.c.b16 %v690, %v688
          %v713 = vpack.c.b16 %v693, %v691
          %v714 = vpack.c.b16 %v694, %v692
          %v715 = vpack.c.b16 %v697, %v695
          %v716 = vpack.c.b16 %v698, %v696
          %v717 = vpack.c.b16 %v701, %v699
          %v718 = vpack.c.b16 %v702, %v700
          %735 = vmatpush.bf16.msra.mxu0 %v717
          %736 = vmatpush.bf16.msra.mxu0 %v715
          %737 = vmatpush.bf16.msra.mxu0 %v713
          %738 = vmatpush.bf16.msra.mxu0 %v711
          %739 = vmatpush.bf16.msra.mxu0 %v709
          %740 = vmatpush.bf16.msra.mxu0 %v707
          %741 = vmatpush.bf16.msra.mxu0 %v705
          %742 = vmatpush.bf16.msra.mxu0 %v703
          %743 = vmatmul.bf16.gmra.mxu0 %v653
          %v744 = vpop.f32.mrf.mxu0
          %v745 = vadd.f32 0.0, %v744
          %v746 = vpop.f32.mrf.mxu0
          %v747 = vadd.f32 0.0, %v746
          %748 = vdwg.mxu0
          %749 = vmatpush.bf16.msra.mxu0 %v718
          %750 = vmatpush.bf16.msra.mxu0 %v716
          %751 = vmatpush.bf16.msra.mxu0 %v714
          %752 = vmatpush.bf16.msra.mxu0 %v712
          %753 = vmatpush.bf16.msra.mxu0 %v710
          %754 = vmatpush.bf16.msra.mxu0 %v708
          %755 = vmatpush.bf16.msra.mxu0 %v706
          %756 = vmatpush.bf16.msra.mxu0 %v704
          %757 = vmatmul.bf16.gmra.mxu0 %v653
          %v758 = vpop.f32.mrf.mxu0
          %v759 = vadd.f32 0.0, %v758
          %v760 = vpop.f32.mrf.mxu0
          %v761 = vadd.f32 0.0, %v760
          %762 = vdwg.mxu0
          %v763 = vadd.f32 %v622, %v745
          %v764 = vadd.f32 %v623, %v759
          %v765 = vadd.f32 %v624, %v747
          %v766 = vadd.f32 %v625, %v761
          %v767 = vld [vmem:[%s629] sm:$0xf]
          %v768 = vld [vmem:[%s629 + $0x4] sm:$0xf]
          %v769 = vld [vmem:[%s629 + $0x8] sm:$0x1]
          %s770 = scalar_lea.vmem [#allocation2], 512
          %v771 = vld [vmem:[%s770] sm:$0xff]
          %v772 = vld [vmem:[%s770 + $0x8] sm:$0xff]
          %v773 = vld [vmem:[%s770 + $0x10] sm:$0xff]
          %v774 = vld [vmem:[%s770 + $0x18] sm:$0xff]
          %v775 = vld [vmem:[%s770 + $0x20] sm:$0xff]
          %v776 = vld [vmem:[%s770 + $0x28] sm:$0xff]
          %v777 = vld [vmem:[%s770 + $0x30] sm:$0xff]
          %v778 = vld [vmem:[%s770 + $0x38] sm:$0xff]
          %v779 = vld [vmem:[%s770 + $0x40] sm:$0xff]
          %v780 = vld [vmem:[%s770 + $0x48] sm:$0xff]
          %v781 = vld [vmem:[%s770 + $0x50] sm:$0xff]
          %v782 = vld [vmem:[%s770 + $0x58] sm:$0xff]
          %v783 = vld [vmem:[%s770 + $0x60] sm:$0xff]
          %v784 = vld [vmem:[%s770 + $0x68] sm:$0xff]
          %v785 = vld [vmem:[%s770 + $0x70] sm:$0xff]
          %v786 = vld [vmem:[%s770 + $0x78] sm:$0xff]
          %v790 = vunpack.c.l.b16 %v767
          %v791 = vunpack.c.l.b16 %v768
          %v792 = vunpack.c.l.b16 %v769
          %v793 = vpack.c.b16 %v791, %v790
          %v794 = vpack.c.b16 %v792, %v792
          %v796 = vshrl.u32 %v793, 16
          %v798 = vshll.u32 %v793, 16
          %v800 = vrot.slane %v798, 1
          %v801 = vor.u32 %v796, %v800
          %v803 = vshll.u32 %v794, 16
          %v805 = vrot.slane %v803, 1
          %v806 = vsel %vm257, %v801, %v805
          %v824 = vunpack.c.l.b16 %v771
          %v825 = vunpack.c.h.b16 %v771
          %v826 = vunpack.c.l.b16 %v772
          %v827 = vunpack.c.h.b16 %v772
          %v828 = vunpack.c.l.b16 %v773
          %v829 = vunpack.c.h.b16 %v773
          %v830 = vunpack.c.l.b16 %v774
          %v831 = vunpack.c.h.b16 %v774
          %v832 = vunpack.c.l.b16 %v775
          %v833 = vunpack.c.h.b16 %v775
          %v834 = vunpack.c.l.b16 %v776
          %v835 = vunpack.c.h.b16 %v776
          %v836 = vunpack.c.l.b16 %v777
          %v837 = vunpack.c.h.b16 %v777
          %v838 = vunpack.c.l.b16 %v778
          %v839 = vunpack.c.h.b16 %v778
          %v840 = vunpack.c.l.b16 %v779
          %v841 = vunpack.c.h.b16 %v779
          %v842 = vunpack.c.l.b16 %v780
          %v843 = vunpack.c.h.b16 %v780
          %v844 = vunpack.c.l.b16 %v781
          %v845 = vunpack.c.h.b16 %v781
          %v846 = vunpack.c.l.b16 %v782
          %v847 = vunpack.c.h.b16 %v782
          %v848 = vunpack.c.l.b16 %v783
          %v849 = vunpack.c.h.b16 %v783
          %v850 = vunpack.c.l.b16 %v784
          %v851 = vunpack.c.h.b16 %v784
          %v852 = vunpack.c.l.b16 %v785
          %v853 = vunpack.c.h.b16 %v785
          %v854 = vunpack.c.l.b16 %v786
          %v855 = vunpack.c.h.b16 %v786
          %v856 = vpack.c.b16 %v826, %v824
          %v857 = vpack.c.b16 %v827, %v825
          %v858 = vpack.c.b16 %v830, %v828
          %v859 = vpack.c.b16 %v831, %v829
          %v860 = vpack.c.b16 %v834, %v832
          %v861 = vpack.c.b16 %v835, %v833
          %v862 = vpack.c.b16 %v838, %v836
          %v863 = vpack.c.b16 %v839, %v837
          %v864 = vpack.c.b16 %v842, %v840
          %v865 = vpack.c.b16 %v843, %v841
          %v866 = vpack.c.b16 %v846, %v844
          %v867 = vpack.c.b16 %v847, %v845
          %v868 = vpack.c.b16 %v850, %v848
          %v869 = vpack.c.b16 %v851, %v849
          %v870 = vpack.c.b16 %v854, %v852
          %v871 = vpack.c.b16 %v855, %v853
          %888 = vmatpush.bf16.msra.mxu0 %v870
          %889 = vmatpush.bf16.msra.mxu0 %v868
          %890 = vmatpush.bf16.msra.mxu0 %v866
          %891 = vmatpush.bf16.msra.mxu0 %v864
          %892 = vmatpush.bf16.msra.mxu0 %v862
          %893 = vmatpush.bf16.msra.mxu0 %v860
          %894 = vmatpush.bf16.msra.mxu0 %v858
          %895 = vmatpush.bf16.msra.mxu0 %v856
          %896 = vmatmul.bf16.gmra.mxu0 %v806
          %v897 = vpop.f32.mrf.mxu0
          %v898 = vadd.f32 0.0, %v897
          %v899 = vpop.f32.mrf.mxu0
          %v900 = vadd.f32 0.0, %v899
          %901 = vdwg.mxu0
          %902 = vmatpush.bf16.msra.mxu0 %v871
          %903 = vmatpush.bf16.msra.mxu0 %v869
          %904 = vmatpush.bf16.msra.mxu0 %v867
          %905 = vmatpush.bf16.msra.mxu0 %v865
          %906 = vmatpush.bf16.msra.mxu0 %v863
          %907 = vmatpush.bf16.msra.mxu0 %v861
          %908 = vmatpush.bf16.msra.mxu0 %v859
          %909 = vmatpush.bf16.msra.mxu0 %v857
          %910 = vmatmul.bf16.gmra.mxu0 %v806
          %v911 = vpop.f32.mrf.mxu0
          %v912 = vadd.f32 0.0, %v911
          %v913 = vpop.f32.mrf.mxu0
          %v914 = vadd.f32 0.0, %v913
          %915 = vdwg.mxu0
          %v916 = vadd.f32 %v763, %v898
          %v917 = vadd.f32 %v764, %v912
          %v918 = vadd.f32 %v765, %v900
          %v919 = vadd.f32 %v766, %v914
          %v920 = vld [vmem:[%s629] sm:$0xe]
          %s921 = scalar_lea.vmem [#allocation2], 640
          %v922 = vld [vmem:[%s921] sm:$0xff]
          %v923 = vld [vmem:[%s921 + $0x8] sm:$0xff]
          %v924 = vld [vmem:[%s921 + $0x10] sm:$0xff]
          %v925 = vld [vmem:[%s921 + $0x18] sm:$0xff]
          %v926 = vld [vmem:[%s921 + $0x20] sm:$0xff]
          %v927 = vld [vmem:[%s921 + $0x28] sm:$0xff]
          %v928 = vld [vmem:[%s921 + $0x30] sm:$0xff]
          %v929 = vld [vmem:[%s921 + $0x38] sm:$0xff]
          %v930 = vld [vmem:[%s921 + $0x40] sm:$0xff]
          %v931 = vld [vmem:[%s921 + $0x48] sm:$0xff]
          %v932 = vld [vmem:[%s921 + $0x50] sm:$0xff]
          %v933 = vld [vmem:[%s921 + $0x58] sm:$0xff]
          %v934 = vld [vmem:[%s921 + $0x60] sm:$0xff]
          %v935 = vld [vmem:[%s921 + $0x68] sm:$0xff]
          %v936 = vld [vmem:[%s921 + $0x70] sm:$0xff]
          %v937 = vld [vmem:[%s921 + $0x78] sm:$0xff]
          %v939 = vunpack.c.l.b16 %v920
          %v940 = vpack.c.b16 %v791, %v939
          %v941 = vrot.slane %v940, 1
          %v942 = vrot.slane %v794, 1
          %v943 = vsel %vm509, %v941, %v942
          %v961 = vunpack.c.l.b16 %v922
          %v962 = vunpack.c.h.b16 %v922
          %v963 = vunpack.c.l.b16 %v923
          %v964 = vunpack.c.h.b16 %v923
          %v965 = vunpack.c.l.b16 %v924
          %v966 = vunpack.c.h.b16 %v924
          %v967 = vunpack.c.l.b16 %v925
          %v968 = vunpack.c.h.b16 %v925
          %v969 = vunpack.c.l.b16 %v926
          %v970 = vunpack.c.h.b16 %v926
          %v971 = vunpack.c.l.b16 %v927
          %v972 = vunpack.c.h.b16 %v927
          %v973 = vunpack.c.l.b16 %v928
          %v974 = vunpack.c.h.b16 %v928
          %v975 = vunpack.c.l.b16 %v929
          %v976 = vunpack.c.h.b16 %v929
          %v977 = vunpack.c.l.b16 %v930
          %v978 = vunpack.c.h.b16 %v930
          %v979 = vunpack.c.l.b16 %v931
          %v980 = vunpack.c.h.b16 %v931
          %v981 = vunpack.c.l.b16 %v932
          %v982 = vunpack.c.h.b16 %v932
          %v983 = vunpack.c.l.b16 %v933
          %v984 = vunpack.c.h.b16 %v933
          %v985 = vunpack.c.l.b16 %v934
          %v986 = vunpack.c.h.b16 %v934
          %v987 = vunpack.c.l.b16 %v935
          %v988 = vunpack.c.h.b16 %v935
          %v989 = vunpack.c.l.b16 %v936
          %v990 = vunpack.c.h.b16 %v936
          %v991 = vunpack.c.l.b16 %v937
          %v992 = vunpack.c.h.b16 %v937
          %v993 = vpack.c.b16 %v963, %v961
          %v994 = vpack.c.b16 %v964, %v962
          %v995 = vpack.c.b16 %v967, %v965
          %v996 = vpack.c.b16 %v968, %v966
          %v997 = vpack.c.b16 %v971, %v969
          %v998 = vpack.c.b16 %v972, %v970
          %v999 = vpack.c.b16 %v975, %v973
          %v1000 = vpack.c.b16 %v976, %v974
          %v1001 = vpack.c.b16 %v979, %v977
          %v1002 = vpack.c.b16 %v980, %v978
          %v1003 = vpack.c.b16 %v983, %v981
          %v1004 = vpack.c.b16 %v984, %v982
          %v1005 = vpack.c.b16 %v987, %v985
          %v1006 = vpack.c.b16 %v988, %v986
          %v1007 = vpack.c.b16 %v991, %v989
          %v1008 = vpack.c.b16 %v992, %v990
          %1025 = vmatpush.bf16.msra.mxu0 %v1007
          %1026 = vmatpush.bf16.msra.mxu0 %v1005
          %1027 = vmatpush.bf16.msra.mxu0 %v1003
          %1028 = vmatpush.bf16.msra.mxu0 %v1001
          %1029 = vmatpush.bf16.msra.mxu0 %v999
          %1030 = vmatpush.bf16.msra.mxu0 %v997
          %1031 = vmatpush.bf16.msra.mxu0 %v995
          %1032 = vmatpush.bf16.msra.mxu0 %v993
          %1033 = vmatmul.bf16.gmra.mxu0 %v943
          %v1034 = vpop.f32.mrf.mxu0
          %v1035 = vadd.f32 0.0, %v1034
          %v1036 = vpop.f32.mrf.mxu0
          %v1037 = vadd.f32 0.0, %v1036
          %1038 = vdwg.mxu0
          %1039 = vmatpush.bf16.msra.mxu0 %v1008
          %1040 = vmatpush.bf16.msra.mxu0 %v1006
          %1041 = vmatpush.bf16.msra.mxu0 %v1004
          %1042 = vmatpush.bf16.msra.mxu0 %v1002
          %1043 = vmatpush.bf16.msra.mxu0 %v1000
          %1044 = vmatpush.bf16.msra.mxu0 %v998
          %1045 = vmatpush.bf16.msra.mxu0 %v996
          %1046 = vmatpush.bf16.msra.mxu0 %v994
          %1047 = vmatmul.bf16.gmra.mxu0 %v943
          %v1048 = vpop.f32.mrf.mxu0
          %v1049 = vadd.f32 0.0, %v1048
          %v1050 = vpop.f32.mrf.mxu0
          %v1051 = vadd.f32 0.0, %v1050
          %1052 = vdwg.mxu0
          %v1053 = vadd.f32 %v916, %v1035
          %v1054 = vadd.f32 %v917, %v1049
          %v1055 = vadd.f32 %v918, %v1037
          %v1056 = vadd.f32 %v919, %v1051
          %s1057 = sadd.s32 %s205, 2
          %s1058 = smul.u32 %s1057, 3
          %s1059 = smul.addr %s1058, 4
          %s1060 = scalar_lea.vmem %s197, %s1059
          %v1061 = vld [vmem:[%s1060] sm:$0xf]
          %v1062 = vld [vmem:[%s1060 + $0x4] sm:$0xf]
          %s1063 = scalar_lea.vmem [#allocation2], 768
          %v1064 = vld [vmem:[%s1063] sm:$0xff]
          %v1065 = vld [vmem:[%s1063 + $0x8] sm:$0xff]
          %v1066 = vld [vmem:[%s1063 + $0x10] sm:$0xff]
          %v1067 = vld [vmem:[%s1063 + $0x18] sm:$0xff]
          %v1068 = vld [vmem:[%s1063 + $0x20] sm:$0xff]
          %v1069 = vld [vmem:[%s1063 + $0x28] sm:$0xff]
          %v1070 = vld [vmem:[%s1063 + $0x30] sm:$0xff]
          %v1071 = vld [vmem:[%s1063 + $0x38] sm:$0xff]
          %v1072 = vld [vmem:[%s1063 + $0x40] sm:$0xff]
          %v1073 = vld [vmem:[%s1063 + $0x48] sm:$0xff]
          %v1074 = vld [vmem:[%s1063 + $0x50] sm:$0xff]
          %v1075 = vld [vmem:[%s1063 + $0x58] sm:$0xff]
          %v1076 = vld [vmem:[%s1063 + $0x60] sm:$0xff]
          %v1077 = vld [vmem:[%s1063 + $0x68] sm:$0xff]
          %v1078 = vld [vmem:[%s1063 + $0x70] sm:$0xff]
          %v1079 = vld [vmem:[%s1063 + $0x78] sm:$0xff]
          %v1082 = vunpack.c.l.b16 %v1061
          %v1083 = vunpack.c.l.b16 %v1062
          %v1084 = vpack.c.b16 %v1083, %v1082
          %v1102 = vunpack.c.l.b16 %v1064
          %v1103 = vunpack.c.h.b16 %v1064
          %v1104 = vunpack.c.l.b16 %v1065
          %v1105 = vunpack.c.h.b16 %v1065
          %v1106 = vunpack.c.l.b16 %v1066
          %v1107 = vunpack.c.h.b16 %v1066
          %v1108 = vunpack.c.l.b16 %v1067
          %v1109 = vunpack.c.h.b16 %v1067
          %v1110 = vunpack.c.l.b16 %v1068
          %v1111 = vunpack.c.h.b16 %v1068
          %v1112 = vunpack.c.l.b16 %v1069
          %v1113 = vunpack.c.h.b16 %v1069
          %v1114 = vunpack.c.l.b16 %v1070
          %v1115 = vunpack.c.h.b16 %v1070
          %v1116 = vunpack.c.l.b16 %v1071
          %v1117 = vunpack.c.h.b16 %v1071
          %v1118 = vunpack.c.l.b16 %v1072
          %v1119 = vunpack.c.h.b16 %v1072
          %v1120 = vunpack.c.l.b16 %v1073
          %v1121 = vunpack.c.h.b16 %v1073
          %v1122 = vunpack.c.l.b16 %v1074
          %v1123 = vunpack.c.h.b16 %v1074
          %v1124 = vunpack.c.l.b16 %v1075
          %v1125 = vunpack.c.h.b16 %v1075
          %v1126 = vunpack.c.l.b16 %v1076
          %v1127 = vunpack.c.h.b16 %v1076
          %v1128 = vunpack.c.l.b16 %v1077
          %v1129 = vunpack.c.h.b16 %v1077
          %v1130 = vunpack.c.l.b16 %v1078
          %v1131 = vunpack.c.h.b16 %v1078
          %v1132 = vunpack.c.l.b16 %v1079
          %v1133 = vunpack.c.h.b16 %v1079
          %v1134 = vpack.c.b16 %v1104, %v1102
          %v1135 = vpack.c.b16 %v1105, %v1103
          %v1136 = vpack.c.b16 %v1108, %v1106
          %v1137 = vpack.c.b16 %v1109, %v1107
          %v1138 = vpack.c.b16 %v1112, %v1110
          %v1139 = vpack.c.b16 %v1113, %v1111
          %v1140 = vpack.c.b16 %v1116, %v1114
          %v1141 = vpack.c.b16 %v1117, %v1115
          %v1142 = vpack.c.b16 %v1120, %v1118
          %v1143 = vpack.c.b16 %v1121, %v1119
          %v1144 = vpack.c.b16 %v1124, %v1122
          %v1145 = vpack.c.b16 %v1125, %v1123
          %v1146 = vpack.c.b16 %v1128, %v1126
          %v1147 = vpack.c.b16 %v1129, %v1127
          %v1148 = vpack.c.b16 %v1132, %v1130
          %v1149 = vpack.c.b16 %v1133, %v1131
          %1166 = vmatpush.bf16.msra.mxu0 %v1148
          %1167 = vmatpush.bf16.msra.mxu0 %v1146
          %1168 = vmatpush.bf16.msra.mxu0 %v1144
          %1169 = vmatpush.bf16.msra.mxu0 %v1142
          %1170 = vmatpush.bf16.msra.mxu0 %v1140
          %1171 = vmatpush.bf16.msra.mxu0 %v1138
          %1172 = vmatpush.bf16.msra.mxu0 %v1136
          %1173 = vmatpush.bf16.msra.mxu0 %v1134
          %1174 = vmatmul.bf16.gmra.mxu0 %v1084
          %v1175 = vpop.f32.mrf.mxu0
          %v1176 = vadd.f32 0.0, %v1175
          %v1177 = vpop.f32.mrf.mxu0
          %v1178 = vadd.f32 0.0, %v1177
          %1179 = vdwg.mxu0
          %1180 = vmatpush.bf16.msra.mxu0 %v1149
          %1181 = vmatpush.bf16.msra.mxu0 %v1147
          %1182 = vmatpush.bf16.msra.mxu0 %v1145
          %1183 = vmatpush.bf16.msra.mxu0 %v1143
          %1184 = vmatpush.bf16.msra.mxu0 %v1141
          %1185 = vmatpush.bf16.msra.mxu0 %v1139
          %1186 = vmatpush.bf16.msra.mxu0 %v1137
          %1187 = vmatpush.bf16.msra.mxu0 %v1135
          %1188 = vmatmul.bf16.gmra.mxu0 %v1084
          %v1189 = vpop.f32.mrf.mxu0
          %v1190 = vadd.f32 0.0, %v1189
          %v1191 = vpop.f32.mrf.mxu0
          %v1192 = vadd.f32 0.0, %v1191
          %1193 = vdwg.mxu0
          %v1194 = vadd.f32 %v1053, %v1176
          %v1195 = vadd.f32 %v1054, %v1190
          %v1196 = vadd.f32 %v1055, %v1178
          %v1197 = vadd.f32 %v1056, %v1192
          %v1198 = vld [vmem:[%s1060] sm:$0xf]
          %v1199 = vld [vmem:[%s1060 + $0x4] sm:$0xf]
          %v1200 = vld [vmem:[%s1060 + $0x8] sm:$0x1]
          %s1201 = scalar_lea.vmem [#allocation2], 896
          %v1202 = vld [vmem:[%s1201] sm:$0xff]
          %v1203 = vld [vmem:[%s1201 + $0x8] sm:$0xff]
          %v1204 = vld [vmem:[%s1201 + $0x10] sm:$0xff]
          %v1205 = vld [vmem:[%s1201 + $0x18] sm:$0xff]
          %v1206 = vld [vmem:[%s1201 + $0x20] sm:$0xff]
          %v1207 = vld [vmem:[%s1201 + $0x28] sm:$0xff]
          %v1208 = vld [vmem:[%s1201 + $0x30] sm:$0xff]
          %v1209 = vld [vmem:[%s1201 + $0x38] sm:$0xff]
          %v1210 = vld [vmem:[%s1201 + $0x40] sm:$0xff]
          %v1211 = vld [vmem:[%s1201 + $0x48] sm:$0xff]
          %v1212 = vld [vmem:[%s1201 + $0x50] sm:$0xff]
          %v1213 = vld [vmem:[%s1201 + $0x58] sm:$0xff]
          %v1214 = vld [vmem:[%s1201 + $0x60] sm:$0xff]
          %v1215 = vld [vmem:[%s1201 + $0x68] sm:$0xff]
          %v1216 = vld [vmem:[%s1201 + $0x70] sm:$0xff]
          %v1217 = vld [vmem:[%s1201 + $0x78] sm:$0xff]
          %v1221 = vunpack.c.l.b16 %v1198
          %v1222 = vunpack.c.l.b16 %v1199
          %v1223 = vunpack.c.l.b16 %v1200
          %v1224 = vpack.c.b16 %v1222, %v1221
          %v1225 = vpack.c.b16 %v1223, %v1223
          %v1227 = vshrl.u32 %v1224, 16
          %v1229 = vshll.u32 %v1224, 16
          %v1231 = vrot.slane %v1229, 1
          %v1232 = vor.u32 %v1227, %v1231
          %v1234 = vshll.u32 %v1225, 16
          %v1236 = vrot.slane %v1234, 1
          %v1237 = vsel %vm257, %v1232, %v1236
          %v1255 = vunpack.c.l.b16 %v1202
          %v1256 = vunpack.c.h.b16 %v1202
          %v1257 = vunpack.c.l.b16 %v1203
          %v1258 = vunpack.c.h.b16 %v1203
          %v1259 = vunpack.c.l.b16 %v1204
          %v1260 = vunpack.c.h.b16 %v1204
          %v1261 = vunpack.c.l.b16 %v1205
          %v1262 = vunpack.c.h.b16 %v1205
          %v1263 = vunpack.c.l.b16 %v1206
          %v1264 = vunpack.c.h.b16 %v1206
          %v1265 = vunpack.c.l.b16 %v1207
          %v1266 = vunpack.c.h.b16 %v1207
          %v1267 = vunpack.c.l.b16 %v1208
          %v1268 = vunpack.c.h.b16 %v1208
          %v1269 = vunpack.c.l.b16 %v1209
          %v1270 = vunpack.c.h.b16 %v1209
          %v1271 = vunpack.c.l.b16 %v1210
          %v1272 = vunpack.c.h.b16 %v1210
          %v1273 = vunpack.c.l.b16 %v1211
          %v1274 = vunpack.c.h.b16 %v1211
          %v1275 = vunpack.c.l.b16 %v1212
          %v1276 = vunpack.c.h.b16 %v1212
          %v1277 = vunpack.c.l.b16 %v1213
          %v1278 = vunpack.c.h.b16 %v1213
          %v1279 = vunpack.c.l.b16 %v1214
          %v1280 = vunpack.c.h.b16 %v1214
          %v1281 = vunpack.c.l.b16 %v1215
          %v1282 = vunpack.c.h.b16 %v1215
          %v1283 = vunpack.c.l.b16 %v1216
          %v1284 = vunpack.c.h.b16 %v1216
          %v1285 = vunpack.c.l.b16 %v1217
          %v1286 = vunpack.c.h.b16 %v1217
          %v1287 = vpack.c.b16 %v1257, %v1255
          %v1288 = vpack.c.b16 %v1258, %v1256
          %v1289 = vpack.c.b16 %v1261, %v1259
          %v1290 = vpack.c.b16 %v1262, %v1260
          %v1291 = vpack.c.b16 %v1265, %v1263
          %v1292 = vpack.c.b16 %v1266, %v1264
          %v1293 = vpack.c.b16 %v1269, %v1267
          %v1294 = vpack.c.b16 %v1270, %v1268
          %v1295 = vpack.c.b16 %v1273, %v1271
          %v1296 = vpack.c.b16 %v1274, %v1272
          %v1297 = vpack.c.b16 %v1277, %v1275
          %v1298 = vpack.c.b16 %v1278, %v1276
          %v1299 = vpack.c.b16 %v1281, %v1279
          %v1300 = vpack.c.b16 %v1282, %v1280
          %v1301 = vpack.c.b16 %v1285, %v1283
          %v1302 = vpack.c.b16 %v1286, %v1284
          %1319 = vmatpush.bf16.msra.mxu0 %v1301
          %1320 = vmatpush.bf16.msra.mxu0 %v1299
          %1321 = vmatpush.bf16.msra.mxu0 %v1297
          %1322 = vmatpush.bf16.msra.mxu0 %v1295
          %1323 = vmatpush.bf16.msra.mxu0 %v1293
          %1324 = vmatpush.bf16.msra.mxu0 %v1291
          %1325 = vmatpush.bf16.msra.mxu0 %v1289
          %1326 = vmatpush.bf16.msra.mxu0 %v1287
          %1327 = vmatmul.bf16.gmra.mxu0 %v1237
          %v1328 = vpop.f32.mrf.mxu0
          %v1329 = vadd.f32 0.0, %v1328
          %v1330 = vpop.f32.mrf.mxu0
          %v1331 = vadd.f32 0.0, %v1330
          %1332 = vdwg.mxu0
          %1333 = vmatpush.bf16.msra.mxu0 %v1302
          %1334 = vmatpush.bf16.msra.mxu0 %v1300
          %1335 = vmatpush.bf16.msra.mxu0 %v1298
          %1336 = vmatpush.bf16.msra.mxu0 %v1296
          %1337 = vmatpush.bf16.msra.mxu0 %v1294
          %1338 = vmatpush.bf16.msra.mxu0 %v1292
          %1339 = vmatpush.bf16.msra.mxu0 %v1290
          %1340 = vmatpush.bf16.msra.mxu0 %v1288
          %1341 = vmatmul.bf16.gmra.mxu0 %v1237
          %v1342 = vpop.f32.mrf.mxu0
          %v1343 = vadd.f32 0.0, %v1342
          %v1344 = vpop.f32.mrf.mxu0
          %v1345 = vadd.f32 0.0, %v1344
          %1346 = vdwg.mxu0
          %v1347 = vadd.f32 %v1194, %v1329
          %v1348 = vadd.f32 %v1195, %v1343
          %v1349 = vadd.f32 %v1196, %v1331
          %v1350 = vadd.f32 %v1197, %v1345
          %v1351 = vld [vmem:[%s1060] sm:$0xe]
          %s1352 = scalar_lea.vmem [#allocation2], 1024
          %v1353 = vld [vmem:[%s1352] sm:$0xff]
          %v1354 = vld [vmem:[%s1352 + $0x8] sm:$0xff]
          %v1355 = vld [vmem:[%s1352 + $0x10] sm:$0xff]
          %v1356 = vld [vmem:[%s1352 + $0x18] sm:$0xff]
          %v1357 = vld [vmem:[%s1352 + $0x20] sm:$0xff]
          %v1358 = vld [vmem:[%s1352 + $0x28] sm:$0xff]
          %v1359 = vld [vmem:[%s1352 + $0x30] sm:$0xff]
          %v1360 = vld [vmem:[%s1352 + $0x38] sm:$0xff]
          %v1361 = vld [vmem:[%s1352 + $0x40] sm:$0xff]
          %v1362 = vld [vmem:[%s1352 + $0x48] sm:$0xff]
          %v1363 = vld [vmem:[%s1352 + $0x50] sm:$0xff]
          %v1364 = vld [vmem:[%s1352 + $0x58] sm:$0xff]
          %v1365 = vld [vmem:[%s1352 + $0x60] sm:$0xff]
          %v1366 = vld [vmem:[%s1352 + $0x68] sm:$0xff]
          %v1367 = vld [vmem:[%s1352 + $0x70] sm:$0xff]
          %v1368 = vld [vmem:[%s1352 + $0x78] sm:$0xff]
          %v1370 = vunpack.c.l.b16 %v1351
          %v1371 = vpack.c.b16 %v1222, %v1370
          %v1372 = vrot.slane %v1371, 1
          %v1373 = vrot.slane %v1225, 1
          %v1374 = vsel %vm509, %v1372, %v1373
          %v1392 = vunpack.c.l.b16 %v1353
          %v1393 = vunpack.c.h.b16 %v1353
          %v1394 = vunpack.c.l.b16 %v1354
          %v1395 = vunpack.c.h.b16 %v1354
          %v1396 = vunpack.c.l.b16 %v1355
          %v1397 = vunpack.c.h.b16 %v1355
          %v1398 = vunpack.c.l.b16 %v1356
          %v1399 = vunpack.c.h.b16 %v1356
          %v1400 = vunpack.c.l.b16 %v1357
          %v1401 = vunpack.c.h.b16 %v1357
          %v1402 = vunpack.c.l.b16 %v1358
          %v1403 = vunpack.c.h.b16 %v1358
          %v1404 = vunpack.c.l.b16 %v1359
          %v1405 = vunpack.c.h.b16 %v1359
          %v1406 = vunpack.c.l.b16 %v1360
          %v1407 = vunpack.c.h.b16 %v1360
          %v1408 = vunpack.c.l.b16 %v1361
          %v1409 = vunpack.c.h.b16 %v1361
          %v1410 = vunpack.c.l.b16 %v1362
          %v1411 = vunpack.c.h.b16 %v1362
          %v1412 = vunpack.c.l.b16 %v1363
          %v1413 = vunpack.c.h.b16 %v1363
          %v1414 = vunpack.c.l.b16 %v1364
          %v1415 = vunpack.c.h.b16 %v1364
          %v1416 = vunpack.c.l.b16 %v1365
          %v1417 = vunpack.c.h.b16 %v1365
          %v1418 = vunpack.c.l.b16 %v1366
          %v1419 = vunpack.c.h.b16 %v1366
          %v1420 = vunpack.c.l.b16 %v1367
          %v1421 = vunpack.c.h.b16 %v1367
          %v1422 = vunpack.c.l.b16 %v1368
          %v1423 = vunpack.c.h.b16 %v1368
          %v1424 = vpack.c.b16 %v1394, %v1392
          %v1425 = vpack.c.b16 %v1395, %v1393
          %v1426 = vpack.c.b16 %v1398, %v1396
          %v1427 = vpack.c.b16 %v1399, %v1397
          %v1428 = vpack.c.b16 %v1402, %v1400
          %v1429 = vpack.c.b16 %v1403, %v1401
          %v1430 = vpack.c.b16 %v1406, %v1404
          %v1431 = vpack.c.b16 %v1407, %v1405
          %v1432 = vpack.c.b16 %v1410, %v1408
          %v1433 = vpack.c.b16 %v1411, %v1409
          %v1434 = vpack.c.b16 %v1414, %v1412
          %v1435 = vpack.c.b16 %v1415, %v1413
          %v1436 = vpack.c.b16 %v1418, %v1416
          %v1437 = vpack.c.b16 %v1419, %v1417
          %v1438 = vpack.c.b16 %v1422, %v1420
          %v1439 = vpack.c.b16 %v1423, %v1421
          %1456 = vmatpush.bf16.msra.mxu0 %v1438
          %1457 = vmatpush.bf16.msra.mxu0 %v1436
          %1458 = vmatpush.bf16.msra.mxu0 %v1434
          %1459 = vmatpush.bf16.msra.mxu0 %v1432
          %1460 = vmatpush.bf16.msra.mxu0 %v1430
          %1461 = vmatpush.bf16.msra.mxu0 %v1428
          %1462 = vmatpush.bf16.msra.mxu0 %v1426
          %1463 = vmatpush.bf16.msra.mxu0 %v1424
          %1464 = vmatmul.bf16.gmra.mxu0 %v1374
          %v1465 = vpop.f32.mrf.mxu0
          %v1466 = vadd.f32 0.0, %v1465
          %v1467 = vpop.f32.mrf.mxu0
          %v1468 = vadd.f32 0.0, %v1467
          %1469 = vdwg.mxu0
          %1470 = vmatpush.bf16.msra.mxu0 %v1439
          %1471 = vmatpush.bf16.msra.mxu0 %v1437
          %1472 = vmatpush.bf16.msra.mxu0 %v1435
          %1473 = vmatpush.bf16.msra.mxu0 %v1433
          %1474 = vmatpush.bf16.msra.mxu0 %v1431
          %1475 = vmatpush.bf16.msra.mxu0 %v1429
          %1476 = vmatpush.bf16.msra.mxu0 %v1427
          %1477 = vmatpush.bf16.msra.mxu0 %v1425
          %1478 = vmatmul.bf16.gmra.mxu0 %v1374
          %v1479 = vpop.f32.mrf.mxu0
          %v1480 = vadd.f32 0.0, %v1479
          %v1481 = vpop.f32.mrf.mxu0
          %v1482 = vadd.f32 0.0, %v1481
          %1483 = vdwg.mxu0
          %v1484 = vadd.f32 %v1347, %v1466
          %v1485 = vadd.f32 %v1348, %v1480
          %v1486 = vadd.f32 %v1349, %v1468
          %v1487 = vadd.f32 %v1350, %v1482
          %v1489 = vperm.slane %v203, 0
          %v1490 = vperm.slane %v203, 1
          %v1493 = vadd.f32 %v1484, %v1489
          %v1494 = vadd.f32 %v1485, %v1490
          %v1495 = vadd.f32 %v1486, %v1489
          %v1496 = vadd.f32 %v1487, %v1490
          %v1497 = vmax.f32 %v1493, 0.0
          %v1498 = vmax.f32 %v1494, 0.0
          %v1499 = vmax.f32 %v1495, 0.0
          %v1500 = vmax.f32 %v1496, 0.0
          %v1501 = vpack.c.bf16 %v1498, %v1497
          %v1502 = vpack.c.bf16 %v1500, %v1499
          %s1503 = smul.u32 %s205, 4
          %s1504 = smul.addr %s1503, 4
          %s1505 = scalar_lea.vmem %s202, %s1504
          %1506 = vst [vmem:[%s1505] sm:$0xff] %v1501
          %1507 = vst [vmem:[%s1505 + $0x8] sm:$0xff] %v1502
        $region45: #{forward.10} parent=31 // loop_footer
          %s209 = sadd.s32 1, %s205
        $region46: #{forward.10} parent=31 // loop_footer_branch
          %204 = sbr.rel target = $region42
        $region47: #{forward.10} parent=31 // loop_exit
          _
        %p1508 = scmp.lt.s32.totalorder %s16, 1
        %s1509 = scalar_select %p1508, %s16, 1
        %s1510 = smul.addr %s1509, 64
        %s1511 = smul.addr %s1510, 4
        %s1512 = scalar_lea.vmem %s3, %s1511
        // Predicated region
        $region48: #{forward.10} parent=31 // pred_check
          %p1513 = pneg %p102
        $region49: #{forward.10} parent=31 // pred_check_branch
          %1515 = sbr.rel (%p1513) target = $region51
        $region50: #{forward.10} parent=31 // pred_region
          _
        $region51: #{forward.10} parent=31 // pred_fallthru
          _
      $region32: #{forward.10} parent=5 // pred_fallthru
        _
      %p1516 = scmp.le.s32.totalorder 2, %s11
      // Predicated region
      $region52: #{forward.10} parent=5 // pred_check
        %p1517 = pneg %p1516
      $region53: #{forward.10} parent=5 // pred_check_branch
        %1519 = sbr.rel (%p1517) target = $region55
      $region54: #{forward.10} parent=5 // pred_region
        %s1520 = ssub.s32 %s11, 2
        // Predicated region
        $region56: #{forward.10} parent=54 // pred_check
          %p1521 = pneg %p108
        $region57: #{forward.10} parent=54 // pred_check_branch
          %1523 = sbr.rel (%p1521) target = $region59
        $region58: #{forward.10} parent=54 // pred_region
          %p1524 = scmp.lt.s32.totalorder %s17, 1
          %s1525 = scalar_select %p1524, %s17, 1
          %s1526 = smul.addr %s1525, 64
          %s1527 = smul.addr %s1526, 4
          %s1528 = scalar_lea.vmem %s3, %s1527
        $region59: #{forward.10} parent=54 // pred_fallthru
          _
      $region55: #{forward.10} parent=5 // pred_fallthru
        _
    $region6: #{forward.10} parent=1 // loop_footer
      %s15 = sadd.s32 1, %s11
    $region7: #{forward.10} parent=1 // loop_footer_branch
      %10 = sbr.rel target = $region3
    $region8: #{forward.10} parent=1 // loop_exit
      _
    %1529 = vsyncpa [#allocation3], 1
    %s1530 = scalar_lea.sflag [#allocation3], 1
    %1531 = vsyncpa %s1530, 1
    %1532 = vsyncpa [#allocation5], 1

// kernel: forward.13
$region0: #{forward.13}
  #allocation0 [shape = 'u32[]', space=smem, size = 0x4, offset = 0x4, fixed_abs, tag = 'smem constant byte address 0x4 - core index']
  #allocation1 [shape = 'u32[72,128]{1,0:T(1,128)}', space=vmem, size = 0x9000, scoped, tag = 'internal scratch']
  %s0 = inlined_call_operand.vmem [shape: bf16[8,512], index: 0, kind: input, shape index: {}]
  %s1 = inlined_call_operand.vmem [shape: bf16[512,128], index: 1, kind: input, shape index: {}]
  %s2 = inlined_call_operand.vmem [shape: f32[1,128], index: 2, kind: input, shape index: {}]
  %s3 = inlined_call_operand.vmem [shape: f32[8,128], index: 3, kind: output, shape index: {}]
  %s4 = sld [smem:[#allocation0]]
  $region22: #{forward.13} parent=0
    _
  %s6 = ssub.s32 1, %s4
  %s7 = scalar_select 0, %s6, %s4
  // Predicated region
  $region2: #{forward.13} parent=0 // pred_check
    _
  $region3: #{forward.13} parent=0 // pred_check_branch
    %9 = sbr.rel (0) target = $region5
  $region4: #{forward.13} parent=0 // pred_region
    _
  $region5: #{forward.13} parent=0 // pred_fallthru
    _
  // Predicated region
  $region6: #{forward.13} parent=0 // pred_check
    _
  $region7: #{forward.13} parent=0 // pred_check_branch
    %11 = sbr.rel (0) target = $region9
  $region8: #{forward.13} parent=0 // pred_region
    _
  $region9: #{forward.13} parent=0 // pred_fallthru
    _
  // Predicated region
  $region10: #{forward.13} parent=0 // pred_check
    _
  $region11: #{forward.13} parent=0 // pred_check_branch
    %13 = sbr.rel (0) target = $region13
  $region12: #{forward.13} parent=0 // pred_region
    _
  $region13: #{forward.13} parent=0 // pred_fallthru
    _
  %v14 = vld [vmem:[%s0] sm:$0xff]
  %v15 = vld [vmem:[%s0 + $0x8] sm:$0xff]
  %v16 = vld [vmem:[%s1] sm:$0xf]
  %v17 = vld [vmem:[%s1 + $0x4] sm:$0xf]
  %v18 = vld [vmem:[%s1 + $0x8] sm:$0xf]
  %v19 = vld [vmem:[%s1 + $0xc] sm:$0xf]
  %v20 = vld [vmem:[%s1 + $0x10] sm:$0xf]
  %v21 = vld [vmem:[%s1 + $0x14] sm:$0xf]
  %v22 = vld [vmem:[%s1 + $0x18] sm:$0xf]
  %v23 = vld [vmem:[%s1 + $0x1c] sm:$0xf]
  %v24 = vld [vmem:[%s1 + $0x20] sm:$0xf]
  %v25 = vld [vmem:[%s1 + $0x24] sm:$0xf]
  %v26 = vld [vmem:[%s1 + $0x28] sm:$0xf]
  %v27 = vld [vmem:[%s1 + $0x2c] sm:$0xf]
  %v28 = vld [vmem:[%s1 + $0x30] sm:$0xf]
  %v29 = vld [vmem:[%s1 + $0x34] sm:$0xf]
  %v30 = vld [vmem:[%s1 + $0x38] sm:$0xf]
  %v31 = vld [vmem:[%s1 + $0x3c] sm:$0xf]
  %v32 = vld [vmem:[%s1 + $0x40] sm:$0xf]
  %v33 = vld [vmem:[%s1 + $0x44] sm:$0xf]
  %v34 = vld [vmem:[%s1 + $0x48] sm:$0xf]
  %v35 = vld [vmem:[%s1 + $0x4c] sm:$0xf]
  %v36 = vld [vmem:[%s1 + $0x50] sm:$0xf]
  %v37 = vld [vmem:[%s1 + $0x54] sm:$0xf]
  %v38 = vld [vmem:[%s1 + $0x58] sm:$0xf]
  %v39 = vld [vmem:[%s1 + $0x5c] sm:$0xf]
  %v40 = vld [vmem:[%s1 + $0x60] sm:$0xf]
  %v41 = vld [vmem:[%s1 + $0x64] sm:$0xf]
  %v42 = vld [vmem:[%s1 + $0x68] sm:$0xf]
  %v43 = vld [vmem:[%s1 + $0x6c] sm:$0xf]
  %v44 = vld [vmem:[%s1 + $0x70] sm:$0xf]
  %v45 = vld [vmem:[%s1 + $0x74] sm:$0xf]
  %v46 = vld [vmem:[%s1 + $0x78] sm:$0xf]
  %v47 = vld [vmem:[%s1 + $0x7c] sm:$0xf]
  %v48 = vld [vmem:[%s1 + $0x80] sm:$0xf]
  %v49 = vld [vmem:[%s1 + $0x84] sm:$0xf]
  %v50 = vld [vmem:[%s1 + $0x88] sm:$0xf]
  %v51 = vld [vmem:[%s1 + $0x8c] sm:$0xf]
  %v52 = vld [vmem:[%s1 + $0x90] sm:$0xf]
  %v53 = vld [vmem:[%s1 + $0x94] sm:$0xf]
  %v54 = vld [vmem:[%s1 + $0x98] sm:$0xf]
  %v55 = vld [vmem:[%s1 + $0x9c] sm:$0xf]
  %v56 = vld [vmem:[%s1 + $0xa0] sm:$0xf]
  %v57 = vld [vmem:[%s1 + $0xa4] sm:$0xf]
  %v58 = vld [vmem:[%s1 + $0xa8] sm:$0xf]
  %v59 = vld [vmem:[%s1 + $0xac] sm:$0xf]
  %v60 = vld [vmem:[%s1 + $0xb0] sm:$0xf]
  %v61 = vld [vmem:[%s1 + $0xb4] sm:$0xf]
  %v62 = vld [vmem:[%s1 + $0xb8] sm:$0xf]
  %v63 = vld [vmem:[%s1 + $0xbc] sm:$0xf]
  %v64 = vld [vmem:[%s1 + $0xc0] sm:$0xf]
  %v65 = vld [vmem:[%s1 + $0xc4] sm:$0xf]
  %v66 = vld [vmem:[%s1 + $0xc8] sm:$0xf]
  %v67 = vld [vmem:[%s1 + $0xcc] sm:$0xf]
  %v68 = vld [vmem:[%s1 + $0xd0] sm:$0xf]
  %v69 = vld [vmem:[%s1 + $0xd4] sm:$0xf]
  %v70 = vld [vmem:[%s1 + $0xd8] sm:$0xf]
  %v71 = vld [vmem:[%s1 + $0xdc] sm:$0xf]
  %v72 = vld [vmem:[%s1 + $0xe0] sm:$0xf]
  %v73 = vld [vmem:[%s1 + $0xe4] sm:$0xf]
  %v74 = vld [vmem:[%s1 + $0xe8] sm:$0xf]
  %v75 = vld [vmem:[%s1 + $0xec] sm:$0xf]
  %v76 = vld [vmem:[%s1 + $0xf0] sm:$0xf]
  %v77 = vld [vmem:[%s1 + $0xf4] sm:$0xf]
  %v78 = vld [vmem:[%s1 + $0xf8] sm:$0xf]
  %v79 = vld [vmem:[%s1 + $0xfc] sm:$0xf]
  %v80 = vld [vmem:[%s2] sm:$0x1]
  %v82 = vperm.slane %v80, 0
  %v86 = vunpack.c.l.b16 %v14
  %v87 = vunpack.c.h.b16 %v14
  %v88 = vunpack.c.l.b16 %v15
  %v89 = vunpack.c.h.b16 %v15
  %v90 = vpack.c.b16 %v86, %v86
  %v91 = vpack.c.b16 %v87, %v87
  %v92 = vpack.c.b16 %v88, %v88
  %v93 = vpack.c.b16 %v89, %v89
  %v162 = vunpack.c.l.b16 %v16
  %v163 = vunpack.c.l.b16 %v17
  %v164 = vunpack.c.l.b16 %v18
  %v165 = vunpack.c.l.b16 %v19
  %v166 = vunpack.c.l.b16 %v20
  %v167 = vunpack.c.l.b16 %v21
  %v168 = vunpack.c.l.b16 %v22
  %v169 = vunpack.c.l.b16 %v23
  %v170 = vunpack.c.l.b16 %v24
  %v171 = vunpack.c.l.b16 %v25
  %v172 = vunpack.c.l.b16 %v26
  %v173 = vunpack.c.l.b16 %v27
  %v174 = vunpack.c.l.b16 %v28
  %v175 = vunpack.c.l.b16 %v29
  %v176 = vunpack.c.l.b16 %v30
  %v177 = vunpack.c.l.b16 %v31
  %v178 = vunpack.c.l.b16 %v32
  %v179 = vunpack.c.l.b16 %v33
  %v180 = vunpack.c.l.b16 %v34
  %v181 = vunpack.c.l.b16 %v35
  %v182 = vunpack.c.l.b16 %v36
  %v183 = vunpack.c.l.b16 %v37
  %v184 = vunpack.c.l.b16 %v38
  %v185 = vunpack.c.l.b16 %v39
  %v186 = vunpack.c.l.b16 %v40
  %v187 = vunpack.c.l.b16 %v41
  %v188 = vunpack.c.l.b16 %v42
  %v189 = vunpack.c.l.b16 %v43
  %v190 = vunpack.c.l.b16 %v44
  %v191 = vunpack.c.l.b16 %v45
  %v192 = vunpack.c.l.b16 %v46
  %v193 = vunpack.c.l.b16 %v47
  %v194 = vunpack.c.l.b16 %v48
  %v195 = vunpack.c.l.b16 %v49
  %v196 = vunpack.c.l.b16 %v50
  %v197 = vunpack.c.l.b16 %v51
  %v198 = vunpack.c.l.b16 %v52
  %v199 = vunpack.c.l.b16 %v53
  %v200 = vunpack.c.l.b16 %v54
  %v201 = vunpack.c.l.b16 %v55
  %v202 = vunpack.c.l.b16 %v56
  %v203 = vunpack.c.l.b16 %v57
  %v204 = vunpack.c.l.b16 %v58
  %v205 = vunpack.c.l.b16 %v59
  %v206 = vunpack.c.l.b16 %v60
  %v207 = vunpack.c.l.b16 %v61
  %v208 = vunpack.c.l.b16 %v62
  %v209 = vunpack.c.l.b16 %v63
  %v210 = vunpack.c.l.b16 %v64
  %v211 = vunpack.c.l.b16 %v65
  %v212 = vunpack.c.l.b16 %v66
  %v213 = vunpack.c.l.b16 %v67
  %v214 = vunpack.c.l.b16 %v68
  %v215 = vunpack.c.l.b16 %v69
  %v216 = vunpack.c.l.b16 %v70
  %v217 = vunpack.c.l.b16 %v71
  %v218 = vunpack.c.l.b16 %v72
  %v219 = vunpack.c.l.b16 %v73
  %v220 = vunpack.c.l.b16 %v74
  %v221 = vunpack.c.l.b16 %v75
  %v222 = vunpack.c.l.b16 %v76
  %v223 = vunpack.c.l.b16 %v77
  %v224 = vunpack.c.l.b16 %v78
  %v225 = vunpack.c.l.b16 %v79
  %v226 = vpack.c.b16 %v163, %v162
  %v227 = vpack.c.b16 %v165, %v164
  %v228 = vpack.c.b16 %v167, %v166
  %v229 = vpack.c.b16 %v169, %v168
  %v230 = vpack.c.b16 %v171, %v170
  %v231 = vpack.c.b16 %v173, %v172
  %v232 = vpack.c.b16 %v175, %v174
  %v233 = vpack.c.b16 %v177, %v176
  %v234 = vpack.c.b16 %v179, %v178
  %v235 = vpack.c.b16 %v181, %v180
  %v236 = vpack.c.b16 %v183, %v182
  %v237 = vpack.c.b16 %v185, %v184
  %v238 = vpack.c.b16 %v187, %v186
  %v239 = vpack.c.b16 %v189, %v188
  %v240 = vpack.c.b16 %v191, %v190
  %v241 = vpack.c.b16 %v193, %v192
  %v242 = vpack.c.b16 %v195, %v194
  %v243 = vpack.c.b16 %v197, %v196
  %v244 = vpack.c.b16 %v199, %v198
  %v245 = vpack.c.b16 %v201, %v200
  %v246 = vpack.c.b16 %v203, %v202
  %v247 = vpack.c.b16 %v205, %v204
  %v248 = vpack.c.b16 %v207, %v206
  %v249 = vpack.c.b16 %v209, %v208
  %v250 = vpack.c.b16 %v211, %v210
  %v251 = vpack.c.b16 %v213, %v212
  %v252 = vpack.c.b16 %v215, %v214
  %v253 = vpack.c.b16 %v217, %v216
  %v254 = vpack.c.b16 %v219, %v218
  %v255 = vpack.c.b16 %v221, %v220
  %v256 = vpack.c.b16 %v223, %v222
  %v257 = vpack.c.b16 %v225, %v224
  %290 = vmatpush.bf16.msra.mxu0 %v233
  %291 = vmatpush.bf16.msra.mxu0 %v232
  %292 = vmatpush.bf16.msra.mxu0 %v231
  %293 = vmatpush.bf16.msra.mxu0 %v230
  %294 = vmatpush.bf16.msra.mxu0 %v229
  %295 = vmatpush.bf16.msra.mxu0 %v228
  %296 = vmatpush.bf16.msra.mxu0 %v227
  %297 = vmatpush.bf16.msra.mxu0 %v226
  %298 = vmatmul.bf16.gmra.mxu0 %v90
  %v299 = vpop.f32.mrf.mxu0
  %v300 = vadd.f32 %v82, %v299
  %v301 = vpop.f32.mrf.mxu0
  %302 = vdwg.mxu0
  %303 = vmatpush.bf16.msra.mxu0 %v241
  %304 = vmatpush.bf16.msra.mxu0 %v240
  %305 = vmatpush.bf16.msra.mxu0 %v239
  %306 = vmatpush.bf16.msra.mxu0 %v238
  %307 = vmatpush.bf16.msra.mxu0 %v237
  %308 = vmatpush.bf16.msra.mxu0 %v236
  %309 = vmatpush.bf16.msra.mxu0 %v235
  %310 = vmatpush.bf16.msra.mxu0 %v234
  %311 = vmatmul.bf16.gmra.mxu0 %v91
  %v312 = vpop.f32.mrf.mxu0
  %v313 = vadd.f32 %v300, %v312
  %v314 = vpop.f32.mrf.mxu0
  %315 = vdwg.mxu0
  %316 = vmatpush.bf16.msra.mxu0 %v249
  %317 = vmatpush.bf16.msra.mxu0 %v248
  %318 = vmatpush.bf16.msra.mxu0 %v247
  %319 = vmatpush.bf16.msra.mxu0 %v246
  %320 = vmatpush.bf16.msra.mxu0 %v245
  %321 = vmatpush.bf16.msra.mxu0 %v244
  %322 = vmatpush.bf16.msra.mxu0 %v243
  %323 = vmatpush.bf16.msra.mxu0 %v242
  %324 = vmatmul.bf16.gmra.mxu0 %v92
  %v325 = vpop.f32.mrf.mxu0
  %v326 = vadd.f32 %v313, %v325
  %v327 = vpop.f32.mrf.mxu0
  %328 = vdwg.mxu0
  %329 = vmatpush.bf16.msra.mxu0 %v257
  %330 = vmatpush.bf16.msra.mxu0 %v256
  %331 = vmatpush.bf16.msra.mxu0 %v255
  %332 = vmatpush.bf16.msra.mxu0 %v254
  %333 = vmatpush.bf16.msra.mxu0 %v253
  %334 = vmatpush.bf16.msra.mxu0 %v252
  %335 = vmatpush.bf16.msra.mxu0 %v251
  %336 = vmatpush.bf16.msra.mxu0 %v250
  %337 = vmatmul.bf16.gmra.mxu0 %v93
  %v338 = vpop.f32.mrf.mxu0
  %v339 = vadd.f32 %v326, %v338
  %v340 = vpop.f32.mrf.mxu0
  %341 = vdwg.mxu0
  %342 = vst [vmem:[%s3] sm:$0xff] %v339
  // Predicated region
  $region14: #{forward.13} parent=0 // pred_check
    _
  $region15: #{forward.13} parent=0 // pred_check_branch
    %344 = sbr.rel (0) target = $region17
  $region16: #{forward.13} parent=0 // pred_region
    _
  $region17: #{forward.13} parent=0 // pred_fallthru
    _
  // Predicated region
  $region18: #{forward.13} parent=0 // pred_check
    _
  $region19: #{forward.13} parent=0 // pred_check_branch
    %346 = sbr.rel (0) target = $region21
  $region20: #{forward.13} parent=0 // pred_region
    _
  $region21: #{forward.13} parent=0 // pred_fallthru
    _

// kernel: forward.12
$region0: #{forward.12}
  #allocation0 [shape = 'u32[]', space=smem, size = 0x4, offset = 0x4, fixed_abs, tag = 'smem constant byte address 0x4 - core index']
  #allocation1 [shape = 'u32[72,128]{1,0:T(1,128)}', space=vmem, size = 0x9000, scoped, tag = 'internal scratch']
  #allocation2 [shape = 'f32[8,512]{1,0:T(8,128)}', space=vmem, size = 0x4000, scoped, tag = 'scratch operand']
  %s0 = inlined_call_operand.vmem [shape: bf16[8,16384], index: 0, kind: input, shape index: {}]
  %s1 = inlined_call_operand.hbm [shape: bf16[16384,512], index: 1, kind: input, shape index: {}]
  %s2 = inlined_call_operand.hbm [shape: f32[1,512], index: 2, kind: input, shape index: {}]
  %s3 = inlined_call_operand.vmem [shape: bf16[8,512], index: 3, kind: output, shape index: {}]
  %s4 = sld [smem:[#allocation0]]
  $region61: #{forward.12} parent=0
    _
  %s6 = ssub.s32 1, %s4
  %s7 = scalar_select 0, %s6, %s4
  $region1: #{forward.12} parent=0
    #allocation3 [shape = 'u8[4194304]{0}', space=vmem, size = 0x400000, scoped, tag = 'input window, operand 1']
    #allocation4 [shape = 's32[2]{0}', space=sflag, size = 0x8, scoped, tag = 'scoped memory for forward.12']
    #allocation5 [shape = 'u8[2048]{0}', space=vmem, size = 0x800, scoped, tag = 'input window, operand 2, single buffered']
    #allocation6 [shape = 's32[1]{0}', space=sflag, size = 0x4, scoped, tag = 'scoped memory for forward.12']
    %8 = vsyncpa [#allocation4], 0
    %s9 = scalar_lea.sflag [#allocation4], 1
    %10 = vsyncpa %s9, 0
    %11 = vsyncpa [#allocation6], 0
    loop: start=0, step=1, limit=10
    $region2: #{forward.12} parent=1 // loop_pre_header
      _
    $region3: #{forward.12} parent=1 // loop_header
      %s13 = sphi 0, %s17
      %p14 = scmp.ge.s32.totalorder %s13, 10
      %s20 = sphi 0, %s32
      %s21 = sphi 0, %s28
      %s22 = sphi 0, %s20
      %s23 = sphi 0, %s21
      %s24 = sphi 0, %s22
      %s25 = sphi 0, %s23
      %s35 = sphi 0, %s37
      %s38 = sphi 0, %s35
      %s39 = sphi 0, %s38
      %s55 = sphi 0, %s39
      %s63 = sphi 0, %s65
      %s66 = sphi 0, %s63
      %s67 = sphi 0, %s66
      %s83 = sphi 0, %s67
      %s89 = sphi 0, %s91
      %s92 = sphi 0, %s89
      %s93 = sphi 0, %s92
      %s109 = sphi 0, %s93
      %s115 = sphi 0, %s117
      %s118 = sphi 0, %s115
      %s119 = sphi 0, %s118
      %s135 = sphi 0, %s119
    $region4: #{forward.12} parent=1 // loop_header_branch
      %16 = sbr.rel (%p14) target = $region8
    $region5: #{forward.12} parent=1 // loop_body
      %s18 = ssub.s32 %s13, 1
      %s19 = ssub.s32 %s13, 2
      %s26 = sadd.s32 1, %s21
      %p27 = scmp.ge.s32.totalorder %s26, 8
      %s28 = scalar_select %p27, 0, %s26
      %s29 = sadd.s32 1, %s20
      %s30 = scalar_select %p27, %s29, %s20
      %p31 = scmp.ge.s32.totalorder %s30, 1
      %s32 = scalar_select %p31, 0, %s30
      %s33 = ssub.s32 %s21, %s28
      %p34 = scmp.eq.s32.totalorder %s33, 0
      %s36 = sadd.s32 %s35, 1
      %s37 = scalar_select %p34, %s35, %s36
      %p40 = pneg %p34
      %p41 = scmp.eq.s32.totalorder %s13, 7
      %p42 = por %p40, %p41
      %p43 = scmp.ne.s32.totalorder %s35, %s38
      %p44 = scmp.eq.s32.totalorder %s13, 0
      %p45 = por %p43, %p44
      %p46 = scmp.ne.s32.totalorder %s35, %s38
      %p47 = scmp.eq.s32.totalorder %s18, 7
      %p48 = por %p46, %p47
      %p49 = scmp.ne.s32.totalorder %s38, %s39
      %p50 = scmp.eq.s32.totalorder %s18, 0
      %p51 = por %p49, %p50
      %p52 = scmp.ne.s32.totalorder %s38, %s39
      %p53 = scmp.eq.s32.totalorder %s19, 7
      %p54 = por %p52, %p53
      %p56 = scmp.ne.s32.totalorder %s39, %s55
      %p57 = scmp.eq.s32.totalorder %s19, 0
      %p58 = por %p56, %p57
      %s59 = ssub.s32 %s21, %s28
      %s60 = ssub.s32 %s20, %s32
      %s61 = sor.u32 %s59, %s60
      %p62 = scmp.eq.s32.totalorder %s61, 0
      %s64 = sadd.s32 %s63, 1
      %s65 = scalar_select %p62, %s63, %s64
      %p68 = pneg %p62
      %p69 = scmp.eq.s32.totalorder %s13, 7
      %p70 = por %p68, %p69
      %p71 = scmp.ne.s32.totalorder %s63, %s66
      %p72 = scmp.eq.s32.totalorder %s13, 0
      %p73 = por %p71, %p72
      %p74 = scmp.ne.s32.totalorder %s63, %s66
      %p75 = scmp.eq.s32.totalorder %s18, 7
      %p76 = por %p74, %p75
      %p77 = scmp.ne.s32.totalorder %s66, %s67
      %p78 = scmp.eq.s32.totalorder %s18, 0
      %p79 = por %p77, %p78
      %p80 = scmp.ne.s32.totalorder %s66, %s67
      %p81 = scmp.eq.s32.totalorder %s19, 7
      %p82 = por %p80, %p81
      %p84 = scmp.ne.s32.totalorder %s67, %s83
      %p85 = scmp.eq.s32.totalorder %s19, 0
      %p86 = por %p84, %p85
      %s87 = ssub.s32 %s20, %s32
      %p88 = scmp.eq.s32.totalorder %s87, 0
      %s90 = sadd.s32 %s89, 1
      %s91 = scalar_select %p88, %s89, %s90
      %p94 = pneg %p88
      %p95 = scmp.eq.s32.totalorder %s13, 7
      %p96 = por %p94, %p95
      %p97 = scmp.ne.s32.totalorder %s89, %s92
      %p98 = scmp.eq.s32.totalorder %s13, 0
      %p99 = por %p97, %p98
      %p100 = scmp.ne.s32.totalorder %s89, %s92
      %p101 = scmp.eq.s32.totalorder %s18, 7
      %p102 = por %p100, %p101
      %p103 = scmp.ne.s32.totalorder %s92, %s93
      %p104 = scmp.eq.s32.totalorder %s18, 0
      %p105 = por %p103, %p104
      %p106 = scmp.ne.s32.totalorder %s92, %s93
      %p107 = scmp.eq.s32.totalorder %s19, 7
      %p108 = por %p106, %p107
      %p110 = scmp.ne.s32.totalorder %s93, %s109
      %p111 = scmp.eq.s32.totalorder %s19, 0
      %p112 = por %p110, %p111
      %s113 = ssub.s32 %s20, %s32
      %p114 = scmp.eq.s32.totalorder %s113, 0
      %s116 = sadd.s32 %s115, 1
      %s117 = scalar_select %p114, %s115, %s116
      %p120 = pneg %p114
      %p121 = scmp.eq.s32.totalorder %s13, 7
      %p122 = por %p120, %p121
      %p123 = scmp.ne.s32.totalorder %s115, %s118
      %p124 = scmp.eq.s32.totalorder %s13, 0
      %p125 = por %p123, %p124
      %p126 = scmp.ne.s32.totalorder %s115, %s118
      %p127 = scmp.eq.s32.totalorder %s18, 7
      %p128 = por %p126, %p127
      %p129 = scmp.ne.s32.totalorder %s118, %s119
      %p130 = scmp.eq.s32.totalorder %s18, 0
      %p131 = por %p129, %p130
      %p132 = scmp.ne.s32.totalorder %s118, %s119
      %p133 = scmp.eq.s32.totalorder %s19, 7
      %p134 = por %p132, %p133
      %p136 = scmp.ne.s32.totalorder %s119, %s135
      %p137 = scmp.eq.s32.totalorder %s19, 0
      %p138 = por %p136, %p137
      %p139 = scmp.le.s32.totalorder 1, %s13
      %p140 = scmp.lt.s32.totalorder %s13, 9
      %p141 = pnand %p139, %p140
      %p142 = pneg %p141
      // Predicated region
      $region9: #{forward.12} parent=5 // pred_check
        _
      $region10: #{forward.12} parent=5 // pred_check_branch
        %144 = sbr.rel (%p141) target = $region12
      $region11: #{forward.12} parent=5 // pred_region
        %s145 = ssub.s32 %s13, 1
        // Predicated region
        $region13: #{forward.12} parent=11 // pred_check
          %p146 = pneg %p105
        $region14: #{forward.12} parent=11 // pred_check_branch
          %148 = sbr.rel (%p146) target = $region16
        $region15: #{forward.12} parent=11 // pred_region
          %s149 = smul.u32 4, %s22
          %151 = vsyncadd [#allocation6], 0
          %s152 = scalar_lea.hbm %s2, %s149
          %s154 = sshll.u32 %s152, 4
          %s155 = int_to_ptr.hbm [resolvable:$true] %s154
          %s156 = sshll.u32 [#allocation5], 4
          %s157 = int_to_ptr.vmem [resolvable:$true] %s156
          %159 = dma.hbm_to_vmem [thread:$0]  %s155, 64, %s157, [#allocation6]
        $region16: #{forward.12} parent=11 // pred_fallthru
          _
      $region12: #{forward.12} parent=5 // pred_fallthru
        _
      %p160 = scmp.lt.s32.totalorder %s13, 8
      // Predicated region
      $region17: #{forward.12} parent=5 // pred_check
        %p161 = pneg %p160
      $region18: #{forward.12} parent=5 // pred_check_branch
        %163 = sbr.rel (%p161) target = $region20
      $region19: #{forward.12} parent=5 // pred_region
        // Predicated region
        $region21: #{forward.12} parent=19 // pred_check
          %p164 = pneg %p45
        $region22: #{forward.12} parent=19 // pred_check_branch
          %166 = sbr.rel (%p164) target = $region24
        $region23: #{forward.12} parent=19 // pred_region
          %s167 = smul.u32 16, %s21
          %p168 = scmp.lt.s32.totalorder %s167, 127
          %s169 = scalar_select %p168, %s167, 127
          %s170 = smul.addr %s169, 4
          %s171 = scalar_lea.vmem %s0, %s170
          %s172 = smul.u32 16, %s21
        $region24: #{forward.12} parent=19 // pred_fallthru
          _
        // Predicated region
        $region25: #{forward.12} parent=19 // pred_check
          %p173 = pneg %p73
        $region26: #{forward.12} parent=19 // pred_check_branch
          %175 = sbr.rel (%p173) target = $region28
        $region27: #{forward.12} parent=19 // pred_region
          %s176 = sand.u32 %s63, 1
          %s177 = scalar_lea.sflag [#allocation4], %s176
          %s178 = sand.u32 %s63, 1
          %s179 = smul.addr %s178, 4096
          %s180 = scalar_lea.vmem [#allocation3], %s179
          %s181 = smul.u32 256, %s21
          %s182 = smul.u32 4, %s20
          %184 = vsyncadd %s177, 0
          %s185 = smul.addr %s181, 4
          %s186 = sadd.s32 %s182, %s185
          %s187 = smul.addr %s186, 4
          %s188 = scalar_lea.hbm %s1, %s187
          %s189 = sshll.u32 %s188, 4
          %s190 = int_to_ptr.hbm [resolvable:$true] %s189
          %s191 = sshll.u32 %s180, 4
          %s192 = int_to_ptr.vmem [resolvable:$true] %s191
          %197 = dma.hbm_to_vmem [thread:$0]  %s190, 65536, %s192, %s177, 256, 256, 16
        $region28: #{forward.12} parent=19 // pred_fallthru
          _
      $region20: #{forward.12} parent=5 // pred_fallthru
        _
      %p198 = scmp.le.s32.totalorder 1, %s13
      %p199 = scmp.lt.s32.totalorder %s13, 9
      %p200 = pnand %p198, %p199
      %p201 = pneg %p200
      // Predicated region
      $region29: #{forward.12} parent=5 // pred_check
        _
      $region30: #{forward.12} parent=5 // pred_check_branch
        %203 = sbr.rel (%p200) target = $region32
      $region31: #{forward.12} parent=5 // pred_region
        %s204 = ssub.s32 %s13, 1
        %s205 = sand.u32 %s66, 1
        %s206 = scalar_lea.sflag [#allocation4], %s205
        %s207 = sand.u32 %s66, 1
        %s208 = smul.addr %s207, 4096
        %s209 = scalar_lea.vmem [#allocation3], %s208
        // Predicated region
        $region33: #{forward.12} parent=31 // pred_check
          %p210 = pneg %p79
        $region34: #{forward.12} parent=31 // pred_check_branch
          %212 = sbr.rel (%p210) target = $region36
        $region35: #{forward.12} parent=31 // pred_region
          %214 = dma.done %s206, 65536
        $region36: #{forward.12} parent=31 // pred_fallthru
          _
        // Predicated region
        $region37: #{forward.12} parent=31 // pred_check
          %p215 = pneg %p105
        $region38: #{forward.12} parent=31 // pred_check_branch
          %217 = sbr.rel (%p215) target = $region40
        $region39: #{forward.12} parent=31 // pred_region
          %219 = dma.done [#allocation6], 64
        $region40: #{forward.12} parent=31 // pred_fallthru
          _
        %s220 = smul.u32 16, %s23
        %p221 = scmp.lt.s32.totalorder %s220, 127
        %s222 = scalar_select %p221, %s220, 127
        %s223 = smul.addr %s222, 4
        %s224 = scalar_lea.vmem %s0, %s223
        %p225 = pneg %p51
        %p226 = pneg %p48
        %s227 = sand.u32 %s66, 1
        %s228 = scalar_lea.sflag [#allocation4], %s227
        %s229 = sand.u32 %s66, 1
        %s230 = smul.addr %s229, 4096
        %s231 = scalar_lea.vmem [#allocation3], %s230
        %p232 = pneg %p79
        %p233 = pneg %p76
        %p234 = pneg %p105
        %p235 = pneg %p102
        %p236 = pneg %p131
        %p237 = pneg %p128
        %s238 = smul.u32 4, %s22
        %p239 = scmp.lt.s32.totalorder %s238, 3
        %s240 = scalar_select %p239, %s238, 3
        %s241 = smul.addr %s240, 4
        %s242 = scalar_lea.vmem %s3, %s241
        %s243 = smul.u32 16, %s23
        %p244 = scmp.lt.s32.totalorder %s243, 127
        %s245 = scalar_select %p244, %s243, 127
        %s246 = smul.addr %s245, 4
        %s247 = scalar_lea.vmem %s0, %s246
        %s248 = smul.u32 16, %s23
        %s249 = smul.u32 256, %s23
        %s250 = smul.u32 4, %s22
        %s251 = smul.u32 4, %s22
        %s252 = smul.u32 4, %s22
        %p253 = scmp.lt.s32.totalorder %s252, 3
        %s254 = scalar_select %p253, %s252, 3
        %s255 = smul.addr %s254, 4
        %s256 = scalar_lea.vmem %s3, %s255
        %s257 = smul.u32 4, %s22
        %p258 = scmp.eq.s32.totalorder %s23, 0
        // Predicated region
        $region41: #{forward.12} parent=31 // pred_check
          %p259 = pneg %p258
        $region42: #{forward.12} parent=31 // pred_check_branch
          %261 = sbr.rel (%p259) target = $region44
        $region43: #{forward.12} parent=31 // pred_region
          %262 = vst [vmem:[#allocation2] sm:$0xff] 0.0
          %263 = vst [vmem:[#allocation2 + $0x8] sm:$0xff] 0.0
          %264 = vst [vmem:[#allocation2 + $0x10] sm:$0xff] 0.0
          %265 = vst [vmem:[#allocation2 + $0x18] sm:$0xff] 0.0
        $region44: #{forward.12} parent=31 // pred_fallthru
          _
        %v266 = vld [vmem:[#allocation2] sm:$0xff]
        %v267 = vld [vmem:[#allocation2 + $0x8] sm:$0xff]
        %v268 = vld [vmem:[#allocation2 + $0x10] sm:$0xff]
        %v269 = vld [vmem:[#allocation2 + $0x18] sm:$0xff]
        %v270 = vld [vmem:[%s247] sm:$0xff]
        %v271 = vld [vmem:[%s247 + $0x8] sm:$0xff]
        %v272 = vld [vmem:[%s247 + $0x10] sm:$0xff]
        %v273 = vld [vmem:[%s247 + $0x18] sm:$0xff]
        %v274 = vld [vmem:[%s247 + $0x20] sm:$0xff]
        %v275 = vld [vmem:[%s247 + $0x28] sm:$0xff]
        %v276 = vld [vmem:[%s247 + $0x30] sm:$0xff]
        %v277 = vld [vmem:[%s247 + $0x38] sm:$0xff]
        %v278 = vld [vmem:[%s209] sm:$0xff]
        %v279 = vld [vmem:[%s209 + $0x8] sm:$0xff]
        %v280 = vld [vmem:[%s209 + $0x10] sm:$0xff]
        %v281 = vld [vmem:[%s209 + $0x18] sm:$0xff]
        %v282 = vld [vmem:[%s209 + $0x20] sm:$0xff]
        %v283 = vld [vmem:[%s209 + $0x28] sm:$0xff]
        %v284 = vld [vmem:[%s209 + $0x30] sm:$0xff]
        %v285 = vld [vmem:[%s209 + $0x38] sm:$0xff]
        %v286 = vld [vmem:[%s209 + $0x40] sm:$0xff]
        %v287 = vld [vmem:[%s209 + $0x48] sm:$0xff]
        %v288 = vld [vmem:[%s209 + $0x50] sm:$0xff]
        %v289 = vld [vmem:[%s209 + $0x58] sm:$0xff]
        %v290 = vld [vmem:[%s209 + $0x60] sm:$0xff]
        %v291 = vld [vmem:[%s209 + $0x68] sm:$0xff]
        %v292 = vld [vmem:[%s209 + $0x70] sm:$0xff]
        %v293 = vld [vmem:[%s209 + $0x78] sm:$0xff]
        %v294 = vld [vmem:[%s209 + $0x80] sm:$0xff]
        %v295 = vld [vmem:[%s209 + $0x88] sm:$0xff]
        %v296 = vld [vmem:[%s209 + $0x90] sm:$0xff]
        %v297 = vld [vmem:[%s209 + $0x98] sm:$0xff]
        %v298 = vld [vmem:[%s209 + $0xa0] sm:$0xff]
        %v299 = vld [vmem:[%s209 + $0xa8] sm:$0xff]
        %v300 = vld [vmem:[%s209 + $0xb0] sm:$0xff]
        %v301 = vld [vmem:[%s209 + $0xb8] sm:$0xff]
        %v302 = vld [vmem:[%s209 + $0xc0] sm:$0xff]
        %v303 = vld [vmem:[%s209 + $0xc8] sm:$0xff]
        %v304 = vld [vmem:[%s209 + $0xd0] sm:$0xff]
        %v305 = vld [vmem:[%s209 + $0xd8] sm:$0xff]
        %v306 = vld [vmem:[%s209 + $0xe0] sm:$0xff]
        %v307 = vld [vmem:[%s209 + $0xe8] sm:$0xff]
        %v308 = vld [vmem:[%s209 + $0xf0] sm:$0xff]
        %v309 = vld [vmem:[%s209 + $0xf8] sm:$0xff]
        %v310 = vld [vmem:[%s209 + $0x100] sm:$0xff]
        %v311 = vld [vmem:[%s209 + $0x108] sm:$0xff]
        %v312 = vld [vmem:[%s209 + $0x110] sm:$0xff]
        %v313 = vld [vmem:[%s209 + $0x118] sm:$0xff]
        %v314 = vld [vmem:[%s209 + $0x120] sm:$0xff]
        %v315 = vld [vmem:[%s209 + $0x128] sm:$0xff]
        %v316 = vld [vmem:[%s209 + $0x130] sm:$0xff]
        %v317 = vld [vmem:[%s209 + $0x138] sm:$0xff]
        %v318 = vld [vmem:[%s209 + $0x140] sm:$0xff]
        %v319 = vld [vmem:[%s209 + $0x148] sm:$0xff]
        %v320 = vld [vmem:[%s209 + $0x150] sm:$0xff]
        %v321 = vld [vmem:[%s209 + $0x158] sm:$0xff]
        %v322 = vld [vmem:[%s209 + $0x160] sm:$0xff]
        %v323 = vld [vmem:[%s209 + $0x168] sm:$0xff]
        %v324 = vld [vmem:[%s209 + $0x170] sm:$0xff]
        %v325 = vld [vmem:[%s209 + $0x178] sm:$0xff]
        %v326 = vld [vmem:[%s209 + $0x180] sm:$0xff]
        %v327 = vld [vmem:[%s209 + $0x188] sm:$0xff]
        %v328 = vld [vmem:[%s209 + $0x190] sm:$0xff]
        %v329 = vld [vmem:[%s209 + $0x198] sm:$0xff]
        %v330 = vld [vmem:[%s209 + $0x1a0] sm:$0xff]
        %v331 = vld [vmem:[%s209 + $0x1a8] sm:$0xff]
        %v332 = vld [vmem:[%s209 + $0x1b0] sm:$0xff]
        %v333 = vld [vmem:[%s209 + $0x1b8] sm:$0xff]
        %v334 = vld [vmem:[%s209 + $0x1c0] sm:$0xff]
        %v335 = vld [vmem:[%s209 + $0x1c8] sm:$0xff]
        %v336 = vld [vmem:[%s209 + $0x1d0] sm:$0xff]
        %v337 = vld [vmem:[%s209 + $0x1d8] sm:$0xff]
        %v338 = vld [vmem:[%s209 + $0x1e0] sm:$0xff]
        %v339 = vld [vmem:[%s209 + $0x1e8] sm:$0xff]
        %v340 = vld [vmem:[%s209 + $0x1f0] sm:$0xff]
        %v341 = vld [vmem:[%s209 + $0x1f8] sm:$0xff]
        %v342 = vld [vmem:[%s209 + $0x200] sm:$0xff]
        %v343 = vld [vmem:[%s209 + $0x208] sm:$0xff]
        %v344 = vld [vmem:[%s209 + $0x210] sm:$0xff]
        %v345 = vld [vmem:[%s209 + $0x218] sm:$0xff]
        %v346 = vld [vmem:[%s209 + $0x220] sm:$0xff]
        %v347 = vld [vmem:[%s209 + $0x228] sm:$0xff]
        %v348 = vld [vmem:[%s209 + $0x230] sm:$0xff]
        %v349 = vld [vmem:[%s209 + $0x238] sm:$0xff]
        %v350 = vld [vmem:[%s209 + $0x240] sm:$0xff]
        %v351 = vld [vmem:[%s209 + $0x248] sm:$0xff]
        %v352 = vld [vmem:[%s209 + $0x250] sm:$0xff]
        %v353 = vld [vmem:[%s209 + $0x258] sm:$0xff]
        %v354 = vld [vmem:[%s209 + $0x260] sm:$0xff]
        %v355 = vld [vmem:[%s209 + $0x268] sm:$0xff]
        %v356 = vld [vmem:[%s209 + $0x270] sm:$0xff]
        %v357 = vld [vmem:[%s209 + $0x278] sm:$0xff]
        %v358 = vld [vmem:[%s209 + $0x280] sm:$0xff]
        %v359 = vld [vmem:[%s209 + $0x288] sm:$0xff]
        %v360 = vld [vmem:[%s209 + $0x290] sm:$0xff]
        %v361 = vld [vmem:[%s209 + $0x298] sm:$0xff]
        %v362 = vld [vmem:[%s209 + $0x2a0] sm:$0xff]
        %v363 = vld [vmem:[%s209 + $0x2a8] sm:$0xff]
        %v364 = vld [vmem:[%s209 + $0x2b0] sm:$0xff]
        %v365 = vld [vmem:[%s209 + $0x2b8] sm:$0xff]
        %v366 = vld [vmem:[%s209 + $0x2c0] sm:$0xff]
        %v367 = vld [vmem:[%s209 + $0x2c8] sm:$0xff]
        %v368 = vld [vmem:[%s209 + $0x2d0] sm:$0xff]
        %v369 = vld [vmem:[%s209 + $0x2d8] sm:$0xff]
        %v370 = vld [vmem:[%s209 + $0x2e0] sm:$0xff]
        %v371 = vld [vmem:[%s209 + $0x2e8] sm:$0xff]
        %v372 = vld [vmem:[%s209 + $0x2f0] sm:$0xff]
        %v373 = vld [vmem:[%s209 + $0x2f8] sm:$0xff]
        %v374 = vld [vmem:[%s209 + $0x300] sm:$0xff]
        %v375 = vld [vmem:[%s209 + $0x308] sm:$0xff]
        %v376 = vld [vmem:[%s209 + $0x310] sm:$0xff]
        %v377 = vld [vmem:[%s209 + $0x318] sm:$0xff]
        %v378 = vld [vmem:[%s209 + $0x320] sm:$0xff]
        %v379 = vld [vmem:[%s209 + $0x328] sm:$0xff]
        %v380 = vld [vmem:[%s209 + $0x330] sm:$0xff]
        %v381 = vld [vmem:[%s209 + $0x338] sm:$0xff]
        %v382 = vld [vmem:[%s209 + $0x340] sm:$0xff]
        %v383 = vld [vmem:[%s209 + $0x348] sm:$0xff]
        %v384 = vld [vmem:[%s209 + $0x350] sm:$0xff]
        %v385 = vld [vmem:[%s209 + $0x358] sm:$0xff]
        %v386 = vld [vmem:[%s209 + $0x360] sm:$0xff]
        %v387 = vld [vmem:[%s209 + $0x368] sm:$0xff]
        %v388 = vld [vmem:[%s209 + $0x370] sm:$0xff]
        %v389 = vld [vmem:[%s209 + $0x378] sm:$0xff]
        %v390 = vld [vmem:[%s209 + $0x380] sm:$0xff]
        %v391 = vld [vmem:[%s209 + $0x388] sm:$0xff]
        %v392 = vld [vmem:[%s209 + $0x390] sm:$0xff]
        %v393 = vld [vmem:[%s209 + $0x398] sm:$0xff]
        %v394 = vld [vmem:[%s209 + $0x3a0] sm:$0xff]
        %v395 = vld [vmem:[%s209 + $0x3a8] sm:$0xff]
        %v396 = vld [vmem:[%s209 + $0x3b0] sm:$0xff]
        %v397 = vld [vmem:[%s209 + $0x3b8] sm:$0xff]
        %v398 = vld [vmem:[%s209 + $0x3c0] sm:$0xff]
        %v399 = vld [vmem:[%s209 + $0x3c8] sm:$0xff]
        %v400 = vld [vmem:[%s209 + $0x3d0] sm:$0xff]
        %v401 = vld [vmem:[%s209 + $0x3d8] sm:$0xff]
        %v402 = vld [vmem:[%s209 + $0x3e0] sm:$0xff]
        %v403 = vld [vmem:[%s209 + $0x3e8] sm:$0xff]
        %v404 = vld [vmem:[%s209 + $0x3f0] sm:$0xff]
        %v405 = vld [vmem:[%s209 + $0x3f8] sm:$0xff]
        %v406 = vld [vmem:[%s209 + $0x400] sm:$0xff]
        %v407 = vld [vmem:[%s209 + $0x408] sm:$0xff]
        %v408 = vld [vmem:[%s209 + $0x410] sm:$0xff]
        %v409 = vld [vmem:[%s209 + $0x418] sm:$0xff]
        %v410 = vld [vmem:[%s209 + $0x420] sm:$0xff]
        %v411 = vld [vmem:[%s209 + $0x428] sm:$0xff]
        %v412 = vld [vmem:[%s209 + $0x430] sm:$0xff]
        %v413 = vld [vmem:[%s209 + $0x438] sm:$0xff]
        %v414 = vld [vmem:[%s209 + $0x440] sm:$0xff]
        %v415 = vld [vmem:[%s209 + $0x448] sm:$0xff]
        %v416 = vld [vmem:[%s209 + $0x450] sm:$0xff]
        %v417 = vld [vmem:[%s209 + $0x458] sm:$0xff]
        %v418 = vld [vmem:[%s209 + $0x460] sm:$0xff]
        %v419 = vld [vmem:[%s209 + $0x468] sm:$0xff]
        %v420 = vld [vmem:[%s209 + $0x470] sm:$0xff]
        %v421 = vld [vmem:[%s209 + $0x478] sm:$0xff]
        %v422 = vld [vmem:[%s209 + $0x480] sm:$0xff]
        %v423 = vld [vmem:[%s209 + $0x488] sm:$0xff]
        %v424 = vld [vmem:[%s209 + $0x490] sm:$0xff]
        %v425 = vld [vmem:[%s209 + $0x498] sm:$0xff]
        %v426 = vld [vmem:[%s209 + $0x4a0] sm:$0xff]
        %v427 = vld [vmem:[%s209 + $0x4a8] sm:$0xff]
        %v428 = vld [vmem:[%s209 + $0x4b0] sm:$0xff]
        %v429 = vld [vmem:[%s209 + $0x4b8] sm:$0xff]
        %v430 = vld [vmem:[%s209 + $0x4c0] sm:$0xff]
        %v431 = vld [vmem:[%s209 + $0x4c8] sm:$0xff]
        %v432 = vld [vmem:[%s209 + $0x4d0] sm:$0xff]
        %v433 = vld [vmem:[%s209 + $0x4d8] sm:$0xff]
        %v434 = vld [vmem:[%s209 + $0x4e0] sm:$0xff]
        %v435 = vld [vmem:[%s209 + $0x4e8] sm:$0xff]
        %v436 = vld [vmem:[%s209 + $0x4f0] sm:$0xff]
        %v437 = vld [vmem:[%s209 + $0x4f8] sm:$0xff]
        %v438 = vld [vmem:[%s209 + $0x500] sm:$0xff]
        %v439 = vld [vmem:[%s209 + $0x508] sm:$0xff]
        %v440 = vld [vmem:[%s209 + $0x510] sm:$0xff]
        %v441 = vld [vmem:[%s209 + $0x518] sm:$0xff]
        %v442 = vld [vmem:[%s209 + $0x520] sm:$0xff]
        %v443 = vld [vmem:[%s209 + $0x528] sm:$0xff]
        %v444 = vld [vmem:[%s209 + $0x530] sm:$0xff]
        %v445 = vld [vmem:[%s209 + $0x538] sm:$0xff]
        %v446 = vld [vmem:[%s209 + $0x540] sm:$0xff]
        %v447 = vld [vmem:[%s209 + $0x548] sm:$0xff]
        %v448 = vld [vmem:[%s209 + $0x550] sm:$0xff]
        %v449 = vld [vmem:[%s209 + $0x558] sm:$0xff]
        %v450 = vld [vmem:[%s209 + $0x560] sm:$0xff]
        %v451 = vld [vmem:[%s209 + $0x568] sm:$0xff]
        %v452 = vld [vmem:[%s209 + $0x570] sm:$0xff]
        %v453 = vld [vmem:[%s209 + $0x578] sm:$0xff]
        %v454 = vld [vmem:[%s209 + $0x580] sm:$0xff]
        %v455 = vld [vmem:[%s209 + $0x588] sm:$0xff]
        %v456 = vld [vmem:[%s209 + $0x590] sm:$0xff]
        %v457 = vld [vmem:[%s209 + $0x598] sm:$0xff]
        %v458 = vld [vmem:[%s209 + $0x5a0] sm:$0xff]
        %v459 = vld [vmem:[%s209 + $0x5a8] sm:$0xff]
        %v460 = vld [vmem:[%s209 + $0x5b0] sm:$0xff]
        %v461 = vld [vmem:[%s209 + $0x5b8] sm:$0xff]
        %v462 = vld [vmem:[%s209 + $0x5c0] sm:$0xff]
        %v463 = vld [vmem:[%s209 + $0x5c8] sm:$0xff]
        %v464 = vld [vmem:[%s209 + $0x5d0] sm:$0xff]
        %v465 = vld [vmem:[%s209 + $0x5d8] sm:$0xff]
        %v466 = vld [vmem:[%s209 + $0x5e0] sm:$0xff]
        %v467 = vld [vmem:[%s209 + $0x5e8] sm:$0xff]
        %v468 = vld [vmem:[%s209 + $0x5f0] sm:$0xff]
        %v469 = vld [vmem:[%s209 + $0x5f8] sm:$0xff]
        %v470 = vld [vmem:[%s209 + $0x600] sm:$0xff]
        %v471 = vld [vmem:[%s209 + $0x608] sm:$0xff]
        %v472 = vld [vmem:[%s209 + $0x610] sm:$0xff]
        %v473 = vld [vmem:[%s209 + $0x618] sm:$0xff]
        %v474 = vld [vmem:[%s209 + $0x620] sm:$0xff]
        %v475 = vld [vmem:[%s209 + $0x628] sm:$0xff]
        %v476 = vld [vmem:[%s209 + $0x630] sm:$0xff]
        %v477 = vld [vmem:[%s209 + $0x638] sm:$0xff]
        %v478 = vld [vmem:[%s209 + $0x640] sm:$0xff]
        %v479 = vld [vmem:[%s209 + $0x648] sm:$0xff]
        %v480 = vld [vmem:[%s209 + $0x650] sm:$0xff]
        %v481 = vld [vmem:[%s209 + $0x658] sm:$0xff]
        %v482 = vld [vmem:[%s209 + $0x660] sm:$0xff]
        %v483 = vld [vmem:[%s209 + $0x668] sm:$0xff]
        %v484 = vld [vmem:[%s209 + $0x670] sm:$0xff]
        %v485 = vld [vmem:[%s209 + $0x678] sm:$0xff]
        %v486 = vld [vmem:[%s209 + $0x680] sm:$0xff]
        %v487 = vld [vmem:[%s209 + $0x688] sm:$0xff]
        %v488 = vld [vmem:[%s209 + $0x690] sm:$0xff]
        %v489 = vld [vmem:[%s209 + $0x698] sm:$0xff]
        %v490 = vld [vmem:[%s209 + $0x6a0] sm:$0xff]
        %v491 = vld [vmem:[%s209 + $0x6a8] sm:$0xff]
        %v492 = vld [vmem:[%s209 + $0x6b0] sm:$0xff]
        %v493 = vld [vmem:[%s209 + $0x6b8] sm:$0xff]
        %v494 = vld [vmem:[%s209 + $0x6c0] sm:$0xff]
        %v495 = vld [vmem:[%s209 + $0x6c8] sm:$0xff]
        %v496 = vld [vmem:[%s209 + $0x6d0] sm:$0xff]
        %v497 = vld [vmem:[%s209 + $0x6d8] sm:$0xff]
        %v498 = vld [vmem:[%s209 + $0x6e0] sm:$0xff]
        %v499 = vld [vmem:[%s209 + $0x6e8] sm:$0xff]
        %v500 = vld [vmem:[%s209 + $0x6f0] sm:$0xff]
        %v501 = vld [vmem:[%s209 + $0x6f8] sm:$0xff]
        %v502 = vld [vmem:[%s209 + $0x700] sm:$0xff]
        %v503 = vld [vmem:[%s209 + $0x708] sm:$0xff]
        %v504 = vld [vmem:[%s209 + $0x710] sm:$0xff]
        %v505 = vld [vmem:[%s209 + $0x718] sm:$0xff]
        %v506 = vld [vmem:[%s209 + $0x720] sm:$0xff]
        %v507 = vld [vmem:[%s209 + $0x728] sm:$0xff]
        %v508 = vld [vmem:[%s209 + $0x730] sm:$0xff]
        %v509 = vld [vmem:[%s209 + $0x738] sm:$0xff]
        %v510 = vld [vmem:[%s209 + $0x740] sm:$0xff]
        %v511 = vld [vmem:[%s209 + $0x748] sm:$0xff]
        %v512 = vld [vmem:[%s209 + $0x750] sm:$0xff]
        %v513 = vld [vmem:[%s209 + $0x758] sm:$0xff]
        %v514 = vld [vmem:[%s209 + $0x760] sm:$0xff]
        %v515 = vld [vmem:[%s209 + $0x768] sm:$0xff]
        %v516 = vld [vmem:[%s209 + $0x770] sm:$0xff]
        %v517 = vld [vmem:[%s209 + $0x778] sm:$0xff]
        %v518 = vld [vmem:[%s209 + $0x780] sm:$0xff]
        %v519 = vld [vmem:[%s209 + $0x788] sm:$0xff]
        %v520 = vld [vmem:[%s209 + $0x790] sm:$0xff]
        %v521 = vld [vmem:[%s209 + $0x798] sm:$0xff]
        %v522 = vld [vmem:[%s209 + $0x7a0] sm:$0xff]
        %v523 = vld [vmem:[%s209 + $0x7a8] sm:$0xff]
        %v524 = vld [vmem:[%s209 + $0x7b0] sm:$0xff]
        %v525 = vld [vmem:[%s209 + $0x7b8] sm:$0xff]
        %v526 = vld [vmem:[%s209 + $0x7c0] sm:$0xff]
        %v527 = vld [vmem:[%s209 + $0x7c8] sm:$0xff]
        %v528 = vld [vmem:[%s209 + $0x7d0] sm:$0xff]
        %v529 = vld [vmem:[%s209 + $0x7d8] sm:$0xff]
        %v530 = vld [vmem:[%s209 + $0x7e0] sm:$0xff]
        %v531 = vld [vmem:[%s209 + $0x7e8] sm:$0xff]
        %v532 = vld [vmem:[%s209 + $0x7f0] sm:$0xff]
        %v533 = vld [vmem:[%s209 + $0x7f8] sm:$0xff]
        %v534 = vld [vmem:[%s209 + $0x800] sm:$0xff]
        %v535 = vld [vmem:[%s209 + $0x808] sm:$0xff]
        %v536 = vld [vmem:[%s209 + $0x810] sm:$0xff]
        %v537 = vld [vmem:[%s209 + $0x818] sm:$0xff]
        %v538 = vld [vmem:[%s209 + $0x820] sm:$0xff]
        %v539 = vld [vmem:[%s209 + $0x828] sm:$0xff]
        %v540 = vld [vmem:[%s209 + $0x830] sm:$0xff]
        %v541 = vld [vmem:[%s209 + $0x838] sm:$0xff]
        %v542 = vld [vmem:[%s209 + $0x840] sm:$0xff]
        %v543 = vld [vmem:[%s209 + $0x848] sm:$0xff]
        %v544 = vld [vmem:[%s209 + $0x850] sm:$0xff]
        %v545 = vld [vmem:[%s209 + $0x858] sm:$0xff]
        %v546 = vld [vmem:[%s209 + $0x860] sm:$0xff]
        %v547 = vld [vmem:[%s209 + $0x868] sm:$0xff]
        %v548 = vld [vmem:[%s209 + $0x870] sm:$0xff]
        %v549 = vld [vmem:[%s209 + $0x878] sm:$0xff]
        %v550 = vld [vmem:[%s209 + $0x880] sm:$0xff]
        %v551 = vld [vmem:[%s209 + $0x888] sm:$0xff]
        %v552 = vld [vmem:[%s209 + $0x890] sm:$0xff]
        %v553 = vld [vmem:[%s209 + $0x898] sm:$0xff]
        %v554 = vld [vmem:[%s209 + $0x8a0] sm:$0xff]
        %v555 = vld [vmem:[%s209 + $0x8a8] sm:$0xff]
        %v556 = vld [vmem:[%s209 + $0x8b0] sm:$0xff]
        %v557 = vld [vmem:[%s209 + $0x8b8] sm:$0xff]
        %v558 = vld [vmem:[%s209 + $0x8c0] sm:$0xff]
        %v559 = vld [vmem:[%s209 + $0x8c8] sm:$0xff]
        %v560 = vld [vmem:[%s209 + $0x8d0] sm:$0xff]
        %v561 = vld [vmem:[%s209 + $0x8d8] sm:$0xff]
        %v562 = vld [vmem:[%s209 + $0x8e0] sm:$0xff]
        %v563 = vld [vmem:[%s209 + $0x8e8] sm:$0xff]
        %v564 = vld [vmem:[%s209 + $0x8f0] sm:$0xff]
        %v565 = vld [vmem:[%s209 + $0x8f8] sm:$0xff]
        %v566 = vld [vmem:[%s209 + $0x900] sm:$0xff]
        %v567 = vld [vmem:[%s209 + $0x908] sm:$0xff]
        %v568 = vld [vmem:[%s209 + $0x910] sm:$0xff]
        %v569 = vld [vmem:[%s209 + $0x918] sm:$0xff]
        %v570 = vld [vmem:[%s209 + $0x920] sm:$0xff]
        %v571 = vld [vmem:[%s209 + $0x928] sm:$0xff]
        %v572 = vld [vmem:[%s209 + $0x930] sm:$0xff]
        %v573 = vld [vmem:[%s209 + $0x938] sm:$0xff]
        %v574 = vld [vmem:[%s209 + $0x940] sm:$0xff]
        %v575 = vld [vmem:[%s209 + $0x948] sm:$0xff]
        %v576 = vld [vmem:[%s209 + $0x950] sm:$0xff]
        %v577 = vld [vmem:[%s209 + $0x958] sm:$0xff]
        %v578 = vld [vmem:[%s209 + $0x960] sm:$0xff]
        %v579 = vld [vmem:[%s209 + $0x968] sm:$0xff]
        %v580 = vld [vmem:[%s209 + $0x970] sm:$0xff]
        %v581 = vld [vmem:[%s209 + $0x978] sm:$0xff]
        %v582 = vld [vmem:[%s209 + $0x980] sm:$0xff]
        %v583 = vld [vmem:[%s209 + $0x988] sm:$0xff]
        %v584 = vld [vmem:[%s209 + $0x990] sm:$0xff]
        %v585 = vld [vmem:[%s209 + $0x998] sm:$0xff]
        %v586 = vld [vmem:[%s209 + $0x9a0] sm:$0xff]
        %v587 = vld [vmem:[%s209 + $0x9a8] sm:$0xff]
        %v588 = vld [vmem:[%s209 + $0x9b0] sm:$0xff]
        %v589 = vld [vmem:[%s209 + $0x9b8] sm:$0xff]
        %v590 = vld [vmem:[%s209 + $0x9c0] sm:$0xff]
        %v591 = vld [vmem:[%s209 + $0x9c8] sm:$0xff]
        %v592 = vld [vmem:[%s209 + $0x9d0] sm:$0xff]
        %v593 = vld [vmem:[%s209 + $0x9d8] sm:$0xff]
        %v594 = vld [vmem:[%s209 + $0x9e0] sm:$0xff]
        %v595 = vld [vmem:[%s209 + $0x9e8] sm:$0xff]
        %v596 = vld [vmem:[%s209 + $0x9f0] sm:$0xff]
        %v597 = vld [vmem:[%s209 + $0x9f8] sm:$0xff]
        %v598 = vld [vmem:[%s209 + $0xa00] sm:$0xff]
        %v599 = vld [vmem:[%s209 + $0xa08] sm:$0xff]
        %v600 = vld [vmem:[%s209 + $0xa10] sm:$0xff]
        %v601 = vld [vmem:[%s209 + $0xa18] sm:$0xff]
        %v602 = vld [vmem:[%s209 + $0xa20] sm:$0xff]
        %v603 = vld [vmem:[%s209 + $0xa28] sm:$0xff]
        %v604 = vld [vmem:[%s209 + $0xa30] sm:$0xff]
        %v605 = vld [vmem:[%s209 + $0xa38] sm:$0xff]
        %v606 = vld [vmem:[%s209 + $0xa40] sm:$0xff]
        %v607 = vld [vmem:[%s209 + $0xa48] sm:$0xff]
        %v608 = vld [vmem:[%s209 + $0xa50] sm:$0xff]
        %v609 = vld [vmem:[%s209 + $0xa58] sm:$0xff]
        %v610 = vld [vmem:[%s209 + $0xa60] sm:$0xff]
        %v611 = vld [vmem:[%s209 + $0xa68] sm:$0xff]
        %v612 = vld [vmem:[%s209 + $0xa70] sm:$0xff]
        %v613 = vld [vmem:[%s209 + $0xa78] sm:$0xff]
        %v614 = vld [vmem:[%s209 + $0xa80] sm:$0xff]
        %v615 = vld [vmem:[%s209 + $0xa88] sm:$0xff]
        %v616 = vld [vmem:[%s209 + $0xa90] sm:$0xff]
        %v617 = vld [vmem:[%s209 + $0xa98] sm:$0xff]
        %v618 = vld [vmem:[%s209 + $0xaa0] sm:$0xff]
        %v619 = vld [vmem:[%s209 + $0xaa8] sm:$0xff]
        %v620 = vld [vmem:[%s209 + $0xab0] sm:$0xff]
        %v621 = vld [vmem:[%s209 + $0xab8] sm:$0xff]
        %v622 = vld [vmem:[%s209 + $0xac0] sm:$0xff]
        %v623 = vld [vmem:[%s209 + $0xac8] sm:$0xff]
        %v624 = vld [vmem:[%s209 + $0xad0] sm:$0xff]
        %v625 = vld [vmem:[%s209 + $0xad8] sm:$0xff]
        %v626 = vld [vmem:[%s209 + $0xae0] sm:$0xff]
        %v627 = vld [vmem:[%s209 + $0xae8] sm:$0xff]
        %v628 = vld [vmem:[%s209 + $0xaf0] sm:$0xff]
        %v629 = vld [vmem:[%s209 + $0xaf8] sm:$0xff]
        %v630 = vld [vmem:[%s209 + $0xb00] sm:$0xff]
        %v631 = vld [vmem:[%s209 + $0xb08] sm:$0xff]
        %v632 = vld [vmem:[%s209 + $0xb10] sm:$0xff]
        %v633 = vld [vmem:[%s209 + $0xb18] sm:$0xff]
        %v634 = vld [vmem:[%s209 + $0xb20] sm:$0xff]
        %v635 = vld [vmem:[%s209 + $0xb28] sm:$0xff]
        %v636 = vld [vmem:[%s209 + $0xb30] sm:$0xff]
        %v637 = vld [vmem:[%s209 + $0xb38] sm:$0xff]
        %v638 = vld [vmem:[%s209 + $0xb40] sm:$0xff]
        %v639 = vld [vmem:[%s209 + $0xb48] sm:$0xff]
        %v640 = vld [vmem:[%s209 + $0xb50] sm:$0xff]
        %v641 = vld [vmem:[%s209 + $0xb58] sm:$0xff]
        %v642 = vld [vmem:[%s209 + $0xb60] sm:$0xff]
        %v643 = vld [vmem:[%s209 + $0xb68] sm:$0xff]
        %v644 = vld [vmem:[%s209 + $0xb70] sm:$0xff]
        %v645 = vld [vmem:[%s209 + $0xb78] sm:$0xff]
        %v646 = vld [vmem:[%s209 + $0xb80] sm:$0xff]
        %v647 = vld [vmem:[%s209 + $0xb88] sm:$0xff]
        %v648 = vld [vmem:[%s209 + $0xb90] sm:$0xff]
        %v649 = vld [vmem:[%s209 + $0xb98] sm:$0xff]
        %v650 = vld [vmem:[%s209 + $0xba0] sm:$0xff]
        %v651 = vld [vmem:[%s209 + $0xba8] sm:$0xff]
        %v652 = vld [vmem:[%s209 + $0xbb0] sm:$0xff]
        %v653 = vld [vmem:[%s209 + $0xbb8] sm:$0xff]
        %v654 = vld [vmem:[%s209 + $0xbc0] sm:$0xff]
        %v655 = vld [vmem:[%s209 + $0xbc8] sm:$0xff]
        %v656 = vld [vmem:[%s209 + $0xbd0] sm:$0xff]
        %v657 = vld [vmem:[%s209 + $0xbd8] sm:$0xff]
        %v658 = vld [vmem:[%s209 + $0xbe0] sm:$0xff]
        %v659 = vld [vmem:[%s209 + $0xbe8] sm:$0xff]
        %v660 = vld [vmem:[%s209 + $0xbf0] sm:$0xff]
        %v661 = vld [vmem:[%s209 + $0xbf8] sm:$0xff]
        %v662 = vld [vmem:[%s209 + $0xc00] sm:$0xff]
        %v663 = vld [vmem:[%s209 + $0xc08] sm:$0xff]
        %v664 = vld [vmem:[%s209 + $0xc10] sm:$0xff]
        %v665 = vld [vmem:[%s209 + $0xc18] sm:$0xff]
        %v666 = vld [vmem:[%s209 + $0xc20] sm:$0xff]
        %v667 = vld [vmem:[%s209 + $0xc28] sm:$0xff]
        %v668 = vld [vmem:[%s209 + $0xc30] sm:$0xff]
        %v669 = vld [vmem:[%s209 + $0xc38] sm:$0xff]
        %v670 = vld [vmem:[%s209 + $0xc40] sm:$0xff]
        %v671 = vld [vmem:[%s209 + $0xc48] sm:$0xff]
        %v672 = vld [vmem:[%s209 + $0xc50] sm:$0xff]
        %v673 = vld [vmem:[%s209 + $0xc58] sm:$0xff]
        %v674 = vld [vmem:[%s209 + $0xc60] sm:$0xff]
        %v675 = vld [vmem:[%s209 + $0xc68] sm:$0xff]
        %v676 = vld [vmem:[%s209 + $0xc70] sm:$0xff]
        %v677 = vld [vmem:[%s209 + $0xc78] sm:$0xff]
        %v678 = vld [vmem:[%s209 + $0xc80] sm:$0xff]
        %v679 = vld [vmem:[%s209 + $0xc88] sm:$0xff]
        %v680 = vld [vmem:[%s209 + $0xc90] sm:$0xff]
        %v681 = vld [vmem:[%s209 + $0xc98] sm:$0xff]
        %v682 = vld [vmem:[%s209 + $0xca0] sm:$0xff]
        %v683 = vld [vmem:[%s209 + $0xca8] sm:$0xff]
        %v684 = vld [vmem:[%s209 + $0xcb0] sm:$0xff]
        %v685 = vld [vmem:[%s209 + $0xcb8] sm:$0xff]
        %v686 = vld [vmem:[%s209 + $0xcc0] sm:$0xff]
        %v687 = vld [vmem:[%s209 + $0xcc8] sm:$0xff]
        %v688 = vld [vmem:[%s209 + $0xcd0] sm:$0xff]
        %v689 = vld [vmem:[%s209 + $0xcd8] sm:$0xff]
        %v690 = vld [vmem:[%s209 + $0xce0] sm:$0xff]
        %v691 = vld [vmem:[%s209 + $0xce8] sm:$0xff]
        %v692 = vld [vmem:[%s209 + $0xcf0] sm:$0xff]
        %v693 = vld [vmem:[%s209 + $0xcf8] sm:$0xff]
        %v694 = vld [vmem:[%s209 + $0xd00] sm:$0xff]
        %v695 = vld [vmem:[%s209 + $0xd08] sm:$0xff]
        %v696 = vld [vmem:[%s209 + $0xd10] sm:$0xff]
        %v697 = vld [vmem:[%s209 + $0xd18] sm:$0xff]
        %v698 = vld [vmem:[%s209 + $0xd20] sm:$0xff]
        %v699 = vld [vmem:[%s209 + $0xd28] sm:$0xff]
        %v700 = vld [vmem:[%s209 + $0xd30] sm:$0xff]
        %v701 = vld [vmem:[%s209 + $0xd38] sm:$0xff]
        %v702 = vld [vmem:[%s209 + $0xd40] sm:$0xff]
        %v703 = vld [vmem:[%s209 + $0xd48] sm:$0xff]
        %v704 = vld [vmem:[%s209 + $0xd50] sm:$0xff]
        %v705 = vld [vmem:[%s209 + $0xd58] sm:$0xff]
        %v706 = vld [vmem:[%s209 + $0xd60] sm:$0xff]
        %v707 = vld [vmem:[%s209 + $0xd68] sm:$0xff]
        %v708 = vld [vmem:[%s209 + $0xd70] sm:$0xff]
        %v709 = vld [vmem:[%s209 + $0xd78] sm:$0xff]
        %v710 = vld [vmem:[%s209 + $0xd80] sm:$0xff]
        %v711 = vld [vmem:[%s209 + $0xd88] sm:$0xff]
        %v712 = vld [vmem:[%s209 + $0xd90] sm:$0xff]
        %v713 = vld [vmem:[%s209 + $0xd98] sm:$0xff]
        %v714 = vld [vmem:[%s209 + $0xda0] sm:$0xff]
        %v715 = vld [vmem:[%s209 + $0xda8] sm:$0xff]
        %v716 = vld [vmem:[%s209 + $0xdb0] sm:$0xff]
        %v717 = vld [vmem:[%s209 + $0xdb8] sm:$0xff]
        %v718 = vld [vmem:[%s209 + $0xdc0] sm:$0xff]
        %v719 = vld [vmem:[%s209 + $0xdc8] sm:$0xff]
        %v720 = vld [vmem:[%s209 + $0xdd0] sm:$0xff]
        %v721 = vld [vmem:[%s209 + $0xdd8] sm:$0xff]
        %v722 = vld [vmem:[%s209 + $0xde0] sm:$0xff]
        %v723 = vld [vmem:[%s209 + $0xde8] sm:$0xff]
        %v724 = vld [vmem:[%s209 + $0xdf0] sm:$0xff]
        %v725 = vld [vmem:[%s209 + $0xdf8] sm:$0xff]
        %v726 = vld [vmem:[%s209 + $0xe00] sm:$0xff]
        %v727 = vld [vmem:[%s209 + $0xe08] sm:$0xff]
        %v728 = vld [vmem:[%s209 + $0xe10] sm:$0xff]
        %v729 = vld [vmem:[%s209 + $0xe18] sm:$0xff]
        %v730 = vld [vmem:[%s209 + $0xe20] sm:$0xff]
        %v731 = vld [vmem:[%s209 + $0xe28] sm:$0xff]
        %v732 = vld [vmem:[%s209 + $0xe30] sm:$0xff]
        %v733 = vld [vmem:[%s209 + $0xe38] sm:$0xff]
        %v734 = vld [vmem:[%s209 + $0xe40] sm:$0xff]
        %v735 = vld [vmem:[%s209 + $0xe48] sm:$0xff]
        %v736 = vld [vmem:[%s209 + $0xe50] sm:$0xff]
        %v737 = vld [vmem:[%s209 + $0xe58] sm:$0xff]
        %v738 = vld [vmem:[%s209 + $0xe60] sm:$0xff]
        %v739 = vld [vmem:[%s209 + $0xe68] sm:$0xff]
        %v740 = vld [vmem:[%s209 + $0xe70] sm:$0xff]
        %v741 = vld [vmem:[%s209 + $0xe78] sm:$0xff]
        %v742 = vld [vmem:[%s209 + $0xe80] sm:$0xff]
        %v743 = vld [vmem:[%s209 + $0xe88] sm:$0xff]
        %v744 = vld [vmem:[%s209 + $0xe90] sm:$0xff]
        %v745 = vld [vmem:[%s209 + $0xe98] sm:$0xff]
        %v746 = vld [vmem:[%s209 + $0xea0] sm:$0xff]
        %v747 = vld [vmem:[%s209 + $0xea8] sm:$0xff]
        %v748 = vld [vmem:[%s209 + $0xeb0] sm:$0xff]
        %v749 = vld [vmem:[%s209 + $0xeb8] sm:$0xff]
        %v750 = vld [vmem:[%s209 + $0xec0] sm:$0xff]
        %v751 = vld [vmem:[%s209 + $0xec8] sm:$0xff]
        %v752 = vld [vmem:[%s209 + $0xed0] sm:$0xff]
        %v753 = vld [vmem:[%s209 + $0xed8] sm:$0xff]
        %v754 = vld [vmem:[%s209 + $0xee0] sm:$0xff]
        %v755 = vld [vmem:[%s209 + $0xee8] sm:$0xff]
        %v756 = vld [vmem:[%s209 + $0xef0] sm:$0xff]
        %v757 = vld [vmem:[%s209 + $0xef8] sm:$0xff]
        %v758 = vld [vmem:[%s209 + $0xf00] sm:$0xff]
        %v759 = vld [vmem:[%s209 + $0xf08] sm:$0xff]
        %v760 = vld [vmem:[%s209 + $0xf10] sm:$0xff]
        %v761 = vld [vmem:[%s209 + $0xf18] sm:$0xff]
        %v762 = vld [vmem:[%s209 + $0xf20] sm:$0xff]
        %v763 = vld [vmem:[%s209 + $0xf28] sm:$0xff]
        %v764 = vld [vmem:[%s209 + $0xf30] sm:$0xff]
        %v765 = vld [vmem:[%s209 + $0xf38] sm:$0xff]
        %v766 = vld [vmem:[%s209 + $0xf40] sm:$0xff]
        %v767 = vld [vmem:[%s209 + $0xf48] sm:$0xff]
        %v768 = vld [vmem:[%s209 + $0xf50] sm:$0xff]
        %v769 = vld [vmem:[%s209 + $0xf58] sm:$0xff]
        %v770 = vld [vmem:[%s209 + $0xf60] sm:$0xff]
        %v771 = vld [vmem:[%s209 + $0xf68] sm:$0xff]
        %v772 = vld [vmem:[%s209 + $0xf70] sm:$0xff]
        %v773 = vld [vmem:[%s209 + $0xf78] sm:$0xff]
        %v774 = vld [vmem:[%s209 + $0xf80] sm:$0xff]
        %v775 = vld [vmem:[%s209 + $0xf88] sm:$0xff]
        %v776 = vld [vmem:[%s209 + $0xf90] sm:$0xff]
        %v777 = vld [vmem:[%s209 + $0xf98] sm:$0xff]
        %v778 = vld [vmem:[%s209 + $0xfa0] sm:$0xff]
        %v779 = vld [vmem:[%s209 + $0xfa8] sm:$0xff]
        %v780 = vld [vmem:[%s209 + $0xfb0] sm:$0xff]
        %v781 = vld [vmem:[%s209 + $0xfb8] sm:$0xff]
        %v782 = vld [vmem:[%s209 + $0xfc0] sm:$0xff]
        %v783 = vld [vmem:[%s209 + $0xfc8] sm:$0xff]
        %v784 = vld [vmem:[%s209 + $0xfd0] sm:$0xff]
        %v785 = vld [vmem:[%s209 + $0xfd8] sm:$0xff]
        %v786 = vld [vmem:[%s209 + $0xfe0] sm:$0xff]
        %v787 = vld [vmem:[%s209 + $0xfe8] sm:$0xff]
        %v788 = vld [vmem:[%s209 + $0xff0] sm:$0xff]
        %v789 = vld [vmem:[%s209 + $0xff8] sm:$0xff]
        %v798 = vunpack.c.l.b16 %v270
        %v799 = vunpack.c.h.b16 %v270
        %v800 = vunpack.c.l.b16 %v271
        %v801 = vunpack.c.h.b16 %v271
        %v802 = vunpack.c.l.b16 %v272
        %v803 = vunpack.c.h.b16 %v272
        %v804 = vunpack.c.l.b16 %v273
        %v805 = vunpack.c.h.b16 %v273
        %v806 = vunpack.c.l.b16 %v274
        %v807 = vunpack.c.h.b16 %v274
        %v808 = vunpack.c.l.b16 %v275
        %v809 = vunpack.c.h.b16 %v275
        %v810 = vunpack.c.l.b16 %v276
        %v811 = vunpack.c.h.b16 %v276
        %v812 = vunpack.c.l.b16 %v277
        %v813 = vunpack.c.h.b16 %v277
        %v814 = vpack.c.b16 %v798, %v798
        %v815 = vpack.c.b16 %v799, %v799
        %v816 = vpack.c.b16 %v800, %v800
        %v817 = vpack.c.b16 %v801, %v801
        %v818 = vpack.c.b16 %v802, %v802
        %v819 = vpack.c.b16 %v803, %v803
        %v820 = vpack.c.b16 %v804, %v804
        %v821 = vpack.c.b16 %v805, %v805
        %v822 = vpack.c.b16 %v806, %v806
        %v823 = vpack.c.b16 %v807, %v807
        %v824 = vpack.c.b16 %v808, %v808
        %v825 = vpack.c.b16 %v809, %v809
        %v826 = vpack.c.b16 %v810, %v810
        %v827 = vpack.c.b16 %v811, %v811
        %v828 = vpack.c.b16 %v812, %v812
        %v829 = vpack.c.b16 %v813, %v813
        %v1358 = vunpack.c.l.b16 %v278
        %v1359 = vunpack.c.h.b16 %v278
        %v1360 = vunpack.c.l.b16 %v279
        %v1361 = vunpack.c.h.b16 %v279
        %v1362 = vunpack.c.l.b16 %v280
        %v1363 = vunpack.c.h.b16 %v280
        %v1364 = vunpack.c.l.b16 %v281
        %v1365 = vunpack.c.h.b16 %v281
        %v1366 = vunpack.c.l.b16 %v282
        %v1367 = vunpack.c.h.b16 %v282
        %v1368 = vunpack.c.l.b16 %v283
        %v1369 = vunpack.c.h.b16 %v283
        %v1370 = vunpack.c.l.b16 %v284
        %v1371 = vunpack.c.h.b16 %v284
        %v1372 = vunpack.c.l.b16 %v285
        %v1373 = vunpack.c.h.b16 %v285
        %v1374 = vunpack.c.l.b16 %v286
        %v1375 = vunpack.c.h.b16 %v286
        %v1376 = vunpack.c.l.b16 %v287
        %v1377 = vunpack.c.h.b16 %v287
        %v1378 = vunpack.c.l.b16 %v288
        %v1379 = vunpack.c.h.b16 %v288
        %v1380 = vunpack.c.l.b16 %v289
        %v1381 = vunpack.c.h.b16 %v289
        %v1382 = vunpack.c.l.b16 %v290
        %v1383 = vunpack.c.h.b16 %v290
        %v1384 = vunpack.c.l.b16 %v291
        %v1385 = vunpack.c.h.b16 %v291
        %v1386 = vunpack.c.l.b16 %v292
        %v1387 = vunpack.c.h.b16 %v292
        %v1388 = vunpack.c.l.b16 %v293
        %v1389 = vunpack.c.h.b16 %v293
        %v1390 = vunpack.c.l.b16 %v294
        %v1391 = vunpack.c.h.b16 %v294
        %v1392 = vunpack.c.l.b16 %v295
        %v1393 = vunpack.c.h.b16 %v295
        %v1394 = vunpack.c.l.b16 %v296
        %v1395 = vunpack.c.h.b16 %v296
        %v1396 = vunpack.c.l.b16 %v297
        %v1397 = vunpack.c.h.b16 %v297
        %v1398 = vunpack.c.l.b16 %v298
        %v1399 = vunpack.c.h.b16 %v298
        %v1400 = vunpack.c.l.b16 %v299
        %v1401 = vunpack.c.h.b16 %v299
        %v1402 = vunpack.c.l.b16 %v300
        %v1403 = vunpack.c.h.b16 %v300
        %v1404 = vunpack.c.l.b16 %v301
        %v1405 = vunpack.c.h.b16 %v301
        %v1406 = vunpack.c.l.b16 %v302
        %v1407 = vunpack.c.h.b16 %v302
        %v1408 = vunpack.c.l.b16 %v303
        %v1409 = vunpack.c.h.b16 %v303
        %v1410 = vunpack.c.l.b16 %v304
        %v1411 = vunpack.c.h.b16 %v304
        %v1412 = vunpack.c.l.b16 %v305
        %v1413 = vunpack.c.h.b16 %v305
        %v1414 = vunpack.c.l.b16 %v306
        %v1415 = vunpack.c.h.b16 %v306
        %v1416 = vunpack.c.l.b16 %v307
        %v1417 = vunpack.c.h.b16 %v307
        %v1418 = vunpack.c.l.b16 %v308
        %v1419 = vunpack.c.h.b16 %v308
        %v1420 = vunpack.c.l.b16 %v309
        %v1421 = vunpack.c.h.b16 %v309
        %v1422 = vunpack.c.l.b16 %v310
        %v1423 = vunpack.c.h.b16 %v310
        %v1424 = vunpack.c.l.b16 %v311
        %v1425 = vunpack.c.h.b16 %v311
        %v1426 = vunpack.c.l.b16 %v312
        %v1427 = vunpack.c.h.b16 %v312
        %v1428 = vunpack.c.l.b16 %v313
        %v1429 = vunpack.c.h.b16 %v313
        %v1430 = vunpack.c.l.b16 %v314
        %v1431 = vunpack.c.h.b16 %v314
        %v1432 = vunpack.c.l.b16 %v315
        %v1433 = vunpack.c.h.b16 %v315
        %v1434 = vunpack.c.l.b16 %v316
        %v1435 = vunpack.c.h.b16 %v316
        %v1436 = vunpack.c.l.b16 %v317
        %v1437 = vunpack.c.h.b16 %v317
        %v1438 = vunpack.c.l.b16 %v318
        %v1439 = vunpack.c.h.b16 %v318
        %v1440 = vunpack.c.l.b16 %v319
        %v1441 = vunpack.c.h.b16 %v319
        %v1442 = vunpack.c.l.b16 %v320
        %v1443 = vunpack.c.h.b16 %v320
        %v1444 = vunpack.c.l.b16 %v321
        %v1445 = vunpack.c.h.b16 %v321
        %v1446 = vunpack.c.l.b16 %v322
        %v1447 = vunpack.c.h.b16 %v322
        %v1448 = vunpack.c.l.b16 %v323
        %v1449 = vunpack.c.h.b16 %v323
        %v1450 = vunpack.c.l.b16 %v324
        %v1451 = vunpack.c.h.b16 %v324
        %v1452 = vunpack.c.l.b16 %v325
        %v1453 = vunpack.c.h.b16 %v325
        %v1454 = vunpack.c.l.b16 %v326
        %v1455 = vunpack.c.h.b16 %v326
        %v1456 = vunpack.c.l.b16 %v327
        %v1457 = vunpack.c.h.b16 %v327
        %v1458 = vunpack.c.l.b16 %v328
        %v1459 = vunpack.c.h.b16 %v328
        %v1460 = vunpack.c.l.b16 %v329
        %v1461 = vunpack.c.h.b16 %v329
        %v1462 = vunpack.c.l.b16 %v330
        %v1463 = vunpack.c.h.b16 %v330
        %v1464 = vunpack.c.l.b16 %v331
        %v1465 = vunpack.c.h.b16 %v331
        %v1466 = vunpack.c.l.b16 %v332
        %v1467 = vunpack.c.h.b16 %v332
        %v1468 = vunpack.c.l.b16 %v333
        %v1469 = vunpack.c.h.b16 %v333
        %v1470 = vunpack.c.l.b16 %v334
        %v1471 = vunpack.c.h.b16 %v334
        %v1472 = vunpack.c.l.b16 %v335
        %v1473 = vunpack.c.h.b16 %v335
        %v1474 = vunpack.c.l.b16 %v336
        %v1475 = vunpack.c.h.b16 %v336
        %v1476 = vunpack.c.l.b16 %v337
        %v1477 = vunpack.c.h.b16 %v337
        %v1478 = vunpack.c.l.b16 %v338
        %v1479 = vunpack.c.h.b16 %v338
        %v1480 = vunpack.c.l.b16 %v339
        %v1481 = vunpack.c.h.b16 %v339
        %v1482 = vunpack.c.l.b16 %v340
        %v1483 = vunpack.c.h.b16 %v340
        %v1484 = vunpack.c.l.b16 %v341
        %v1485 = vunpack.c.h.b16 %v341
        %v1486 = vunpack.c.l.b16 %v342
        %v1487 = vunpack.c.h.b16 %v342
        %v1488 = vunpack.c.l.b16 %v343
        %v1489 = vunpack.c.h.b16 %v343
        %v1490 = vunpack.c.l.b16 %v344
        %v1491 = vunpack.c.h.b16 %v344
        %v1492 = vunpack.c.l.b16 %v345
        %v1493 = vunpack.c.h.b16 %v345
        %v1494 = vunpack.c.l.b16 %v346
        %v1495 = vunpack.c.h.b16 %v346
        %v1496 = vunpack.c.l.b16 %v347
        %v1497 = vunpack.c.h.b16 %v347
        %v1498 = vunpack.c.l.b16 %v348
        %v1499 = vunpack.c.h.b16 %v348
        %v1500 = vunpack.c.l.b16 %v349
        %v1501 = vunpack.c.h.b16 %v349
        %v1502 = vunpack.c.l.b16 %v350
        %v1503 = vunpack.c.h.b16 %v350
        %v1504 = vunpack.c.l.b16 %v351
        %v1505 = vunpack.c.h.b16 %v351
        %v1506 = vunpack.c.l.b16 %v352
        %v1507 = vunpack.c.h.b16 %v352
        %v1508 = vunpack.c.l.b16 %v353
        %v1509 = vunpack.c.h.b16 %v353
        %v1510 = vunpack.c.l.b16 %v354
        %v1511 = vunpack.c.h.b16 %v354
        %v1512 = vunpack.c.l.b16 %v355
        %v1513 = vunpack.c.h.b16 %v355
        %v1514 = vunpack.c.l.b16 %v356
        %v1515 = vunpack.c.h.b16 %v356
        %v1516 = vunpack.c.l.b16 %v357
        %v1517 = vunpack.c.h.b16 %v357
        %v1518 = vunpack.c.l.b16 %v358
        %v1519 = vunpack.c.h.b16 %v358
        %v1520 = vunpack.c.l.b16 %v359
        %v1521 = vunpack.c.h.b16 %v359
        %v1522 = vunpack.c.l.b16 %v360
        %v1523 = vunpack.c.h.b16 %v360
        %v1524 = vunpack.c.l.b16 %v361
        %v1525 = vunpack.c.h.b16 %v361
        %v1526 = vunpack.c.l.b16 %v362
        %v1527 = vunpack.c.h.b16 %v362
        %v1528 = vunpack.c.l.b16 %v363
        %v1529 = vunpack.c.h.b16 %v363
        %v1530 = vunpack.c.l.b16 %v364
        %v1531 = vunpack.c.h.b16 %v364
        %v1532 = vunpack.c.l.b16 %v365
        %v1533 = vunpack.c.h.b16 %v365
        %v1534 = vunpack.c.l.b16 %v366
        %v1535 = vunpack.c.h.b16 %v366
        %v1536 = vunpack.c.l.b16 %v367
        %v1537 = vunpack.c.h.b16 %v367
        %v1538 = vunpack.c.l.b16 %v368
        %v1539 = vunpack.c.h.b16 %v368
        %v1540 = vunpack.c.l.b16 %v369
        %v1541 = vunpack.c.h.b16 %v369
        %v1542 = vunpack.c.l.b16 %v370
        %v1543 = vunpack.c.h.b16 %v370
        %v1544 = vunpack.c.l.b16 %v371
        %v1545 = vunpack.c.h.b16 %v371
        %v1546 = vunpack.c.l.b16 %v372
        %v1547 = vunpack.c.h.b16 %v372
        %v1548 = vunpack.c.l.b16 %v373
        %v1549 = vunpack.c.h.b16 %v373
        %v1550 = vunpack.c.l.b16 %v374
        %v1551 = vunpack.c.h.b16 %v374
        %v1552 = vunpack.c.l.b16 %v375
        %v1553 = vunpack.c.h.b16 %v375
        %v1554 = vunpack.c.l.b16 %v376
        %v1555 = vunpack.c.h.b16 %v376
        %v1556 = vunpack.c.l.b16 %v377
        %v1557 = vunpack.c.h.b16 %v377
        %v1558 = vunpack.c.l.b16 %v378
        %v1559 = vunpack.c.h.b16 %v378
        %v1560 = vunpack.c.l.b16 %v379
        %v1561 = vunpack.c.h.b16 %v379
        %v1562 = vunpack.c.l.b16 %v380
        %v1563 = vunpack.c.h.b16 %v380
        %v1564 = vunpack.c.l.b16 %v381
        %v1565 = vunpack.c.h.b16 %v381
        %v1566 = vunpack.c.l.b16 %v382
        %v1567 = vunpack.c.h.b16 %v382
        %v1568 = vunpack.c.l.b16 %v383
        %v1569 = vunpack.c.h.b16 %v383
        %v1570 = vunpack.c.l.b16 %v384
        %v1571 = vunpack.c.h.b16 %v384
        %v1572 = vunpack.c.l.b16 %v385
        %v1573 = vunpack.c.h.b16 %v385
        %v1574 = vunpack.c.l.b16 %v386
        %v1575 = vunpack.c.h.b16 %v386
        %v1576 = vunpack.c.l.b16 %v387
        %v1577 = vunpack.c.h.b16 %v387
        %v1578 = vunpack.c.l.b16 %v388
        %v1579 = vunpack.c.h.b16 %v388
        %v1580 = vunpack.c.l.b16 %v389
        %v1581 = vunpack.c.h.b16 %v389
        %v1582 = vunpack.c.l.b16 %v390
        %v1583 = vunpack.c.h.b16 %v390
        %v1584 = vunpack.c.l.b16 %v391
        %v1585 = vunpack.c.h.b16 %v391
        %v1586 = vunpack.c.l.b16 %v392
        %v1587 = vunpack.c.h.b16 %v392
        %v1588 = vunpack.c.l.b16 %v393
        %v1589 = vunpack.c.h.b16 %v393
        %v1590 = vunpack.c.l.b16 %v394
        %v1591 = vunpack.c.h.b16 %v394
        %v1592 = vunpack.c.l.b16 %v395
        %v1593 = vunpack.c.h.b16 %v395
        %v1594 = vunpack.c.l.b16 %v396
        %v1595 = vunpack.c.h.b16 %v396
        %v1596 = vunpack.c.l.b16 %v397
        %v1597 = vunpack.c.h.b16 %v397
        %v1598 = vunpack.c.l.b16 %v398
        %v1599 = vunpack.c.h.b16 %v398
        %v1600 = vunpack.c.l.b16 %v399
        %v1601 = vunpack.c.h.b16 %v399
        %v1602 = vunpack.c.l.b16 %v400
        %v1603 = vunpack.c.h.b16 %v400
        %v1604 = vunpack.c.l.b16 %v401
        %v1605 = vunpack.c.h.b16 %v401
        %v1606 = vunpack.c.l.b16 %v402
        %v1607 = vunpack.c.h.b16 %v402
        %v1608 = vunpack.c.l.b16 %v403
        %v1609 = vunpack.c.h.b16 %v403
        %v1610 = vunpack.c.l.b16 %v404
        %v1611 = vunpack.c.h.b16 %v404
        %v1612 = vunpack.c.l.b16 %v405
        %v1613 = vunpack.c.h.b16 %v405
        %v1614 = vunpack.c.l.b16 %v406
        %v1615 = vunpack.c.h.b16 %v406
        %v1616 = vunpack.c.l.b16 %v407
        %v1617 = vunpack.c.h.b16 %v407
        %v1618 = vunpack.c.l.b16 %v408
        %v1619 = vunpack.c.h.b16 %v408
        %v1620 = vunpack.c.l.b16 %v409
        %v1621 = vunpack.c.h.b16 %v409
        %v1622 = vunpack.c.l.b16 %v410
        %v1623 = vunpack.c.h.b16 %v410
        %v1624 = vunpack.c.l.b16 %v411
        %v1625 = vunpack.c.h.b16 %v411
        %v1626 = vunpack.c.l.b16 %v412
        %v1627 = vunpack.c.h.b16 %v412
        %v1628 = vunpack.c.l.b16 %v413
        %v1629 = vunpack.c.h.b16 %v413
        %v1630 = vunpack.c.l.b16 %v414
        %v1631 = vunpack.c.h.b16 %v414
        %v1632 = vunpack.c.l.b16 %v415
        %v1633 = vunpack.c.h.b16 %v415
        %v1634 = vunpack.c.l.b16 %v416
        %v1635 = vunpack.c.h.b16 %v416
        %v1636 = vunpack.c.l.b16 %v417
        %v1637 = vunpack.c.h.b16 %v417
        %v1638 = vunpack.c.l.b16 %v418
        %v1639 = vunpack.c.h.b16 %v418
        %v1640 = vunpack.c.l.b16 %v419
        %v1641 = vunpack.c.h.b16 %v419
        %v1642 = vunpack.c.l.b16 %v420
        %v1643 = vunpack.c.h.b16 %v420
        %v1644 = vunpack.c.l.b16 %v421
        %v1645 = vunpack.c.h.b16 %v421
        %v1646 = vunpack.c.l.b16 %v422
        %v1647 = vunpack.c.h.b16 %v422
        %v1648 = vunpack.c.l.b16 %v423
        %v1649 = vunpack.c.h.b16 %v423
        %v1650 = vunpack.c.l.b16 %v424
        %v1651 = vunpack.c.h.b16 %v424
        %v1652 = vunpack.c.l.b16 %v425
        %v1653 = vunpack.c.h.b16 %v425
        %v1654 = vunpack.c.l.b16 %v426
        %v1655 = vunpack.c.h.b16 %v426
        %v1656 = vunpack.c.l.b16 %v427
        %v1657 = vunpack.c.h.b16 %v427
        %v1658 = vunpack.c.l.b16 %v428
        %v1659 = vunpack.c.h.b16 %v428
        %v1660 = vunpack.c.l.b16 %v429
        %v1661 = vunpack.c.h.b16 %v429
        %v1662 = vunpack.c.l.b16 %v430
        %v1663 = vunpack.c.h.b16 %v430
        %v1664 = vunpack.c.l.b16 %v431
        %v1665 = vunpack.c.h.b16 %v431
        %v1666 = vunpack.c.l.b16 %v432
        %v1667 = vunpack.c.h.b16 %v432
        %v1668 = vunpack.c.l.b16 %v433
        %v1669 = vunpack.c.h.b16 %v433
        %v1670 = vunpack.c.l.b16 %v434
        %v1671 = vunpack.c.h.b16 %v434
        %v1672 = vunpack.c.l.b16 %v435
        %v1673 = vunpack.c.h.b16 %v435
        %v1674 = vunpack.c.l.b16 %v436
        %v1675 = vunpack.c.h.b16 %v436
        %v1676 = vunpack.c.l.b16 %v437
        %v1677 = vunpack.c.h.b16 %v437
        %v1678 = vunpack.c.l.b16 %v438
        %v1679 = vunpack.c.h.b16 %v438
        %v1680 = vunpack.c.l.b16 %v439
        %v1681 = vunpack.c.h.b16 %v439
        %v1682 = vunpack.c.l.b16 %v440
        %v1683 = vunpack.c.h.b16 %v440
        %v1684 = vunpack.c.l.b16 %v441
        %v1685 = vunpack.c.h.b16 %v441
        %v1686 = vunpack.c.l.b16 %v442
        %v1687 = vunpack.c.h.b16 %v442
        %v1688 = vunpack.c.l.b16 %v443
        %v1689 = vunpack.c.h.b16 %v443
        %v1690 = vunpack.c.l.b16 %v444
        %v1691 = vunpack.c.h.b16 %v444
        %v1692 = vunpack.c.l.b16 %v445
        %v1693 = vunpack.c.h.b16 %v445
        %v1694 = vunpack.c.l.b16 %v446
        %v1695 = vunpack.c.h.b16 %v446
        %v1696 = vunpack.c.l.b16 %v447
        %v1697 = vunpack.c.h.b16 %v447
        %v1698 = vunpack.c.l.b16 %v448
        %v1699 = vunpack.c.h.b16 %v448
        %v1700 = vunpack.c.l.b16 %v449
        %v1701 = vunpack.c.h.b16 %v449
        %v1702 = vunpack.c.l.b16 %v450
        %v1703 = vunpack.c.h.b16 %v450
        %v1704 = vunpack.c.l.b16 %v451
        %v1705 = vunpack.c.h.b16 %v451
        %v1706 = vunpack.c.l.b16 %v452
        %v1707 = vunpack.c.h.b16 %v452
        %v1708 = vunpack.c.l.b16 %v453
        %v1709 = vunpack.c.h.b16 %v453
        %v1710 = vunpack.c.l.b16 %v454
        %v1711 = vunpack.c.h.b16 %v454
        %v1712 = vunpack.c.l.b16 %v455
        %v1713 = vunpack.c.h.b16 %v455
        %v1714 = vunpack.c.l.b16 %v456
        %v1715 = vunpack.c.h.b16 %v456
        %v1716 = vunpack.c.l.b16 %v457
        %v1717 = vunpack.c.h.b16 %v457
        %v1718 = vunpack.c.l.b16 %v458
        %v1719 = vunpack.c.h.b16 %v458
        %v1720 = vunpack.c.l.b16 %v459
        %v1721 = vunpack.c.h.b16 %v459
        %v1722 = vunpack.c.l.b16 %v460
        %v1723 = vunpack.c.h.b16 %v460
        %v1724 = vunpack.c.l.b16 %v461
        %v1725 = vunpack.c.h.b16 %v461
        %v1726 = vunpack.c.l.b16 %v462
        %v1727 = vunpack.c.h.b16 %v462
        %v1728 = vunpack.c.l.b16 %v463
        %v1729 = vunpack.c.h.b16 %v463
        %v1730 = vunpack.c.l.b16 %v464
        %v1731 = vunpack.c.h.b16 %v464
        %v1732 = vunpack.c.l.b16 %v465
        %v1733 = vunpack.c.h.b16 %v465
        %v1734 = vunpack.c.l.b16 %v466
        %v1735 = vunpack.c.h.b16 %v466
        %v1736 = vunpack.c.l.b16 %v467
        %v1737 = vunpack.c.h.b16 %v467
        %v1738 = vunpack.c.l.b16 %v468
        %v1739 = vunpack.c.h.b16 %v468
        %v1740 = vunpack.c.l.b16 %v469
        %v1741 = vunpack.c.h.b16 %v469
        %v1742 = vunpack.c.l.b16 %v470
        %v1743 = vunpack.c.h.b16 %v470
        %v1744 = vunpack.c.l.b16 %v471
        %v1745 = vunpack.c.h.b16 %v471
        %v1746 = vunpack.c.l.b16 %v472
        %v1747 = vunpack.c.h.b16 %v472
        %v1748 = vunpack.c.l.b16 %v473
        %v1749 = vunpack.c.h.b16 %v473
        %v1750 = vunpack.c.l.b16 %v474
        %v1751 = vunpack.c.h.b16 %v474
        %v1752 = vunpack.c.l.b16 %v475
        %v1753 = vunpack.c.h.b16 %v475
        %v1754 = vunpack.c.l.b16 %v476
        %v1755 = vunpack.c.h.b16 %v476
        %v1756 = vunpack.c.l.b16 %v477
        %v1757 = vunpack.c.h.b16 %v477
        %v1758 = vunpack.c.l.b16 %v478
        %v1759 = vunpack.c.h.b16 %v478
        %v1760 = vunpack.c.l.b16 %v479
        %v1761 = vunpack.c.h.b16 %v479
        %v1762 = vunpack.c.l.b16 %v480
        %v1763 = vunpack.c.h.b16 %v480
        %v1764 = vunpack.c.l.b16 %v481
        %v1765 = vunpack.c.h.b16 %v481
        %v1766 = vunpack.c.l.b16 %v482
        %v1767 = vunpack.c.h.b16 %v482
        %v1768 = vunpack.c.l.b16 %v483
        %v1769 = vunpack.c.h.b16 %v483
        %v1770 = vunpack.c.l.b16 %v484
        %v1771 = vunpack.c.h.b16 %v484
        %v1772 = vunpack.c.l.b16 %v485
        %v1773 = vunpack.c.h.b16 %v485
        %v1774 = vunpack.c.l.b16 %v486
        %v1775 = vunpack.c.h.b16 %v486
        %v1776 = vunpack.c.l.b16 %v487
        %v1777 = vunpack.c.h.b16 %v487
        %v1778 = vunpack.c.l.b16 %v488
        %v1779 = vunpack.c.h.b16 %v488
        %v1780 = vunpack.c.l.b16 %v489
        %v1781 = vunpack.c.h.b16 %v489
        %v1782 = vunpack.c.l.b16 %v490
        %v1783 = vunpack.c.h.b16 %v490
        %v1784 = vunpack.c.l.b16 %v491
        %v1785 = vunpack.c.h.b16 %v491
        %v1786 = vunpack.c.l.b16 %v492
        %v1787 = vunpack.c.h.b16 %v492
        %v1788 = vunpack.c.l.b16 %v493
        %v1789 = vunpack.c.h.b16 %v493
        %v1790 = vunpack.c.l.b16 %v494
        %v1791 = vunpack.c.h.b16 %v494
        %v1792 = vunpack.c.l.b16 %v495
        %v1793 = vunpack.c.h.b16 %v495
        %v1794 = vunpack.c.l.b16 %v496
        %v1795 = vunpack.c.h.b16 %v496
        %v1796 = vunpack.c.l.b16 %v497
        %v1797 = vunpack.c.h.b16 %v497
        %v1798 = vunpack.c.l.b16 %v498
        %v1799 = vunpack.c.h.b16 %v498
        %v1800 = vunpack.c.l.b16 %v499
        %v1801 = vunpack.c.h.b16 %v499
        %v1802 = vunpack.c.l.b16 %v500
        %v1803 = vunpack.c.h.b16 %v500
        %v1804 = vunpack.c.l.b16 %v501
        %v1805 = vunpack.c.h.b16 %v501
        %v1806 = vunpack.c.l.b16 %v502
        %v1807 = vunpack.c.h.b16 %v502
        %v1808 = vunpack.c.l.b16 %v503
        %v1809 = vunpack.c.h.b16 %v503
        %v1810 = vunpack.c.l.b16 %v504
        %v1811 = vunpack.c.h.b16 %v504
        %v1812 = vunpack.c.l.b16 %v505
        %v1813 = vunpack.c.h.b16 %v505
        %v1814 = vunpack.c.l.b16 %v506
        %v1815 = vunpack.c.h.b16 %v506
        %v1816 = vunpack.c.l.b16 %v507
        %v1817 = vunpack.c.h.b16 %v507
        %v1818 = vunpack.c.l.b16 %v508
        %v1819 = vunpack.c.h.b16 %v508
        %v1820 = vunpack.c.l.b16 %v509
        %v1821 = vunpack.c.h.b16 %v509
        %v1822 = vunpack.c.l.b16 %v510
        %v1823 = vunpack.c.h.b16 %v510
        %v1824 = vunpack.c.l.b16 %v511
        %v1825 = vunpack.c.h.b16 %v511
        %v1826 = vunpack.c.l.b16 %v512
        %v1827 = vunpack.c.h.b16 %v512
        %v1828 = vunpack.c.l.b16 %v513
        %v1829 = vunpack.c.h.b16 %v513
        %v1830 = vunpack.c.l.b16 %v514
        %v1831 = vunpack.c.h.b16 %v514
        %v1832 = vunpack.c.l.b16 %v515
        %v1833 = vunpack.c.h.b16 %v515
        %v1834 = vunpack.c.l.b16 %v516
        %v1835 = vunpack.c.h.b16 %v516
        %v1836 = vunpack.c.l.b16 %v517
        %v1837 = vunpack.c.h.b16 %v517
        %v1838 = vunpack.c.l.b16 %v518
        %v1839 = vunpack.c.h.b16 %v518
        %v1840 = vunpack.c.l.b16 %v519
        %v1841 = vunpack.c.h.b16 %v519
        %v1842 = vunpack.c.l.b16 %v520
        %v1843 = vunpack.c.h.b16 %v520
        %v1844 = vunpack.c.l.b16 %v521
        %v1845 = vunpack.c.h.b16 %v521
        %v1846 = vunpack.c.l.b16 %v522
        %v1847 = vunpack.c.h.b16 %v522
        %v1848 = vunpack.c.l.b16 %v523
        %v1849 = vunpack.c.h.b16 %v523
        %v1850 = vunpack.c.l.b16 %v524
        %v1851 = vunpack.c.h.b16 %v524
        %v1852 = vunpack.c.l.b16 %v525
        %v1853 = vunpack.c.h.b16 %v525
        %v1854 = vunpack.c.l.b16 %v526
        %v1855 = vunpack.c.h.b16 %v526
        %v1856 = vunpack.c.l.b16 %v527
        %v1857 = vunpack.c.h.b16 %v527
        %v1858 = vunpack.c.l.b16 %v528
        %v1859 = vunpack.c.h.b16 %v528
        %v1860 = vunpack.c.l.b16 %v529
        %v1861 = vunpack.c.h.b16 %v529
        %v1862 = vunpack.c.l.b16 %v530
        %v1863 = vunpack.c.h.b16 %v530
        %v1864 = vunpack.c.l.b16 %v531
        %v1865 = vunpack.c.h.b16 %v531
        %v1866 = vunpack.c.l.b16 %v532
        %v1867 = vunpack.c.h.b16 %v532
        %v1868 = vunpack.c.l.b16 %v533
        %v1869 = vunpack.c.h.b16 %v533
        %v1870 = vunpack.c.l.b16 %v534
        %v1871 = vunpack.c.h.b16 %v534
        %v1872 = vunpack.c.l.b16 %v535
        %v1873 = vunpack.c.h.b16 %v535
        %v1874 = vunpack.c.l.b16 %v536
        %v1875 = vunpack.c.h.b16 %v536
        %v1876 = vunpack.c.l.b16 %v537
        %v1877 = vunpack.c.h.b16 %v537
        %v1878 = vunpack.c.l.b16 %v538
        %v1879 = vunpack.c.h.b16 %v538
        %v1880 = vunpack.c.l.b16 %v539
        %v1881 = vunpack.c.h.b16 %v539
        %v1882 = vunpack.c.l.b16 %v540
        %v1883 = vunpack.c.h.b16 %v540
        %v1884 = vunpack.c.l.b16 %v541
        %v1885 = vunpack.c.h.b16 %v541
        %v1886 = vunpack.c.l.b16 %v542
        %v1887 = vunpack.c.h.b16 %v542
        %v1888 = vunpack.c.l.b16 %v543
        %v1889 = vunpack.c.h.b16 %v543
        %v1890 = vunpack.c.l.b16 %v544
        %v1891 = vunpack.c.h.b16 %v544
        %v1892 = vunpack.c.l.b16 %v545
        %v1893 = vunpack.c.h.b16 %v545
        %v1894 = vunpack.c.l.b16 %v546
        %v1895 = vunpack.c.h.b16 %v546
        %v1896 = vunpack.c.l.b16 %v547
        %v1897 = vunpack.c.h.b16 %v547
        %v1898 = vunpack.c.l.b16 %v548
        %v1899 = vunpack.c.h.b16 %v548
        %v1900 = vunpack.c.l.b16 %v549
        %v1901 = vunpack.c.h.b16 %v549
        %v1902 = vunpack.c.l.b16 %v550
        %v1903 = vunpack.c.h.b16 %v550
        %v1904 = vunpack.c.l.b16 %v551
        %v1905 = vunpack.c.h.b16 %v551
        %v1906 = vunpack.c.l.b16 %v552
        %v1907 = vunpack.c.h.b16 %v552
        %v1908 = vunpack.c.l.b16 %v553
        %v1909 = vunpack.c.h.b16 %v553
        %v1910 = vunpack.c.l.b16 %v554
        %v1911 = vunpack.c.h.b16 %v554
        %v1912 = vunpack.c.l.b16 %v555
        %v1913 = vunpack.c.h.b16 %v555
        %v1914 = vunpack.c.l.b16 %v556
        %v1915 = vunpack.c.h.b16 %v556
        %v1916 = vunpack.c.l.b16 %v557
        %v1917 = vunpack.c.h.b16 %v557
        %v1918 = vunpack.c.l.b16 %v558
        %v1919 = vunpack.c.h.b16 %v558
        %v1920 = vunpack.c.l.b16 %v559
        %v1921 = vunpack.c.h.b16 %v559
        %v1922 = vunpack.c.l.b16 %v560
        %v1923 = vunpack.c.h.b16 %v560
        %v1924 = vunpack.c.l.b16 %v561
        %v1925 = vunpack.c.h.b16 %v561
        %v1926 = vunpack.c.l.b16 %v562
        %v1927 = vunpack.c.h.b16 %v562
        %v1928 = vunpack.c.l.b16 %v563
        %v1929 = vunpack.c.h.b16 %v563
        %v1930 = vunpack.c.l.b16 %v564
        %v1931 = vunpack.c.h.b16 %v564
        %v1932 = vunpack.c.l.b16 %v565
        %v1933 = vunpack.c.h.b16 %v565
        %v1934 = vunpack.c.l.b16 %v566
        %v1935 = vunpack.c.h.b16 %v566
        %v1936 = vunpack.c.l.b16 %v567
        %v1937 = vunpack.c.h.b16 %v567
        %v1938 = vunpack.c.l.b16 %v568
        %v1939 = vunpack.c.h.b16 %v568
        %v1940 = vunpack.c.l.b16 %v569
        %v1941 = vunpack.c.h.b16 %v569
        %v1942 = vunpack.c.l.b16 %v570
        %v1943 = vunpack.c.h.b16 %v570
        %v1944 = vunpack.c.l.b16 %v571
        %v1945 = vunpack.c.h.b16 %v571
        %v1946 = vunpack.c.l.b16 %v572
        %v1947 = vunpack.c.h.b16 %v572
        %v1948 = vunpack.c.l.b16 %v573
        %v1949 = vunpack.c.h.b16 %v573
        %v1950 = vunpack.c.l.b16 %v574
        %v1951 = vunpack.c.h.b16 %v574
        %v1952 = vunpack.c.l.b16 %v575
        %v1953 = vunpack.c.h.b16 %v575
        %v1954 = vunpack.c.l.b16 %v576
        %v1955 = vunpack.c.h.b16 %v576
        %v1956 = vunpack.c.l.b16 %v577
        %v1957 = vunpack.c.h.b16 %v577
        %v1958 = vunpack.c.l.b16 %v578
        %v1959 = vunpack.c.h.b16 %v578
        %v1960 = vunpack.c.l.b16 %v579
        %v1961 = vunpack.c.h.b16 %v579
        %v1962 = vunpack.c.l.b16 %v580
        %v1963 = vunpack.c.h.b16 %v580
        %v1964 = vunpack.c.l.b16 %v581
        %v1965 = vunpack.c.h.b16 %v581
        %v1966 = vunpack.c.l.b16 %v582
        %v1967 = vunpack.c.h.b16 %v582
        %v1968 = vunpack.c.l.b16 %v583
        %v1969 = vunpack.c.h.b16 %v583
        %v1970 = vunpack.c.l.b16 %v584
        %v1971 = vunpack.c.h.b16 %v584
        %v1972 = vunpack.c.l.b16 %v585
        %v1973 = vunpack.c.h.b16 %v585
        %v1974 = vunpack.c.l.b16 %v586
        %v1975 = vunpack.c.h.b16 %v586
        %v1976 = vunpack.c.l.b16 %v587
        %v1977 = vunpack.c.h.b16 %v587
        %v1978 = vunpack.c.l.b16 %v588
        %v1979 = vunpack.c.h.b16 %v588
        %v1980 = vunpack.c.l.b16 %v589
        %v1981 = vunpack.c.h.b16 %v589
        %v1982 = vunpack.c.l.b16 %v590
        %v1983 = vunpack.c.h.b16 %v590
        %v1984 = vunpack.c.l.b16 %v591
        %v1985 = vunpack.c.h.b16 %v591
        %v1986 = vunpack.c.l.b16 %v592
        %v1987 = vunpack.c.h.b16 %v592
        %v1988 = vunpack.c.l.b16 %v593
        %v1989 = vunpack.c.h.b16 %v593
        %v1990 = vunpack.c.l.b16 %v594
        %v1991 = vunpack.c.h.b16 %v594
        %v1992 = vunpack.c.l.b16 %v595
        %v1993 = vunpack.c.h.b16 %v595
        %v1994 = vunpack.c.l.b16 %v596
        %v1995 = vunpack.c.h.b16 %v596
        %v1996 = vunpack.c.l.b16 %v597
        %v1997 = vunpack.c.h.b16 %v597
        %v1998 = vunpack.c.l.b16 %v598
        %v1999 = vunpack.c.h.b16 %v598
        %v2000 = vunpack.c.l.b16 %v599
        %v2001 = vunpack.c.h.b16 %v599
        %v2002 = vunpack.c.l.b16 %v600
        %v2003 = vunpack.c.h.b16 %v600
        %v2004 = vunpack.c.l.b16 %v601
        %v2005 = vunpack.c.h.b16 %v601
        %v2006 = vunpack.c.l.b16 %v602
        %v2007 = vunpack.c.h.b16 %v602
        %v2008 = vunpack.c.l.b16 %v603
        %v2009 = vunpack.c.h.b16 %v603
        %v2010 = vunpack.c.l.b16 %v604
        %v2011 = vunpack.c.h.b16 %v604
        %v2012 = vunpack.c.l.b16 %v605
        %v2013 = vunpack.c.h.b16 %v605
        %v2014 = vunpack.c.l.b16 %v606
        %v2015 = vunpack.c.h.b16 %v606
        %v2016 = vunpack.c.l.b16 %v607
        %v2017 = vunpack.c.h.b16 %v607
        %v2018 = vunpack.c.l.b16 %v608
        %v2019 = vunpack.c.h.b16 %v608
        %v2020 = vunpack.c.l.b16 %v609
        %v2021 = vunpack.c.h.b16 %v609
        %v2022 = vunpack.c.l.b16 %v610
        %v2023 = vunpack.c.h.b16 %v610
        %v2024 = vunpack.c.l.b16 %v611
        %v2025 = vunpack.c.h.b16 %v611
        %v2026 = vunpack.c.l.b16 %v612
        %v2027 = vunpack.c.h.b16 %v612
        %v2028 = vunpack.c.l.b16 %v613
        %v2029 = vunpack.c.h.b16 %v613
        %v2030 = vunpack.c.l.b16 %v614
        %v2031 = vunpack.c.h.b16 %v614
        %v2032 = vunpack.c.l.b16 %v615
        %v2033 = vunpack.c.h.b16 %v615
        %v2034 = vunpack.c.l.b16 %v616
        %v2035 = vunpack.c.h.b16 %v616
        %v2036 = vunpack.c.l.b16 %v617
        %v2037 = vunpack.c.h.b16 %v617
        %v2038 = vunpack.c.l.b16 %v618
        %v2039 = vunpack.c.h.b16 %v618
        %v2040 = vunpack.c.l.b16 %v619
        %v2041 = vunpack.c.h.b16 %v619
        %v2042 = vunpack.c.l.b16 %v620
        %v2043 = vunpack.c.h.b16 %v620
        %v2044 = vunpack.c.l.b16 %v621
        %v2045 = vunpack.c.h.b16 %v621
        %v2046 = vunpack.c.l.b16 %v622
        %v2047 = vunpack.c.h.b16 %v622
        %v2048 = vunpack.c.l.b16 %v623
        %v2049 = vunpack.c.h.b16 %v623
        %v2050 = vunpack.c.l.b16 %v624
        %v2051 = vunpack.c.h.b16 %v624
        %v2052 = vunpack.c.l.b16 %v625
        %v2053 = vunpack.c.h.b16 %v625
        %v2054 = vunpack.c.l.b16 %v626
        %v2055 = vunpack.c.h.b16 %v626
        %v2056 = vunpack.c.l.b16 %v627
        %v2057 = vunpack.c.h.b16 %v627
        %v2058 = vunpack.c.l.b16 %v628
        %v2059 = vunpack.c.h.b16 %v628
        %v2060 = vunpack.c.l.b16 %v629
        %v2061 = vunpack.c.h.b16 %v629
        %v2062 = vunpack.c.l.b16 %v630
        %v2063 = vunpack.c.h.b16 %v630
        %v2064 = vunpack.c.l.b16 %v631
        %v2065 = vunpack.c.h.b16 %v631
        %v2066 = vunpack.c.l.b16 %v632
        %v2067 = vunpack.c.h.b16 %v632
        %v2068 = vunpack.c.l.b16 %v633
        %v2069 = vunpack.c.h.b16 %v633
        %v2070 = vunpack.c.l.b16 %v634
        %v2071 = vunpack.c.h.b16 %v634
        %v2072 = vunpack.c.l.b16 %v635
        %v2073 = vunpack.c.h.b16 %v635
        %v2074 = vunpack.c.l.b16 %v636
        %v2075 = vunpack.c.h.b16 %v636
        %v2076 = vunpack.c.l.b16 %v637
        %v2077 = vunpack.c.h.b16 %v637
        %v2078 = vunpack.c.l.b16 %v638
        %v2079 = vunpack.c.h.b16 %v638
        %v2080 = vunpack.c.l.b16 %v639
        %v2081 = vunpack.c.h.b16 %v639
        %v2082 = vunpack.c.l.b16 %v640
        %v2083 = vunpack.c.h.b16 %v640
        %v2084 = vunpack.c.l.b16 %v641
        %v2085 = vunpack.c.h.b16 %v641
        %v2086 = vunpack.c.l.b16 %v642
        %v2087 = vunpack.c.h.b16 %v642
        %v2088 = vunpack.c.l.b16 %v643
        %v2089 = vunpack.c.h.b16 %v643
        %v2090 = vunpack.c.l.b16 %v644
        %v2091 = vunpack.c.h.b16 %v644
        %v2092 = vunpack.c.l.b16 %v645
        %v2093 = vunpack.c.h.b16 %v645
        %v2094 = vunpack.c.l.b16 %v646
        %v2095 = vunpack.c.h.b16 %v646
        %v2096 = vunpack.c.l.b16 %v647
        %v2097 = vunpack.c.h.b16 %v647
        %v2098 = vunpack.c.l.b16 %v648
        %v2099 = vunpack.c.h.b16 %v648
        %v2100 = vunpack.c.l.b16 %v649
        %v2101 = vunpack.c.h.b16 %v649
        %v2102 = vunpack.c.l.b16 %v650
        %v2103 = vunpack.c.h.b16 %v650
        %v2104 = vunpack.c.l.b16 %v651
        %v2105 = vunpack.c.h.b16 %v651
        %v2106 = vunpack.c.l.b16 %v652
        %v2107 = vunpack.c.h.b16 %v652
        %v2108 = vunpack.c.l.b16 %v653
        %v2109 = vunpack.c.h.b16 %v653
        %v2110 = vunpack.c.l.b16 %v654
        %v2111 = vunpack.c.h.b16 %v654
        %v2112 = vunpack.c.l.b16 %v655
        %v2113 = vunpack.c.h.b16 %v655
        %v2114 = vunpack.c.l.b16 %v656
        %v2115 = vunpack.c.h.b16 %v656
        %v2116 = vunpack.c.l.b16 %v657
        %v2117 = vunpack.c.h.b16 %v657
        %v2118 = vunpack.c.l.b16 %v658
        %v2119 = vunpack.c.h.b16 %v658
        %v2120 = vunpack.c.l.b16 %v659
        %v2121 = vunpack.c.h.b16 %v659
        %v2122 = vunpack.c.l.b16 %v660
        %v2123 = vunpack.c.h.b16 %v660
        %v2124 = vunpack.c.l.b16 %v661
        %v2125 = vunpack.c.h.b16 %v661
        %v2126 = vunpack.c.l.b16 %v662
        %v2127 = vunpack.c.h.b16 %v662
        %v2128 = vunpack.c.l.b16 %v663
        %v2129 = vunpack.c.h.b16 %v663
        %v2130 = vunpack.c.l.b16 %v664
        %v2131 = vunpack.c.h.b16 %v664
        %v2132 = vunpack.c.l.b16 %v665
        %v2133 = vunpack.c.h.b16 %v665
        %v2134 = vunpack.c.l.b16 %v666
        %v2135 = vunpack.c.h.b16 %v666
        %v2136 = vunpack.c.l.b16 %v667
        %v2137 = vunpack.c.h.b16 %v667
        %v2138 = vunpack.c.l.b16 %v668
        %v2139 = vunpack.c.h.b16 %v668
        %v2140 = vunpack.c.l.b16 %v669
        %v2141 = vunpack.c.h.b16 %v669
        %v2142 = vunpack.c.l.b16 %v670
        %v2143 = vunpack.c.h.b16 %v670
        %v2144 = vunpack.c.l.b16 %v671
        %v2145 = vunpack.c.h.b16 %v671
        %v2146 = vunpack.c.l.b16 %v672
        %v2147 = vunpack.c.h.b16 %v672
        %v2148 = vunpack.c.l.b16 %v673
        %v2149 = vunpack.c.h.b16 %v673
        %v2150 = vunpack.c.l.b16 %v674
        %v2151 = vunpack.c.h.b16 %v674
        %v2152 = vunpack.c.l.b16 %v675
        %v2153 = vunpack.c.h.b16 %v675
        %v2154 = vunpack.c.l.b16 %v676
        %v2155 = vunpack.c.h.b16 %v676
        %v2156 = vunpack.c.l.b16 %v677
        %v2157 = vunpack.c.h.b16 %v677
        %v2158 = vunpack.c.l.b16 %v678
        %v2159 = vunpack.c.h.b16 %v678
        %v2160 = vunpack.c.l.b16 %v679
        %v2161 = vunpack.c.h.b16 %v679
        %v2162 = vunpack.c.l.b16 %v680
        %v2163 = vunpack.c.h.b16 %v680
        %v2164 = vunpack.c.l.b16 %v681
        %v2165 = vunpack.c.h.b16 %v681
        %v2166 = vunpack.c.l.b16 %v682
        %v2167 = vunpack.c.h.b16 %v682
        %v2168 = vunpack.c.l.b16 %v683
        %v2169 = vunpack.c.h.b16 %v683
        %v2170 = vunpack.c.l.b16 %v684
        %v2171 = vunpack.c.h.b16 %v684
        %v2172 = vunpack.c.l.b16 %v685
        %v2173 = vunpack.c.h.b16 %v685
        %v2174 = vunpack.c.l.b16 %v686
        %v2175 = vunpack.c.h.b16 %v686
        %v2176 = vunpack.c.l.b16 %v687
        %v2177 = vunpack.c.h.b16 %v687
        %v2178 = vunpack.c.l.b16 %v688
        %v2179 = vunpack.c.h.b16 %v688
        %v2180 = vunpack.c.l.b16 %v689
        %v2181 = vunpack.c.h.b16 %v689
        %v2182 = vunpack.c.l.b16 %v690
        %v2183 = vunpack.c.h.b16 %v690
        %v2184 = vunpack.c.l.b16 %v691
        %v2185 = vunpack.c.h.b16 %v691
        %v2186 = vunpack.c.l.b16 %v692
        %v2187 = vunpack.c.h.b16 %v692
        %v2188 = vunpack.c.l.b16 %v693
        %v2189 = vunpack.c.h.b16 %v693
        %v2190 = vunpack.c.l.b16 %v694
        %v2191 = vunpack.c.h.b16 %v694
        %v2192 = vunpack.c.l.b16 %v695
        %v2193 = vunpack.c.h.b16 %v695
        %v2194 = vunpack.c.l.b16 %v696
        %v2195 = vunpack.c.h.b16 %v696
        %v2196 = vunpack.c.l.b16 %v697
        %v2197 = vunpack.c.h.b16 %v697
        %v2198 = vunpack.c.l.b16 %v698
        %v2199 = vunpack.c.h.b16 %v698
        %v2200 = vunpack.c.l.b16 %v699
        %v2201 = vunpack.c.h.b16 %v699
        %v2202 = vunpack.c.l.b16 %v700
        %v2203 = vunpack.c.h.b16 %v700
        %v2204 = vunpack.c.l.b16 %v701
        %v2205 = vunpack.c.h.b16 %v701
        %v2206 = vunpack.c.l.b16 %v702
        %v2207 = vunpack.c.h.b16 %v702
        %v2208 = vunpack.c.l.b16 %v703
        %v2209 = vunpack.c.h.b16 %v703
        %v2210 = vunpack.c.l.b16 %v704
        %v2211 = vunpack.c.h.b16 %v704
        %v2212 = vunpack.c.l.b16 %v705
        %v2213 = vunpack.c.h.b16 %v705
        %v2214 = vunpack.c.l.b16 %v706
        %v2215 = vunpack.c.h.b16 %v706
        %v2216 = vunpack.c.l.b16 %v707
        %v2217 = vunpack.c.h.b16 %v707
        %v2218 = vunpack.c.l.b16 %v708
        %v2219 = vunpack.c.h.b16 %v708
        %v2220 = vunpack.c.l.b16 %v709
        %v2221 = vunpack.c.h.b16 %v709
        %v2222 = vunpack.c.l.b16 %v710
        %v2223 = vunpack.c.h.b16 %v710
        %v2224 = vunpack.c.l.b16 %v711
        %v2225 = vunpack.c.h.b16 %v711
        %v2226 = vunpack.c.l.b16 %v712
        %v2227 = vunpack.c.h.b16 %v712
        %v2228 = vunpack.c.l.b16 %v713
        %v2229 = vunpack.c.h.b16 %v713
        %v2230 = vunpack.c.l.b16 %v714
        %v2231 = vunpack.c.h.b16 %v714
        %v2232 = vunpack.c.l.b16 %v715
        %v2233 = vunpack.c.h.b16 %v715
        %v2234 = vunpack.c.l.b16 %v716
        %v2235 = vunpack.c.h.b16 %v716
        %v2236 = vunpack.c.l.b16 %v717
        %v2237 = vunpack.c.h.b16 %v717
        %v2238 = vunpack.c.l.b16 %v718
        %v2239 = vunpack.c.h.b16 %v718
        %v2240 = vunpack.c.l.b16 %v719
        %v2241 = vunpack.c.h.b16 %v719
        %v2242 = vunpack.c.l.b16 %v720
        %v2243 = vunpack.c.h.b16 %v720
        %v2244 = vunpack.c.l.b16 %v721
        %v2245 = vunpack.c.h.b16 %v721
        %v2246 = vunpack.c.l.b16 %v722
        %v2247 = vunpack.c.h.b16 %v722
        %v2248 = vunpack.c.l.b16 %v723
        %v2249 = vunpack.c.h.b16 %v723
        %v2250 = vunpack.c.l.b16 %v724
        %v2251 = vunpack.c.h.b16 %v724
        %v2252 = vunpack.c.l.b16 %v725
        %v2253 = vunpack.c.h.b16 %v725
        %v2254 = vunpack.c.l.b16 %v726
        %v2255 = vunpack.c.h.b16 %v726
        %v2256 = vunpack.c.l.b16 %v727
        %v2257 = vunpack.c.h.b16 %v727
        %v2258 = vunpack.c.l.b16 %v728
        %v2259 = vunpack.c.h.b16 %v728
        %v2260 = vunpack.c.l.b16 %v729
        %v2261 = vunpack.c.h.b16 %v729
        %v2262 = vunpack.c.l.b16 %v730
        %v2263 = vunpack.c.h.b16 %v730
        %v2264 = vunpack.c.l.b16 %v731
        %v2265 = vunpack.c.h.b16 %v731
        %v2266 = vunpack.c.l.b16 %v732
        %v2267 = vunpack.c.h.b16 %v732
        %v2268 = vunpack.c.l.b16 %v733
        %v2269 = vunpack.c.h.b16 %v733
        %v2270 = vunpack.c.l.b16 %v734
        %v2271 = vunpack.c.h.b16 %v734
        %v2272 = vunpack.c.l.b16 %v735
        %v2273 = vunpack.c.h.b16 %v735
        %v2274 = vunpack.c.l.b16 %v736
        %v2275 = vunpack.c.h.b16 %v736
        %v2276 = vunpack.c.l.b16 %v737
        %v2277 = vunpack.c.h.b16 %v737
        %v2278 = vunpack.c.l.b16 %v738
        %v2279 = vunpack.c.h.b16 %v738
        %v2280 = vunpack.c.l.b16 %v739
        %v2281 = vunpack.c.h.b16 %v739
        %v2282 = vunpack.c.l.b16 %v740
        %v2283 = vunpack.c.h.b16 %v740
        %v2284 = vunpack.c.l.b16 %v741
        %v2285 = vunpack.c.h.b16 %v741
        %v2286 = vunpack.c.l.b16 %v742
        %v2287 = vunpack.c.h.b16 %v742
        %v2288 = vunpack.c.l.b16 %v743
        %v2289 = vunpack.c.h.b16 %v743
        %v2290 = vunpack.c.l.b16 %v744
        %v2291 = vunpack.c.h.b16 %v744
        %v2292 = vunpack.c.l.b16 %v745
        %v2293 = vunpack.c.h.b16 %v745
        %v2294 = vunpack.c.l.b16 %v746
        %v2295 = vunpack.c.h.b16 %v746
        %v2296 = vunpack.c.l.b16 %v747
        %v2297 = vunpack.c.h.b16 %v747
        %v2298 = vunpack.c.l.b16 %v748
        %v2299 = vunpack.c.h.b16 %v748
        %v2300 = vunpack.c.l.b16 %v749
        %v2301 = vunpack.c.h.b16 %v749
        %v2302 = vunpack.c.l.b16 %v750
        %v2303 = vunpack.c.h.b16 %v750
        %v2304 = vunpack.c.l.b16 %v751
        %v2305 = vunpack.c.h.b16 %v751
        %v2306 = vunpack.c.l.b16 %v752
        %v2307 = vunpack.c.h.b16 %v752
        %v2308 = vunpack.c.l.b16 %v753
        %v2309 = vunpack.c.h.b16 %v753
        %v2310 = vunpack.c.l.b16 %v754
        %v2311 = vunpack.c.h.b16 %v754
        %v2312 = vunpack.c.l.b16 %v755
        %v2313 = vunpack.c.h.b16 %v755
        %v2314 = vunpack.c.l.b16 %v756
        %v2315 = vunpack.c.h.b16 %v756
        %v2316 = vunpack.c.l.b16 %v757
        %v2317 = vunpack.c.h.b16 %v757
        %v2318 = vunpack.c.l.b16 %v758
        %v2319 = vunpack.c.h.b16 %v758
        %v2320 = vunpack.c.l.b16 %v759
        %v2321 = vunpack.c.h.b16 %v759
        %v2322 = vunpack.c.l.b16 %v760
        %v2323 = vunpack.c.h.b16 %v760
        %v2324 = vunpack.c.l.b16 %v761
        %v2325 = vunpack.c.h.b16 %v761
        %v2326 = vunpack.c.l.b16 %v762
        %v2327 = vunpack.c.h.b16 %v762
        %v2328 = vunpack.c.l.b16 %v763
        %v2329 = vunpack.c.h.b16 %v763
        %v2330 = vunpack.c.l.b16 %v764
        %v2331 = vunpack.c.h.b16 %v764
        %v2332 = vunpack.c.l.b16 %v765
        %v2333 = vunpack.c.h.b16 %v765
        %v2334 = vunpack.c.l.b16 %v766
        %v2335 = vunpack.c.h.b16 %v766
        %v2336 = vunpack.c.l.b16 %v767
        %v2337 = vunpack.c.h.b16 %v767
        %v2338 = vunpack.c.l.b16 %v768
        %v2339 = vunpack.c.h.b16 %v768
        %v2340 = vunpack.c.l.b16 %v769
        %v2341 = vunpack.c.h.b16 %v769
        %v2342 = vunpack.c.l.b16 %v770
        %v2343 = vunpack.c.h.b16 %v770
        %v2344 = vunpack.c.l.b16 %v771
        %v2345 = vunpack.c.h.b16 %v771
        %v2346 = vunpack.c.l.b16 %v772
        %v2347 = vunpack.c.h.b16 %v772
        %v2348 = vunpack.c.l.b16 %v773
        %v2349 = vunpack.c.h.b16 %v773
        %v2350 = vunpack.c.l.b16 %v774
        %v2351 = vunpack.c.h.b16 %v774
        %v2352 = vunpack.c.l.b16 %v775
        %v2353 = vunpack.c.h.b16 %v775
        %v2354 = vunpack.c.l.b16 %v776
        %v2355 = vunpack.c.h.b16 %v776
        %v2356 = vunpack.c.l.b16 %v777
        %v2357 = vunpack.c.h.b16 %v777
        %v2358 = vunpack.c.l.b16 %v778
        %v2359 = vunpack.c.h.b16 %v778
        %v2360 = vunpack.c.l.b16 %v779
        %v2361 = vunpack.c.h.b16 %v779
        %v2362 = vunpack.c.l.b16 %v780
        %v2363 = vunpack.c.h.b16 %v780
        %v2364 = vunpack.c.l.b16 %v781
        %v2365 = vunpack.c.h.b16 %v781
        %v2366 = vunpack.c.l.b16 %v782
        %v2367 = vunpack.c.h.b16 %v782
        %v2368 = vunpack.c.l.b16 %v783
        %v2369 = vunpack.c.h.b16 %v783
        %v2370 = vunpack.c.l.b16 %v784
        %v2371 = vunpack.c.h.b16 %v784
        %v2372 = vunpack.c.l.b16 %v785
        %v2373 = vunpack.c.h.b16 %v785
        %v2374 = vunpack.c.l.b16 %v786
        %v2375 = vunpack.c.h.b16 %v786
        %v2376 = vunpack.c.l.b16 %v787
        %v2377 = vunpack.c.h.b16 %v787
        %v2378 = vunpack.c.l.b16 %v788
        %v2379 = vunpack.c.h.b16 %v788
        %v2380 = vunpack.c.l.b16 %v789
        %v2381 = vunpack.c.h.b16 %v789
        %v2382 = vpack.c.b16 %v1362, %v1358
        %v2383 = vpack.c.b16 %v1363, %v1359
        %v2384 = vpack.c.b16 %v1364, %v1360
        %v2385 = vpack.c.b16 %v1365, %v1361
        %v2386 = vpack.c.b16 %v1370, %v1366
        %v2387 = vpack.c.b16 %v1371, %v1367
        %v2388 = vpack.c.b16 %v1372, %v1368
        %v2389 = vpack.c.b16 %v1373, %v1369
        %v2390 = vpack.c.b16 %v1378, %v1374
        %v2391 = vpack.c.b16 %v1379, %v1375
        %v2392 = vpack.c.b16 %v1380, %v1376
        %v2393 = vpack.c.b16 %v1381, %v1377
        %v2394 = vpack.c.b16 %v1386, %v1382
        %v2395 = vpack.c.b16 %v1387, %v1383
        %v2396 = vpack.c.b16 %v1388, %v1384
        %v2397 = vpack.c.b16 %v1389, %v1385
        %v2398 = vpack.c.b16 %v1394, %v1390
        %v2399 = vpack.c.b16 %v1395, %v1391
        %v2400 = vpack.c.b16 %v1396, %v1392
        %v2401 = vpack.c.b16 %v1397, %v1393
        %v2402 = vpack.c.b16 %v1402, %v1398
        %v2403 = vpack.c.b16 %v1403, %v1399
        %v2404 = vpack.c.b16 %v1404, %v1400
        %v2405 = vpack.c.b16 %v1405, %v1401
        %v2406 = vpack.c.b16 %v1410, %v1406
        %v2407 = vpack.c.b16 %v1411, %v1407
        %v2408 = vpack.c.b16 %v1412, %v1408
        %v2409 = vpack.c.b16 %v1413, %v1409
        %v2410 = vpack.c.b16 %v1418, %v1414
        %v2411 = vpack.c.b16 %v1419, %v1415
        %v2412 = vpack.c.b16 %v1420, %v1416
        %v2413 = vpack.c.b16 %v1421, %v1417
        %v2414 = vpack.c.b16 %v1426, %v1422
        %v2415 = vpack.c.b16 %v1427, %v1423
        %v2416 = vpack.c.b16 %v1428, %v1424
        %v2417 = vpack.c.b16 %v1429, %v1425
        %v2418 = vpack.c.b16 %v1434, %v1430
        %v2419 = vpack.c.b16 %v1435, %v1431
        %v2420 = vpack.c.b16 %v1436, %v1432
        %v2421 = vpack.c.b16 %v1437, %v1433
        %v2422 = vpack.c.b16 %v1442, %v1438
        %v2423 = vpack.c.b16 %v1443, %v1439
        %v2424 = vpack.c.b16 %v1444, %v1440
        %v2425 = vpack.c.b16 %v1445, %v1441
        %v2426 = vpack.c.b16 %v1450, %v1446
        %v2427 = vpack.c.b16 %v1451, %v1447
        %v2428 = vpack.c.b16 %v1452, %v1448
        %v2429 = vpack.c.b16 %v1453, %v1449
        %v2430 = vpack.c.b16 %v1458, %v1454
        %v2431 = vpack.c.b16 %v1459, %v1455
        %v2432 = vpack.c.b16 %v1460, %v1456
        %v2433 = vpack.c.b16 %v1461, %v1457
        %v2434 = vpack.c.b16 %v1466, %v1462
        %v2435 = vpack.c.b16 %v1467, %v1463
        %v2436 = vpack.c.b16 %v1468, %v1464
        %v2437 = vpack.c.b16 %v1469, %v1465
        %v2438 = vpack.c.b16 %v1474, %v1470
        %v2439 = vpack.c.b16 %v1475, %v1471
        %v2440 = vpack.c.b16 %v1476, %v1472
        %v2441 = vpack.c.b16 %v1477, %v1473
        %v2442 = vpack.c.b16 %v1482, %v1478
        %v2443 = vpack.c.b16 %v1483, %v1479
        %v2444 = vpack.c.b16 %v1484, %v1480
        %v2445 = vpack.c.b16 %v1485, %v1481
        %v2446 = vpack.c.b16 %v1490, %v1486
        %v2447 = vpack.c.b16 %v1491, %v1487
        %v2448 = vpack.c.b16 %v1492, %v1488
        %v2449 = vpack.c.b16 %v1493, %v1489
        %v2450 = vpack.c.b16 %v1498, %v1494
        %v2451 = vpack.c.b16 %v1499, %v1495
        %v2452 = vpack.c.b16 %v1500, %v1496
        %v2453 = vpack.c.b16 %v1501, %v1497
        %v2454 = vpack.c.b16 %v1506, %v1502
        %v2455 = vpack.c.b16 %v1507, %v1503
        %v2456 = vpack.c.b16 %v1508, %v1504
        %v2457 = vpack.c.b16 %v1509, %v1505
        %v2458 = vpack.c.b16 %v1514, %v1510
        %v2459 = vpack.c.b16 %v1515, %v1511
        %v2460 = vpack.c.b16 %v1516, %v1512
        %v2461 = vpack.c.b16 %v1517, %v1513
        %v2462 = vpack.c.b16 %v1522, %v1518
        %v2463 = vpack.c.b16 %v1523, %v1519
        %v2464 = vpack.c.b16 %v1524, %v1520
        %v2465 = vpack.c.b16 %v1525, %v1521
        %v2466 = vpack.c.b16 %v1530, %v1526
        %v2467 = vpack.c.b16 %v1531, %v1527
        %v2468 = vpack.c.b16 %v1532, %v1528
        %v2469 = vpack.c.b16 %v1533, %v1529
        %v2470 = vpack.c.b16 %v1538, %v1534
        %v2471 = vpack.c.b16 %v1539, %v1535
        %v2472 = vpack.c.b16 %v1540, %v1536
        %v2473 = vpack.c.b16 %v1541, %v1537
        %v2474 = vpack.c.b16 %v1546, %v1542
        %v2475 = vpack.c.b16 %v1547, %v1543
        %v2476 = vpack.c.b16 %v1548, %v1544
        %v2477 = vpack.c.b16 %v1549, %v1545
        %v2478 = vpack.c.b16 %v1554, %v1550
        %v2479 = vpack.c.b16 %v1555, %v1551
        %v2480 = vpack.c.b16 %v1556, %v1552
        %v2481 = vpack.c.b16 %v1557, %v1553
        %v2482 = vpack.c.b16 %v1562, %v1558
        %v2483 = vpack.c.b16 %v1563, %v1559
        %v2484 = vpack.c.b16 %v1564, %v1560
        %v2485 = vpack.c.b16 %v1565, %v1561
        %v2486 = vpack.c.b16 %v1570, %v1566
        %v2487 = vpack.c.b16 %v1571, %v1567
        %v2488 = vpack.c.b16 %v1572, %v1568
        %v2489 = vpack.c.b16 %v1573, %v1569
        %v2490 = vpack.c.b16 %v1578, %v1574
        %v2491 = vpack.c.b16 %v1579, %v1575
        %v2492 = vpack.c.b16 %v1580, %v1576
        %v2493 = vpack.c.b16 %v1581, %v1577
        %v2494 = vpack.c.b16 %v1586, %v1582
        %v2495 = vpack.c.b16 %v1587, %v1583
        %v2496 = vpack.c.b16 %v1588, %v1584
        %v2497 = vpack.c.b16 %v1589, %v1585
        %v2498 = vpack.c.b16 %v1594, %v1590
        %v2499 = vpack.c.b16 %v1595, %v1591
        %v2500 = vpack.c.b16 %v1596, %v1592
        %v2501 = vpack.c.b16 %v1597, %v1593
        %v2502 = vpack.c.b16 %v1602, %v1598
        %v2503 = vpack.c.b16 %v1603, %v1599
        %v2504 = vpack.c.b16 %v1604, %v1600
        %v2505 = vpack.c.b16 %v1605, %v1601
        %v2506 = vpack.c.b16 %v1610, %v1606
        %v2507 = vpack.c.b16 %v1611, %v1607
        %v2508 = vpack.c.b16 %v1612, %v1608
        %v2509 = vpack.c.b16 %v1613, %v1609
        %v2510 = vpack.c.b16 %v1618, %v1614
        %v2511 = vpack.c.b16 %v1619, %v1615
        %v2512 = vpack.c.b16 %v1620, %v1616
        %v2513 = vpack.c.b16 %v1621, %v1617
        %v2514 = vpack.c.b16 %v1626, %v1622
        %v2515 = vpack.c.b16 %v1627, %v1623
        %v2516 = vpack.c.b16 %v1628, %v1624
        %v2517 = vpack.c.b16 %v1629, %v1625
        %v2518 = vpack.c.b16 %v1634, %v1630
        %v2519 = vpack.c.b16 %v1635, %v1631
        %v2520 = vpack.c.b16 %v1636, %v1632
        %v2521 = vpack.c.b16 %v1637, %v1633
        %v2522 = vpack.c.b16 %v1642, %v1638
        %v2523 = vpack.c.b16 %v1643, %v1639
        %v2524 = vpack.c.b16 %v1644, %v1640
        %v2525 = vpack.c.b16 %v1645, %v1641
        %v2526 = vpack.c.b16 %v1650, %v1646
        %v2527 = vpack.c.b16 %v1651, %v1647
        %v2528 = vpack.c.b16 %v1652, %v1648
        %v2529 = vpack.c.b16 %v1653, %v1649
        %v2530 = vpack.c.b16 %v1658, %v1654
        %v2531 = vpack.c.b16 %v1659, %v1655
        %v2532 = vpack.c.b16 %v1660, %v1656
        %v2533 = vpack.c.b16 %v1661, %v1657
        %v2534 = vpack.c.b16 %v1666, %v1662
        %v2535 = vpack.c.b16 %v1667, %v1663
        %v2536 = vpack.c.b16 %v1668, %v1664
        %v2537 = vpack.c.b16 %v1669, %v1665
        %v2538 = vpack.c.b16 %v1674, %v1670
        %v2539 = vpack.c.b16 %v1675, %v1671
        %v2540 = vpack.c.b16 %v1676, %v1672
        %v2541 = vpack.c.b16 %v1677, %v1673
        %v2542 = vpack.c.b16 %v1682, %v1678
        %v2543 = vpack.c.b16 %v1683, %v1679
        %v2544 = vpack.c.b16 %v1684, %v1680
        %v2545 = vpack.c.b16 %v1685, %v1681
        %v2546 = vpack.c.b16 %v1690, %v1686
        %v2547 = vpack.c.b16 %v1691, %v1687
        %v2548 = vpack.c.b16 %v1692, %v1688
        %v2549 = vpack.c.b16 %v1693, %v1689
        %v2550 = vpack.c.b16 %v1698, %v1694
        %v2551 = vpack.c.b16 %v1699, %v1695
        %v2552 = vpack.c.b16 %v1700, %v1696
        %v2553 = vpack.c.b16 %v1701, %v1697
        %v2554 = vpack.c.b16 %v1706, %v1702
        %v2555 = vpack.c.b16 %v1707, %v1703
        %v2556 = vpack.c.b16 %v1708, %v1704
        %v2557 = vpack.c.b16 %v1709, %v1705
        %v2558 = vpack.c.b16 %v1714, %v1710
        %v2559 = vpack.c.b16 %v1715, %v1711
        %v2560 = vpack.c.b16 %v1716, %v1712
        %v2561 = vpack.c.b16 %v1717, %v1713
        %v2562 = vpack.c.b16 %v1722, %v1718
        %v2563 = vpack.c.b16 %v1723, %v1719
        %v2564 = vpack.c.b16 %v1724, %v1720
        %v2565 = vpack.c.b16 %v1725, %v1721
        %v2566 = vpack.c.b16 %v1730, %v1726
        %v2567 = vpack.c.b16 %v1731, %v1727
        %v2568 = vpack.c.b16 %v1732, %v1728
        %v2569 = vpack.c.b16 %v1733, %v1729
        %v2570 = vpack.c.b16 %v1738, %v1734
        %v2571 = vpack.c.b16 %v1739, %v1735
        %v2572 = vpack.c.b16 %v1740, %v1736
        %v2573 = vpack.c.b16 %v1741, %v1737
        %v2574 = vpack.c.b16 %v1746, %v1742
        %v2575 = vpack.c.b16 %v1747, %v1743
        %v2576 = vpack.c.b16 %v1748, %v1744
        %v2577 = vpack.c.b16 %v1749, %v1745
        %v2578 = vpack.c.b16 %v1754, %v1750
        %v2579 = vpack.c.b16 %v1755, %v1751
        %v2580 = vpack.c.b16 %v1756, %v1752
        %v2581 = vpack.c.b16 %v1757, %v1753
        %v2582 = vpack.c.b16 %v1762, %v1758
        %v2583 = vpack.c.b16 %v1763, %v1759
        %v2584 = vpack.c.b16 %v1764, %v1760
        %v2585 = vpack.c.b16 %v1765, %v1761
        %v2586 = vpack.c.b16 %v1770, %v1766
        %v2587 = vpack.c.b16 %v1771, %v1767
        %v2588 = vpack.c.b16 %v1772, %v1768
        %v2589 = vpack.c.b16 %v1773, %v1769
        %v2590 = vpack.c.b16 %v1778, %v1774
        %v2591 = vpack.c.b16 %v1779, %v1775
        %v2592 = vpack.c.b16 %v1780, %v1776
        %v2593 = vpack.c.b16 %v1781, %v1777
        %v2594 = vpack.c.b16 %v1786, %v1782
        %v2595 = vpack.c.b16 %v1787, %v1783
        %v2596 = vpack.c.b16 %v1788, %v1784
        %v2597 = vpack.c.b16 %v1789, %v1785
        %v2598 = vpack.c.b16 %v1794, %v1790
        %v2599 = vpack.c.b16 %v1795, %v1791
        %v2600 = vpack.c.b16 %v1796, %v1792
        %v2601 = vpack.c.b16 %v1797, %v1793
        %v2602 = vpack.c.b16 %v1802, %v1798
        %v2603 = vpack.c.b16 %v1803, %v1799
        %v2604 = vpack.c.b16 %v1804, %v1800
        %v2605 = vpack.c.b16 %v1805, %v1801
        %v2606 = vpack.c.b16 %v1810, %v1806
        %v2607 = vpack.c.b16 %v1811, %v1807
        %v2608 = vpack.c.b16 %v1812, %v1808
        %v2609 = vpack.c.b16 %v1813, %v1809
        %v2610 = vpack.c.b16 %v1818, %v1814
        %v2611 = vpack.c.b16 %v1819, %v1815
        %v2612 = vpack.c.b16 %v1820, %v1816
        %v2613 = vpack.c.b16 %v1821, %v1817
        %v2614 = vpack.c.b16 %v1826, %v1822
        %v2615 = vpack.c.b16 %v1827, %v1823
        %v2616 = vpack.c.b16 %v1828, %v1824
        %v2617 = vpack.c.b16 %v1829, %v1825
        %v2618 = vpack.c.b16 %v1834, %v1830
        %v2619 = vpack.c.b16 %v1835, %v1831
        %v2620 = vpack.c.b16 %v1836, %v1832
        %v2621 = vpack.c.b16 %v1837, %v1833
        %v2622 = vpack.c.b16 %v1842, %v1838
        %v2623 = vpack.c.b16 %v1843, %v1839
        %v2624 = vpack.c.b16 %v1844, %v1840
        %v2625 = vpack.c.b16 %v1845, %v1841
        %v2626 = vpack.c.b16 %v1850, %v1846
        %v2627 = vpack.c.b16 %v1851, %v1847
        %v2628 = vpack.c.b16 %v1852, %v1848
        %v2629 = vpack.c.b16 %v1853, %v1849
        %v2630 = vpack.c.b16 %v1858, %v1854
        %v2631 = vpack.c.b16 %v1859, %v1855
        %v2632 = vpack.c.b16 %v1860, %v1856
        %v2633 = vpack.c.b16 %v1861, %v1857
        %v2634 = vpack.c.b16 %v1866, %v1862
        %v2635 = vpack.c.b16 %v1867, %v1863
        %v2636 = vpack.c.b16 %v1868, %v1864
        %v2637 = vpack.c.b16 %v1869, %v1865
        %v2638 = vpack.c.b16 %v1874, %v1870
        %v2639 = vpack.c.b16 %v1875, %v1871
        %v2640 = vpack.c.b16 %v1876, %v1872
        %v2641 = vpack.c.b16 %v1877, %v1873
        %v2642 = vpack.c.b16 %v1882, %v1878
        %v2643 = vpack.c.b16 %v1883, %v1879
        %v2644 = vpack.c.b16 %v1884, %v1880
        %v2645 = vpack.c.b16 %v1885, %v1881
        %v2646 = vpack.c.b16 %v1890, %v1886
        %v2647 = vpack.c.b16 %v1891, %v1887
        %v2648 = vpack.c.b16 %v1892, %v1888
        %v2649 = vpack.c.b16 %v1893, %v1889
        %v2650 = vpack.c.b16 %v1898, %v1894
        %v2651 = vpack.c.b16 %v1899, %v1895
        %v2652 = vpack.c.b16 %v1900, %v1896
        %v2653 = vpack.c.b16 %v1901, %v1897
        %v2654 = vpack.c.b16 %v1906, %v1902
        %v2655 = vpack.c.b16 %v1907, %v1903
        %v2656 = vpack.c.b16 %v1908, %v1904
        %v2657 = vpack.c.b16 %v1909, %v1905
        %v2658 = vpack.c.b16 %v1914, %v1910
        %v2659 = vpack.c.b16 %v1915, %v1911
        %v2660 = vpack.c.b16 %v1916, %v1912
        %v2661 = vpack.c.b16 %v1917, %v1913
        %v2662 = vpack.c.b16 %v1922, %v1918
        %v2663 = vpack.c.b16 %v1923, %v1919
        %v2664 = vpack.c.b16 %v1924, %v1920
        %v2665 = vpack.c.b16 %v1925, %v1921
        %v2666 = vpack.c.b16 %v1930, %v1926
        %v2667 = vpack.c.b16 %v1931, %v1927
        %v2668 = vpack.c.b16 %v1932, %v1928
        %v2669 = vpack.c.b16 %v1933, %v1929
        %v2670 = vpack.c.b16 %v1938, %v1934
        %v2671 = vpack.c.b16 %v1939, %v1935
        %v2672 = vpack.c.b16 %v1940, %v1936
        %v2673 = vpack.c.b16 %v1941, %v1937
        %v2674 = vpack.c.b16 %v1946, %v1942
        %v2675 = vpack.c.b16 %v1947, %v1943
        %v2676 = vpack.c.b16 %v1948, %v1944
        %v2677 = vpack.c.b16 %v1949, %v1945
        %v2678 = vpack.c.b16 %v1954, %v1950
        %v2679 = vpack.c.b16 %v1955, %v1951
        %v2680 = vpack.c.b16 %v1956, %v1952
        %v2681 = vpack.c.b16 %v1957, %v1953
        %v2682 = vpack.c.b16 %v1962, %v1958
        %v2683 = vpack.c.b16 %v1963, %v1959
        %v2684 = vpack.c.b16 %v1964, %v1960
        %v2685 = vpack.c.b16 %v1965, %v1961
        %v2686 = vpack.c.b16 %v1970, %v1966
        %v2687 = vpack.c.b16 %v1971, %v1967
        %v2688 = vpack.c.b16 %v1972, %v1968
        %v2689 = vpack.c.b16 %v1973, %v1969
        %v2690 = vpack.c.b16 %v1978, %v1974
        %v2691 = vpack.c.b16 %v1979, %v1975
        %v2692 = vpack.c.b16 %v1980, %v1976
        %v2693 = vpack.c.b16 %v1981, %v1977
        %v2694 = vpack.c.b16 %v1986, %v1982
        %v2695 = vpack.c.b16 %v1987, %v1983
        %v2696 = vpack.c.b16 %v1988, %v1984
        %v2697 = vpack.c.b16 %v1989, %v1985
        %v2698 = vpack.c.b16 %v1994, %v1990
        %v2699 = vpack.c.b16 %v1995, %v1991
        %v2700 = vpack.c.b16 %v1996, %v1992
        %v2701 = vpack.c.b16 %v1997, %v1993
        %v2702 = vpack.c.b16 %v2002, %v1998
        %v2703 = vpack.c.b16 %v2003, %v1999
        %v2704 = vpack.c.b16 %v2004, %v2000
        %v2705 = vpack.c.b16 %v2005, %v2001
        %v2706 = vpack.c.b16 %v2010, %v2006
        %v2707 = vpack.c.b16 %v2011, %v2007
        %v2708 = vpack.c.b16 %v2012, %v2008
        %v2709 = vpack.c.b16 %v2013, %v2009
        %v2710 = vpack.c.b16 %v2018, %v2014
        %v2711 = vpack.c.b16 %v2019, %v2015
        %v2712 = vpack.c.b16 %v2020, %v2016
        %v2713 = vpack.c.b16 %v2021, %v2017
        %v2714 = vpack.c.b16 %v2026, %v2022
        %v2715 = vpack.c.b16 %v2027, %v2023
        %v2716 = vpack.c.b16 %v2028, %v2024
        %v2717 = vpack.c.b16 %v2029, %v2025
        %v2718 = vpack.c.b16 %v2034, %v2030
        %v2719 = vpack.c.b16 %v2035, %v2031
        %v2720 = vpack.c.b16 %v2036, %v2032
        %v2721 = vpack.c.b16 %v2037, %v2033
        %v2722 = vpack.c.b16 %v2042, %v2038
        %v2723 = vpack.c.b16 %v2043, %v2039
        %v2724 = vpack.c.b16 %v2044, %v2040
        %v2725 = vpack.c.b16 %v2045, %v2041
        %v2726 = vpack.c.b16 %v2050, %v2046
        %v2727 = vpack.c.b16 %v2051, %v2047
        %v2728 = vpack.c.b16 %v2052, %v2048
        %v2729 = vpack.c.b16 %v2053, %v2049
        %v2730 = vpack.c.b16 %v2058, %v2054
        %v2731 = vpack.c.b16 %v2059, %v2055
        %v2732 = vpack.c.b16 %v2060, %v2056
        %v2733 = vpack.c.b16 %v2061, %v2057
        %v2734 = vpack.c.b16 %v2066, %v2062
        %v2735 = vpack.c.b16 %v2067, %v2063
        %v2736 = vpack.c.b16 %v2068, %v2064
        %v2737 = vpack.c.b16 %v2069, %v2065
        %v2738 = vpack.c.b16 %v2074, %v2070
        %v2739 = vpack.c.b16 %v2075, %v2071
        %v2740 = vpack.c.b16 %v2076, %v2072
        %v2741 = vpack.c.b16 %v2077, %v2073
        %v2742 = vpack.c.b16 %v2082, %v2078
        %v2743 = vpack.c.b16 %v2083, %v2079
        %v2744 = vpack.c.b16 %v2084, %v2080
        %v2745 = vpack.c.b16 %v2085, %v2081
        %v2746 = vpack.c.b16 %v2090, %v2086
        %v2747 = vpack.c.b16 %v2091, %v2087
        %v2748 = vpack.c.b16 %v2092, %v2088
        %v2749 = vpack.c.b16 %v2093, %v2089
        %v2750 = vpack.c.b16 %v2098, %v2094
        %v2751 = vpack.c.b16 %v2099, %v2095
        %v2752 = vpack.c.b16 %v2100, %v2096
        %v2753 = vpack.c.b16 %v2101, %v2097
        %v2754 = vpack.c.b16 %v2106, %v2102
        %v2755 = vpack.c.b16 %v2107, %v2103
        %v2756 = vpack.c.b16 %v2108, %v2104
        %v2757 = vpack.c.b16 %v2109, %v2105
        %v2758 = vpack.c.b16 %v2114, %v2110
        %v2759 = vpack.c.b16 %v2115, %v2111
        %v2760 = vpack.c.b16 %v2116, %v2112
        %v2761 = vpack.c.b16 %v2117, %v2113
        %v2762 = vpack.c.b16 %v2122, %v2118
        %v2763 = vpack.c.b16 %v2123, %v2119
        %v2764 = vpack.c.b16 %v2124, %v2120
        %v2765 = vpack.c.b16 %v2125, %v2121
        %v2766 = vpack.c.b16 %v2130, %v2126
        %v2767 = vpack.c.b16 %v2131, %v2127
        %v2768 = vpack.c.b16 %v2132, %v2128
        %v2769 = vpack.c.b16 %v2133, %v2129
        %v2770 = vpack.c.b16 %v2138, %v2134
        %v2771 = vpack.c.b16 %v2139, %v2135
        %v2772 = vpack.c.b16 %v2140, %v2136
        %v2773 = vpack.c.b16 %v2141, %v2137
        %v2774 = vpack.c.b16 %v2146, %v2142
        %v2775 = vpack.c.b16 %v2147, %v2143
        %v2776 = vpack.c.b16 %v2148, %v2144
        %v2777 = vpack.c.b16 %v2149, %v2145
        %v2778 = vpack.c.b16 %v2154, %v2150
        %v2779 = vpack.c.b16 %v2155, %v2151
        %v2780 = vpack.c.b16 %v2156, %v2152
        %v2781 = vpack.c.b16 %v2157, %v2153
        %v2782 = vpack.c.b16 %v2162, %v2158
        %v2783 = vpack.c.b16 %v2163, %v2159
        %v2784 = vpack.c.b16 %v2164, %v2160
        %v2785 = vpack.c.b16 %v2165, %v2161
        %v2786 = vpack.c.b16 %v2170, %v2166
        %v2787 = vpack.c.b16 %v2171, %v2167
        %v2788 = vpack.c.b16 %v2172, %v2168
        %v2789 = vpack.c.b16 %v2173, %v2169
        %v2790 = vpack.c.b16 %v2178, %v2174
        %v2791 = vpack.c.b16 %v2179, %v2175
        %v2792 = vpack.c.b16 %v2180, %v2176
        %v2793 = vpack.c.b16 %v2181, %v2177
        %v2794 = vpack.c.b16 %v2186, %v2182
        %v2795 = vpack.c.b16 %v2187, %v2183
        %v2796 = vpack.c.b16 %v2188, %v2184
        %v2797 = vpack.c.b16 %v2189, %v2185
        %v2798 = vpack.c.b16 %v2194, %v2190
        %v2799 = vpack.c.b16 %v2195, %v2191
        %v2800 = vpack.c.b16 %v2196, %v2192
        %v2801 = vpack.c.b16 %v2197, %v2193
        %v2802 = vpack.c.b16 %v2202, %v2198
        %v2803 = vpack.c.b16 %v2203, %v2199
        %v2804 = vpack.c.b16 %v2204, %v2200
        %v2805 = vpack.c.b16 %v2205, %v2201
        %v2806 = vpack.c.b16 %v2210, %v2206
        %v2807 = vpack.c.b16 %v2211, %v2207
        %v2808 = vpack.c.b16 %v2212, %v2208
        %v2809 = vpack.c.b16 %v2213, %v2209
        %v2810 = vpack.c.b16 %v2218, %v2214
        %v2811 = vpack.c.b16 %v2219, %v2215
        %v2812 = vpack.c.b16 %v2220, %v2216
        %v2813 = vpack.c.b16 %v2221, %v2217
        %v2814 = vpack.c.b16 %v2226, %v2222
        %v2815 = vpack.c.b16 %v2227, %v2223
        %v2816 = vpack.c.b16 %v2228, %v2224
        %v2817 = vpack.c.b16 %v2229, %v2225
        %v2818 = vpack.c.b16 %v2234, %v2230
        %v2819 = vpack.c.b16 %v2235, %v2231
        %v2820 = vpack.c.b16 %v2236, %v2232
        %v2821 = vpack.c.b16 %v2237, %v2233
        %v2822 = vpack.c.b16 %v2242, %v2238
        %v2823 = vpack.c.b16 %v2243, %v2239
        %v2824 = vpack.c.b16 %v2244, %v2240
        %v2825 = vpack.c.b16 %v2245, %v2241
        %v2826 = vpack.c.b16 %v2250, %v2246
        %v2827 = vpack.c.b16 %v2251, %v2247
        %v2828 = vpack.c.b16 %v2252, %v2248
        %v2829 = vpack.c.b16 %v2253, %v2249
        %v2830 = vpack.c.b16 %v2258, %v2254
        %v2831 = vpack.c.b16 %v2259, %v2255
        %v2832 = vpack.c.b16 %v2260, %v2256
        %v2833 = vpack.c.b16 %v2261, %v2257
        %v2834 = vpack.c.b16 %v2266, %v2262
        %v2835 = vpack.c.b16 %v2267, %v2263
        %v2836 = vpack.c.b16 %v2268, %v2264
        %v2837 = vpack.c.b16 %v2269, %v2265
        %v2838 = vpack.c.b16 %v2274, %v2270
        %v2839 = vpack.c.b16 %v2275, %v2271
        %v2840 = vpack.c.b16 %v2276, %v2272
        %v2841 = vpack.c.b16 %v2277, %v2273
        %v2842 = vpack.c.b16 %v2282, %v2278
        %v2843 = vpack.c.b16 %v2283, %v2279
        %v2844 = vpack.c.b16 %v2284, %v2280
        %v2845 = vpack.c.b16 %v2285, %v2281
        %v2846 = vpack.c.b16 %v2290, %v2286
        %v2847 = vpack.c.b16 %v2291, %v2287
        %v2848 = vpack.c.b16 %v2292, %v2288
        %v2849 = vpack.c.b16 %v2293, %v2289
        %v2850 = vpack.c.b16 %v2298, %v2294
        %v2851 = vpack.c.b16 %v2299, %v2295
        %v2852 = vpack.c.b16 %v2300, %v2296
        %v2853 = vpack.c.b16 %v2301, %v2297
        %v2854 = vpack.c.b16 %v2306, %v2302
        %v2855 = vpack.c.b16 %v2307, %v2303
        %v2856 = vpack.c.b16 %v2308, %v2304
        %v2857 = vpack.c.b16 %v2309, %v2305
        %v2858 = vpack.c.b16 %v2314, %v2310
        %v2859 = vpack.c.b16 %v2315, %v2311
        %v2860 = vpack.c.b16 %v2316, %v2312
        %v2861 = vpack.c.b16 %v2317, %v2313
        %v2862 = vpack.c.b16 %v2322, %v2318
        %v2863 = vpack.c.b16 %v2323, %v2319
        %v2864 = vpack.c.b16 %v2324, %v2320
        %v2865 = vpack.c.b16 %v2325, %v2321
        %v2866 = vpack.c.b16 %v2330, %v2326
        %v2867 = vpack.c.b16 %v2331, %v2327
        %v2868 = vpack.c.b16 %v2332, %v2328
        %v2869 = vpack.c.b16 %v2333, %v2329
        %v2870 = vpack.c.b16 %v2338, %v2334
        %v2871 = vpack.c.b16 %v2339, %v2335
        %v2872 = vpack.c.b16 %v2340, %v2336
        %v2873 = vpack.c.b16 %v2341, %v2337
        %v2874 = vpack.c.b16 %v2346, %v2342
        %v2875 = vpack.c.b16 %v2347, %v2343
        %v2876 = vpack.c.b16 %v2348, %v2344
        %v2877 = vpack.c.b16 %v2349, %v2345
        %v2878 = vpack.c.b16 %v2354, %v2350
        %v2879 = vpack.c.b16 %v2355, %v2351
        %v2880 = vpack.c.b16 %v2356, %v2352
        %v2881 = vpack.c.b16 %v2357, %v2353
        %v2882 = vpack.c.b16 %v2362, %v2358
        %v2883 = vpack.c.b16 %v2363, %v2359
        %v2884 = vpack.c.b16 %v2364, %v2360
        %v2885 = vpack.c.b16 %v2365, %v2361
        %v2886 = vpack.c.b16 %v2370, %v2366
        %v2887 = vpack.c.b16 %v2371, %v2367
        %v2888 = vpack.c.b16 %v2372, %v2368
        %v2889 = vpack.c.b16 %v2373, %v2369
        %v2890 = vpack.c.b16 %v2378, %v2374
        %v2891 = vpack.c.b16 %v2379, %v2375
        %v2892 = vpack.c.b16 %v2380, %v2376
        %v2893 = vpack.c.b16 %v2381, %v2377
        %3406 = vmatpush.bf16.msra.mxu0 %v2410
        %3407 = vmatpush.bf16.msra.mxu0 %v2406
        %3408 = vmatpush.bf16.msra.mxu0 %v2402
        %3409 = vmatpush.bf16.msra.mxu0 %v2398
        %3410 = vmatpush.bf16.msra.mxu0 %v2394
        %3411 = vmatpush.bf16.msra.mxu0 %v2390
        %3412 = vmatpush.bf16.msra.mxu0 %v2386
        %3413 = vmatpush.bf16.msra.mxu0 %v2382
        %3414 = vmatmul.bf16.gmra.mxu0 %v814
        %v3415 = vpop.f32.mrf.mxu0
        %v3416 = vadd.f32 0.0, %v3415
        %v3417 = vpop.f32.mrf.mxu0
        %3418 = vdwg.mxu0
        %3419 = vmatpush.bf16.msra.mxu0 %v2442
        %3420 = vmatpush.bf16.msra.mxu0 %v2438
        %3421 = vmatpush.bf16.msra.mxu0 %v2434
        %3422 = vmatpush.bf16.msra.mxu0 %v2430
        %3423 = vmatpush.bf16.msra.mxu0 %v2426
        %3424 = vmatpush.bf16.msra.mxu0 %v2422
        %3425 = vmatpush.bf16.msra.mxu0 %v2418
        %3426 = vmatpush.bf16.msra.mxu0 %v2414
        %3427 = vmatmul.bf16.gmra.mxu0 %v815
        %v3428 = vpop.f32.mrf.mxu0
        %v3429 = vadd.f32 %v3416, %v3428
        %v3430 = vpop.f32.mrf.mxu0
        %3431 = vdwg.mxu0
        %3432 = vmatpush.bf16.msra.mxu0 %v2474
        %3433 = vmatpush.bf16.msra.mxu0 %v2470
        %3434 = vmatpush.bf16.msra.mxu0 %v2466
        %3435 = vmatpush.bf16.msra.mxu0 %v2462
        %3436 = vmatpush.bf16.msra.mxu0 %v2458
        %3437 = vmatpush.bf16.msra.mxu0 %v2454
        %3438 = vmatpush.bf16.msra.mxu0 %v2450
        %3439 = vmatpush.bf16.msra.mxu0 %v2446
        %3440 = vmatmul.bf16.gmra.mxu0 %v816
        %v3441 = vpop.f32.mrf.mxu0
        %v3442 = vadd.f32 %v3429, %v3441
        %v3443 = vpop.f32.mrf.mxu0
        %3444 = vdwg.mxu0
        %3445 = vmatpush.bf16.msra.mxu0 %v2506
        %3446 = vmatpush.bf16.msra.mxu0 %v2502
        %3447 = vmatpush.bf16.msra.mxu0 %v2498
        %3448 = vmatpush.bf16.msra.mxu0 %v2494
        %3449 = vmatpush.bf16.msra.mxu0 %v2490
        %3450 = vmatpush.bf16.msra.mxu0 %v2486
        %3451 = vmatpush.bf16.msra.mxu0 %v2482
        %3452 = vmatpush.bf16.msra.mxu0 %v2478
        %3453 = vmatmul.bf16.gmra.mxu0 %v817
        %v3454 = vpop.f32.mrf.mxu0
        %v3455 = vadd.f32 %v3442, %v3454
        %v3456 = vpop.f32.mrf.mxu0
        %3457 = vdwg.mxu0
        %3458 = vmatpush.bf16.msra.mxu0 %v2538
        %3459 = vmatpush.bf16.msra.mxu0 %v2534
        %3460 = vmatpush.bf16.msra.mxu0 %v2530
        %3461 = vmatpush.bf16.msra.mxu0 %v2526
        %3462 = vmatpush.bf16.msra.mxu0 %v2522
        %3463 = vmatpush.bf16.msra.mxu0 %v2518
        %3464 = vmatpush.bf16.msra.mxu0 %v2514
        %3465 = vmatpush.bf16.msra.mxu0 %v2510
        %3466 = vmatmul.bf16.gmra.mxu0 %v818
        %v3467 = vpop.f32.mrf.mxu0
        %v3468 = vadd.f32 %v3455, %v3467
        %v3469 = vpop.f32.mrf.mxu0
        %3470 = vdwg.mxu0
        %3471 = vmatpush.bf16.msra.mxu0 %v2570
        %3472 = vmatpush.bf16.msra.mxu0 %v2566
        %3473 = vmatpush.bf16.msra.mxu0 %v2562
        %3474 = vmatpush.bf16.msra.mxu0 %v2558
        %3475 = vmatpush.bf16.msra.mxu0 %v2554
        %3476 = vmatpush.bf16.msra.mxu0 %v2550
        %3477 = vmatpush.bf16.msra.mxu0 %v2546
        %3478 = vmatpush.bf16.msra.mxu0 %v2542
        %3479 = vmatmul.bf16.gmra.mxu0 %v819
        %v3480 = vpop.f32.mrf.mxu0
        %v3481 = vadd.f32 %v3468, %v3480
        %v3482 = vpop.f32.mrf.mxu0
        %3483 = vdwg.mxu0
        %3484 = vmatpush.bf16.msra.mxu0 %v2602
        %3485 = vmatpush.bf16.msra.mxu0 %v2598
        %3486 = vmatpush.bf16.msra.mxu0 %v2594
        %3487 = vmatpush.bf16.msra.mxu0 %v2590
        %3488 = vmatpush.bf16.msra.mxu0 %v2586
        %3489 = vmatpush.bf16.msra.mxu0 %v2582
        %3490 = vmatpush.bf16.msra.mxu0 %v2578
        %3491 = vmatpush.bf16.msra.mxu0 %v2574
        %3492 = vmatmul.bf16.gmra.mxu0 %v820
        %v3493 = vpop.f32.mrf.mxu0
        %v3494 = vadd.f32 %v3481, %v3493
        %v3495 = vpop.f32.mrf.mxu0
        %3496 = vdwg.mxu0
        %3497 = vmatpush.bf16.msra.mxu0 %v2634
        %3498 = vmatpush.bf16.msra.mxu0 %v2630
        %3499 = vmatpush.bf16.msra.mxu0 %v2626
        %3500 = vmatpush.bf16.msra.mxu0 %v2622
        %3501 = vmatpush.bf16.msra.mxu0 %v2618
        %3502 = vmatpush.bf16.msra.mxu0 %v2614
        %3503 = vmatpush.bf16.msra.mxu0 %v2610
        %3504 = vmatpush.bf16.msra.mxu0 %v2606
        %3505 = vmatmul.bf16.gmra.mxu0 %v821
        %v3506 = vpop.f32.mrf.mxu0
        %v3507 = vadd.f32 %v3494, %v3506
        %v3508 = vpop.f32.mrf.mxu0
        %3509 = vdwg.mxu0
        %3510 = vmatpush.bf16.msra.mxu0 %v2666
        %3511 = vmatpush.bf16.msra.mxu0 %v2662
        %3512 = vmatpush.bf16.msra.mxu0 %v2658
        %3513 = vmatpush.bf16.msra.mxu0 %v2654
        %3514 = vmatpush.bf16.msra.mxu0 %v2650
        %3515 = vmatpush.bf16.msra.mxu0 %v2646
        %3516 = vmatpush.bf16.msra.mxu0 %v2642
        %3517 = vmatpush.bf16.msra.mxu0 %v2638
        %3518 = vmatmul.bf16.gmra.mxu0 %v822
        %v3519 = vpop.f32.mrf.mxu0
        %v3520 = vadd.f32 %v3507, %v3519
        %v3521 = vpop.f32.mrf.mxu0
        %3522 = vdwg.mxu0
        %3523 = vmatpush.bf16.msra.mxu0 %v2698
        %3524 = vmatpush.bf16.msra.mxu0 %v2694
        %3525 = vmatpush.bf16.msra.mxu0 %v2690
        %3526 = vmatpush.bf16.msra.mxu0 %v2686
        %3527 = vmatpush.bf16.msra.mxu0 %v2682
        %3528 = vmatpush.bf16.msra.mxu0 %v2678
        %3529 = vmatpush.bf16.msra.mxu0 %v2674
        %3530 = vmatpush.bf16.msra.mxu0 %v2670
        %3531 = vmatmul.bf16.gmra.mxu0 %v823
        %v3532 = vpop.f32.mrf.mxu0
        %v3533 = vadd.f32 %v3520, %v3532
        %v3534 = vpop.f32.mrf.mxu0
        %3535 = vdwg.mxu0
        %3536 = vmatpush.bf16.msra.mxu0 %v2730
        %3537 = vmatpush.bf16.msra.mxu0 %v2726
        %3538 = vmatpush.bf16.msra.mxu0 %v2722
        %3539 = vmatpush.bf16.msra.mxu0 %v2718
        %3540 = vmatpush.bf16.msra.mxu0 %v2714
        %3541 = vmatpush.bf16.msra.mxu0 %v2710
        %3542 = vmatpush.bf16.msra.mxu0 %v2706
        %3543 = vmatpush.bf16.msra.mxu0 %v2702
        %3544 = vmatmul.bf16.gmra.mxu0 %v824
        %v3545 = vpop.f32.mrf.mxu0
        %v3546 = vadd.f32 %v3533, %v3545
        %v3547 = vpop.f32.mrf.mxu0
        %3548 = vdwg.mxu0
        %3549 = vmatpush.bf16.msra.mxu0 %v2762
        %3550 = vmatpush.bf16.msra.mxu0 %v2758
        %3551 = vmatpush.bf16.msra.mxu0 %v2754
        %3552 = vmatpush.bf16.msra.mxu0 %v2750
        %3553 = vmatpush.bf16.msra.mxu0 %v2746
        %3554 = vmatpush.bf16.msra.mxu0 %v2742
        %3555 = vmatpush.bf16.msra.mxu0 %v2738
        %3556 = vmatpush.bf16.msra.mxu0 %v2734
        %3557 = vmatmul.bf16.gmra.mxu0 %v825
        %v3558 = vpop.f32.mrf.mxu0
        %v3559 = vadd.f32 %v3546, %v3558
        %v3560 = vpop.f32.mrf.mxu0
        %3561 = vdwg.mxu0
        %3562 = vmatpush.bf16.msra.mxu0 %v2794
        %3563 = vmatpush.bf16.msra.mxu0 %v2790
        %3564 = vmatpush.bf16.msra.mxu0 %v2786
        %3565 = vmatpush.bf16.msra.mxu0 %v2782
        %3566 = vmatpush.bf16.msra.mxu0 %v2778
        %3567 = vmatpush.bf16.msra.mxu0 %v2774
        %3568 = vmatpush.bf16.msra.mxu0 %v2770
        %3569 = vmatpush.bf16.msra.mxu0 %v2766
        %3570 = vmatmul.bf16.gmra.mxu0 %v826
        %v3571 = vpop.f32.mrf.mxu0
        %v3572 = vadd.f32 %v3559, %v3571
        %v3573 = vpop.f32.mrf.mxu0
        %3574 = vdwg.mxu0
        %3575 = vmatpush.bf16.msra.mxu0 %v2826
        %3576 = vmatpush.bf16.msra.mxu0 %v2822
        %3577 = vmatpush.bf16.msra.mxu0 %v2818
        %3578 = vmatpush.bf16.msra.mxu0 %v2814
        %3579 = vmatpush.bf16.msra.mxu0 %v2810
        %3580 = vmatpush.bf16.msra.mxu0 %v2806
        %3581 = vmatpush.bf16.msra.mxu0 %v2802
        %3582 = vmatpush.bf16.msra.mxu0 %v2798
        %3583 = vmatmul.bf16.gmra.mxu0 %v827
        %v3584 = vpop.f32.mrf.mxu0
        %v3585 = vadd.f32 %v3572, %v3584
        %v3586 = vpop.f32.mrf.mxu0
        %3587 = vdwg.mxu0
        %3588 = vmatpush.bf16.msra.mxu0 %v2858
        %3589 = vmatpush.bf16.msra.mxu0 %v2854
        %3590 = vmatpush.bf16.msra.mxu0 %v2850
        %3591 = vmatpush.bf16.msra.mxu0 %v2846
        %3592 = vmatpush.bf16.msra.mxu0 %v2842
        %3593 = vmatpush.bf16.msra.mxu0 %v2838
        %3594 = vmatpush.bf16.msra.mxu0 %v2834
        %3595 = vmatpush.bf16.msra.mxu0 %v2830
        %3596 = vmatmul.bf16.gmra.mxu0 %v828
        %v3597 = vpop.f32.mrf.mxu0
        %v3598 = vadd.f32 %v3585, %v3597
        %v3599 = vpop.f32.mrf.mxu0
        %3600 = vdwg.mxu0
        %3601 = vmatpush.bf16.msra.mxu0 %v2890
        %3602 = vmatpush.bf16.msra.mxu0 %v2886
        %3603 = vmatpush.bf16.msra.mxu0 %v2882
        %3604 = vmatpush.bf16.msra.mxu0 %v2878
        %3605 = vmatpush.bf16.msra.mxu0 %v2874
        %3606 = vmatpush.bf16.msra.mxu0 %v2870
        %3607 = vmatpush.bf16.msra.mxu0 %v2866
        %3608 = vmatpush.bf16.msra.mxu0 %v2862
        %3609 = vmatmul.bf16.gmra.mxu0 %v829
        %v3610 = vpop.f32.mrf.mxu0
        %v3611 = vadd.f32 %v3598, %v3610
        %v3612 = vpop.f32.mrf.mxu0
        %3613 = vdwg.mxu0
        %3614 = vmatpush.bf16.msra.mxu0 %v2411
        %3615 = vmatpush.bf16.msra.mxu0 %v2407
        %3616 = vmatpush.bf16.msra.mxu0 %v2403
        %3617 = vmatpush.bf16.msra.mxu0 %v2399
        %3618 = vmatpush.bf16.msra.mxu0 %v2395
        %3619 = vmatpush.bf16.msra.mxu0 %v2391
        %3620 = vmatpush.bf16.msra.mxu0 %v2387
        %3621 = vmatpush.bf16.msra.mxu0 %v2383
        %3622 = vmatmul.bf16.gmra.mxu0 %v814
        %v3623 = vpop.f32.mrf.mxu0
        %v3624 = vadd.f32 0.0, %v3623
        %v3625 = vpop.f32.mrf.mxu0
        %3626 = vdwg.mxu0
        %3627 = vmatpush.bf16.msra.mxu0 %v2443
        %3628 = vmatpush.bf16.msra.mxu0 %v2439
        %3629 = vmatpush.bf16.msra.mxu0 %v2435
        %3630 = vmatpush.bf16.msra.mxu0 %v2431
        %3631 = vmatpush.bf16.msra.mxu0 %v2427
        %3632 = vmatpush.bf16.msra.mxu0 %v2423
        %3633 = vmatpush.bf16.msra.mxu0 %v2419
        %3634 = vmatpush.bf16.msra.mxu0 %v2415
        %3635 = vmatmul.bf16.gmra.mxu0 %v815
        %v3636 = vpop.f32.mrf.mxu0
        %v3637 = vadd.f32 %v3624, %v3636
        %v3638 = vpop.f32.mrf.mxu0
        %3639 = vdwg.mxu0
        %3640 = vmatpush.bf16.msra.mxu0 %v2475
        %3641 = vmatpush.bf16.msra.mxu0 %v2471
        %3642 = vmatpush.bf16.msra.mxu0 %v2467
        %3643 = vmatpush.bf16.msra.mxu0 %v2463
        %3644 = vmatpush.bf16.msra.mxu0 %v2459
        %3645 = vmatpush.bf16.msra.mxu0 %v2455
        %3646 = vmatpush.bf16.msra.mxu0 %v2451
        %3647 = vmatpush.bf16.msra.mxu0 %v2447
        %3648 = vmatmul.bf16.gmra.mxu0 %v816
        %v3649 = vpop.f32.mrf.mxu0
        %v3650 = vadd.f32 %v3637, %v3649
        %v3651 = vpop.f32.mrf.mxu0
        %3652 = vdwg.mxu0
        %3653 = vmatpush.bf16.msra.mxu0 %v2507
        %3654 = vmatpush.bf16.msra.mxu0 %v2503
        %3655 = vmatpush.bf16.msra.mxu0 %v2499
        %3656 = vmatpush.bf16.msra.mxu0 %v2495
        %3657 = vmatpush.bf16.msra.mxu0 %v2491
        %3658 = vmatpush.bf16.msra.mxu0 %v2487
        %3659 = vmatpush.bf16.msra.mxu0 %v2483
        %3660 = vmatpush.bf16.msra.mxu0 %v2479
        %3661 = vmatmul.bf16.gmra.mxu0 %v817
        %v3662 = vpop.f32.mrf.mxu0
        %v3663 = vadd.f32 %v3650, %v3662
        %v3664 = vpop.f32.mrf.mxu0
        %3665 = vdwg.mxu0
        %3666 = vmatpush.bf16.msra.mxu0 %v2539
        %3667 = vmatpush.bf16.msra.mxu0 %v2535
        %3668 = vmatpush.bf16.msra.mxu0 %v2531
        %3669 = vmatpush.bf16.msra.mxu0 %v2527
        %3670 = vmatpush.bf16.msra.mxu0 %v2523
        %3671 = vmatpush.bf16.msra.mxu0 %v2519
        %3672 = vmatpush.bf16.msra.mxu0 %v2515
        %3673 = vmatpush.bf16.msra.mxu0 %v2511
        %3674 = vmatmul.bf16.gmra.mxu0 %v818
        %v3675 = vpop.f32.mrf.mxu0
        %v3676 = vadd.f32 %v3663, %v3675
        %v3677 = vpop.f32.mrf.mxu0
        %3678 = vdwg.mxu0
        %3679 = vmatpush.bf16.msra.mxu0 %v2571
        %3680 = vmatpush.bf16.msra.mxu0 %v2567
        %3681 = vmatpush.bf16.msra.mxu0 %v2563
        %3682 = vmatpush.bf16.msra.mxu0 %v2559
        %3683 = vmatpush.bf16.msra.mxu0 %v2555
        %3684 = vmatpush.bf16.msra.mxu0 %v2551
        %3685 = vmatpush.bf16.msra.mxu0 %v2547
        %3686 = vmatpush.bf16.msra.mxu0 %v2543
        %3687 = vmatmul.bf16.gmra.mxu0 %v819
        %v3688 = vpop.f32.mrf.mxu0
        %v3689 = vadd.f32 %v3676, %v3688
        %v3690 = vpop.f32.mrf.mxu0
        %3691 = vdwg.mxu0
        %3692 = vmatpush.bf16.msra.mxu0 %v2603
        %3693 = vmatpush.bf16.msra.mxu0 %v2599
        %3694 = vmatpush.bf16.msra.mxu0 %v2595
        %3695 = vmatpush.bf16.msra.mxu0 %v2591
        %3696 = vmatpush.bf16.msra.mxu0 %v2587
        %3697 = vmatpush.bf16.msra.mxu0 %v2583
        %3698 = vmatpush.bf16.msra.mxu0 %v2579
        %3699 = vmatpush.bf16.msra.mxu0 %v2575
        %3700 = vmatmul.bf16.gmra.mxu0 %v820
        %v3701 = vpop.f32.mrf.mxu0
        %v3702 = vadd.f32 %v3689, %v3701
        %v3703 = vpop.f32.mrf.mxu0
        %3704 = vdwg.mxu0
        %3705 = vmatpush.bf16.msra.mxu0 %v2635
        %3706 = vmatpush.bf16.msra.mxu0 %v2631
        %3707 = vmatpush.bf16.msra.mxu0 %v2627
        %3708 = vmatpush.bf16.msra.mxu0 %v2623
        %3709 = vmatpush.bf16.msra.mxu0 %v2619
        %3710 = vmatpush.bf16.msra.mxu0 %v2615
        %3711 = vmatpush.bf16.msra.mxu0 %v2611
        %3712 = vmatpush.bf16.msra.mxu0 %v2607
        %3713 = vmatmul.bf16.gmra.mxu0 %v821
        %v3714 = vpop.f32.mrf.mxu0
        %v3715 = vadd.f32 %v3702, %v3714
        %v3716 = vpop.f32.mrf.mxu0
        %3717 = vdwg.mxu0
        %3718 = vmatpush.bf16.msra.mxu0 %v2667
        %3719 = vmatpush.bf16.msra.mxu0 %v2663
        %3720 = vmatpush.bf16.msra.mxu0 %v2659
        %3721 = vmatpush.bf16.msra.mxu0 %v2655
        %3722 = vmatpush.bf16.msra.mxu0 %v2651
        %3723 = vmatpush.bf16.msra.mxu0 %v2647
        %3724 = vmatpush.bf16.msra.mxu0 %v2643
        %3725 = vmatpush.bf16.msra.mxu0 %v2639
        %3726 = vmatmul.bf16.gmra.mxu0 %v822
        %v3727 = vpop.f32.mrf.mxu0
        %v3728 = vadd.f32 %v3715, %v3727
        %v3729 = vpop.f32.mrf.mxu0
        %3730 = vdwg.mxu0
        %3731 = vmatpush.bf16.msra.mxu0 %v2699
        %3732 = vmatpush.bf16.msra.mxu0 %v2695
        %3733 = vmatpush.bf16.msra.mxu0 %v2691
        %3734 = vmatpush.bf16.msra.mxu0 %v2687
        %3735 = vmatpush.bf16.msra.mxu0 %v2683
        %3736 = vmatpush.bf16.msra.mxu0 %v2679
        %3737 = vmatpush.bf16.msra.mxu0 %v2675
        %3738 = vmatpush.bf16.msra.mxu0 %v2671
        %3739 = vmatmul.bf16.gmra.mxu0 %v823
        %v3740 = vpop.f32.mrf.mxu0
        %v3741 = vadd.f32 %v3728, %v3740
        %v3742 = vpop.f32.mrf.mxu0
        %3743 = vdwg.mxu0
        %3744 = vmatpush.bf16.msra.mxu0 %v2731
        %3745 = vmatpush.bf16.msra.mxu0 %v2727
        %3746 = vmatpush.bf16.msra.mxu0 %v2723
        %3747 = vmatpush.bf16.msra.mxu0 %v2719
        %3748 = vmatpush.bf16.msra.mxu0 %v2715
        %3749 = vmatpush.bf16.msra.mxu0 %v2711
        %3750 = vmatpush.bf16.msra.mxu0 %v2707
        %3751 = vmatpush.bf16.msra.mxu0 %v2703
        %3752 = vmatmul.bf16.gmra.mxu0 %v824
        %v3753 = vpop.f32.mrf.mxu0
        %v3754 = vadd.f32 %v3741, %v3753
        %v3755 = vpop.f32.mrf.mxu0
        %3756 = vdwg.mxu0
        %3757 = vmatpush.bf16.msra.mxu0 %v2763
        %3758 = vmatpush.bf16.msra.mxu0 %v2759
        %3759 = vmatpush.bf16.msra.mxu0 %v2755
        %3760 = vmatpush.bf16.msra.mxu0 %v2751
        %3761 = vmatpush.bf16.msra.mxu0 %v2747
        %3762 = vmatpush.bf16.msra.mxu0 %v2743
        %3763 = vmatpush.bf16.msra.mxu0 %v2739
        %3764 = vmatpush.bf16.msra.mxu0 %v2735
        %3765 = vmatmul.bf16.gmra.mxu0 %v825
        %v3766 = vpop.f32.mrf.mxu0
        %v3767 = vadd.f32 %v3754, %v3766
        %v3768 = vpop.f32.mrf.mxu0
        %3769 = vdwg.mxu0
        %3770 = vmatpush.bf16.msra.mxu0 %v2795
        %3771 = vmatpush.bf16.msra.mxu0 %v2791
        %3772 = vmatpush.bf16.msra.mxu0 %v2787
        %3773 = vmatpush.bf16.msra.mxu0 %v2783
        %3774 = vmatpush.bf16.msra.mxu0 %v2779
        %3775 = vmatpush.bf16.msra.mxu0 %v2775
        %3776 = vmatpush.bf16.msra.mxu0 %v2771
        %3777 = vmatpush.bf16.msra.mxu0 %v2767
        %3778 = vmatmul.bf16.gmra.mxu0 %v826
        %v3779 = vpop.f32.mrf.mxu0
        %v3780 = vadd.f32 %v3767, %v3779
        %v3781 = vpop.f32.mrf.mxu0
        %3782 = vdwg.mxu0
        %3783 = vmatpush.bf16.msra.mxu0 %v2827
        %3784 = vmatpush.bf16.msra.mxu0 %v2823
        %3785 = vmatpush.bf16.msra.mxu0 %v2819
        %3786 = vmatpush.bf16.msra.mxu0 %v2815
        %3787 = vmatpush.bf16.msra.mxu0 %v2811
        %3788 = vmatpush.bf16.msra.mxu0 %v2807
        %3789 = vmatpush.bf16.msra.mxu0 %v2803
        %3790 = vmatpush.bf16.msra.mxu0 %v2799
        %3791 = vmatmul.bf16.gmra.mxu0 %v827
        %v3792 = vpop.f32.mrf.mxu0
        %v3793 = vadd.f32 %v3780, %v3792
        %v3794 = vpop.f32.mrf.mxu0
        %3795 = vdwg.mxu0
        %3796 = vmatpush.bf16.msra.mxu0 %v2859
        %3797 = vmatpush.bf16.msra.mxu0 %v2855
        %3798 = vmatpush.bf16.msra.mxu0 %v2851
        %3799 = vmatpush.bf16.msra.mxu0 %v2847
        %3800 = vmatpush.bf16.msra.mxu0 %v2843
        %3801 = vmatpush.bf16.msra.mxu0 %v2839
        %3802 = vmatpush.bf16.msra.mxu0 %v2835
        %3803 = vmatpush.bf16.msra.mxu0 %v2831
        %3804 = vmatmul.bf16.gmra.mxu0 %v828
        %v3805 = vpop.f32.mrf.mxu0
        %v3806 = vadd.f32 %v3793, %v3805
        %v3807 = vpop.f32.mrf.mxu0
        %3808 = vdwg.mxu0
        %3809 = vmatpush.bf16.msra.mxu0 %v2891
        %3810 = vmatpush.bf16.msra.mxu0 %v2887
        %3811 = vmatpush.bf16.msra.mxu0 %v2883
        %3812 = vmatpush.bf16.msra.mxu0 %v2879
        %3813 = vmatpush.bf16.msra.mxu0 %v2875
        %3814 = vmatpush.bf16.msra.mxu0 %v2871
        %3815 = vmatpush.bf16.msra.mxu0 %v2867
        %3816 = vmatpush.bf16.msra.mxu0 %v2863
        %3817 = vmatmul.bf16.gmra.mxu0 %v829
        %v3818 = vpop.f32.mrf.mxu0
        %v3819 = vadd.f32 %v3806, %v3818
        %v3820 = vpop.f32.mrf.mxu0
        %3821 = vdwg.mxu0
        %3822 = vmatpush.bf16.msra.mxu0 %v2412
        %3823 = vmatpush.bf16.msra.mxu0 %v2408
        %3824 = vmatpush.bf16.msra.mxu0 %v2404
        %3825 = vmatpush.bf16.msra.mxu0 %v2400
        %3826 = vmatpush.bf16.msra.mxu0 %v2396
        %3827 = vmatpush.bf16.msra.mxu0 %v2392
        %3828 = vmatpush.bf16.msra.mxu0 %v2388
        %3829 = vmatpush.bf16.msra.mxu0 %v2384
        %3830 = vmatmul.bf16.gmra.mxu0 %v814
        %v3831 = vpop.f32.mrf.mxu0
        %v3832 = vadd.f32 0.0, %v3831
        %v3833 = vpop.f32.mrf.mxu0
        %3834 = vdwg.mxu0
        %3835 = vmatpush.bf16.msra.mxu0 %v2444
        %3836 = vmatpush.bf16.msra.mxu0 %v2440
        %3837 = vmatpush.bf16.msra.mxu0 %v2436
        %3838 = vmatpush.bf16.msra.mxu0 %v2432
        %3839 = vmatpush.bf16.msra.mxu0 %v2428
        %3840 = vmatpush.bf16.msra.mxu0 %v2424
        %3841 = vmatpush.bf16.msra.mxu0 %v2420
        %3842 = vmatpush.bf16.msra.mxu0 %v2416
        %3843 = vmatmul.bf16.gmra.mxu0 %v815
        %v3844 = vpop.f32.mrf.mxu0
        %v3845 = vadd.f32 %v3832, %v3844
        %v3846 = vpop.f32.mrf.mxu0
        %3847 = vdwg.mxu0
        %3848 = vmatpush.bf16.msra.mxu0 %v2476
        %3849 = vmatpush.bf16.msra.mxu0 %v2472
        %3850 = vmatpush.bf16.msra.mxu0 %v2468
        %3851 = vmatpush.bf16.msra.mxu0 %v2464
        %3852 = vmatpush.bf16.msra.mxu0 %v2460
        %3853 = vmatpush.bf16.msra.mxu0 %v2456
        %3854 = vmatpush.bf16.msra.mxu0 %v2452
        %3855 = vmatpush.bf16.msra.mxu0 %v2448
        %3856 = vmatmul.bf16.gmra.mxu0 %v816
        %v3857 = vpop.f32.mrf.mxu0
        %v3858 = vadd.f32 %v3845, %v3857
        %v3859 = vpop.f32.mrf.mxu0
        %3860 = vdwg.mxu0
        %3861 = vmatpush.bf16.msra.mxu0 %v2508
        %3862 = vmatpush.bf16.msra.mxu0 %v2504
        %3863 = vmatpush.bf16.msra.mxu0 %v2500
        %3864 = vmatpush.bf16.msra.mxu0 %v2496
        %3865 = vmatpush.bf16.msra.mxu0 %v2492
        %3866 = vmatpush.bf16.msra.mxu0 %v2488
        %3867 = vmatpush.bf16.msra.mxu0 %v2484
        %3868 = vmatpush.bf16.msra.mxu0 %v2480
        %3869 = vmatmul.bf16.gmra.mxu0 %v817
        %v3870 = vpop.f32.mrf.mxu0
        %v3871 = vadd.f32 %v3858, %v3870
        %v3872 = vpop.f32.mrf.mxu0
        %3873 = vdwg.mxu0
        %3874 = vmatpush.bf16.msra.mxu0 %v2540
        %3875 = vmatpush.bf16.msra.mxu0 %v2536
        %3876 = vmatpush.bf16.msra.mxu0 %v2532
        %3877 = vmatpush.bf16.msra.mxu0 %v2528
        %3878 = vmatpush.bf16.msra.mxu0 %v2524
        %3879 = vmatpush.bf16.msra.mxu0 %v2520
        %3880 = vmatpush.bf16.msra.mxu0 %v2516
        %3881 = vmatpush.bf16.msra.mxu0 %v2512
        %3882 = vmatmul.bf16.gmra.mxu0 %v818
        %v3883 = vpop.f32.mrf.mxu0
        %v3884 = vadd.f32 %v3871, %v3883
        %v3885 = vpop.f32.mrf.mxu0
        %3886 = vdwg.mxu0
        %3887 = vmatpush.bf16.msra.mxu0 %v2572
        %3888 = vmatpush.bf16.msra.mxu0 %v2568
        %3889 = vmatpush.bf16.msra.mxu0 %v2564
        %3890 = vmatpush.bf16.msra.mxu0 %v2560
        %3891 = vmatpush.bf16.msra.mxu0 %v2556
        %3892 = vmatpush.bf16.msra.mxu0 %v2552
        %3893 = vmatpush.bf16.msra.mxu0 %v2548
        %3894 = vmatpush.bf16.msra.mxu0 %v2544
        %3895 = vmatmul.bf16.gmra.mxu0 %v819
        %v3896 = vpop.f32.mrf.mxu0
        %v3897 = vadd.f32 %v3884, %v3896
        %v3898 = vpop.f32.mrf.mxu0
        %3899 = vdwg.mxu0
        %3900 = vmatpush.bf16.msra.mxu0 %v2604
        %3901 = vmatpush.bf16.msra.mxu0 %v2600
        %3902 = vmatpush.bf16.msra.mxu0 %v2596
        %3903 = vmatpush.bf16.msra.mxu0 %v2592
        %3904 = vmatpush.bf16.msra.mxu0 %v2588
        %3905 = vmatpush.bf16.msra.mxu0 %v2584
        %3906 = vmatpush.bf16.msra.mxu0 %v2580
        %3907 = vmatpush.bf16.msra.mxu0 %v2576
        %3908 = vmatmul.bf16.gmra.mxu0 %v820
        %v3909 = vpop.f32.mrf.mxu0
        %v3910 = vadd.f32 %v3897, %v3909
        %v3911 = vpop.f32.mrf.mxu0
        %3912 = vdwg.mxu0
        %3913 = vmatpush.bf16.msra.mxu0 %v2636
        %3914 = vmatpush.bf16.msra.mxu0 %v2632
        %3915 = vmatpush.bf16.msra.mxu0 %v2628
        %3916 = vmatpush.bf16.msra.mxu0 %v2624
        %3917 = vmatpush.bf16.msra.mxu0 %v2620
        %3918 = vmatpush.bf16.msra.mxu0 %v2616
        %3919 = vmatpush.bf16.msra.mxu0 %v2612
        %3920 = vmatpush.bf16.msra.mxu0 %v2608
        %3921 = vmatmul.bf16.gmra.mxu0 %v821
        %v3922 = vpop.f32.mrf.mxu0
        %v3923 = vadd.f32 %v3910, %v3922
        %v3924 = vpop.f32.mrf.mxu0
        %3925 = vdwg.mxu0
        %3926 = vmatpush.bf16.msra.mxu0 %v2668
        %3927 = vmatpush.bf16.msra.mxu0 %v2664
        %3928 = vmatpush.bf16.msra.mxu0 %v2660
        %3929 = vmatpush.bf16.msra.mxu0 %v2656
        %3930 = vmatpush.bf16.msra.mxu0 %v2652
        %3931 = vmatpush.bf16.msra.mxu0 %v2648
        %3932 = vmatpush.bf16.msra.mxu0 %v2644
        %3933 = vmatpush.bf16.msra.mxu0 %v2640
        %3934 = vmatmul.bf16.gmra.mxu0 %v822
        %v3935 = vpop.f32.mrf.mxu0
        %v3936 = vadd.f32 %v3923, %v3935
        %v3937 = vpop.f32.mrf.mxu0
        %3938 = vdwg.mxu0
        %3939 = vmatpush.bf16.msra.mxu0 %v2700
        %3940 = vmatpush.bf16.msra.mxu0 %v2696
        %3941 = vmatpush.bf16.msra.mxu0 %v2692
        %3942 = vmatpush.bf16.msra.mxu0 %v2688
        %3943 = vmatpush.bf16.msra.mxu0 %v2684
        %3944 = vmatpush.bf16.msra.mxu0 %v2680
        %3945 = vmatpush.bf16.msra.mxu0 %v2676
        %3946 = vmatpush.bf16.msra.mxu0 %v2672
        %3947 = vmatmul.bf16.gmra.mxu0 %v823
        %v3948 = vpop.f32.mrf.mxu0
        %v3949 = vadd.f32 %v3936, %v3948
        %v3950 = vpop.f32.mrf.mxu0
        %3951 = vdwg.mxu0
        %3952 = vmatpush.bf16.msra.mxu0 %v2732
        %3953 = vmatpush.bf16.msra.mxu0 %v2728
        %3954 = vmatpush.bf16.msra.mxu0 %v2724
        %3955 = vmatpush.bf16.msra.mxu0 %v2720
        %3956 = vmatpush.bf16.msra.mxu0 %v2716
        %3957 = vmatpush.bf16.msra.mxu0 %v2712
        %3958 = vmatpush.bf16.msra.mxu0 %v2708
        %3959 = vmatpush.bf16.msra.mxu0 %v2704
        %3960 = vmatmul.bf16.gmra.mxu0 %v824
        %v3961 = vpop.f32.mrf.mxu0
        %v3962 = vadd.f32 %v3949, %v3961
        %v3963 = vpop.f32.mrf.mxu0
        %3964 = vdwg.mxu0
        %3965 = vmatpush.bf16.msra.mxu0 %v2764
        %3966 = vmatpush.bf16.msra.mxu0 %v2760
        %3967 = vmatpush.bf16.msra.mxu0 %v2756
        %3968 = vmatpush.bf16.msra.mxu0 %v2752
        %3969 = vmatpush.bf16.msra.mxu0 %v2748
        %3970 = vmatpush.bf16.msra.mxu0 %v2744
        %3971 = vmatpush.bf16.msra.mxu0 %v2740
        %3972 = vmatpush.bf16.msra.mxu0 %v2736
        %3973 = vmatmul.bf16.gmra.mxu0 %v825
        %v3974 = vpop.f32.mrf.mxu0
        %v3975 = vadd.f32 %v3962, %v3974
        %v3976 = vpop.f32.mrf.mxu0
        %3977 = vdwg.mxu0
        %3978 = vmatpush.bf16.msra.mxu0 %v2796
        %3979 = vmatpush.bf16.msra.mxu0 %v2792
        %3980 = vmatpush.bf16.msra.mxu0 %v2788
        %3981 = vmatpush.bf16.msra.mxu0 %v2784
        %3982 = vmatpush.bf16.msra.mxu0 %v2780
        %3983 = vmatpush.bf16.msra.mxu0 %v2776
        %3984 = vmatpush.bf16.msra.mxu0 %v2772
        %3985 = vmatpush.bf16.msra.mxu0 %v2768
        %3986 = vmatmul.bf16.gmra.mxu0 %v826
        %v3987 = vpop.f32.mrf.mxu0
        %v3988 = vadd.f32 %v3975, %v3987
        %v3989 = vpop.f32.mrf.mxu0
        %3990 = vdwg.mxu0
        %3991 = vmatpush.bf16.msra.mxu0 %v2828
        %3992 = vmatpush.bf16.msra.mxu0 %v2824
        %3993 = vmatpush.bf16.msra.mxu0 %v2820
        %3994 = vmatpush.bf16.msra.mxu0 %v2816
        %3995 = vmatpush.bf16.msra.mxu0 %v2812
        %3996 = vmatpush.bf16.msra.mxu0 %v2808
        %3997 = vmatpush.bf16.msra.mxu0 %v2804
        %3998 = vmatpush.bf16.msra.mxu0 %v2800
        %3999 = vmatmul.bf16.gmra.mxu0 %v827
        %v4000 = vpop.f32.mrf.mxu0
        %v4001 = vadd.f32 %v3988, %v4000
        %v4002 = vpop.f32.mrf.mxu0
        %4003 = vdwg.mxu0
        %4004 = vmatpush.bf16.msra.mxu0 %v2860
        %4005 = vmatpush.bf16.msra.mxu0 %v2856
        %4006 = vmatpush.bf16.msra.mxu0 %v2852
        %4007 = vmatpush.bf16.msra.mxu0 %v2848
        %4008 = vmatpush.bf16.msra.mxu0 %v2844
        %4009 = vmatpush.bf16.msra.mxu0 %v2840
        %4010 = vmatpush.bf16.msra.mxu0 %v2836
        %4011 = vmatpush.bf16.msra.mxu0 %v2832
        %4012 = vmatmul.bf16.gmra.mxu0 %v828
        %v4013 = vpop.f32.mrf.mxu0
        %v4014 = vadd.f32 %v4001, %v4013
        %v4015 = vpop.f32.mrf.mxu0
        %4016 = vdwg.mxu0
        %4017 = vmatpush.bf16.msra.mxu0 %v2892
        %4018 = vmatpush.bf16.msra.mxu0 %v2888
        %4019 = vmatpush.bf16.msra.mxu0 %v2884
        %4020 = vmatpush.bf16.msra.mxu0 %v2880
        %4021 = vmatpush.bf16.msra.mxu0 %v2876
        %4022 = vmatpush.bf16.msra.mxu0 %v2872
        %4023 = vmatpush.bf16.msra.mxu0 %v2868
        %4024 = vmatpush.bf16.msra.mxu0 %v2864
        %4025 = vmatmul.bf16.gmra.mxu0 %v829
        %v4026 = vpop.f32.mrf.mxu0
        %v4027 = vadd.f32 %v4014, %v4026
        %v4028 = vpop.f32.mrf.mxu0
        %4029 = vdwg.mxu0
        %4030 = vmatpush.bf16.msra.mxu0 %v2413
        %4031 = vmatpush.bf16.msra.mxu0 %v2409
        %4032 = vmatpush.bf16.msra.mxu0 %v2405
        %4033 = vmatpush.bf16.msra.mxu0 %v2401
        %4034 = vmatpush.bf16.msra.mxu0 %v2397
        %4035 = vmatpush.bf16.msra.mxu0 %v2393
        %4036 = vmatpush.bf16.msra.mxu0 %v2389
        %4037 = vmatpush.bf16.msra.mxu0 %v2385
        %4038 = vmatmul.bf16.gmra.mxu0 %v814
        %v4039 = vpop.f32.mrf.mxu0
        %v4040 = vadd.f32 0.0, %v4039
        %v4041 = vpop.f32.mrf.mxu0
        %4042 = vdwg.mxu0
        %4043 = vmatpush.bf16.msra.mxu0 %v2445
        %4044 = vmatpush.bf16.msra.mxu0 %v2441
        %4045 = vmatpush.bf16.msra.mxu0 %v2437
        %4046 = vmatpush.bf16.msra.mxu0 %v2433
        %4047 = vmatpush.bf16.msra.mxu0 %v2429
        %4048 = vmatpush.bf16.msra.mxu0 %v2425
        %4049 = vmatpush.bf16.msra.mxu0 %v2421
        %4050 = vmatpush.bf16.msra.mxu0 %v2417
        %4051 = vmatmul.bf16.gmra.mxu0 %v815
        %v4052 = vpop.f32.mrf.mxu0
        %v4053 = vadd.f32 %v4040, %v4052
        %v4054 = vpop.f32.mrf.mxu0
        %4055 = vdwg.mxu0
        %4056 = vmatpush.bf16.msra.mxu0 %v2477
        %4057 = vmatpush.bf16.msra.mxu0 %v2473
        %4058 = vmatpush.bf16.msra.mxu0 %v2469
        %4059 = vmatpush.bf16.msra.mxu0 %v2465
        %4060 = vmatpush.bf16.msra.mxu0 %v2461
        %4061 = vmatpush.bf16.msra.mxu0 %v2457
        %4062 = vmatpush.bf16.msra.mxu0 %v2453
        %4063 = vmatpush.bf16.msra.mxu0 %v2449
        %4064 = vmatmul.bf16.gmra.mxu0 %v816
        %v4065 = vpop.f32.mrf.mxu0
        %v4066 = vadd.f32 %v4053, %v4065
        %v4067 = vpop.f32.mrf.mxu0
        %4068 = vdwg.mxu0
        %4069 = vmatpush.bf16.msra.mxu0 %v2509
        %4070 = vmatpush.bf16.msra.mxu0 %v2505
        %4071 = vmatpush.bf16.msra.mxu0 %v2501
        %4072 = vmatpush.bf16.msra.mxu0 %v2497
        %4073 = vmatpush.bf16.msra.mxu0 %v2493
        %4074 = vmatpush.bf16.msra.mxu0 %v2489
        %4075 = vmatpush.bf16.msra.mxu0 %v2485
        %4076 = vmatpush.bf16.msra.mxu0 %v2481
        %4077 = vmatmul.bf16.gmra.mxu0 %v817
        %v4078 = vpop.f32.mrf.mxu0
        %v4079 = vadd.f32 %v4066, %v4078
        %v4080 = vpop.f32.mrf.mxu0
        %4081 = vdwg.mxu0
        %4082 = vmatpush.bf16.msra.mxu0 %v2541
        %4083 = vmatpush.bf16.msra.mxu0 %v2537
        %4084 = vmatpush.bf16.msra.mxu0 %v2533
        %4085 = vmatpush.bf16.msra.mxu0 %v2529
        %4086 = vmatpush.bf16.msra.mxu0 %v2525
        %4087 = vmatpush.bf16.msra.mxu0 %v2521
        %4088 = vmatpush.bf16.msra.mxu0 %v2517
        %4089 = vmatpush.bf16.msra.mxu0 %v2513
        %4090 = vmatmul.bf16.gmra.mxu0 %v818
        %v4091 = vpop.f32.mrf.mxu0
        %v4092 = vadd.f32 %v4079, %v4091
        %v4093 = vpop.f32.mrf.mxu0
        %4094 = vdwg.mxu0
        %4095 = vmatpush.bf16.msra.mxu0 %v2573
        %4096 = vmatpush.bf16.msra.mxu0 %v2569
        %4097 = vmatpush.bf16.msra.mxu0 %v2565
        %4098 = vmatpush.bf16.msra.mxu0 %v2561
        %4099 = vmatpush.bf16.msra.mxu0 %v2557
        %4100 = vmatpush.bf16.msra.mxu0 %v2553
        %4101 = vmatpush.bf16.msra.mxu0 %v2549
        %4102 = vmatpush.bf16.msra.mxu0 %v2545
        %4103 = vmatmul.bf16.gmra.mxu0 %v819
        %v4104 = vpop.f32.mrf.mxu0
        %v4105 = vadd.f32 %v4092, %v4104
        %v4106 = vpop.f32.mrf.mxu0
        %4107 = vdwg.mxu0
        %4108 = vmatpush.bf16.msra.mxu0 %v2605
        %4109 = vmatpush.bf16.msra.mxu0 %v2601
        %4110 = vmatpush.bf16.msra.mxu0 %v2597
        %4111 = vmatpush.bf16.msra.mxu0 %v2593
        %4112 = vmatpush.bf16.msra.mxu0 %v2589
        %4113 = vmatpush.bf16.msra.mxu0 %v2585
        %4114 = vmatpush.bf16.msra.mxu0 %v2581
        %4115 = vmatpush.bf16.msra.mxu0 %v2577
        %4116 = vmatmul.bf16.gmra.mxu0 %v820
        %v4117 = vpop.f32.mrf.mxu0
        %v4118 = vadd.f32 %v4105, %v4117
        %v4119 = vpop.f32.mrf.mxu0
        %4120 = vdwg.mxu0
        %4121 = vmatpush.bf16.msra.mxu0 %v2637
        %4122 = vmatpush.bf16.msra.mxu0 %v2633
        %4123 = vmatpush.bf16.msra.mxu0 %v2629
        %4124 = vmatpush.bf16.msra.mxu0 %v2625
        %4125 = vmatpush.bf16.msra.mxu0 %v2621
        %4126 = vmatpush.bf16.msra.mxu0 %v2617
        %4127 = vmatpush.bf16.msra.mxu0 %v2613
        %4128 = vmatpush.bf16.msra.mxu0 %v2609
        %4129 = vmatmul.bf16.gmra.mxu0 %v821
        %v4130 = vpop.f32.mrf.mxu0
        %v4131 = vadd.f32 %v4118, %v4130
        %v4132 = vpop.f32.mrf.mxu0
        %4133 = vdwg.mxu0
        %4134 = vmatpush.bf16.msra.mxu0 %v2669
        %4135 = vmatpush.bf16.msra.mxu0 %v2665
        %4136 = vmatpush.bf16.msra.mxu0 %v2661
        %4137 = vmatpush.bf16.msra.mxu0 %v2657
        %4138 = vmatpush.bf16.msra.mxu0 %v2653
        %4139 = vmatpush.bf16.msra.mxu0 %v2649
        %4140 = vmatpush.bf16.msra.mxu0 %v2645
        %4141 = vmatpush.bf16.msra.mxu0 %v2641
        %4142 = vmatmul.bf16.gmra.mxu0 %v822
        %v4143 = vpop.f32.mrf.mxu0
        %v4144 = vadd.f32 %v4131, %v4143
        %v4145 = vpop.f32.mrf.mxu0
        %4146 = vdwg.mxu0
        %4147 = vmatpush.bf16.msra.mxu0 %v2701
        %4148 = vmatpush.bf16.msra.mxu0 %v2697
        %4149 = vmatpush.bf16.msra.mxu0 %v2693
        %4150 = vmatpush.bf16.msra.mxu0 %v2689
        %4151 = vmatpush.bf16.msra.mxu0 %v2685
        %4152 = vmatpush.bf16.msra.mxu0 %v2681
        %4153 = vmatpush.bf16.msra.mxu0 %v2677
        %4154 = vmatpush.bf16.msra.mxu0 %v2673
        %4155 = vmatmul.bf16.gmra.mxu0 %v823
        %v4156 = vpop.f32.mrf.mxu0
        %v4157 = vadd.f32 %v4144, %v4156
        %v4158 = vpop.f32.mrf.mxu0
        %4159 = vdwg.mxu0
        %4160 = vmatpush.bf16.msra.mxu0 %v2733
        %4161 = vmatpush.bf16.msra.mxu0 %v2729
        %4162 = vmatpush.bf16.msra.mxu0 %v2725
        %4163 = vmatpush.bf16.msra.mxu0 %v2721
        %4164 = vmatpush.bf16.msra.mxu0 %v2717
        %4165 = vmatpush.bf16.msra.mxu0 %v2713
        %4166 = vmatpush.bf16.msra.mxu0 %v2709
        %4167 = vmatpush.bf16.msra.mxu0 %v2705
        %4168 = vmatmul.bf16.gmra.mxu0 %v824
        %v4169 = vpop.f32.mrf.mxu0
        %v4170 = vadd.f32 %v4157, %v4169
        %v4171 = vpop.f32.mrf.mxu0
        %4172 = vdwg.mxu0
        %4173 = vmatpush.bf16.msra.mxu0 %v2765
        %4174 = vmatpush.bf16.msra.mxu0 %v2761
        %4175 = vmatpush.bf16.msra.mxu0 %v2757
        %4176 = vmatpush.bf16.msra.mxu0 %v2753
        %4177 = vmatpush.bf16.msra.mxu0 %v2749
        %4178 = vmatpush.bf16.msra.mxu0 %v2745
        %4179 = vmatpush.bf16.msra.mxu0 %v2741
        %4180 = vmatpush.bf16.msra.mxu0 %v2737
        %4181 = vmatmul.bf16.gmra.mxu0 %v825
        %v4182 = vpop.f32.mrf.mxu0
        %v4183 = vadd.f32 %v4170, %v4182
        %v4184 = vpop.f32.mrf.mxu0
        %4185 = vdwg.mxu0
        %4186 = vmatpush.bf16.msra.mxu0 %v2797
        %4187 = vmatpush.bf16.msra.mxu0 %v2793
        %4188 = vmatpush.bf16.msra.mxu0 %v2789
        %4189 = vmatpush.bf16.msra.mxu0 %v2785
        %4190 = vmatpush.bf16.msra.mxu0 %v2781
        %4191 = vmatpush.bf16.msra.mxu0 %v2777
        %4192 = vmatpush.bf16.msra.mxu0 %v2773
        %4193 = vmatpush.bf16.msra.mxu0 %v2769
        %4194 = vmatmul.bf16.gmra.mxu0 %v826
        %v4195 = vpop.f32.mrf.mxu0
        %v4196 = vadd.f32 %v4183, %v4195
        %v4197 = vpop.f32.mrf.mxu0
        %4198 = vdwg.mxu0
        %4199 = vmatpush.bf16.msra.mxu0 %v2829
        %4200 = vmatpush.bf16.msra.mxu0 %v2825
        %4201 = vmatpush.bf16.msra.mxu0 %v2821
        %4202 = vmatpush.bf16.msra.mxu0 %v2817
        %4203 = vmatpush.bf16.msra.mxu0 %v2813
        %4204 = vmatpush.bf16.msra.mxu0 %v2809
        %4205 = vmatpush.bf16.msra.mxu0 %v2805
        %4206 = vmatpush.bf16.msra.mxu0 %v2801
        %4207 = vmatmul.bf16.gmra.mxu0 %v827
        %v4208 = vpop.f32.mrf.mxu0
        %v4209 = vadd.f32 %v4196, %v4208
        %v4210 = vpop.f32.mrf.mxu0
        %4211 = vdwg.mxu0
        %4212 = vmatpush.bf16.msra.mxu0 %v2861
        %4213 = vmatpush.bf16.msra.mxu0 %v2857
        %4214 = vmatpush.bf16.msra.mxu0 %v2853
        %4215 = vmatpush.bf16.msra.mxu0 %v2849
        %4216 = vmatpush.bf16.msra.mxu0 %v2845
        %4217 = vmatpush.bf16.msra.mxu0 %v2841
        %4218 = vmatpush.bf16.msra.mxu0 %v2837
        %4219 = vmatpush.bf16.msra.mxu0 %v2833
        %4220 = vmatmul.bf16.gmra.mxu0 %v828
        %v4221 = vpop.f32.mrf.mxu0
        %v4222 = vadd.f32 %v4209, %v4221
        %v4223 = vpop.f32.mrf.mxu0
        %4224 = vdwg.mxu0
        %4225 = vmatpush.bf16.msra.mxu0 %v2893
        %4226 = vmatpush.bf16.msra.mxu0 %v2889
        %4227 = vmatpush.bf16.msra.mxu0 %v2885
        %4228 = vmatpush.bf16.msra.mxu0 %v2881
        %4229 = vmatpush.bf16.msra.mxu0 %v2877
        %4230 = vmatpush.bf16.msra.mxu0 %v2873
        %4231 = vmatpush.bf16.msra.mxu0 %v2869
        %4232 = vmatpush.bf16.msra.mxu0 %v2865
        %4233 = vmatmul.bf16.gmra.mxu0 %v829
        %v4234 = vpop.f32.mrf.mxu0
        %v4235 = vadd.f32 %v4222, %v4234
        %v4236 = vpop.f32.mrf.mxu0
        %4237 = vdwg.mxu0
        %v4238 = vadd.f32 %v266, %v3611
        %v4239 = vadd.f32 %v267, %v3819
        %v4240 = vadd.f32 %v268, %v4027
        %v4241 = vadd.f32 %v269, %v4235
        %4242 = vst [vmem:[#allocation2] sm:$0xff] %v4238
        %4243 = vst [vmem:[#allocation2 + $0x8] sm:$0xff] %v4239
        %4244 = vst [vmem:[#allocation2 + $0x10] sm:$0xff] %v4240
        %4245 = vst [vmem:[#allocation2 + $0x18] sm:$0xff] %v4241
        %p4246 = scmp.eq.s32.totalorder %s23, 7
        // Predicated region
        $region45: #{forward.12} parent=31 // pred_check
          %p4247 = pneg %p4246
        $region46: #{forward.12} parent=31 // pred_check_branch
          %4249 = sbr.rel (%p4247) target = $region48
        $region47: #{forward.12} parent=31 // pred_region
          %v4250 = vld [vmem:[#allocation2] sm:$0xff]
          %v4251 = vld [vmem:[#allocation2 + $0x8] sm:$0xff]
          %v4252 = vld [vmem:[#allocation2 + $0x10] sm:$0xff]
          %v4253 = vld [vmem:[#allocation2 + $0x18] sm:$0xff]
          %v4254 = vld [vmem:[#allocation5] sm:$0xf]
          %v4256 = vperm.slane %v4254, 0
          %v4257 = vperm.slane %v4254, 1
          %v4258 = vperm.slane %v4254, 2
          %v4259 = vperm.slane %v4254, 3
          %v4264 = vadd.f32 %v4250, %v4256
          %v4265 = vadd.f32 %v4251, %v4257
          %v4266 = vadd.f32 %v4252, %v4258
          %v4267 = vadd.f32 %v4253, %v4259
          %v4268 = vmax.f32 %v4264, 0.0
          %v4269 = vmax.f32 %v4265, 0.0
          %v4270 = vmax.f32 %v4266, 0.0
          %v4271 = vmax.f32 %v4267, 0.0
          %v4272 = vpack.c.bf16 %v4269, %v4268
          %v4273 = vpack.c.bf16 %v4271, %v4270
          %4274 = vst [vmem:[%s256] sm:$0xff] %v4272
          %4275 = vst [vmem:[%s256 + $0x8] sm:$0xff] %v4273
        $region48: #{forward.12} parent=31 // pred_fallthru
          _
        %s4276 = smul.u32 4, %s22
        %p4277 = scmp.lt.s32.totalorder %s4276, 3
        %s4278 = scalar_select %p4277, %s4276, 3
        %s4279 = smul.addr %s4278, 4
        %s4280 = scalar_lea.vmem %s3, %s4279
        // Predicated region
        $region49: #{forward.12} parent=31 // pred_check
          %p4281 = pneg %p128
        $region50: #{forward.12} parent=31 // pred_check_branch
          %4283 = sbr.rel (%p4281) target = $region52
        $region51: #{forward.12} parent=31 // pred_region
          %s4284 = smul.u32 4, %s22
        $region52: #{forward.12} parent=31 // pred_fallthru
          _
        // Predicated region
        $region53: #{forward.12} parent=31 // pred_check
          %p4285 = pneg %p128
        $region54: #{forward.12} parent=31 // pred_check_branch
          %4287 = sbr.rel (%p4285) target = $region56
        $region55: #{forward.12} parent=31 // pred_region
          %s4288 = smul.u32 4, %s22
          %p4289 = scmp.lt.s32.totalorder %s4288, 3
          %s4290 = scalar_select %p4289, %s4288, 3
          %s4291 = smul.addr %s4290, 4
          %s4292 = scalar_lea.vmem %s3, %s4291
        $region56: #{forward.12} parent=31 // pred_fallthru
          _
      $region32: #{forward.12} parent=5 // pred_fallthru
        _
      %p4293 = scmp.le.s32.totalorder 2, %s13
      // Predicated region
      $region57: #{forward.12} parent=5 // pred_check
        %p4294 = pneg %p4293
      $region58: #{forward.12} parent=5 // pred_check_branch
        %4296 = sbr.rel (%p4294) target = $region60
      $region59: #{forward.12} parent=5 // pred_region
        %s4297 = ssub.s32 %s13, 2
      $region60: #{forward.12} parent=5 // pred_fallthru
        _
    $region6: #{forward.12} parent=1 // loop_footer
      %s17 = sadd.s32 1, %s13
    $region7: #{forward.12} parent=1 // loop_footer_branch
      %12 = sbr.rel target = $region3
    $region8: #{forward.12} parent=1 // loop_exit
      _
    %4298 = vsyncpa [#allocation4], 1
    %s4299 = scalar_lea.sflag [#allocation4], 1
    %4300 = vsyncpa %s4299, 1
    %4301 = vsyncpa [#allocation6], 1

</llo_original>
